<compile_context>
chip_gen: v7x
topology: tpu7x:2x2x1
jax: 0.10.0
libtpu: 0.0.40
codegen_flags: <defaults>
</compile_context>

<pallas_src>
import jax
import jax.numpy as jnp
from jax import lax
from jax.experimental import pallas as pl
from jax.experimental.pallas import tpu as pltpu

# ----- mini-ELMo config (real 5.5B model uses 512/4096/2048-CNN; scaled down) ---
B, T, C = 2, 8, 8                     # batch, max_sen_len, chars per token
CHAR_VOCAB, CHAR_EMB = 64, 16
CONV_WIDTHS = (1, 2, 3)
CONV_FILTERS = (16, 16, 32)
N_FILTERS = sum(CONV_FILTERS)         # 64
D = 32                                # per-direction projection dim
H = 64                                # LSTM hidden size (pre-projection)
N_LAYERS = 2
EMB_DIM = 2 * D                       # ELMo output dim (fwd || bwd)
NTOK = T * B                          # 16 tokens, time-major (t, b)
KMAX = CONV_WIDTHS[-1] * CHAR_EMB     # padded conv K (48)
CELL_CLIP = 3.0
PROJ_CLIP = 3.0


# ------------------------------- fused kernel ----------------------------------
def elmo_kernel(ids_ref, emb_ref, cnn_w_ref, cnn_b_ref, hw_w_ref, hw_b_ref,
                proj_w_ref, proj_b_ref, lstm_w_ref, lstm_b_ref, lstm_wp_ref,
                mix_ref, out_ref, reps_ref):
    f32 = jnp.float32
    bf16 = jnp.bfloat16

    # ---- char embedding lookup fused as a one-hot matmul --------------------
    ids = ids_ref[...]                                            # (C*NTOK, 1) i32
    vocab = lax.broadcasted_iota(jnp.int32, (C * NTOK, CHAR_VOCAB), 1)
    onehot = jnp.where(ids == vocab, 1.0, 0.0).astype(bf16)       # (128, 64)
    emb = jnp.dot(onehot, emb_ref[...], preferred_element_type=f32)   # (128, 16)
    x2 = emb.astype(bf16)                                         # (C*NTOK, CE)
    x3 = x2.reshape(C, NTOK, CHAR_EMB)                            # char-pos leading

    # ---- multi-width char CNN: one matmul per width, ReLU, max over positions
    F1, F2, F3 = CONV_FILTERS

    def conv(width, c_lo, c_hi):
        if width == 1:
            win = x2                                              # (128, 16)
        else:
            win = jnp.concatenate(
                [x3[k:C - width + 1 + k] for k in range(width)], axis=-1
            ).reshape((C - width + 1) * NTOK, width * CHAR_EMB)
        w = cnn_w_ref[0:width * CHAR_EMB, c_lo:c_hi]              # bf16 slice
        a = jnp.dot(win, w, preferred_element_type=f32) + cnn_b_ref[:, c_lo:c_hi]
        a = jnp.maximum(a, 0.0)                                   # relu (f32)
        return jnp.max(a.reshape(C - width + 1, NTOK, c_hi - c_lo), axis=0)

    m1 = conv(1, 0, F1)
    m2 = conv(2, F1, F1 + F2)
    m3 = conv(3, F1 + F2, F1 + F2 + F3)
    tok = jnp.concatenate([m1, m2, m3], axis=-1)                  # (NTOK, 64) f32

    # ---- highway (packed [Wt|Wh] -> one matmul) + linear projection to D -----
    hwz = (jnp.dot(tok.astype(bf16), hw_w_ref[...],
                   preferred_element_type=f32) + hw_b_ref[...])   # (NTOK, 128)
    gate = jax.nn.sigmoid(hwz[:, 0:N_FILTERS])
    nonlin = jnp.maximum(hwz[:, N_FILTERS:2 * N_FILTERS], 0.0)
    tok = gate * tok + (1.0 - gate) * nonlin
    xproj = (jnp.dot(tok.astype(bf16), proj_w_ref[...],
                     preferred_element_type=f32) + proj_b_ref[...])  # (NTOK, D)

    # layer-0 representation = [x || x], directions packed side-by-side in lanes
    reps_ref[0, :, 0:D] = xproj
    reps_ref[0, :, D:2 * D] = xproj

    # ---- 2-layer biLSTM with projection; fwd & bwd fused per unrolled step ----
    for layer in range(N_LAYERS):
        wx_f = lstm_w_ref[layer, 0, 0:D, :]        # (D, 4H) bf16
        wh_f = lstm_w_ref[layer, 0, D:2 * D, :]
        wx_b = lstm_w_ref[layer, 1, 0:D, :]
        wh_b = lstm_w_ref[layer, 1, D:2 * D, :]
        wp_f = lstm_wp_ref[layer, 0]               # (H, D) bf16
        wp_b = lstm_wp_ref[layer, 1]

        # hoisted input projections (+ bias) for all timesteps of both directions
        xg_f = (jnp.dot(reps_ref[layer, :, 0:D].astype(bf16), wx_f,
                        preferred_element_type=f32) + lstm_b_ref[layer, 0])
        xg_b = (jnp.dot(reps_ref[layer, :, D:2 * D].astype(bf16), wx_b,
                        preferred_element_type=f32) + lstm_b_ref[layer, 1])

        h_f = jnp.zeros((B, D), f32)
        c_f = jnp.zeros((B, H), f32)
        h_b = jnp.zeros((B, D), f32)
        c_b = jnp.zeros((B, H), f32)

        for i in range(T):                         # static full unroll (T = 8)
            tf, tb = i, T - 1 - i
            g_f = xg_f[tf * B:(tf + 1) * B] + jnp.dot(
                h_f.astype(bf16), wh_f, preferred_element_type=f32)
            g_b = xg_b[tb * B:(tb + 1) * B] + jnp.dot(
                h_b.astype(bf16), wh_b, preferred_element_type=f32)
            # gate layout: [i | f | o] sigmoid block, [g] tanh block
            s_f = jax.nn.sigmoid(g_f[:, 0:3 * H])
            s_b = jax.nn.sigmoid(g_b[:, 0:3 * H])
            gg_f = jnp.tanh(g_f[:, 3 * H:4 * H])
            gg_b = jnp.tanh(g_b[:, 3 * H:4 * H])
            c_f = jnp.clip(s_f[:, H:2 * H] * c_f + s_f[:, 0:H] * gg_f,
                           -CELL_CLIP, CELL_CLIP)                 # cell_clip
            c_b = jnp.clip(s_b[:, H:2 * H] * c_b + s_b[:, 0:H] * gg_b,
                           -CELL_CLIP, CELL_CLIP)
            h_f = jnp.clip(
                jnp.dot((s_f[:, 2 * H:3 * H] * jnp.tanh(c_f)).astype(bf16),
                        wp_f, preferred_element_type=f32),
                -PROJ_CLIP, PROJ_CLIP)                            # proj_clip
            h_b = jnp.clip(
                jnp.dot((s_b[:, 2 * H:3 * H] * jnp.tanh(c_b)).astype(bf16),
                        wp_b, preferred_element_type=f32),
                -PROJ_CLIP, PROJ_CLIP)
            reps_ref[layer + 1, tf * B:(tf + 1) * B, 0:D] = h_f
            reps_ref[layer + 1, tb * B:(tb + 1) * B, D:2 * D] = h_b

    # ---- softmax scalar mix * gamma (residual added on the top layer) --------
    w0, w1, w2, gamma = mix_ref[0], mix_ref[1], mix_ref[2], mix_ref[3]
    r0 = reps_ref[0]
    r1 = reps_ref[1]
    r2 = reps_ref[2]
    out_ref[...] = gamma * (w0 * r0 + w1 * r1 + w2 * (r2 + r1))


# ------------------------------- module forward --------------------------------
def elmo_embedding_forward(char_ids, p):
    # ids ordered (char_pos, time, batch) -> row index c*(T*B) + t*B + b
    ids = char_ids.transpose(2, 1, 0).reshape(C * T * B, 1).astype(jnp.int32)
    w = jax.nn.softmax(p["mix_s"])
    mix = jnp.concatenate([w, p["mix_gamma"].reshape(1)]).astype(jnp.float32)

    bf = lambda a: a.astype(jnp.bfloat16)   # matmul operands bf16, f32 accumulation
    vspec = pl.BlockSpec(memory_space=pltpu.MemorySpace.VMEM)
    sspec = pl.BlockSpec(memory_space=pltpu.MemorySpace.SMEM)

    out = pl.pallas_call(
        elmo_kernel,
        out_shape=jax.ShapeDtypeStruct((NTOK, EMB_DIM), jnp.float32),
        in_specs=[vspec] * 11 + [sspec],
        out_specs=vspec,
        scratch_shapes=[pltpu.VMEM((N_LAYERS + 1, NTOK, EMB_DIM), jnp.float32)],
    )(ids, bf(p["char_emb"]), bf(p["cnn_w"]), p["cnn_b"],
      bf(p["hw_w"]), p["hw_b"], bf(p["proj_w"]), p["proj_b"],
      bf(p["lstm_w"]), p["lstm_b"], bf(p["lstm_wp"]), mix)

    # (T*B, 2D) time-major -> (batch, max_sen_len, emb_dim) as in the module
    return out.reshape(T, B, EMB_DIM).transpose(1, 0, 2)


# ------------------------------- parameter init ---------------------------------
def init_params(key):
    ks = jax.random.split(key, 14)
    nrm = lambda k, s, sc=0.1: sc * jax.random.normal(k, s, jnp.float32)
    F1, F2, F3 = CONV_FILTERS
    # conv weights flattened to (width*CHAR_EMB, F), K-padded to 48, packed along N
    w1 = nrm(ks[0], (1 * CHAR_EMB, F1))
    w2 = nrm(ks[1], (2 * CHAR_EMB, F2))
    w3 = nrm(ks[2], (3 * CHAR_EMB, F3))
    pad_k = lambda wgt: jnp.pad(wgt, ((0, KMAX - wgt.shape[0]), (0, 0)))
    cnn_w = jnp.concatenate([pad_k(w1), pad_k(w2), w3], axis=1)        # (48, 64)
    cnn_b = jnp.concatenate([nrm(ks[3], (1, F1)), nrm(ks[4], (1, F2)),
                             nrm(ks[5], (1, F3))], axis=1)             # (1, 64)
    hw_w = jnp.concatenate([nrm(ks[6], (N_FILTERS, N_FILTERS)),        # Wt | Wh
                            nrm(ks[7], (N_FILTERS, N_FILTERS))], axis=1)
    hw_b = nrm(ks[8], (1, 2 * N_FILTERS))
    return {
        "char_emb": nrm(ks[13], (CHAR_VOCAB, CHAR_EMB)),
        "cnn_w": cnn_w, "cnn_b": cnn_b,
        "hw_w": hw_w, "hw_b": hw_b,
        "proj_w": nrm(ks[9], (N_FILTERS, D)),
        "proj_b": nrm(ks[10], (1, D)),
        # rows [0:D] = W_x, rows [D:2D] = W_h; gate columns ordered [i|f|o|g]
        "lstm_w": nrm(ks[11], (N_LAYERS, 2, 2 * D, 4 * H)),
        "lstm_b": jnp.zeros((N_LAYERS, 2, 1, 4 * H), jnp.float32),
        "lstm_wp": nrm(ks[12], (N_LAYERS, 2, H, D)),
        "mix_s": jnp.array([0.2, -0.1, 0.3], jnp.float32),
        "mix_gamma": jnp.array(1.0, jnp.float32),
    }


if __name__ == "__main__":
    key = jax.random.PRNGKey(0)
    pkey, dkey = jax.random.split(key)
    params = init_params(pkey)
    # char_ids stands in for batch_to_ids(text): (batch, max_sen_len, max_chars)
    char_ids = jax.random.randint(dkey, (B, T, C), 0, CHAR_VOCAB, dtype=jnp.int32)
    out = jax.jit(elmo_embedding_forward)(char_ids, params)
    jax.block_until_ready(out)
    assert out.shape == (B, T, EMB_DIM) and out.dtype == jnp.float32
    print("KERNEL_OK")
</pallas_src>

<mosaic_0001>
module attributes {stable_mosaic.version = 11 : i64} {
  func.func @elmo_kernel(%arg0: memref<128x1xi32, #tpu.memory_space<vmem>>, %arg1: memref<64x16xbf16, #tpu.memory_space<vmem>>, %arg2: memref<48x64xbf16, #tpu.memory_space<vmem>>, %arg3: memref<1x64xf32, #tpu.memory_space<vmem>>, %arg4: memref<64x128xbf16, #tpu.memory_space<vmem>>, %arg5: memref<1x128xf32, #tpu.memory_space<vmem>>, %arg6: memref<64x32xbf16, #tpu.memory_space<vmem>>, %arg7: memref<1x32xf32, #tpu.memory_space<vmem>>, %arg8: memref<2x2x64x256xbf16, #tpu.memory_space<vmem>>, %arg9: memref<2x2x1x256xf32, #tpu.memory_space<vmem>>, %arg10: memref<2x2x64x32xbf16, #tpu.memory_space<vmem>>, %arg11: memref<4xf32, #tpu.memory_space<smem>>, %arg12: memref<16x64xf32, #tpu.memory_space<vmem>>, %arg13: memref<3x16x64xf32, #tpu.memory_space<vmem>>) attributes {dimension_semantics = [], scalar_prefetch = 0 : i64, scratch_operands = 1 : i64, tpu.core_type = #tpu.core_type<tc>} {
    %c0 = arith.constant 0 : index
    %c0_0 = arith.constant 0 : index
    %0 = vector.load %arg0[%c0, %c0_0] : memref<128x1xi32, #tpu.memory_space<vmem>>, vector<128x1xi32>
    %1 = tpu.iota {dimensions = array<i32: 1>} : vector<128x64xi32>
    %2 = vector.broadcast %0 : vector<128x1xi32> to vector<128x64xi32>
    %3 = arith.cmpi eq, %2, %1 : vector<128x64xi32>
    %cst = arith.constant 1.000000e+00 : f32
    %cst_1 = arith.constant 0.000000e+00 : f32
    %4 = vector.broadcast %cst : f32 to vector<128x64xf32>
    %5 = vector.broadcast %cst_1 : f32 to vector<128x64xf32>
    %6 = arith.select %3, %4, %5 : vector<128x64xi1>, vector<128x64xf32>
    %7 = arith.truncf %6 : vector<128x64xf32> to vector<128x64xbf16>
    %c0_2 = arith.constant 0 : index
    %c0_3 = arith.constant 0 : index
    %8 = vector.load %arg1[%c0_2, %c0_3] : memref<64x16xbf16, #tpu.memory_space<vmem>>, vector<64x16xbf16>
    %cst_4 = arith.constant dense<0.000000e+00> : vector<128x16xf32>
    %9 = tpu.matmul %7, %8, %cst_4 {dimension_numbers = #tpu.dot_dimension_numbers<[1], [0], [0], [1], [0, 0, 1, 1], [], []>} : vector<128x64xbf16>, vector<64x16xbf16>, vector<128x16xf32> -> vector<128x16xf32>
    %10 = arith.truncf %9 : vector<128x16xf32> to vector<128x16xbf16>
    %11 = vector.shape_cast %10 : vector<128x16xbf16> to vector<8x16x16xbf16>
    %c0_5 = arith.constant 0 : index
    %c0_6 = arith.constant 0 : index
    %12 = vector.load %arg2[%c0_5, %c0_6] : memref<48x64xbf16, #tpu.memory_space<vmem>>, vector<16x16xbf16>
    %cst_7 = arith.constant dense<0.000000e+00> : vector<128x16xf32>
    %13 = tpu.matmul %10, %12, %cst_7 {dimension_numbers = #tpu.dot_dimension_numbers<[1], [0], [0], [1], [0, 0, 1, 1], [], []>} : vector<128x16xbf16>, vector<16x16xbf16>, vector<128x16xf32> -> vector<128x16xf32>
    %c0_8 = arith.constant 0 : index
    %c0_9 = arith.constant 0 : index
    %14 = vector.load %arg3[%c0_8, %c0_9] : memref<1x64xf32, #tpu.memory_space<vmem>>, vector<1x16xf32>
    %15 = vector.broadcast %14 : vector<1x16xf32> to vector<128x16xf32>
    %16 = arith.addf %13, %15 : vector<128x16xf32>
    %cst_10 = arith.constant 0.000000e+00 : f32
    %17 = vector.broadcast %cst_10 : f32 to vector<128x16xf32>
    %18 = arith.maximumf %16, %17 : vector<128x16xf32>
    %19 = vector.shape_cast %18 : vector<128x16xf32> to vector<8x16x16xf32>
    %cst_11 = arith.constant dense<0xFF800000> : vector<16x16xf32>
    %20 = vector.multi_reduction <maximumf>, %19, %cst_11 [0] : vector<8x16x16xf32> to vector<16x16xf32>
    %21 = vector.extract_strided_slice %11 {offsets = [0, 0, 0], sizes = [7, 16, 16], strides = [1, 1, 1]} : vector<8x16x16xbf16> to vector<7x16x16xbf16>
    %22 = vector.extract_strided_slice %11 {offsets = [1, 0, 0], sizes = [7, 16, 16], strides = [1, 1, 1]} : vector<8x16x16xbf16> to vector<7x16x16xbf16>
    %23 = tpu.concatenate %21, %22 in 2 : vector<7x16x16xbf16>, vector<7x16x16xbf16> -> vector<7x16x32xbf16>
    %24 = vector.shape_cast %23 : vector<7x16x32xbf16> to vector<112x32xbf16>
    %c0_12 = arith.constant 0 : index
    %c16 = arith.constant 16 : index
    %25 = vector.load %arg2[%c0_12, %c16] : memref<48x64xbf16, #tpu.memory_space<vmem>>, vector<32x16xbf16>
    %cst_13 = arith.constant dense<0.000000e+00> : vector<112x16xf32>
    %26 = tpu.matmul %24, %25, %cst_13 {dimension_numbers = #tpu.dot_dimension_numbers<[1], [0], [0], [1], [0, 0, 1, 1], [], []>} : vector<112x32xbf16>, vector<32x16xbf16>, vector<112x16xf32> -> vector<112x16xf32>
    %c0_14 = arith.constant 0 : index
    %c16_15 = arith.constant 16 : index
    %27 = vector.load %arg3[%c0_14, %c16_15] : memref<1x64xf32, #tpu.memory_space<vmem>>, vector<1x16xf32>
    %28 = vector.broadcast %27 : vector<1x16xf32> to vector<112x16xf32>
    %29 = arith.addf %26, %28 : vector<112x16xf32>
    %cst_16 = arith.constant 0.000000e+00 : f32
    %30 = vector.broadcast %cst_16 : f32 to vector<112x16xf32>
    %31 = arith.maximumf %29, %30 : vector<112x16xf32>
    %32 = vector.shape_cast %31 : vector<112x16xf32> to vector<7x16x16xf32>
    %cst_17 = arith.constant dense<0xFF800000> : vector<16x16xf32>
    %33 = vector.multi_reduction <maximumf>, %32, %cst_17 [0] : vector<7x16x16xf32> to vector<16x16xf32>
    %34 = vector.extract_strided_slice %11 {offsets = [0, 0, 0], sizes = [6, 16, 16], strides = [1, 1, 1]} : vector<8x16x16xbf16> to vector<6x16x16xbf16>
    %35 = vector.extract_strided_slice %11 {offsets = [1, 0, 0], sizes = [6, 16, 16], strides = [1, 1, 1]} : vector<8x16x16xbf16> to vector<6x16x16xbf16>
    %36 = vector.extract_strided_slice %11 {offsets = [2, 0, 0], sizes = [6, 16, 16], strides = [1, 1, 1]} : vector<8x16x16xbf16> to vector<6x16x16xbf16>
    %37 = tpu.concatenate %34, %35, %36 in 2 : vector<6x16x16xbf16>, vector<6x16x16xbf16>, vector<6x16x16xbf16> -> vector<6x16x48xbf16>
    %38 = vector.shape_cast %37 : vector<6x16x48xbf16> to vector<96x48xbf16>
    %c0_18 = arith.constant 0 : index
    %c32 = arith.constant 32 : index
    %39 = vector.load %arg2[%c0_18, %c32] : memref<48x64xbf16, #tpu.memory_space<vmem>>, vector<48x32xbf16>
    %cst_19 = arith.constant dense<0.000000e+00> : vector<96x32xf32>
    %40 = tpu.matmul %38, %39, %cst_19 {dimension_numbers = #tpu.dot_dimension_numbers<[1], [0], [0], [1], [0, 0, 1, 1], [], []>} : vector<96x48xbf16>, vector<48x32xbf16>, vector<96x32xf32> -> vector<96x32xf32>
    %c0_20 = arith.constant 0 : index
    %c32_21 = arith.constant 32 : index
    %41 = vector.load %arg3[%c0_20, %c32_21] : memref<1x64xf32, #tpu.memory_space<vmem>>, vector<1x32xf32>
    %42 = vector.broadcast %41 : vector<1x32xf32> to vector<96x32xf32>
    %43 = arith.addf %40, %42 : vector<96x32xf32>
    %cst_22 = arith.constant 0.000000e+00 : f32
    %44 = vector.broadcast %cst_22 : f32 to vector<96x32xf32>
    %45 = arith.maximumf %43, %44 : vector<96x32xf32>
    %46 = vector.shape_cast %45 : vector<96x32xf32> to vector<6x16x32xf32>
    %cst_23 = arith.constant dense<0xFF800000> : vector<16x32xf32>
    %47 = vector.multi_reduction <maximumf>, %46, %cst_23 [0] : vector<6x16x32xf32> to vector<16x32xf32>
    %48 = tpu.concatenate %20, %33, %47 in 1 : vector<16x16xf32>, vector<16x16xf32>, vector<16x32xf32> -> vector<16x64xf32>
    %49 = arith.truncf %48 : vector<16x64xf32> to vector<16x64xbf16>
    %c0_24 = arith.constant 0 : index
    %c0_25 = arith.constant 0 : index
    %50 = vector.load %arg4[%c0_24, %c0_25] : memref<64x128xbf16, #tpu.memory_space<vmem>>, vector<64x128xbf16>
    %cst_26 = arith.constant dense<0.000000e+00> : vector<16x128xf32>
    %51 = tpu.matmul %49, %50, %cst_26 {dimension_numbers = #tpu.dot_dimension_numbers<[1], [0], [0], [1], [0, 0, 1, 1], [], []>} : vector<16x64xbf16>, vector<64x128xbf16>, vector<16x128xf32> -> vector<16x128xf32>
    %c0_27 = arith.constant 0 : index
    %c0_28 = arith.constant 0 : index
    %52 = vector.load %arg5[%c0_27, %c0_28] : memref<1x128xf32, #tpu.memory_space<vmem>>, vector<1x128xf32>
    %53 = vector.broadcast %52 : vector<1x128xf32> to vector<16x128xf32>
    %54 = arith.addf %51, %53 : vector<16x128xf32>
    %55 = vector.extract_strided_slice %54 {offsets = [0, 0], sizes = [16, 64], strides = [1, 1]} : vector<16x128xf32> to vector<16x64xf32>
    %56 = arith.negf %55 : vector<16x64xf32>
    %57 = math.exp %56 : vector<16x64xf32>
    %cst_29 = arith.constant 1.000000e+00 : f32
    %58 = vector.broadcast %cst_29 : f32 to vector<16x64xf32>
    %59 = arith.addf %58, %57 : vector<16x64xf32>
    %60 = arith.divf %58, %59 : vector<16x64xf32>
    %61 = vector.extract_strided_slice %54 {offsets = [0, 64], sizes = [16, 64], strides = [1, 1]} : vector<16x128xf32> to vector<16x64xf32>
    %cst_30 = arith.constant 0.000000e+00 : f32
    %62 = vector.broadcast %cst_30 : f32 to vector<16x64xf32>
    %63 = arith.maximumf %61, %62 : vector<16x64xf32>
    %64 = arith.mulf %60, %48 : vector<16x64xf32>
    %cst_31 = arith.constant 1.000000e+00 : f32
    %65 = vector.broadcast %cst_31 : f32 to vector<16x64xf32>
    %66 = arith.subf %65, %60 : vector<16x64xf32>
    %67 = arith.mulf %66, %63 : vector<16x64xf32>
    %68 = arith.addf %64, %67 : vector<16x64xf32>
    %69 = arith.truncf %68 : vector<16x64xf32> to vector<16x64xbf16>
    %c0_32 = arith.constant 0 : index
    %c0_33 = arith.constant 0 : index
    %70 = vector.load %arg6[%c0_32, %c0_33] : memref<64x32xbf16, #tpu.memory_space<vmem>>, vector<64x32xbf16>
    %cst_34 = arith.constant dense<0.000000e+00> : vector<16x32xf32>
    %71 = tpu.matmul %69, %70, %cst_34 {dimension_numbers = #tpu.dot_dimension_numbers<[1], [0], [0], [1], [0, 0, 1, 1], [], []>} : vector<16x64xbf16>, vector<64x32xbf16>, vector<16x32xf32> -> vector<16x32xf32>
    %c0_35 = arith.constant 0 : index
    %c0_36 = arith.constant 0 : index
    %72 = vector.load %arg7[%c0_35, %c0_36] : memref<1x32xf32, #tpu.memory_space<vmem>>, vector<1x32xf32>
    %73 = vector.broadcast %72 : vector<1x32xf32> to vector<16x32xf32>
    %74 = arith.addf %71, %73 : vector<16x32xf32>
    %c0_37 = arith.constant 0 : index
    %c0_38 = arith.constant 0 : index
    %c0_39 = arith.constant 0 : index
    %75 = vector.load %arg13[%c0_37, %c0_38, %c0_39] : memref<3x16x64xf32, #tpu.memory_space<vmem>>, vector<1x16x32xf32>
    %76 = vector.shape_cast %75 : vector<1x16x32xf32> to vector<16x32xf32>
    %77 = vector.shape_cast %74 : vector<16x32xf32> to vector<1x16x32xf32>
    tpu.vector_store %arg13[%c0_37, %c0_38, %c0_39], %77 {strides = array<i32>} : memref<3x16x64xf32, #tpu.memory_space<vmem>>, vector<1x16x32xf32>,
    %c0_40 = arith.constant 0 : index
    %c0_41 = arith.constant 0 : index
    %c32_42 = arith.constant 32 : index
    %78 = vector.load %arg13[%c0_40, %c0_41, %c32_42] : memref<3x16x64xf32, #tpu.memory_space<vmem>>, vector<1x16x32xf32>
    %79 = vector.shape_cast %78 : vector<1x16x32xf32> to vector<16x32xf32>
    %80 = vector.shape_cast %74 : vector<16x32xf32> to vector<1x16x32xf32>
    tpu.vector_store %arg13[%c0_40, %c0_41, %c32_42], %80 {strides = array<i32>} : memref<3x16x64xf32, #tpu.memory_space<vmem>>, vector<1x16x32xf32>,
    %c0_43 = arith.constant 0 : index
    %c0_44 = arith.constant 0 : index
    %c0_45 = arith.constant 0 : index
    %c0_46 = arith.constant 0 : index
    %81 = vector.load %arg8[%c0_43, %c0_44, %c0_45, %c0_46] : memref<2x2x64x256xbf16, #tpu.memory_space<vmem>>, vector<1x1x32x256xbf16>
    %82 = vector.shape_cast %81 : vector<1x1x32x256xbf16> to vector<32x256xbf16>
    %c0_47 = arith.constant 0 : index
    %c0_48 = arith.constant 0 : index
    %c32_49 = arith.constant 32 : index
    %c0_50 = arith.constant 0 : index
    %83 = vector.load %arg8[%c0_47, %c0_48, %c32_49, %c0_50] : memref<2x2x64x256xbf16, #tpu.memory_space<vmem>>, vector<1x1x32x256xbf16>
    %84 = vector.shape_cast %83 : vector<1x1x32x256xbf16> to vector<32x256xbf16>
    %c0_51 = arith.constant 0 : index
    %c1 = arith.constant 1 : index
    %c0_52 = arith.constant 0 : index
    %c0_53 = arith.constant 0 : index
    %85 = vector.load %arg8[%c0_51, %c1, %c0_52, %c0_53] : memref<2x2x64x256xbf16, #tpu.memory_space<vmem>>, vector<1x1x32x256xbf16>
    %86 = vector.shape_cast %85 : vector<1x1x32x256xbf16> to vector<32x256xbf16>
    %c0_54 = arith.constant 0 : index
    %c1_55 = arith.constant 1 : index
    %c32_56 = arith.constant 32 : index
    %c0_57 = arith.constant 0 : index
    %87 = vector.load %arg8[%c0_54, %c1_55, %c32_56, %c0_57] : memref<2x2x64x256xbf16, #tpu.memory_space<vmem>>, vector<1x1x32x256xbf16>
    %88 = vector.shape_cast %87 : vector<1x1x32x256xbf16> to vector<32x256xbf16>
    %c0_58 = arith.constant 0 : index
    %c0_59 = arith.constant 0 : index
    %c0_60 = arith.constant 0 : index
    %c0_61 = arith.constant 0 : index
    %89 = vector.load %arg10[%c0_58, %c0_59, %c0_60, %c0_61] : memref<2x2x64x32xbf16, #tpu.memory_space<vmem>>, vector<1x1x64x32xbf16>
    %90 = vector.shape_cast %89 : vector<1x1x64x32xbf16> to vector<64x32xbf16>
    %c0_62 = arith.constant 0 : index
    %c1_63 = arith.constant 1 : index
    %c0_64 = arith.constant 0 : index
    %c0_65 = arith.constant 0 : index
    %91 = vector.load %arg10[%c0_62, %c1_63, %c0_64, %c0_65] : memref<2x2x64x32xbf16, #tpu.memory_space<vmem>>, vector<1x1x64x32xbf16>
    %92 = vector.shape_cast %91 : vector<1x1x64x32xbf16> to vector<64x32xbf16>
    %c0_66 = arith.constant 0 : index
    %c0_67 = arith.constant 0 : index
    %c0_68 = arith.constant 0 : index
    %93 = vector.load %arg13[%c0_66, %c0_67, %c0_68] : memref<3x16x64xf32, #tpu.memory_space<vmem>>, vector<1x16x32xf32>
    %94 = vector.shape_cast %93 : vector<1x16x32xf32> to vector<16x32xf32>
    %95 = arith.truncf %94 : vector<16x32xf32> to vector<16x32xbf16>
    %cst_69 = arith.constant dense<0.000000e+00> : vector<16x256xf32>
    %96 = tpu.matmul %95, %82, %cst_69 {dimension_numbers = #tpu.dot_dimension_numbers<[1], [0], [0], [1], [0, 0, 1, 1], [], []>} : vector<16x32xbf16>, vector<32x256xbf16>, vector<16x256xf32> -> vector<16x256xf32>
    %c0_70 = arith.constant 0 : index
    %c0_71 = arith.constant 0 : index
    %c0_72 = arith.constant 0 : index
    %c0_73 = arith.constant 0 : index
    %97 = vector.load %arg9[%c0_70, %c0_71, %c0_72, %c0_73] : memref<2x2x1x256xf32, #tpu.memory_space<vmem>>, vector<1x1x1x256xf32>
    %98 = vector.shape_cast %97 : vector<1x1x1x256xf32> to vector<1x256xf32>
    %99 = vector.broadcast %98 : vector<1x256xf32> to vector<16x256xf32>
    %100 = arith.addf %96, %99 : vector<16x256xf32>
    %c0_74 = arith.constant 0 : index
    %c0_75 = arith.constant 0 : index
    %c32_76 = arith.constant 32 : index
    %101 = vector.load %arg13[%c0_74, %c0_75, %c32_76] : memref<3x16x64xf32, #tpu.memory_space<vmem>>, vector<1x16x32xf32>
    %102 = vector.shape_cast %101 : vector<1x16x32xf32> to vector<16x32xf32>
    %103 = arith.truncf %102 : vector<16x32xf32> to vector<16x32xbf16>
    %cst_77 = arith.constant dense<0.000000e+00> : vector<16x256xf32>
    %104 = tpu.matmul %103, %86, %cst_77 {dimension_numbers = #tpu.dot_dimension_numbers<[1], [0], [0], [1], [0, 0, 1, 1], [], []>} : vector<16x32xbf16>, vector<32x256xbf16>, vector<16x256xf32> -> vector<16x256xf32>
    %c0_78 = arith.constant 0 : index
    %c1_79 = arith.constant 1 : index
    %c0_80 = arith.constant 0 : index
    %c0_81 = arith.constant 0 : index
    %105 = vector.load %arg9[%c0_78, %c1_79, %c0_80, %c0_81] : memref<2x2x1x256xf32, #tpu.memory_space<vmem>>, vector<1x1x1x256xf32>
    %106 = vector.shape_cast %105 : vector<1x1x1x256xf32> to vector<1x256xf32>
    %107 = vector.broadcast %106 : vector<1x256xf32> to vector<16x256xf32>
    %108 = arith.addf %104, %107 : vector<16x256xf32>
    %cst_82 = arith.constant 0.000000e+00 : f32
    %109 = vector.broadcast %cst_82 : f32 to vector<2x32xf32>
    %cst_83 = arith.constant 0.000000e+00 : f32
    %110 = vector.broadcast %cst_83 : f32 to vector<2x64xf32>
    %cst_84 = arith.constant 0.000000e+00 : f32
    %111 = vector.broadcast %cst_84 : f32 to vector<2x32xf32>
    %cst_85 = arith.constant 0.000000e+00 : f32
    %112 = vector.broadcast %cst_85 : f32 to vector<2x64xf32>
    %113 = vector.extract_strided_slice %100 {offsets = [0, 0], sizes = [2, 256], strides = [1, 1]} : vector<16x256xf32> to vector<2x256xf32>
    %114 = arith.truncf %109 : vector<2x32xf32> to vector<2x32xbf16>
    %cst_86 = arith.constant dense<0.000000e+00> : vector<2x256xf32>
    %115 = tpu.matmul %114, %84, %cst_86 {dimension_numbers = #tpu.dot_dimension_numbers<[1], [0], [0], [1], [0, 0, 1, 1], [], []>} : vector<2x32xbf16>, vector<32x256xbf16>, vector<2x256xf32> -> vector<2x256xf32>
    %116 = arith.addf %113, %115 : vector<2x256xf32>
    %117 = vector.extract_strided_slice %108 {offsets = [14, 0], sizes = [2, 256], strides = [1, 1]} : vector<16x256xf32> to vector<2x256xf32>
    %118 = arith.truncf %111 : vector<2x32xf32> to vector<2x32xbf16>
    %cst_87 = arith.constant dense<0.000000e+00> : vector<2x256xf32>
    %119 = tpu.matmul %118, %88, %cst_87 {dimension_numbers = #tpu.dot_dimension_numbers<[1], [0], [0], [1], [0, 0, 1, 1], [], []>} : vector<2x32xbf16>, vector<32x256xbf16>, vector<2x256xf32> -> vector<2x256xf32>
    %120 = arith.addf %117, %119 : vector<2x256xf32>
    %121 = vector.extract_strided_slice %116 {offsets = [0, 0], sizes = [2, 192], strides = [1, 1]} : vector<2x256xf32> to vector<2x192xf32>
    %122 = arith.negf %121 : vector<2x192xf32>
    %123 = math.exp %122 : vector<2x192xf32>
    %cst_88 = arith.constant 1.000000e+00 : f32
    %124 = vector.broadcast %cst_88 : f32 to vector<2x192xf32>
    %125 = arith.addf %124, %123 : vector<2x192xf32>
    %126 = arith.divf %124, %125 : vector<2x192xf32>
    %127 = vector.extract_strided_slice %120 {offsets = [0, 0], sizes = [2, 192], strides = [1, 1]} : vector<2x256xf32> to vector<2x192xf32>
    %128 = arith.negf %127 : vector<2x192xf32>
    %129 = math.exp %128 : vector<2x192xf32>
    %cst_89 = arith.constant 1.000000e+00 : f32
    %130 = vector.broadcast %cst_89 : f32 to vector<2x192xf32>
    %131 = arith.addf %130, %129 : vector<2x192xf32>
    %132 = arith.divf %130, %131 : vector<2x192xf32>
    %133 = vector.extract_strided_slice %116 {offsets = [0, 192], sizes = [2, 64], strides = [1, 1]} : vector<2x256xf32> to vector<2x64xf32>
    %134 = math.tanh %133 : vector<2x64xf32>
    %135 = vector.extract_strided_slice %120 {offsets = [0, 192], sizes = [2, 64], strides = [1, 1]} : vector<2x256xf32> to vector<2x64xf32>
    %136 = math.tanh %135 : vector<2x64xf32>
    %137 = vector.extract_strided_slice %126 {offsets = [0, 64], sizes = [2, 64], strides = [1, 1]} : vector<2x192xf32> to vector<2x64xf32>
    %138 = arith.mulf %137, %110 : vector<2x64xf32>
    %139 = vector.extract_strided_slice %126 {offsets = [0, 0], sizes = [2, 64], strides = [1, 1]} : vector<2x192xf32> to vector<2x64xf32>
    %140 = arith.mulf %139, %134 : vector<2x64xf32>
    %141 = arith.addf %138, %140 : vector<2x64xf32>
    %cst_90 = arith.constant -3.000000e+00 : f32
    %cst_91 = arith.constant 3.000000e+00 : f32
    %142 = vector.broadcast %cst_90 : f32 to vector<2x64xf32>
    %143 = arith.maximumf %142, %141 : vector<2x64xf32>
    %144 = vector.broadcast %cst_91 : f32 to vector<2x64xf32>
    %145 = arith.minimumf %144, %143 : vector<2x64xf32>
    %146 = vector.extract_strided_slice %132 {offsets = [0, 64], sizes = [2, 64], strides = [1, 1]} : vector<2x192xf32> to vector<2x64xf32>
    %147 = arith.mulf %146, %112 : vector<2x64xf32>
    %148 = vector.extract_strided_slice %132 {offsets = [0, 0], sizes = [2, 64], strides = [1, 1]} : vector<2x192xf32> to vector<2x64xf32>
    %149 = arith.mulf %148, %136 : vector<2x64xf32>
    %150 = arith.addf %147, %149 : vector<2x64xf32>
    %cst_92 = arith.constant -3.000000e+00 : f32
    %cst_93 = arith.constant 3.000000e+00 : f32
    %151 = vector.broadcast %cst_92 : f32 to vector<2x64xf32>
    %152 = arith.maximumf %151, %150 : vector<2x64xf32>
    %153 = vector.broadcast %cst_93 : f32 to vector<2x64xf32>
    %154 = arith.minimumf %153, %152 : vector<2x64xf32>
    %155 = vector.extract_strided_slice %126 {offsets = [0, 128], sizes = [2, 64], strides = [1, 1]} : vector<2x192xf32> to vector<2x64xf32>
    %156 = math.tanh %145 : vector<2x64xf32>
    %157 = arith.mulf %155, %156 : vector<2x64xf32>
    %158 = arith.truncf %157 : vector<2x64xf32> to vector<2x64xbf16>
    %cst_94 = arith.constant dense<0.000000e+00> : vector<2x32xf32>
    %159 = tpu.matmul %158, %90, %cst_94 {dimension_numbers = #tpu.dot_dimension_numbers<[1], [0], [0], [1], [0, 0, 1, 1], [], []>} : vector<2x64xbf16>, vector<64x32xbf16>, vector<2x32xf32> -> vector<2x32xf32>
    %cst_95 = arith.constant -3.000000e+00 : f32
    %cst_96 = arith.constant 3.000000e+00 : f32
    %160 = vector.broadcast %cst_95 : f32 to vector<2x32xf32>
    %161 = arith.maximumf %160, %159 : vector<2x32xf32>
    %162 = vector.broadcast %cst_96 : f32 to vector<2x32xf32>
    %163 = arith.minimumf %162, %161 : vector<2x32xf32>
    %164 = vector.extract_strided_slice %132 {offsets = [0, 128], sizes = [2, 64], strides = [1, 1]} : vector<2x192xf32> to vector<2x64xf32>
    %165 = math.tanh %154 : vector<2x64xf32>
    %166 = arith.mulf %164, %165 : vector<2x64xf32>
    %167 = arith.truncf %166 : vector<2x64xf32> to vector<2x64xbf16>
    %cst_97 = arith.constant dense<0.000000e+00> : vector<2x32xf32>
    %168 = tpu.matmul %167, %92, %cst_97 {dimension_numbers = #tpu.dot_dimension_numbers<[1], [0], [0], [1], [0, 0, 1, 1], [], []>} : vector<2x64xbf16>, vector<64x32xbf16>, vector<2x32xf32> -> vector<2x32xf32>
    %cst_98 = arith.constant -3.000000e+00 : f32
    %cst_99 = arith.constant 3.000000e+00 : f32
    %169 = vector.broadcast %cst_98 : f32 to vector<2x32xf32>
    %170 = arith.maximumf %169, %168 : vector<2x32xf32>
    %171 = vector.broadcast %cst_99 : f32 to vector<2x32xf32>
    %172 = arith.minimumf %171, %170 : vector<2x32xf32>
    %c1_100 = arith.constant 1 : index
    %c0_101 = arith.constant 0 : index
    %c0_102 = arith.constant 0 : index
    %173 = vector.load %arg13[%c1_100, %c0_101, %c0_102] : memref<3x16x64xf32, #tpu.memory_space<vmem>>, vector<1x2x32xf32>
    %174 = vector.shape_cast %173 : vector<1x2x32xf32> to vector<2x32xf32>
    %175 = vector.shape_cast %163 : vector<2x32xf32> to vector<1x2x32xf32>
    tpu.vector_store %arg13[%c1_100, %c0_101, %c0_102], %175 {strides = array<i32>} : memref<3x16x64xf32, #tpu.memory_space<vmem>>, vector<1x2x32xf32>,
    %c1_103 = arith.constant 1 : index
    %c14 = arith.constant 14 : index
    %c32_104 = arith.constant 32 : index
    %176 = vector.load %arg13[%c1_103, %c14, %c32_104] : memref<3x16x64xf32, #tpu.memory_space<vmem>>, vector<1x2x32xf32>
    %177 = vector.shape_cast %176 : vector<1x2x32xf32> to vector<2x32xf32>
    %178 = vector.shape_cast %172 : vector<2x32xf32> to vector<1x2x32xf32>
    tpu.vector_store %arg13[%c1_103, %c14, %c32_104], %178 {strides = array<i32>} : memref<3x16x64xf32, #tpu.memory_space<vmem>>, vector<1x2x32xf32>,
    %179 = vector.extract_strided_slice %100 {offsets = [2, 0], sizes = [2, 256], strides = [1, 1]} : vector<16x256xf32> to vector<2x256xf32>
    %180 = arith.truncf %163 : vector<2x32xf32> to vector<2x32xbf16>
    %cst_105 = arith.constant dense<0.000000e+00> : vector<2x256xf32>
    %181 = tpu.matmul %180, %84, %cst_105 {dimension_numbers = #tpu.dot_dimension_numbers<[1], [0], [0], [1], [0, 0, 1, 1], [], []>} : vector<2x32xbf16>, vector<32x256xbf16>, vector<2x256xf32> -> vector<2x256xf32>
    %182 = arith.addf %179, %181 : vector<2x256xf32>
    %183 = vector.extract_strided_slice %108 {offsets = [12, 0], sizes = [2, 256], strides = [1, 1]} : vector<16x256xf32> to vector<2x256xf32>
    %184 = arith.truncf %172 : vector<2x32xf32> to vector<2x32xbf16>
    %cst_106 = arith.constant dense<0.000000e+00> : vector<2x256xf32>
    %185 = tpu.matmul %184, %88, %cst_106 {dimension_numbers = #tpu.dot_dimension_numbers<[1], [0], [0], [1], [0, 0, 1, 1], [], []>} : vector<2x32xbf16>, vector<32x256xbf16>, vector<2x256xf32> -> vector<2x256xf32>
    %186 = arith.addf %183, %185 : vector<2x256xf32>
    %187 = vector.extract_strided_slice %182 {offsets = [0, 0], sizes = [2, 192], strides = [1, 1]} : vector<2x256xf32> to vector<2x192xf32>
    %188 = arith.negf %187 : vector<2x192xf32>
    %189 = math.exp %188 : vector<2x192xf32>
    %cst_107 = arith.constant 1.000000e+00 : f32
    %190 = vector.broadcast %cst_107 : f32 to vector<2x192xf32>
    %191 = arith.addf %190, %189 : vector<2x192xf32>
    %192 = arith.divf %190, %191 : vector<2x192xf32>
    %193 = vector.extract_strided_slice %186 {offsets = [0, 0], sizes = [2, 192], strides = [1, 1]} : vector<2x256xf32> to vector<2x192xf32>
    %194 = arith.negf %193 : vector<2x192xf32>
    %195 = math.exp %194 : vector<2x192xf32>
    %cst_108 = arith.constant 1.000000e+00 : f32
    %196 = vector.broadcast %cst_108 : f32 to vector<2x192xf32>
    %197 = arith.addf %196, %195 : vector<2x192xf32>
    %198 = arith.divf %196, %197 : vector<2x192xf32>
    %199 = vector.extract_strided_slice %182 {offsets = [0, 192], sizes = [2, 64], strides = [1, 1]} : vector<2x256xf32> to vector<2x64xf32>
    %200 = math.tanh %199 : vector<2x64xf32>
    %201 = vector.extract_strided_slice %186 {offsets = [0, 192], sizes = [2, 64], strides = [1, 1]} : vector<2x256xf32> to vector<2x64xf32>
    %202 = math.tanh %201 : vector<2x64xf32>
    %203 = vector.extract_strided_slice %192 {offsets = [0, 64], sizes = [2, 64], strides = [1, 1]} : vector<2x192xf32> to vector<2x64xf32>
    %204 = arith.mulf %203, %145 : vector<2x64xf32>
    %205 = vector.extract_strided_slice %192 {offsets = [0, 0], sizes = [2, 64], strides = [1, 1]} : vector<2x192xf32> to vector<2x64xf32>
    %206 = arith.mulf %205, %200 : vector<2x64xf32>
    %207 = arith.addf %204, %206 : vector<2x64xf32>
    %cst_109 = arith.constant -3.000000e+00 : f32
    %cst_110 = arith.constant 3.000000e+00 : f32
    %208 = vector.broadcast %cst_109 : f32 to vector<2x64xf32>
    %209 = arith.maximumf %208, %207 : vector<2x64xf32>
    %210 = vector.broadcast %cst_110 : f32 to vector<2x64xf32>
    %211 = arith.minimumf %210, %209 : vector<2x64xf32>
    %212 = vector.extract_strided_slice %198 {offsets = [0, 64], sizes = [2, 64], strides = [1, 1]} : vector<2x192xf32> to vector<2x64xf32>
    %213 = arith.mulf %212, %154 : vector<2x64xf32>
    %214 = vector.extract_strided_slice %198 {offsets = [0, 0], sizes = [2, 64], strides = [1, 1]} : vector<2x192xf32> to vector<2x64xf32>
    %215 = arith.mulf %214, %202 : vector<2x64xf32>
    %216 = arith.addf %213, %215 : vector<2x64xf32>
    %cst_111 = arith.constant -3.000000e+00 : f32
    %cst_112 = arith.constant 3.000000e+00 : f32
    %217 = vector.broadcast %cst_111 : f32 to vector<2x64xf32>
    %218 = arith.maximumf %217, %216 : vector<2x64xf32>
    %219 = vector.broadcast %cst_112 : f32 to vector<2x64xf32>
    %220 = arith.minimumf %219, %218 : vector<2x64xf32>
    %221 = vector.extract_strided_slice %192 {offsets = [0, 128], sizes = [2, 64], strides = [1, 1]} : vector<2x192xf32> to vector<2x64xf32>
    %222 = math.tanh %211 : vector<2x64xf32>
    %223 = arith.mulf %221, %222 : vector<2x64xf32>
    %224 = arith.truncf %223 : vector<2x64xf32> to vector<2x64xbf16>
    %cst_113 = arith.constant dense<0.000000e+00> : vector<2x32xf32>
    %225 = tpu.matmul %224, %90, %cst_113 {dimension_numbers = #tpu.dot_dimension_numbers<[1], [0], [0], [1], [0, 0, 1, 1], [], []>} : vector<2x64xbf16>, vector<64x32xbf16>, vector<2x32xf32> -> vector<2x32xf32>
    %cst_114 = arith.constant -3.000000e+00 : f32
    %cst_115 = arith.constant 3.000000e+00 : f32
    %226 = vector.broadcast %cst_114 : f32 to vector<2x32xf32>
    %227 = arith.maximumf %226, %225 : vector<2x32xf32>
    %228 = vector.broadcast %cst_115 : f32 to vector<2x32xf32>
    %229 = arith.minimumf %228, %227 : vector<2x32xf32>
    %230 = vector.extract_strided_slice %198 {offsets = [0, 128], sizes = [2, 64], strides = [1, 1]} : vector<2x192xf32> to vector<2x64xf32>
    %231 = math.tanh %220 : vector<2x64xf32>
    %232 = arith.mulf %230, %231 : vector<2x64xf32>
    %233 = arith.truncf %232 : vector<2x64xf32> to vector<2x64xbf16>
    %cst_116 = arith.constant dense<0.000000e+00> : vector<2x32xf32>
    %234 = tpu.matmul %233, %92, %cst_116 {dimension_numbers = #tpu.dot_dimension_numbers<[1], [0], [0], [1], [0, 0, 1, 1], [], []>} : vector<2x64xbf16>, vector<64x32xbf16>, vector<2x32xf32> -> vector<2x32xf32>
    %cst_117 = arith.constant -3.000000e+00 : f32
    %cst_118 = arith.constant 3.000000e+00 : f32
    %235 = vector.broadcast %cst_117 : f32 to vector<2x32xf32>
    %236 = arith.maximumf %235, %234 : vector<2x32xf32>
    %237 = vector.broadcast %cst_118 : f32 to vector<2x32xf32>
    %238 = arith.minimumf %237, %236 : vector<2x32xf32>
    %c1_119 = arith.constant 1 : index
    %c2 = arith.constant 2 : index
    %c0_120 = arith.constant 0 : index
    %239 = vector.load %arg13[%c1_119, %c2, %c0_120] : memref<3x16x64xf32, #tpu.memory_space<vmem>>, vector<1x2x32xf32>
    %240 = vector.shape_cast %239 : vector<1x2x32xf32> to vector<2x32xf32>
    %241 = vector.shape_cast %229 : vector<2x32xf32> to vector<1x2x32xf32>
    tpu.vector_store %arg13[%c1_119, %c2, %c0_120], %241 {strides = array<i32>} : memref<3x16x64xf32, #tpu.memory_space<vmem>>, vector<1x2x32xf32>,
    %c1_121 = arith.constant 1 : index
    %c12 = arith.constant 12 : index
    %c32_122 = arith.constant 32 : index
    %242 = vector.load %arg13[%c1_121, %c12, %c32_122] : memref<3x16x64xf32, #tpu.memory_space<vmem>>, vector<1x2x32xf32>
    %243 = vector.shape_cast %242 : vector<1x2x32xf32> to vector<2x32xf32>
    %244 = vector.shape_cast %238 : vector<2x32xf32> to vector<1x2x32xf32>
    tpu.vector_store %arg13[%c1_121, %c12, %c32_122], %244 {strides = array<i32>} : memref<3x16x64xf32, #tpu.memory_space<vmem>>, vector<1x2x32xf32>,
    %245 = vector.extract_strided_slice %100 {offsets = [4, 0], sizes = [2, 256], strides = [1, 1]} : vector<16x256xf32> to vector<2x256xf32>
    %246 = arith.truncf %229 : vector<2x32xf32> to vector<2x32xbf16>
    %cst_123 = arith.constant dense<0.000000e+00> : vector<2x256xf32>
    %247 = tpu.matmul %246, %84, %cst_123 {dimension_numbers = #tpu.dot_dimension_numbers<[1], [0], [0], [1], [0, 0, 1, 1], [], []>} : vector<2x32xbf16>, vector<32x256xbf16>, vector<2x256xf32> -> vector<2x256xf32>
    %248 = arith.addf %245, %247 : vector<2x256xf32>
    %249 = vector.extract_strided_slice %108 {offsets = [10, 0], sizes = [2, 256], strides = [1, 1]} : vector<16x256xf32> to vector<2x256xf32>
    %250 = arith.truncf %238 : vector<2x32xf32> to vector<2x32xbf16>
    %cst_124 = arith.constant dense<0.000000e+00> : vector<2x256xf32>
    %251 = tpu.matmul %250, %88, %cst_124 {dimension_numbers = #tpu.dot_dimension_numbers<[1], [0], [0], [1], [0, 0, 1, 1], [], []>} : vector<2x32xbf16>, vector<32x256xbf16>, vector<2x256xf32> -> vector<2x256xf32>
    %252 = arith.addf %249, %251 : vector<2x256xf32>
    %253 = vector.extract_strided_slice %248 {offsets = [0, 0], sizes = [2, 192], strides = [1, 1]} : vector<2x256xf32> to vector<2x192xf32>
    %254 = arith.negf %253 : vector<2x192xf32>
    %255 = math.exp %254 : vector<2x192xf32>
    %cst_125 = arith.constant 1.000000e+00 : f32
    %256 = vector.broadcast %cst_125 : f32 to vector<2x192xf32>
    %257 = arith.addf %256, %255 : vector<2x192xf32>
    %258 = arith.divf %256, %257 : vector<2x192xf32>
    %259 = vector.extract_strided_slice %252 {offsets = [0, 0], sizes = [2, 192], strides = [1, 1]} : vector<2x256xf32> to vector<2x192xf32>
    %260 = arith.negf %259 : vector<2x192xf32>
    %261 = math.exp %260 : vector<2x192xf32>
    %cst_126 = arith.constant 1.000000e+00 : f32
    %262 = vector.broadcast %cst_126 : f32 to vector<2x192xf32>
    %263 = arith.addf %262, %261 : vector<2x192xf32>
    %264 = arith.divf %262, %263 : vector<2x192xf32>
    %265 = vector.extract_strided_slice %248 {offsets = [0, 192], sizes = [2, 64], strides = [1, 1]} : vector<2x256xf32> to vector<2x64xf32>
    %266 = math.tanh %265 : vector<2x64xf32>
    %267 = vector.extract_strided_slice %252 {offsets = [0, 192], sizes = [2, 64], strides = [1, 1]} : vector<2x256xf32> to vector<2x64xf32>
    %268 = math.tanh %267 : vector<2x64xf32>
    %269 = vector.extract_strided_slice %258 {offsets = [0, 64], sizes = [2, 64], strides = [1, 1]} : vector<2x192xf32> to vector<2x64xf32>
    %270 = arith.mulf %269, %211 : vector<2x64xf32>
    %271 = vector.extract_strided_slice %258 {offsets = [0, 0], sizes = [2, 64], strides = [1, 1]} : vector<2x192xf32> to vector<2x64xf32>
    %272 = arith.mulf %271, %266 : vector<2x64xf32>
    %273 = arith.addf %270, %272 : vector<2x64xf32>
    %cst_127 = arith.constant -3.000000e+00 : f32
    %cst_128 = arith.constant 3.000000e+00 : f32
    %274 = vector.broadcast %cst_127 : f32 to vector<2x64xf32>
    %275 = arith.maximumf %274, %273 : vector<2x64xf32>
    %276 = vector.broadcast %cst_128 : f32 to vector<2x64xf32>
    %277 = arith.minimumf %276, %275 : vector<2x64xf32>
    %278 = vector.extract_strided_slice %264 {offsets = [0, 64], sizes = [2, 64], strides = [1, 1]} : vector<2x192xf32> to vector<2x64xf32>
    %279 = arith.mulf %278, %220 : vector<2x64xf32>
    %280 = vector.extract_strided_slice %264 {offsets = [0, 0], sizes = [2, 64], strides = [1, 1]} : vector<2x192xf32> to vector<2x64xf32>
    %281 = arith.mulf %280, %268 : vector<2x64xf32>
    %282 = arith.addf %279, %281 : vector<2x64xf32>
    %cst_129 = arith.constant -3.000000e+00 : f32
    %cst_130 = arith.constant 3.000000e+00 : f32
    %283 = vector.broadcast %cst_129 : f32 to vector<2x64xf32>
    %284 = arith.maximumf %283, %282 : vector<2x64xf32>
    %285 = vector.broadcast %cst_130 : f32 to vector<2x64xf32>
    %286 = arith.minimumf %285, %284 : vector<2x64xf32>
    %287 = vector.extract_strided_slice %258 {offsets = [0, 128], sizes = [2, 64], strides = [1, 1]} : vector<2x192xf32> to vector<2x64xf32>
    %288 = math.tanh %277 : vector<2x64xf32>
    %289 = arith.mulf %287, %288 : vector<2x64xf32>
    %290 = arith.truncf %289 : vector<2x64xf32> to vector<2x64xbf16>
    %cst_131 = arith.constant dense<0.000000e+00> : vector<2x32xf32>
    %291 = tpu.matmul %290, %90, %cst_131 {dimension_numbers = #tpu.dot_dimension_numbers<[1], [0], [0], [1], [0, 0, 1, 1], [], []>} : vector<2x64xbf16>, vector<64x32xbf16>, vector<2x32xf32> -> vector<2x32xf32>
    %cst_132 = arith.constant -3.000000e+00 : f32
    %cst_133 = arith.constant 3.000000e+00 : f32
    %292 = vector.broadcast %cst_132 : f32 to vector<2x32xf32>
    %293 = arith.maximumf %292, %291 : vector<2x32xf32>
    %294 = vector.broadcast %cst_133 : f32 to vector<2x32xf32>
    %295 = arith.minimumf %294, %293 : vector<2x32xf32>
    %296 = vector.extract_strided_slice %264 {offsets = [0, 128], sizes = [2, 64], strides = [1, 1]} : vector<2x192xf32> to vector<2x64xf32>
    %297 = math.tanh %286 : vector<2x64xf32>
    %298 = arith.mulf %296, %297 : vector<2x64xf32>
    %299 = arith.truncf %298 : vector<2x64xf32> to vector<2x64xbf16>
    %cst_134 = arith.constant dense<0.000000e+00> : vector<2x32xf32>
    %300 = tpu.matmul %299, %92, %cst_134 {dimension_numbers = #tpu.dot_dimension_numbers<[1], [0], [0], [1], [0, 0, 1, 1], [], []>} : vector<2x64xbf16>, vector<64x32xbf16>, vector<2x32xf32> -> vector<2x32xf32>
    %cst_135 = arith.constant -3.000000e+00 : f32
    %cst_136 = arith.constant 3.000000e+00 : f32
    %301 = vector.broadcast %cst_135 : f32 to vector<2x32xf32>
    %302 = arith.maximumf %301, %300 : vector<2x32xf32>
    %303 = vector.broadcast %cst_136 : f32 to vector<2x32xf32>
    %304 = arith.minimumf %303, %302 : vector<2x32xf32>
    %c1_137 = arith.constant 1 : index
    %c4 = arith.constant 4 : index
    %c0_138 = arith.constant 0 : index
    %305 = vector.load %arg13[%c1_137, %c4, %c0_138] : memref<3x16x64xf32, #tpu.memory_space<vmem>>, vector<1x2x32xf32>
    %306 = vector.shape_cast %305 : vector<1x2x32xf32> to vector<2x32xf32>
    %307 = vector.shape_cast %295 : vector<2x32xf32> to vector<1x2x32xf32>
    tpu.vector_store %arg13[%c1_137, %c4, %c0_138], %307 {strides = array<i32>} : memref<3x16x64xf32, #tpu.memory_space<vmem>>, vector<1x2x32xf32>,
    %c1_139 = arith.constant 1 : index
    %c10 = arith.constant 10 : index
    %c32_140 = arith.constant 32 : index
    %308 = vector.load %arg13[%c1_139, %c10, %c32_140] : memref<3x16x64xf32, #tpu.memory_space<vmem>>, vector<1x2x32xf32>
    %309 = vector.shape_cast %308 : vector<1x2x32xf32> to vector<2x32xf32>
    %310 = vector.shape_cast %304 : vector<2x32xf32> to vector<1x2x32xf32>
    tpu.vector_store %arg13[%c1_139, %c10, %c32_140], %310 {strides = array<i32>} : memref<3x16x64xf32, #tpu.memory_space<vmem>>, vector<1x2x32xf32>,
    %311 = vector.extract_strided_slice %100 {offsets = [6, 0], sizes = [2, 256], strides = [1, 1]} : vector<16x256xf32> to vector<2x256xf32>
    %312 = arith.truncf %295 : vector<2x32xf32> to vector<2x32xbf16>
    %cst_141 = arith.constant dense<0.000000e+00> : vector<2x256xf32>
    %313 = tpu.matmul %312, %84, %cst_141 {dimension_numbers = #tpu.dot_dimension_numbers<[1], [0], [0], [1], [0, 0, 1, 1], [], []>} : vector<2x32xbf16>, vector<32x256xbf16>, vector<2x256xf32> -> vector<2x256xf32>
    %314 = arith.addf %311, %313 : vector<2x256xf32>
    %315 = vector.extract_strided_slice %108 {offsets = [8, 0], sizes = [2, 256], strides = [1, 1]} : vector<16x256xf32> to vector<2x256xf32>
    %316 = arith.truncf %304 : vector<2x32xf32> to vector<2x32xbf16>
    %cst_142 = arith.constant dense<0.000000e+00> : vector<2x256xf32>
    %317 = tpu.matmul %316, %88, %cst_142 {dimension_numbers = #tpu.dot_dimension_numbers<[1], [0], [0], [1], [0, 0, 1, 1], [], []>} : vector<2x32xbf16>, vector<32x256xbf16>, vector<2x256xf32> -> vector<2x256xf32>
    %318 = arith.addf %315, %317 : vector<2x256xf32>
    %319 = vector.extract_strided_slice %314 {offsets = [0, 0], sizes = [2, 192], strides = [1, 1]} : vector<2x256xf32> to vector<2x192xf32>
    %320 = arith.negf %319 : vector<2x192xf32>
    %321 = math.exp %320 : vector<2x192xf32>
    %cst_143 = arith.constant 1.000000e+00 : f32
    %322 = vector.broadcast %cst_143 : f32 to vector<2x192xf32>
    %323 = arith.addf %322, %321 : vector<2x192xf32>
    %324 = arith.divf %322, %323 : vector<2x192xf32>
    %325 = vector.extract_strided_slice %318 {offsets = [0, 0], sizes = [2, 192], strides = [1, 1]} : vector<2x256xf32> to vector<2x192xf32>
    %326 = arith.negf %325 : vector<2x192xf32>
    %327 = math.exp %326 : vector<2x192xf32>
    %cst_144 = arith.constant 1.000000e+00 : f32
    %328 = vector.broadcast %cst_144 : f32 to vector<2x192xf32>
    %329 = arith.addf %328, %327 : vector<2x192xf32>
    %330 = arith.divf %328, %329 : vector<2x192xf32>
    %331 = vector.extract_strided_slice %314 {offsets = [0, 192], sizes = [2, 64], strides = [1, 1]} : vector<2x256xf32> to vector<2x64xf32>
    %332 = math.tanh %331 : vector<2x64xf32>
    %333 = vector.extract_strided_slice %318 {offsets = [0, 192], sizes = [2, 64], strides = [1, 1]} : vector<2x256xf32> to vector<2x64xf32>
    %334 = math.tanh %333 : vector<2x64xf32>
    %335 = vector.extract_strided_slice %324 {offsets = [0, 64], sizes = [2, 64], strides = [1, 1]} : vector<2x192xf32> to vector<2x64xf32>
    %336 = arith.mulf %335, %277 : vector<2x64xf32>
    %337 = vector.extract_strided_slice %324 {offsets = [0, 0], sizes = [2, 64], strides = [1, 1]} : vector<2x192xf32> to vector<2x64xf32>
    %338 = arith.mulf %337, %332 : vector<2x64xf32>
    %339 = arith.addf %336, %338 : vector<2x64xf32>
    %cst_145 = arith.constant -3.000000e+00 : f32
    %cst_146 = arith.constant 3.000000e+00 : f32
    %340 = vector.broadcast %cst_145 : f32 to vector<2x64xf32>
    %341 = arith.maximumf %340, %339 : vector<2x64xf32>
    %342 = vector.broadcast %cst_146 : f32 to vector<2x64xf32>
    %343 = arith.minimumf %342, %341 : vector<2x64xf32>
    %344 = vector.extract_strided_slice %330 {offsets = [0, 64], sizes = [2, 64], strides = [1, 1]} : vector<2x192xf32> to vector<2x64xf32>
    %345 = arith.mulf %344, %286 : vector<2x64xf32>
    %346 = vector.extract_strided_slice %330 {offsets = [0, 0], sizes = [2, 64], strides = [1, 1]} : vector<2x192xf32> to vector<2x64xf32>
    %347 = arith.mulf %346, %334 : vector<2x64xf32>
    %348 = arith.addf %345, %347 : vector<2x64xf32>
    %cst_147 = arith.constant -3.000000e+00 : f32
    %cst_148 = arith.constant 3.000000e+00 : f32
    %349 = vector.broadcast %cst_147 : f32 to vector<2x64xf32>
    %350 = arith.maximumf %349, %348 : vector<2x64xf32>
    %351 = vector.broadcast %cst_148 : f32 to vector<2x64xf32>
    %352 = arith.minimumf %351, %350 : vector<2x64xf32>
    %353 = vector.extract_strided_slice %324 {offsets = [0, 128], sizes = [2, 64], strides = [1, 1]} : vector<2x192xf32> to vector<2x64xf32>
    %354 = math.tanh %343 : vector<2x64xf32>
    %355 = arith.mulf %353, %354 : vector<2x64xf32>
    %356 = arith.truncf %355 : vector<2x64xf32> to vector<2x64xbf16>
    %cst_149 = arith.constant dense<0.000000e+00> : vector<2x32xf32>
    %357 = tpu.matmul %356, %90, %cst_149 {dimension_numbers = #tpu.dot_dimension_numbers<[1], [0], [0], [1], [0, 0, 1, 1], [], []>} : vector<2x64xbf16>, vector<64x32xbf16>, vector<2x32xf32> -> vector<2x32xf32>
    %cst_150 = arith.constant -3.000000e+00 : f32
    %cst_151 = arith.constant 3.000000e+00 : f32
    %358 = vector.broadcast %cst_150 : f32 to vector<2x32xf32>
    %359 = arith.maximumf %358, %357 : vector<2x32xf32>
    %360 = vector.broadcast %cst_151 : f32 to vector<2x32xf32>
    %361 = arith.minimumf %360, %359 : vector<2x32xf32>
    %362 = vector.extract_strided_slice %330 {offsets = [0, 128], sizes = [2, 64], strides = [1, 1]} : vector<2x192xf32> to vector<2x64xf32>
    %363 = math.tanh %352 : vector<2x64xf32>
    %364 = arith.mulf %362, %363 : vector<2x64xf32>
    %365 = arith.truncf %364 : vector<2x64xf32> to vector<2x64xbf16>
    %cst_152 = arith.constant dense<0.000000e+00> : vector<2x32xf32>
    %366 = tpu.matmul %365, %92, %cst_152 {dimension_numbers = #tpu.dot_dimension_numbers<[1], [0], [0], [1], [0, 0, 1, 1], [], []>} : vector<2x64xbf16>, vector<64x32xbf16>, vector<2x32xf32> -> vector<2x32xf32>
    %cst_153 = arith.constant -3.000000e+00 : f32
    %cst_154 = arith.constant 3.000000e+00 : f32
    %367 = vector.broadcast %cst_153 : f32 to vector<2x32xf32>
    %368 = arith.maximumf %367, %366 : vector<2x32xf32>
    %369 = vector.broadcast %cst_154 : f32 to vector<2x32xf32>
    %370 = arith.minimumf %369, %368 : vector<2x32xf32>
    %c1_155 = arith.constant 1 : index
    %c6 = arith.constant 6 : index
    %c0_156 = arith.constant 0 : index
    %371 = vector.load %arg13[%c1_155, %c6, %c0_156] : memref<3x16x64xf32, #tpu.memory_space<vmem>>, vector<1x2x32xf32>
    %372 = vector.shape_cast %371 : vector<1x2x32xf32> to vector<2x32xf32>
    %373 = vector.shape_cast %361 : vector<2x32xf32> to vector<1x2x32xf32>
    tpu.vector_store %arg13[%c1_155, %c6, %c0_156], %373 {strides = array<i32>} : memref<3x16x64xf32, #tpu.memory_space<vmem>>, vector<1x2x32xf32>,
    %c1_157 = arith.constant 1 : index
    %c8 = arith.constant 8 : index
    %c32_158 = arith.constant 32 : index
    %374 = vector.load %arg13[%c1_157, %c8, %c32_158] : memref<3x16x64xf32, #tpu.memory_space<vmem>>, vector<1x2x32xf32>
    %375 = vector.shape_cast %374 : vector<1x2x32xf32> to vector<2x32xf32>
    %376 = vector.shape_cast %370 : vector<2x32xf32> to vector<1x2x32xf32>
    tpu.vector_store %arg13[%c1_157, %c8, %c32_158], %376 {strides = array<i32>} : memref<3x16x64xf32, #tpu.memory_space<vmem>>, vector<1x2x32xf32>,
    %377 = vector.extract_strided_slice %100 {offsets = [8, 0], sizes = [2, 256], strides = [1, 1]} : vector<16x256xf32> to vector<2x256xf32>
    %378 = arith.truncf %361 : vector<2x32xf32> to vector<2x32xbf16>
    %cst_159 = arith.constant dense<0.000000e+00> : vector<2x256xf32>
    %379 = tpu.matmul %378, %84, %cst_159 {dimension_numbers = #tpu.dot_dimension_numbers<[1], [0], [0], [1], [0, 0, 1, 1], [], []>} : vector<2x32xbf16>, vector<32x256xbf16>, vector<2x256xf32> -> vector<2x256xf32>
    %380 = arith.addf %377, %379 : vector<2x256xf32>
    %381 = vector.extract_strided_slice %108 {offsets = [6, 0], sizes = [2, 256], strides = [1, 1]} : vector<16x256xf32> to vector<2x256xf32>
    %382 = arith.truncf %370 : vector<2x32xf32> to vector<2x32xbf16>
    %cst_160 = arith.constant dense<0.000000e+00> : vector<2x256xf32>
    %383 = tpu.matmul %382, %88, %cst_160 {dimension_numbers = #tpu.dot_dimension_numbers<[1], [0], [0], [1], [0, 0, 1, 1], [], []>} : vector<2x32xbf16>, vector<32x256xbf16>, vector<2x256xf32> -> vector<2x256xf32>
    %384 = arith.addf %381, %383 : vector<2x256xf32>
    %385 = vector.extract_strided_slice %380 {offsets = [0, 0], sizes = [2, 192], strides = [1, 1]} : vector<2x256xf32> to vector<2x192xf32>
    %386 = arith.negf %385 : vector<2x192xf32>
    %387 = math.exp %386 : vector<2x192xf32>
    %cst_161 = arith.constant 1.000000e+00 : f32
    %388 = vector.broadcast %cst_161 : f32 to vector<2x192xf32>
    %389 = arith.addf %388, %387 : vector<2x192xf32>
    %390 = arith.divf %388, %389 : vector<2x192xf32>
    %391 = vector.extract_strided_slice %384 {offsets = [0, 0], sizes = [2, 192], strides = [1, 1]} : vector<2x256xf32> to vector<2x192xf32>
    %392 = arith.negf %391 : vector<2x192xf32>
    %393 = math.exp %392 : vector<2x192xf32>
    %cst_162 = arith.constant 1.000000e+00 : f32
    %394 = vector.broadcast %cst_162 : f32 to vector<2x192xf32>
    %395 = arith.addf %394, %393 : vector<2x192xf32>
    %396 = arith.divf %394, %395 : vector<2x192xf32>
    %397 = vector.extract_strided_slice %380 {offsets = [0, 192], sizes = [2, 64], strides = [1, 1]} : vector<2x256xf32> to vector<2x64xf32>
    %398 = math.tanh %397 : vector<2x64xf32>
    %399 = vector.extract_strided_slice %384 {offsets = [0, 192], sizes = [2, 64], strides = [1, 1]} : vector<2x256xf32> to vector<2x64xf32>
    %400 = math.tanh %399 : vector<2x64xf32>
    %401 = vector.extract_strided_slice %390 {offsets = [0, 64], sizes = [2, 64], strides = [1, 1]} : vector<2x192xf32> to vector<2x64xf32>
    %402 = arith.mulf %401, %343 : vector<2x64xf32>
    %403 = vector.extract_strided_slice %390 {offsets = [0, 0], sizes = [2, 64], strides = [1, 1]} : vector<2x192xf32> to vector<2x64xf32>
    %404 = arith.mulf %403, %398 : vector<2x64xf32>
    %405 = arith.addf %402, %404 : vector<2x64xf32>
    %cst_163 = arith.constant -3.000000e+00 : f32
    %cst_164 = arith.constant 3.000000e+00 : f32
    %406 = vector.broadcast %cst_163 : f32 to vector<2x64xf32>
    %407 = arith.maximumf %406, %405 : vector<2x64xf32>
    %408 = vector.broadcast %cst_164 : f32 to vector<2x64xf32>
    %409 = arith.minimumf %408, %407 : vector<2x64xf32>
    %410 = vector.extract_strided_slice %396 {offsets = [0, 64], sizes = [2, 64], strides = [1, 1]} : vector<2x192xf32> to vector<2x64xf32>
    %411 = arith.mulf %410, %352 : vector<2x64xf32>
    %412 = vector.extract_strided_slice %396 {offsets = [0, 0], sizes = [2, 64], strides = [1, 1]} : vector<2x192xf32> to vector<2x64xf32>
    %413 = arith.mulf %412, %400 : vector<2x64xf32>
    %414 = arith.addf %411, %413 : vector<2x64xf32>
    %cst_165 = arith.constant -3.000000e+00 : f32
    %cst_166 = arith.constant 3.000000e+00 : f32
    %415 = vector.broadcast %cst_165 : f32 to vector<2x64xf32>
    %416 = arith.maximumf %415, %414 : vector<2x64xf32>
    %417 = vector.broadcast %cst_166 : f32 to vector<2x64xf32>
    %418 = arith.minimumf %417, %416 : vector<2x64xf32>
    %419 = vector.extract_strided_slice %390 {offsets = [0, 128], sizes = [2, 64], strides = [1, 1]} : vector<2x192xf32> to vector<2x64xf32>
    %420 = math.tanh %409 : vector<2x64xf32>
    %421 = arith.mulf %419, %420 : vector<2x64xf32>
    %422 = arith.truncf %421 : vector<2x64xf32> to vector<2x64xbf16>
    %cst_167 = arith.constant dense<0.000000e+00> : vector<2x32xf32>
    %423 = tpu.matmul %422, %90, %cst_167 {dimension_numbers = #tpu.dot_dimension_numbers<[1], [0], [0], [1], [0, 0, 1, 1], [], []>} : vector<2x64xbf16>, vector<64x32xbf16>, vector<2x32xf32> -> vector<2x32xf32>
    %cst_168 = arith.constant -3.000000e+00 : f32
    %cst_169 = arith.constant 3.000000e+00 : f32
    %424 = vector.broadcast %cst_168 : f32 to vector<2x32xf32>
    %425 = arith.maximumf %424, %423 : vector<2x32xf32>
    %426 = vector.broadcast %cst_169 : f32 to vector<2x32xf32>
    %427 = arith.minimumf %426, %425 : vector<2x32xf32>
    %428 = vector.extract_strided_slice %396 {offsets = [0, 128], sizes = [2, 64], strides = [1, 1]} : vector<2x192xf32> to vector<2x64xf32>
    %429 = math.tanh %418 : vector<2x64xf32>
    %430 = arith.mulf %428, %429 : vector<2x64xf32>
    %431 = arith.truncf %430 : vector<2x64xf32> to vector<2x64xbf16>
    %cst_170 = arith.constant dense<0.000000e+00> : vector<2x32xf32>
    %432 = tpu.matmul %431, %92, %cst_170 {dimension_numbers = #tpu.dot_dimension_numbers<[1], [0], [0], [1], [0, 0, 1, 1], [], []>} : vector<2x64xbf16>, vector<64x32xbf16>, vector<2x32xf32> -> vector<2x32xf32>
    %cst_171 = arith.constant -3.000000e+00 : f32
    %cst_172 = arith.constant 3.000000e+00 : f32
    %433 = vector.broadcast %cst_171 : f32 to vector<2x32xf32>
    %434 = arith.maximumf %433, %432 : vector<2x32xf32>
    %435 = vector.broadcast %cst_172 : f32 to vector<2x32xf32>
    %436 = arith.minimumf %435, %434 : vector<2x32xf32>
    %c1_173 = arith.constant 1 : index
    %c8_174 = arith.constant 8 : index
    %c0_175 = arith.constant 0 : index
    %437 = vector.load %arg13[%c1_173, %c8_174, %c0_175] : memref<3x16x64xf32, #tpu.memory_space<vmem>>, vector<1x2x32xf32>
    %438 = vector.shape_cast %437 : vector<1x2x32xf32> to vector<2x32xf32>
    %439 = vector.shape_cast %427 : vector<2x32xf32> to vector<1x2x32xf32>
    tpu.vector_store %arg13[%c1_173, %c8_174, %c0_175], %439 {strides = array<i32>} : memref<3x16x64xf32, #tpu.memory_space<vmem>>, vector<1x2x32xf32>,
    %c1_176 = arith.constant 1 : index
    %c6_177 = arith.constant 6 : index
    %c32_178 = arith.constant 32 : index
    %440 = vector.load %arg13[%c1_176, %c6_177, %c32_178] : memref<3x16x64xf32, #tpu.memory_space<vmem>>, vector<1x2x32xf32>
    %441 = vector.shape_cast %440 : vector<1x2x32xf32> to vector<2x32xf32>
    %442 = vector.shape_cast %436 : vector<2x32xf32> to vector<1x2x32xf32>
    tpu.vector_store %arg13[%c1_176, %c6_177, %c32_178], %442 {strides = array<i32>} : memref<3x16x64xf32, #tpu.memory_space<vmem>>, vector<1x2x32xf32>,
    %443 = vector.extract_strided_slice %100 {offsets = [10, 0], sizes = [2, 256], strides = [1, 1]} : vector<16x256xf32> to vector<2x256xf32>
    %444 = arith.truncf %427 : vector<2x32xf32> to vector<2x32xbf16>
    %cst_179 = arith.constant dense<0.000000e+00> : vector<2x256xf32>
    %445 = tpu.matmul %444, %84, %cst_179 {dimension_numbers = #tpu.dot_dimension_numbers<[1], [0], [0], [1], [0, 0, 1, 1], [], []>} : vector<2x32xbf16>, vector<32x256xbf16>, vector<2x256xf32> -> vector<2x256xf32>
    %446 = arith.addf %443, %445 : vector<2x256xf32>
    %447 = vector.extract_strided_slice %108 {offsets = [4, 0], sizes = [2, 256], strides = [1, 1]} : vector<16x256xf32> to vector<2x256xf32>
    %448 = arith.truncf %436 : vector<2x32xf32> to vector<2x32xbf16>
    %cst_180 = arith.constant dense<0.000000e+00> : vector<2x256xf32>
    %449 = tpu.matmul %448, %88, %cst_180 {dimension_numbers = #tpu.dot_dimension_numbers<[1], [0], [0], [1], [0, 0, 1, 1], [], []>} : vector<2x32xbf16>, vector<32x256xbf16>, vector<2x256xf32> -> vector<2x256xf32>
    %450 = arith.addf %447, %449 : vector<2x256xf32>
    %451 = vector.extract_strided_slice %446 {offsets = [0, 0], sizes = [2, 192], strides = [1, 1]} : vector<2x256xf32> to vector<2x192xf32>
    %452 = arith.negf %451 : vector<2x192xf32>
    %453 = math.exp %452 : vector<2x192xf32>
    %cst_181 = arith.constant 1.000000e+00 : f32
    %454 = vector.broadcast %cst_181 : f32 to vector<2x192xf32>
    %455 = arith.addf %454, %453 : vector<2x192xf32>
    %456 = arith.divf %454, %455 : vector<2x192xf32>
    %457 = vector.extract_strided_slice %450 {offsets = [0, 0], sizes = [2, 192], strides = [1, 1]} : vector<2x256xf32> to vector<2x192xf32>
    %458 = arith.negf %457 : vector<2x192xf32>
    %459 = math.exp %458 : vector<2x192xf32>
    %cst_182 = arith.constant 1.000000e+00 : f32
    %460 = vector.broadcast %cst_182 : f32 to vector<2x192xf32>
    %461 = arith.addf %460, %459 : vector<2x192xf32>
    %462 = arith.divf %460, %461 : vector<2x192xf32>
    %463 = vector.extract_strided_slice %446 {offsets = [0, 192], sizes = [2, 64], strides = [1, 1]} : vector<2x256xf32> to vector<2x64xf32>
    %464 = math.tanh %463 : vector<2x64xf32>
    %465 = vector.extract_strided_slice %450 {offsets = [0, 192], sizes = [2, 64], strides = [1, 1]} : vector<2x256xf32> to vector<2x64xf32>
    %466 = math.tanh %465 : vector<2x64xf32>
    %467 = vector.extract_strided_slice %456 {offsets = [0, 64], sizes = [2, 64], strides = [1, 1]} : vector<2x192xf32> to vector<2x64xf32>
    %468 = arith.mulf %467, %409 : vector<2x64xf32>
    %469 = vector.extract_strided_slice %456 {offsets = [0, 0], sizes = [2, 64], strides = [1, 1]} : vector<2x192xf32> to vector<2x64xf32>
    %470 = arith.mulf %469, %464 : vector<2x64xf32>
    %471 = arith.addf %468, %470 : vector<2x64xf32>
    %cst_183 = arith.constant -3.000000e+00 : f32
    %cst_184 = arith.constant 3.000000e+00 : f32
    %472 = vector.broadcast %cst_183 : f32 to vector<2x64xf32>
    %473 = arith.maximumf %472, %471 : vector<2x64xf32>
    %474 = vector.broadcast %cst_184 : f32 to vector<2x64xf32>
    %475 = arith.minimumf %474, %473 : vector<2x64xf32>
    %476 = vector.extract_strided_slice %462 {offsets = [0, 64], sizes = [2, 64], strides = [1, 1]} : vector<2x192xf32> to vector<2x64xf32>
    %477 = arith.mulf %476, %418 : vector<2x64xf32>
    %478 = vector.extract_strided_slice %462 {offsets = [0, 0], sizes = [2, 64], strides = [1, 1]} : vector<2x192xf32> to vector<2x64xf32>
    %479 = arith.mulf %478, %466 : vector<2x64xf32>
    %480 = arith.addf %477, %479 : vector<2x64xf32>
    %cst_185 = arith.constant -3.000000e+00 : f32
    %cst_186 = arith.constant 3.000000e+00 : f32
    %481 = vector.broadcast %cst_185 : f32 to vector<2x64xf32>
    %482 = arith.maximumf %481, %480 : vector<2x64xf32>
    %483 = vector.broadcast %cst_186 : f32 to vector<2x64xf32>
    %484 = arith.minimumf %483, %482 : vector<2x64xf32>
    %485 = vector.extract_strided_slice %456 {offsets = [0, 128], sizes = [2, 64], strides = [1, 1]} : vector<2x192xf32> to vector<2x64xf32>
    %486 = math.tanh %475 : vector<2x64xf32>
    %487 = arith.mulf %485, %486 : vector<2x64xf32>
    %488 = arith.truncf %487 : vector<2x64xf32> to vector<2x64xbf16>
    %cst_187 = arith.constant dense<0.000000e+00> : vector<2x32xf32>
    %489 = tpu.matmul %488, %90, %cst_187 {dimension_numbers = #tpu.dot_dimension_numbers<[1], [0], [0], [1], [0, 0, 1, 1], [], []>} : vector<2x64xbf16>, vector<64x32xbf16>, vector<2x32xf32> -> vector<2x32xf32>
    %cst_188 = arith.constant -3.000000e+00 : f32
    %cst_189 = arith.constant 3.000000e+00 : f32
    %490 = vector.broadcast %cst_188 : f32 to vector<2x32xf32>
    %491 = arith.maximumf %490, %489 : vector<2x32xf32>
    %492 = vector.broadcast %cst_189 : f32 to vector<2x32xf32>
    %493 = arith.minimumf %492, %491 : vector<2x32xf32>
    %494 = vector.extract_strided_slice %462 {offsets = [0, 128], sizes = [2, 64], strides = [1, 1]} : vector<2x192xf32> to vector<2x64xf32>
    %495 = math.tanh %484 : vector<2x64xf32>
    %496 = arith.mulf %494, %495 : vector<2x64xf32>
    %497 = arith.truncf %496 : vector<2x64xf32> to vector<2x64xbf16>
    %cst_190 = arith.constant dense<0.000000e+00> : vector<2x32xf32>
    %498 = tpu.matmul %497, %92, %cst_190 {dimension_numbers = #tpu.dot_dimension_numbers<[1], [0], [0], [1], [0, 0, 1, 1], [], []>} : vector<2x64xbf16>, vector<64x32xbf16>, vector<2x32xf32> -> vector<2x32xf32>
    %cst_191 = arith.constant -3.000000e+00 : f32
    %cst_192 = arith.constant 3.000000e+00 : f32
    %499 = vector.broadcast %cst_191 : f32 to vector<2x32xf32>
    %500 = arith.maximumf %499, %498 : vector<2x32xf32>
    %501 = vector.broadcast %cst_192 : f32 to vector<2x32xf32>
    %502 = arith.minimumf %501, %500 : vector<2x32xf32>
    %c1_193 = arith.constant 1 : index
    %c10_194 = arith.constant 10 : index
    %c0_195 = arith.constant 0 : index
    %503 = vector.load %arg13[%c1_193, %c10_194, %c0_195] : memref<3x16x64xf32, #tpu.memory_space<vmem>>, vector<1x2x32xf32>
    %504 = vector.shape_cast %503 : vector<1x2x32xf32> to vector<2x32xf32>
    %505 = vector.shape_cast %493 : vector<2x32xf32> to vector<1x2x32xf32>
    tpu.vector_store %arg13[%c1_193, %c10_194, %c0_195], %505 {strides = array<i32>} : memref<3x16x64xf32, #tpu.memory_space<vmem>>, vector<1x2x32xf32>,
    %c1_196 = arith.constant 1 : index
    %c4_197 = arith.constant 4 : index
    %c32_198 = arith.constant 32 : index
    %506 = vector.load %arg13[%c1_196, %c4_197, %c32_198] : memref<3x16x64xf32, #tpu.memory_space<vmem>>, vector<1x2x32xf32>
    %507 = vector.shape_cast %506 : vector<1x2x32xf32> to vector<2x32xf32>
    %508 = vector.shape_cast %502 : vector<2x32xf32> to vector<1x2x32xf32>
    tpu.vector_store %arg13[%c1_196, %c4_197, %c32_198], %508 {strides = array<i32>} : memref<3x16x64xf32, #tpu.memory_space<vmem>>, vector<1x2x32xf32>,
    %509 = vector.extract_strided_slice %100 {offsets = [12, 0], sizes = [2, 256], strides = [1, 1]} : vector<16x256xf32> to vector<2x256xf32>
    %510 = arith.truncf %493 : vector<2x32xf32> to vector<2x32xbf16>
    %cst_199 = arith.constant dense<0.000000e+00> : vector<2x256xf32>
    %511 = tpu.matmul %510, %84, %cst_199 {dimension_numbers = #tpu.dot_dimension_numbers<[1], [0], [0], [1], [0, 0, 1, 1], [], []>} : vector<2x32xbf16>, vector<32x256xbf16>, vector<2x256xf32> -> vector<2x256xf32>
    %512 = arith.addf %509, %511 : vector<2x256xf32>
    %513 = vector.extract_strided_slice %108 {offsets = [2, 0], sizes = [2, 256], strides = [1, 1]} : vector<16x256xf32> to vector<2x256xf32>
    %514 = arith.truncf %502 : vector<2x32xf32> to vector<2x32xbf16>
    %cst_200 = arith.constant dense<0.000000e+00> : vector<2x256xf32>
    %515 = tpu.matmul %514, %88, %cst_200 {dimension_numbers = #tpu.dot_dimension_numbers<[1], [0], [0], [1], [0, 0, 1, 1], [], []>} : vector<2x32xbf16>, vector<32x256xbf16>, vector<2x256xf32> -> vector<2x256xf32>
    %516 = arith.addf %513, %515 : vector<2x256xf32>
    %517 = vector.extract_strided_slice %512 {offsets = [0, 0], sizes = [2, 192], strides = [1, 1]} : vector<2x256xf32> to vector<2x192xf32>
    %518 = arith.negf %517 : vector<2x192xf32>
    %519 = math.exp %518 : vector<2x192xf32>
    %cst_201 = arith.constant 1.000000e+00 : f32
    %520 = vector.broadcast %cst_201 : f32 to vector<2x192xf32>
    %521 = arith.addf %520, %519 : vector<2x192xf32>
    %522 = arith.divf %520, %521 : vector<2x192xf32>
    %523 = vector.extract_strided_slice %516 {offsets = [0, 0], sizes = [2, 192], strides = [1, 1]} : vector<2x256xf32> to vector<2x192xf32>
    %524 = arith.negf %523 : vector<2x192xf32>
    %525 = math.exp %524 : vector<2x192xf32>
    %cst_202 = arith.constant 1.000000e+00 : f32
    %526 = vector.broadcast %cst_202 : f32 to vector<2x192xf32>
    %527 = arith.addf %526, %525 : vector<2x192xf32>
    %528 = arith.divf %526, %527 : vector<2x192xf32>
    %529 = vector.extract_strided_slice %512 {offsets = [0, 192], sizes = [2, 64], strides = [1, 1]} : vector<2x256xf32> to vector<2x64xf32>
    %530 = math.tanh %529 : vector<2x64xf32>
    %531 = vector.extract_strided_slice %516 {offsets = [0, 192], sizes = [2, 64], strides = [1, 1]} : vector<2x256xf32> to vector<2x64xf32>
    %532 = math.tanh %531 : vector<2x64xf32>
    %533 = vector.extract_strided_slice %522 {offsets = [0, 64], sizes = [2, 64], strides = [1, 1]} : vector<2x192xf32> to vector<2x64xf32>
    %534 = arith.mulf %533, %475 : vector<2x64xf32>
    %535 = vector.extract_strided_slice %522 {offsets = [0, 0], sizes = [2, 64], strides = [1, 1]} : vector<2x192xf32> to vector<2x64xf32>
    %536 = arith.mulf %535, %530 : vector<2x64xf32>
    %537 = arith.addf %534, %536 : vector<2x64xf32>
    %cst_203 = arith.constant -3.000000e+00 : f32
    %cst_204 = arith.constant 3.000000e+00 : f32
    %538 = vector.broadcast %cst_203 : f32 to vector<2x64xf32>
    %539 = arith.maximumf %538, %537 : vector<2x64xf32>
    %540 = vector.broadcast %cst_204 : f32 to vector<2x64xf32>
    %541 = arith.minimumf %540, %539 : vector<2x64xf32>
    %542 = vector.extract_strided_slice %528 {offsets = [0, 64], sizes = [2, 64], strides = [1, 1]} : vector<2x192xf32> to vector<2x64xf32>
    %543 = arith.mulf %542, %484 : vector<2x64xf32>
    %544 = vector.extract_strided_slice %528 {offsets = [0, 0], sizes = [2, 64], strides = [1, 1]} : vector<2x192xf32> to vector<2x64xf32>
    %545 = arith.mulf %544, %532 : vector<2x64xf32>
    %546 = arith.addf %543, %545 : vector<2x64xf32>
    %cst_205 = arith.constant -3.000000e+00 : f32
    %cst_206 = arith.constant 3.000000e+00 : f32
    %547 = vector.broadcast %cst_205 : f32 to vector<2x64xf32>
    %548 = arith.maximumf %547, %546 : vector<2x64xf32>
    %549 = vector.broadcast %cst_206 : f32 to vector<2x64xf32>
    %550 = arith.minimumf %549, %548 : vector<2x64xf32>
    %551 = vector.extract_strided_slice %522 {offsets = [0, 128], sizes = [2, 64], strides = [1, 1]} : vector<2x192xf32> to vector<2x64xf32>
    %552 = math.tanh %541 : vector<2x64xf32>
    %553 = arith.mulf %551, %552 : vector<2x64xf32>
    %554 = arith.truncf %553 : vector<2x64xf32> to vector<2x64xbf16>
    %cst_207 = arith.constant dense<0.000000e+00> : vector<2x32xf32>
    %555 = tpu.matmul %554, %90, %cst_207 {dimension_numbers = #tpu.dot_dimension_numbers<[1], [0], [0], [1], [0, 0, 1, 1], [], []>} : vector<2x64xbf16>, vector<64x32xbf16>, vector<2x32xf32> -> vector<2x32xf32>
    %cst_208 = arith.constant -3.000000e+00 : f32
    %cst_209 = arith.constant 3.000000e+00 : f32
    %556 = vector.broadcast %cst_208 : f32 to vector<2x32xf32>
    %557 = arith.maximumf %556, %555 : vector<2x32xf32>
    %558 = vector.broadcast %cst_209 : f32 to vector<2x32xf32>
    %559 = arith.minimumf %558, %557 : vector<2x32xf32>
    %560 = vector.extract_strided_slice %528 {offsets = [0, 128], sizes = [2, 64], strides = [1, 1]} : vector<2x192xf32> to vector<2x64xf32>
    %561 = math.tanh %550 : vector<2x64xf32>
    %562 = arith.mulf %560, %561 : vector<2x64xf32>
    %563 = arith.truncf %562 : vector<2x64xf32> to vector<2x64xbf16>
    %cst_210 = arith.constant dense<0.000000e+00> : vector<2x32xf32>
    %564 = tpu.matmul %563, %92, %cst_210 {dimension_numbers = #tpu.dot_dimension_numbers<[1], [0], [0], [1], [0, 0, 1, 1], [], []>} : vector<2x64xbf16>, vector<64x32xbf16>, vector<2x32xf32> -> vector<2x32xf32>
    %cst_211 = arith.constant -3.000000e+00 : f32
    %cst_212 = arith.constant 3.000000e+00 : f32
    %565 = vector.broadcast %cst_211 : f32 to vector<2x32xf32>
    %566 = arith.maximumf %565, %564 : vector<2x32xf32>
    %567 = vector.broadcast %cst_212 : f32 to vector<2x32xf32>
    %568 = arith.minimumf %567, %566 : vector<2x32xf32>
    %c1_213 = arith.constant 1 : index
    %c12_214 = arith.constant 12 : index
    %c0_215 = arith.constant 0 : index
    %569 = vector.load %arg13[%c1_213, %c12_214, %c0_215] : memref<3x16x64xf32, #tpu.memory_space<vmem>>, vector<1x2x32xf32>
    %570 = vector.shape_cast %569 : vector<1x2x32xf32> to vector<2x32xf32>
    %571 = vector.shape_cast %559 : vector<2x32xf32> to vector<1x2x32xf32>
    tpu.vector_store %arg13[%c1_213, %c12_214, %c0_215], %571 {strides = array<i32>} : memref<3x16x64xf32, #tpu.memory_space<vmem>>, vector<1x2x32xf32>,
    %c1_216 = arith.constant 1 : index
    %c2_217 = arith.constant 2 : index
    %c32_218 = arith.constant 32 : index
    %572 = vector.load %arg13[%c1_216, %c2_217, %c32_218] : memref<3x16x64xf32, #tpu.memory_space<vmem>>, vector<1x2x32xf32>
    %573 = vector.shape_cast %572 : vector<1x2x32xf32> to vector<2x32xf32>
    %574 = vector.shape_cast %568 : vector<2x32xf32> to vector<1x2x32xf32>
    tpu.vector_store %arg13[%c1_216, %c2_217, %c32_218], %574 {strides = array<i32>} : memref<3x16x64xf32, #tpu.memory_space<vmem>>, vector<1x2x32xf32>,
    %575 = vector.extract_strided_slice %100 {offsets = [14, 0], sizes = [2, 256], strides = [1, 1]} : vector<16x256xf32> to vector<2x256xf32>
    %576 = arith.truncf %559 : vector<2x32xf32> to vector<2x32xbf16>
    %cst_219 = arith.constant dense<0.000000e+00> : vector<2x256xf32>
    %577 = tpu.matmul %576, %84, %cst_219 {dimension_numbers = #tpu.dot_dimension_numbers<[1], [0], [0], [1], [0, 0, 1, 1], [], []>} : vector<2x32xbf16>, vector<32x256xbf16>, vector<2x256xf32> -> vector<2x256xf32>
    %578 = arith.addf %575, %577 : vector<2x256xf32>
    %579 = vector.extract_strided_slice %108 {offsets = [0, 0], sizes = [2, 256], strides = [1, 1]} : vector<16x256xf32> to vector<2x256xf32>
    %580 = arith.truncf %568 : vector<2x32xf32> to vector<2x32xbf16>
    %cst_220 = arith.constant dense<0.000000e+00> : vector<2x256xf32>
    %581 = tpu.matmul %580, %88, %cst_220 {dimension_numbers = #tpu.dot_dimension_numbers<[1], [0], [0], [1], [0, 0, 1, 1], [], []>} : vector<2x32xbf16>, vector<32x256xbf16>, vector<2x256xf32> -> vector<2x256xf32>
    %582 = arith.addf %579, %581 : vector<2x256xf32>
    %583 = vector.extract_strided_slice %578 {offsets = [0, 0], sizes = [2, 192], strides = [1, 1]} : vector<2x256xf32> to vector<2x192xf32>
    %584 = arith.negf %583 : vector<2x192xf32>
    %585 = math.exp %584 : vector<2x192xf32>
    %cst_221 = arith.constant 1.000000e+00 : f32
    %586 = vector.broadcast %cst_221 : f32 to vector<2x192xf32>
    %587 = arith.addf %586, %585 : vector<2x192xf32>
    %588 = arith.divf %586, %587 : vector<2x192xf32>
    %589 = vector.extract_strided_slice %582 {offsets = [0, 0], sizes = [2, 192], strides = [1, 1]} : vector<2x256xf32> to vector<2x192xf32>
    %590 = arith.negf %589 : vector<2x192xf32>
    %591 = math.exp %590 : vector<2x192xf32>
    %cst_222 = arith.constant 1.000000e+00 : f32
    %592 = vector.broadcast %cst_222 : f32 to vector<2x192xf32>
    %593 = arith.addf %592, %591 : vector<2x192xf32>
    %594 = arith.divf %592, %593 : vector<2x192xf32>
    %595 = vector.extract_strided_slice %578 {offsets = [0, 192], sizes = [2, 64], strides = [1, 1]} : vector<2x256xf32> to vector<2x64xf32>
    %596 = math.tanh %595 : vector<2x64xf32>
    %597 = vector.extract_strided_slice %582 {offsets = [0, 192], sizes = [2, 64], strides = [1, 1]} : vector<2x256xf32> to vector<2x64xf32>
    %598 = math.tanh %597 : vector<2x64xf32>
    %599 = vector.extract_strided_slice %588 {offsets = [0, 64], sizes = [2, 64], strides = [1, 1]} : vector<2x192xf32> to vector<2x64xf32>
    %600 = arith.mulf %599, %541 : vector<2x64xf32>
    %601 = vector.extract_strided_slice %588 {offsets = [0, 0], sizes = [2, 64], strides = [1, 1]} : vector<2x192xf32> to vector<2x64xf32>
    %602 = arith.mulf %601, %596 : vector<2x64xf32>
    %603 = arith.addf %600, %602 : vector<2x64xf32>
    %cst_223 = arith.constant -3.000000e+00 : f32
    %cst_224 = arith.constant 3.000000e+00 : f32
    %604 = vector.broadcast %cst_223 : f32 to vector<2x64xf32>
    %605 = arith.maximumf %604, %603 : vector<2x64xf32>
    %606 = vector.broadcast %cst_224 : f32 to vector<2x64xf32>
    %607 = arith.minimumf %606, %605 : vector<2x64xf32>
    %608 = vector.extract_strided_slice %594 {offsets = [0, 64], sizes = [2, 64], strides = [1, 1]} : vector<2x192xf32> to vector<2x64xf32>
    %609 = arith.mulf %608, %550 : vector<2x64xf32>
    %610 = vector.extract_strided_slice %594 {offsets = [0, 0], sizes = [2, 64], strides = [1, 1]} : vector<2x192xf32> to vector<2x64xf32>
    %611 = arith.mulf %610, %598 : vector<2x64xf32>
    %612 = arith.addf %609, %611 : vector<2x64xf32>
    %cst_225 = arith.constant -3.000000e+00 : f32
    %cst_226 = arith.constant 3.000000e+00 : f32
    %613 = vector.broadcast %cst_225 : f32 to vector<2x64xf32>
    %614 = arith.maximumf %613, %612 : vector<2x64xf32>
    %615 = vector.broadcast %cst_226 : f32 to vector<2x64xf32>
    %616 = arith.minimumf %615, %614 : vector<2x64xf32>
    %617 = vector.extract_strided_slice %588 {offsets = [0, 128], sizes = [2, 64], strides = [1, 1]} : vector<2x192xf32> to vector<2x64xf32>
    %618 = math.tanh %607 : vector<2x64xf32>
    %619 = arith.mulf %617, %618 : vector<2x64xf32>
    %620 = arith.truncf %619 : vector<2x64xf32> to vector<2x64xbf16>
    %cst_227 = arith.constant dense<0.000000e+00> : vector<2x32xf32>
    %621 = tpu.matmul %620, %90, %cst_227 {dimension_numbers = #tpu.dot_dimension_numbers<[1], [0], [0], [1], [0, 0, 1, 1], [], []>} : vector<2x64xbf16>, vector<64x32xbf16>, vector<2x32xf32> -> vector<2x32xf32>
    %cst_228 = arith.constant -3.000000e+00 : f32
    %cst_229 = arith.constant 3.000000e+00 : f32
    %622 = vector.broadcast %cst_228 : f32 to vector<2x32xf32>
    %623 = arith.maximumf %622, %621 : vector<2x32xf32>
    %624 = vector.broadcast %cst_229 : f32 to vector<2x32xf32>
    %625 = arith.minimumf %624, %623 : vector<2x32xf32>
    %626 = vector.extract_strided_slice %594 {offsets = [0, 128], sizes = [2, 64], strides = [1, 1]} : vector<2x192xf32> to vector<2x64xf32>
    %627 = math.tanh %616 : vector<2x64xf32>
    %628 = arith.mulf %626, %627 : vector<2x64xf32>
    %629 = arith.truncf %628 : vector<2x64xf32> to vector<2x64xbf16>
    %cst_230 = arith.constant dense<0.000000e+00> : vector<2x32xf32>
    %630 = tpu.matmul %629, %92, %cst_230 {dimension_numbers = #tpu.dot_dimension_numbers<[1], [0], [0], [1], [0, 0, 1, 1], [], []>} : vector<2x64xbf16>, vector<64x32xbf16>, vector<2x32xf32> -> vector<2x32xf32>
    %cst_231 = arith.constant -3.000000e+00 : f32
    %cst_232 = arith.constant 3.000000e+00 : f32
    %631 = vector.broadcast %cst_231 : f32 to vector<2x32xf32>
    %632 = arith.maximumf %631, %630 : vector<2x32xf32>
    %633 = vector.broadcast %cst_232 : f32 to vector<2x32xf32>
    %634 = arith.minimumf %633, %632 : vector<2x32xf32>
    %c1_233 = arith.constant 1 : index
    %c14_234 = arith.constant 14 : index
    %c0_235 = arith.constant 0 : index
    %635 = vector.load %arg13[%c1_233, %c14_234, %c0_235] : memref<3x16x64xf32, #tpu.memory_space<vmem>>, vector<1x2x32xf32>
    %636 = vector.shape_cast %635 : vector<1x2x32xf32> to vector<2x32xf32>
    %637 = vector.shape_cast %625 : vector<2x32xf32> to vector<1x2x32xf32>
    tpu.vector_store %arg13[%c1_233, %c14_234, %c0_235], %637 {strides = array<i32>} : memref<3x16x64xf32, #tpu.memory_space<vmem>>, vector<1x2x32xf32>,
    %c1_236 = arith.constant 1 : index
    %c0_237 = arith.constant 0 : index
    %c32_238 = arith.constant 32 : index
    %638 = vector.load %arg13[%c1_236, %c0_237, %c32_238] : memref<3x16x64xf32, #tpu.memory_space<vmem>>, vector<1x2x32xf32>
    %639 = vector.shape_cast %638 : vector<1x2x32xf32> to vector<2x32xf32>
    %640 = vector.shape_cast %634 : vector<2x32xf32> to vector<1x2x32xf32>
    tpu.vector_store %arg13[%c1_236, %c0_237, %c32_238], %640 {strides = array<i32>} : memref<3x16x64xf32, #tpu.memory_space<vmem>>, vector<1x2x32xf32>,
    %c1_239 = arith.constant 1 : index
    %c0_240 = arith.constant 0 : index
    %c0_241 = arith.constant 0 : index
    %c0_242 = arith.constant 0 : index
    %641 = vector.load %arg8[%c1_239, %c0_240, %c0_241, %c0_242] : memref<2x2x64x256xbf16, #tpu.memory_space<vmem>>, vector<1x1x32x256xbf16>
    %642 = vector.shape_cast %641 : vector<1x1x32x256xbf16> to vector<32x256xbf16>
    %c1_243 = arith.constant 1 : index
    %c0_244 = arith.constant 0 : index
    %c32_245 = arith.constant 32 : index
    %c0_246 = arith.constant 0 : index
    %643 = vector.load %arg8[%c1_243, %c0_244, %c32_245, %c0_246] : memref<2x2x64x256xbf16, #tpu.memory_space<vmem>>, vector<1x1x32x256xbf16>
    %644 = vector.shape_cast %643 : vector<1x1x32x256xbf16> to vector<32x256xbf16>
    %c1_247 = arith.constant 1 : index
    %c1_248 = arith.constant 1 : index
    %c0_249 = arith.constant 0 : index
    %c0_250 = arith.constant 0 : index
    %645 = vector.load %arg8[%c1_247, %c1_248, %c0_249, %c0_250] : memref<2x2x64x256xbf16, #tpu.memory_space<vmem>>, vector<1x1x32x256xbf16>
    %646 = vector.shape_cast %645 : vector<1x1x32x256xbf16> to vector<32x256xbf16>
    %c1_251 = arith.constant 1 : index
    %c1_252 = arith.constant 1 : index
    %c32_253 = arith.constant 32 : index
    %c0_254 = arith.constant 0 : index
    %647 = vector.load %arg8[%c1_251, %c1_252, %c32_253, %c0_254] : memref<2x2x64x256xbf16, #tpu.memory_space<vmem>>, vector<1x1x32x256xbf16>
    %648 = vector.shape_cast %647 : vector<1x1x32x256xbf16> to vector<32x256xbf16>
    %c1_255 = arith.constant 1 : index
    %c0_256 = arith.constant 0 : index
    %c0_257 = arith.constant 0 : index
    %c0_258 = arith.constant 0 : index
    %649 = vector.load %arg10[%c1_255, %c0_256, %c0_257, %c0_258] : memref<2x2x64x32xbf16, #tpu.memory_space<vmem>>, vector<1x1x64x32xbf16>
    %650 = vector.shape_cast %649 : vector<1x1x64x32xbf16> to vector<64x32xbf16>
    %c1_259 = arith.constant 1 : index
    %c1_260 = arith.constant 1 : index
    %c0_261 = arith.constant 0 : index
    %c0_262 = arith.constant 0 : index
    %651 = vector.load %arg10[%c1_259, %c1_260, %c0_261, %c0_262] : memref<2x2x64x32xbf16, #tpu.memory_space<vmem>>, vector<1x1x64x32xbf16>
    %652 = vector.shape_cast %651 : vector<1x1x64x32xbf16> to vector<64x32xbf16>
    %c1_263 = arith.constant 1 : index
    %c0_264 = arith.constant 0 : index
    %c0_265 = arith.constant 0 : index
    %653 = vector.load %arg13[%c1_263, %c0_264, %c0_265] : memref<3x16x64xf32, #tpu.memory_space<vmem>>, vector<1x16x32xf32>
    %654 = vector.shape_cast %653 : vector<1x16x32xf32> to vector<16x32xf32>
    %655 = arith.truncf %654 : vector<16x32xf32> to vector<16x32xbf16>
    %cst_266 = arith.constant dense<0.000000e+00> : vector<16x256xf32>
    %656 = tpu.matmul %655, %642, %cst_266 {dimension_numbers = #tpu.dot_dimension_numbers<[1], [0], [0], [1], [0, 0, 1, 1], [], []>} : vector<16x32xbf16>, vector<32x256xbf16>, vector<16x256xf32> -> vector<16x256xf32>
    %c1_267 = arith.constant 1 : index
    %c0_268 = arith.constant 0 : index
    %c0_269 = arith.constant 0 : index
    %c0_270 = arith.constant 0 : index
    %657 = vector.load %arg9[%c1_267, %c0_268, %c0_269, %c0_270] : memref<2x2x1x256xf32, #tpu.memory_space<vmem>>, vector<1x1x1x256xf32>
    %658 = vector.shape_cast %657 : vector<1x1x1x256xf32> to vector<1x256xf32>
    %659 = vector.broadcast %658 : vector<1x256xf32> to vector<16x256xf32>
    %660 = arith.addf %656, %659 : vector<16x256xf32>
    %c1_271 = arith.constant 1 : index
    %c0_272 = arith.constant 0 : index
    %c32_273 = arith.constant 32 : index
    %661 = vector.load %arg13[%c1_271, %c0_272, %c32_273] : memref<3x16x64xf32, #tpu.memory_space<vmem>>, vector<1x16x32xf32>
    %662 = vector.shape_cast %661 : vector<1x16x32xf32> to vector<16x32xf32>
    %663 = arith.truncf %662 : vector<16x32xf32> to vector<16x32xbf16>
    %cst_274 = arith.constant dense<0.000000e+00> : vector<16x256xf32>
    %664 = tpu.matmul %663, %646, %cst_274 {dimension_numbers = #tpu.dot_dimension_numbers<[1], [0], [0], [1], [0, 0, 1, 1], [], []>} : vector<16x32xbf16>, vector<32x256xbf16>, vector<16x256xf32> -> vector<16x256xf32>
    %c1_275 = arith.constant 1 : index
    %c1_276 = arith.constant 1 : index
    %c0_277 = arith.constant 0 : index
    %c0_278 = arith.constant 0 : index
    %665 = vector.load %arg9[%c1_275, %c1_276, %c0_277, %c0_278] : memref<2x2x1x256xf32, #tpu.memory_space<vmem>>, vector<1x1x1x256xf32>
    %666 = vector.shape_cast %665 : vector<1x1x1x256xf32> to vector<1x256xf32>
    %667 = vector.broadcast %666 : vector<1x256xf32> to vector<16x256xf32>
    %668 = arith.addf %664, %667 : vector<16x256xf32>
    %cst_279 = arith.constant 0.000000e+00 : f32
    %669 = vector.broadcast %cst_279 : f32 to vector<2x32xf32>
    %cst_280 = arith.constant 0.000000e+00 : f32
    %670 = vector.broadcast %cst_280 : f32 to vector<2x64xf32>
    %cst_281 = arith.constant 0.000000e+00 : f32
    %671 = vector.broadcast %cst_281 : f32 to vector<2x32xf32>
    %cst_282 = arith.constant 0.000000e+00 : f32
    %672 = vector.broadcast %cst_282 : f32 to vector<2x64xf32>
    %673 = vector.extract_strided_slice %660 {offsets = [0, 0], sizes = [2, 256], strides = [1, 1]} : vector<16x256xf32> to vector<2x256xf32>
    %674 = arith.truncf %669 : vector<2x32xf32> to vector<2x32xbf16>
    %cst_283 = arith.constant dense<0.000000e+00> : vector<2x256xf32>
    %675 = tpu.matmul %674, %644, %cst_283 {dimension_numbers = #tpu.dot_dimension_numbers<[1], [0], [0], [1], [0, 0, 1, 1], [], []>} : vector<2x32xbf16>, vector<32x256xbf16>, vector<2x256xf32> -> vector<2x256xf32>
    %676 = arith.addf %673, %675 : vector<2x256xf32>
    %677 = vector.extract_strided_slice %668 {offsets = [14, 0], sizes = [2, 256], strides = [1, 1]} : vector<16x256xf32> to vector<2x256xf32>
    %678 = arith.truncf %671 : vector<2x32xf32> to vector<2x32xbf16>
    %cst_284 = arith.constant dense<0.000000e+00> : vector<2x256xf32>
    %679 = tpu.matmul %678, %648, %cst_284 {dimension_numbers = #tpu.dot_dimension_numbers<[1], [0], [0], [1], [0, 0, 1, 1], [], []>} : vector<2x32xbf16>, vector<32x256xbf16>, vector<2x256xf32> -> vector<2x256xf32>
    %680 = arith.addf %677, %679 : vector<2x256xf32>
    %681 = vector.extract_strided_slice %676 {offsets = [0, 0], sizes = [2, 192], strides = [1, 1]} : vector<2x256xf32> to vector<2x192xf32>
    %682 = arith.negf %681 : vector<2x192xf32>
    %683 = math.exp %682 : vector<2x192xf32>
    %cst_285 = arith.constant 1.000000e+00 : f32
    %684 = vector.broadcast %cst_285 : f32 to vector<2x192xf32>
    %685 = arith.addf %684, %683 : vector<2x192xf32>
    %686 = arith.divf %684, %685 : vector<2x192xf32>
    %687 = vector.extract_strided_slice %680 {offsets = [0, 0], sizes = [2, 192], strides = [1, 1]} : vector<2x256xf32> to vector<2x192xf32>
    %688 = arith.negf %687 : vector<2x192xf32>
    %689 = math.exp %688 : vector<2x192xf32>
    %cst_286 = arith.constant 1.000000e+00 : f32
    %690 = vector.broadcast %cst_286 : f32 to vector<2x192xf32>
    %691 = arith.addf %690, %689 : vector<2x192xf32>
    %692 = arith.divf %690, %691 : vector<2x192xf32>
    %693 = vector.extract_strided_slice %676 {offsets = [0, 192], sizes = [2, 64], strides = [1, 1]} : vector<2x256xf32> to vector<2x64xf32>
    %694 = math.tanh %693 : vector<2x64xf32>
    %695 = vector.extract_strided_slice %680 {offsets = [0, 192], sizes = [2, 64], strides = [1, 1]} : vector<2x256xf32> to vector<2x64xf32>
    %696 = math.tanh %695 : vector<2x64xf32>
    %697 = vector.extract_strided_slice %686 {offsets = [0, 64], sizes = [2, 64], strides = [1, 1]} : vector<2x192xf32> to vector<2x64xf32>
    %698 = arith.mulf %697, %670 : vector<2x64xf32>
    %699 = vector.extract_strided_slice %686 {offsets = [0, 0], sizes = [2, 64], strides = [1, 1]} : vector<2x192xf32> to vector<2x64xf32>
    %700 = arith.mulf %699, %694 : vector<2x64xf32>
    %701 = arith.addf %698, %700 : vector<2x64xf32>
    %cst_287 = arith.constant -3.000000e+00 : f32
    %cst_288 = arith.constant 3.000000e+00 : f32
    %702 = vector.broadcast %cst_287 : f32 to vector<2x64xf32>
    %703 = arith.maximumf %702, %701 : vector<2x64xf32>
    %704 = vector.broadcast %cst_288 : f32 to vector<2x64xf32>
    %705 = arith.minimumf %704, %703 : vector<2x64xf32>
    %706 = vector.extract_strided_slice %692 {offsets = [0, 64], sizes = [2, 64], strides = [1, 1]} : vector<2x192xf32> to vector<2x64xf32>
    %707 = arith.mulf %706, %672 : vector<2x64xf32>
    %708 = vector.extract_strided_slice %692 {offsets = [0, 0], sizes = [2, 64], strides = [1, 1]} : vector<2x192xf32> to vector<2x64xf32>
    %709 = arith.mulf %708, %696 : vector<2x64xf32>
    %710 = arith.addf %707, %709 : vector<2x64xf32>
    %cst_289 = arith.constant -3.000000e+00 : f32
    %cst_290 = arith.constant 3.000000e+00 : f32
    %711 = vector.broadcast %cst_289 : f32 to vector<2x64xf32>
    %712 = arith.maximumf %711, %710 : vector<2x64xf32>
    %713 = vector.broadcast %cst_290 : f32 to vector<2x64xf32>
    %714 = arith.minimumf %713, %712 : vector<2x64xf32>
    %715 = vector.extract_strided_slice %686 {offsets = [0, 128], sizes = [2, 64], strides = [1, 1]} : vector<2x192xf32> to vector<2x64xf32>
    %716 = math.tanh %705 : vector<2x64xf32>
    %717 = arith.mulf %715, %716 : vector<2x64xf32>
    %718 = arith.truncf %717 : vector<2x64xf32> to vector<2x64xbf16>
    %cst_291 = arith.constant dense<0.000000e+00> : vector<2x32xf32>
    %719 = tpu.matmul %718, %650, %cst_291 {dimension_numbers = #tpu.dot_dimension_numbers<[1], [0], [0], [1], [0, 0, 1, 1], [], []>} : vector<2x64xbf16>, vector<64x32xbf16>, vector<2x32xf32> -> vector<2x32xf32>
    %cst_292 = arith.constant -3.000000e+00 : f32
    %cst_293 = arith.constant 3.000000e+00 : f32
    %720 = vector.broadcast %cst_292 : f32 to vector<2x32xf32>
    %721 = arith.maximumf %720, %719 : vector<2x32xf32>
    %722 = vector.broadcast %cst_293 : f32 to vector<2x32xf32>
    %723 = arith.minimumf %722, %721 : vector<2x32xf32>
    %724 = vector.extract_strided_slice %692 {offsets = [0, 128], sizes = [2, 64], strides = [1, 1]} : vector<2x192xf32> to vector<2x64xf32>
    %725 = math.tanh %714 : vector<2x64xf32>
    %726 = arith.mulf %724, %725 : vector<2x64xf32>
    %727 = arith.truncf %726 : vector<2x64xf32> to vector<2x64xbf16>
    %cst_294 = arith.constant dense<0.000000e+00> : vector<2x32xf32>
    %728 = tpu.matmul %727, %652, %cst_294 {dimension_numbers = #tpu.dot_dimension_numbers<[1], [0], [0], [1], [0, 0, 1, 1], [], []>} : vector<2x64xbf16>, vector<64x32xbf16>, vector<2x32xf32> -> vector<2x32xf32>
    %cst_295 = arith.constant -3.000000e+00 : f32
    %cst_296 = arith.constant 3.000000e+00 : f32
    %729 = vector.broadcast %cst_295 : f32 to vector<2x32xf32>
    %730 = arith.maximumf %729, %728 : vector<2x32xf32>
    %731 = vector.broadcast %cst_296 : f32 to vector<2x32xf32>
    %732 = arith.minimumf %731, %730 : vector<2x32xf32>
    %c2_297 = arith.constant 2 : index
    %c0_298 = arith.constant 0 : index
    %c0_299 = arith.constant 0 : index
    %733 = vector.load %arg13[%c2_297, %c0_298, %c0_299] : memref<3x16x64xf32, #tpu.memory_space<vmem>>, vector<1x2x32xf32>
    %734 = vector.shape_cast %733 : vector<1x2x32xf32> to vector<2x32xf32>
    %735 = vector.shape_cast %723 : vector<2x32xf32> to vector<1x2x32xf32>
    tpu.vector_store %arg13[%c2_297, %c0_298, %c0_299], %735 {strides = array<i32>} : memref<3x16x64xf32, #tpu.memory_space<vmem>>, vector<1x2x32xf32>,
    %c2_300 = arith.constant 2 : index
    %c14_301 = arith.constant 14 : index
    %c32_302 = arith.constant 32 : index
    %736 = vector.load %arg13[%c2_300, %c14_301, %c32_302] : memref<3x16x64xf32, #tpu.memory_space<vmem>>, vector<1x2x32xf32>
    %737 = vector.shape_cast %736 : vector<1x2x32xf32> to vector<2x32xf32>
    %738 = vector.shape_cast %732 : vector<2x32xf32> to vector<1x2x32xf32>
    tpu.vector_store %arg13[%c2_300, %c14_301, %c32_302], %738 {strides = array<i32>} : memref<3x16x64xf32, #tpu.memory_space<vmem>>, vector<1x2x32xf32>,
    %739 = vector.extract_strided_slice %660 {offsets = [2, 0], sizes = [2, 256], strides = [1, 1]} : vector<16x256xf32> to vector<2x256xf32>
    %740 = arith.truncf %723 : vector<2x32xf32> to vector<2x32xbf16>
    %cst_303 = arith.constant dense<0.000000e+00> : vector<2x256xf32>
    %741 = tpu.matmul %740, %644, %cst_303 {dimension_numbers = #tpu.dot_dimension_numbers<[1], [0], [0], [1], [0, 0, 1, 1], [], []>} : vector<2x32xbf16>, vector<32x256xbf16>, vector<2x256xf32> -> vector<2x256xf32>
    %742 = arith.addf %739, %741 : vector<2x256xf32>
    %743 = vector.extract_strided_slice %668 {offsets = [12, 0], sizes = [2, 256], strides = [1, 1]} : vector<16x256xf32> to vector<2x256xf32>
    %744 = arith.truncf %732 : vector<2x32xf32> to vector<2x32xbf16>
    %cst_304 = arith.constant dense<0.000000e+00> : vector<2x256xf32>
    %745 = tpu.matmul %744, %648, %cst_304 {dimension_numbers = #tpu.dot_dimension_numbers<[1], [0], [0], [1], [0, 0, 1, 1], [], []>} : vector<2x32xbf16>, vector<32x256xbf16>, vector<2x256xf32> -> vector<2x256xf32>
    %746 = arith.addf %743, %745 : vector<2x256xf32>
    %747 = vector.extract_strided_slice %742 {offsets = [0, 0], sizes = [2, 192], strides = [1, 1]} : vector<2x256xf32> to vector<2x192xf32>
    %748 = arith.negf %747 : vector<2x192xf32>
    %749 = math.exp %748 : vector<2x192xf32>
    %cst_305 = arith.constant 1.000000e+00 : f32
    %750 = vector.broadcast %cst_305 : f32 to vector<2x192xf32>
    %751 = arith.addf %750, %749 : vector<2x192xf32>
    %752 = arith.divf %750, %751 : vector<2x192xf32>
    %753 = vector.extract_strided_slice %746 {offsets = [0, 0], sizes = [2, 192], strides = [1, 1]} : vector<2x256xf32> to vector<2x192xf32>
    %754 = arith.negf %753 : vector<2x192xf32>
    %755 = math.exp %754 : vector<2x192xf32>
    %cst_306 = arith.constant 1.000000e+00 : f32
    %756 = vector.broadcast %cst_306 : f32 to vector<2x192xf32>
    %757 = arith.addf %756, %755 : vector<2x192xf32>
    %758 = arith.divf %756, %757 : vector<2x192xf32>
    %759 = vector.extract_strided_slice %742 {offsets = [0, 192], sizes = [2, 64], strides = [1, 1]} : vector<2x256xf32> to vector<2x64xf32>
    %760 = math.tanh %759 : vector<2x64xf32>
    %761 = vector.extract_strided_slice %746 {offsets = [0, 192], sizes = [2, 64], strides = [1, 1]} : vector<2x256xf32> to vector<2x64xf32>
    %762 = math.tanh %761 : vector<2x64xf32>
    %763 = vector.extract_strided_slice %752 {offsets = [0, 64], sizes = [2, 64], strides = [1, 1]} : vector<2x192xf32> to vector<2x64xf32>
    %764 = arith.mulf %763, %705 : vector<2x64xf32>
    %765 = vector.extract_strided_slice %752 {offsets = [0, 0], sizes = [2, 64], strides = [1, 1]} : vector<2x192xf32> to vector<2x64xf32>
    %766 = arith.mulf %765, %760 : vector<2x64xf32>
    %767 = arith.addf %764, %766 : vector<2x64xf32>
    %cst_307 = arith.constant -3.000000e+00 : f32
    %cst_308 = arith.constant 3.000000e+00 : f32
    %768 = vector.broadcast %cst_307 : f32 to vector<2x64xf32>
    %769 = arith.maximumf %768, %767 : vector<2x64xf32>
    %770 = vector.broadcast %cst_308 : f32 to vector<2x64xf32>
    %771 = arith.minimumf %770, %769 : vector<2x64xf32>
    %772 = vector.extract_strided_slice %758 {offsets = [0, 64], sizes = [2, 64], strides = [1, 1]} : vector<2x192xf32> to vector<2x64xf32>
    %773 = arith.mulf %772, %714 : vector<2x64xf32>
    %774 = vector.extract_strided_slice %758 {offsets = [0, 0], sizes = [2, 64], strides = [1, 1]} : vector<2x192xf32> to vector<2x64xf32>
    %775 = arith.mulf %774, %762 : vector<2x64xf32>
    %776 = arith.addf %773, %775 : vector<2x64xf32>
    %cst_309 = arith.constant -3.000000e+00 : f32
    %cst_310 = arith.constant 3.000000e+00 : f32
    %777 = vector.broadcast %cst_309 : f32 to vector<2x64xf32>
    %778 = arith.maximumf %777, %776 : vector<2x64xf32>
    %779 = vector.broadcast %cst_310 : f32 to vector<2x64xf32>
    %780 = arith.minimumf %779, %778 : vector<2x64xf32>
    %781 = vector.extract_strided_slice %752 {offsets = [0, 128], sizes = [2, 64], strides = [1, 1]} : vector<2x192xf32> to vector<2x64xf32>
    %782 = math.tanh %771 : vector<2x64xf32>
    %783 = arith.mulf %781, %782 : vector<2x64xf32>
    %784 = arith.truncf %783 : vector<2x64xf32> to vector<2x64xbf16>
    %cst_311 = arith.constant dense<0.000000e+00> : vector<2x32xf32>
    %785 = tpu.matmul %784, %650, %cst_311 {dimension_numbers = #tpu.dot_dimension_numbers<[1], [0], [0], [1], [0, 0, 1, 1], [], []>} : vector<2x64xbf16>, vector<64x32xbf16>, vector<2x32xf32> -> vector<2x32xf32>
    %cst_312 = arith.constant -3.000000e+00 : f32
    %cst_313 = arith.constant 3.000000e+00 : f32
    %786 = vector.broadcast %cst_312 : f32 to vector<2x32xf32>
    %787 = arith.maximumf %786, %785 : vector<2x32xf32>
    %788 = vector.broadcast %cst_313 : f32 to vector<2x32xf32>
    %789 = arith.minimumf %788, %787 : vector<2x32xf32>
    %790 = vector.extract_strided_slice %758 {offsets = [0, 128], sizes = [2, 64], strides = [1, 1]} : vector<2x192xf32> to vector<2x64xf32>
    %791 = math.tanh %780 : vector<2x64xf32>
    %792 = arith.mulf %790, %791 : vector<2x64xf32>
    %793 = arith.truncf %792 : vector<2x64xf32> to vector<2x64xbf16>
    %cst_314 = arith.constant dense<0.000000e+00> : vector<2x32xf32>
    %794 = tpu.matmul %793, %652, %cst_314 {dimension_numbers = #tpu.dot_dimension_numbers<[1], [0], [0], [1], [0, 0, 1, 1], [], []>} : vector<2x64xbf16>, vector<64x32xbf16>, vector<2x32xf32> -> vector<2x32xf32>
    %cst_315 = arith.constant -3.000000e+00 : f32
    %cst_316 = arith.constant 3.000000e+00 : f32
    %795 = vector.broadcast %cst_315 : f32 to vector<2x32xf32>
    %796 = arith.maximumf %795, %794 : vector<2x32xf32>
    %797 = vector.broadcast %cst_316 : f32 to vector<2x32xf32>
    %798 = arith.minimumf %797, %796 : vector<2x32xf32>
    %c2_317 = arith.constant 2 : index
    %c2_318 = arith.constant 2 : index
    %c0_319 = arith.constant 0 : index
    %799 = vector.load %arg13[%c2_317, %c2_318, %c0_319] : memref<3x16x64xf32, #tpu.memory_space<vmem>>, vector<1x2x32xf32>
    %800 = vector.shape_cast %799 : vector<1x2x32xf32> to vector<2x32xf32>
    %801 = vector.shape_cast %789 : vector<2x32xf32> to vector<1x2x32xf32>
    tpu.vector_store %arg13[%c2_317, %c2_318, %c0_319], %801 {strides = array<i32>} : memref<3x16x64xf32, #tpu.memory_space<vmem>>, vector<1x2x32xf32>,
    %c2_320 = arith.constant 2 : index
    %c12_321 = arith.constant 12 : index
    %c32_322 = arith.constant 32 : index
    %802 = vector.load %arg13[%c2_320, %c12_321, %c32_322] : memref<3x16x64xf32, #tpu.memory_space<vmem>>, vector<1x2x32xf32>
    %803 = vector.shape_cast %802 : vector<1x2x32xf32> to vector<2x32xf32>
    %804 = vector.shape_cast %798 : vector<2x32xf32> to vector<1x2x32xf32>
    tpu.vector_store %arg13[%c2_320, %c12_321, %c32_322], %804 {strides = array<i32>} : memref<3x16x64xf32, #tpu.memory_space<vmem>>, vector<1x2x32xf32>,
    %805 = vector.extract_strided_slice %660 {offsets = [4, 0], sizes = [2, 256], strides = [1, 1]} : vector<16x256xf32> to vector<2x256xf32>
    %806 = arith.truncf %789 : vector<2x32xf32> to vector<2x32xbf16>
    %cst_323 = arith.constant dense<0.000000e+00> : vector<2x256xf32>
    %807 = tpu.matmul %806, %644, %cst_323 {dimension_numbers = #tpu.dot_dimension_numbers<[1], [0], [0], [1], [0, 0, 1, 1], [], []>} : vector<2x32xbf16>, vector<32x256xbf16>, vector<2x256xf32> -> vector<2x256xf32>
    %808 = arith.addf %805, %807 : vector<2x256xf32>
    %809 = vector.extract_strided_slice %668 {offsets = [10, 0], sizes = [2, 256], strides = [1, 1]} : vector<16x256xf32> to vector<2x256xf32>
    %810 = arith.truncf %798 : vector<2x32xf32> to vector<2x32xbf16>
    %cst_324 = arith.constant dense<0.000000e+00> : vector<2x256xf32>
    %811 = tpu.matmul %810, %648, %cst_324 {dimension_numbers = #tpu.dot_dimension_numbers<[1], [0], [0], [1], [0, 0, 1, 1], [], []>} : vector<2x32xbf16>, vector<32x256xbf16>, vector<2x256xf32> -> vector<2x256xf32>
    %812 = arith.addf %809, %811 : vector<2x256xf32>
    %813 = vector.extract_strided_slice %808 {offsets = [0, 0], sizes = [2, 192], strides = [1, 1]} : vector<2x256xf32> to vector<2x192xf32>
    %814 = arith.negf %813 : vector<2x192xf32>
    %815 = math.exp %814 : vector<2x192xf32>
    %cst_325 = arith.constant 1.000000e+00 : f32
    %816 = vector.broadcast %cst_325 : f32 to vector<2x192xf32>
    %817 = arith.addf %816, %815 : vector<2x192xf32>
    %818 = arith.divf %816, %817 : vector<2x192xf32>
    %819 = vector.extract_strided_slice %812 {offsets = [0, 0], sizes = [2, 192], strides = [1, 1]} : vector<2x256xf32> to vector<2x192xf32>
    %820 = arith.negf %819 : vector<2x192xf32>
    %821 = math.exp %820 : vector<2x192xf32>
    %cst_326 = arith.constant 1.000000e+00 : f32
    %822 = vector.broadcast %cst_326 : f32 to vector<2x192xf32>
    %823 = arith.addf %822, %821 : vector<2x192xf32>
    %824 = arith.divf %822, %823 : vector<2x192xf32>
    %825 = vector.extract_strided_slice %808 {offsets = [0, 192], sizes = [2, 64], strides = [1, 1]} : vector<2x256xf32> to vector<2x64xf32>
    %826 = math.tanh %825 : vector<2x64xf32>
    %827 = vector.extract_strided_slice %812 {offsets = [0, 192], sizes = [2, 64], strides = [1, 1]} : vector<2x256xf32> to vector<2x64xf32>
    %828 = math.tanh %827 : vector<2x64xf32>
    %829 = vector.extract_strided_slice %818 {offsets = [0, 64], sizes = [2, 64], strides = [1, 1]} : vector<2x192xf32> to vector<2x64xf32>
    %830 = arith.mulf %829, %771 : vector<2x64xf32>
    %831 = vector.extract_strided_slice %818 {offsets = [0, 0], sizes = [2, 64], strides = [1, 1]} : vector<2x192xf32> to vector<2x64xf32>
    %832 = arith.mulf %831, %826 : vector<2x64xf32>
    %833 = arith.addf %830, %832 : vector<2x64xf32>
    %cst_327 = arith.constant -3.000000e+00 : f32
    %cst_328 = arith.constant 3.000000e+00 : f32
    %834 = vector.broadcast %cst_327 : f32 to vector<2x64xf32>
    %835 = arith.maximumf %834, %833 : vector<2x64xf32>
    %836 = vector.broadcast %cst_328 : f32 to vector<2x64xf32>
    %837 = arith.minimumf %836, %835 : vector<2x64xf32>
    %838 = vector.extract_strided_slice %824 {offsets = [0, 64], sizes = [2, 64], strides = [1, 1]} : vector<2x192xf32> to vector<2x64xf32>
    %839 = arith.mulf %838, %780 : vector<2x64xf32>
    %840 = vector.extract_strided_slice %824 {offsets = [0, 0], sizes = [2, 64], strides = [1, 1]} : vector<2x192xf32> to vector<2x64xf32>
    %841 = arith.mulf %840, %828 : vector<2x64xf32>
    %842 = arith.addf %839, %841 : vector<2x64xf32>
    %cst_329 = arith.constant -3.000000e+00 : f32
    %cst_330 = arith.constant 3.000000e+00 : f32
    %843 = vector.broadcast %cst_329 : f32 to vector<2x64xf32>
    %844 = arith.maximumf %843, %842 : vector<2x64xf32>
    %845 = vector.broadcast %cst_330 : f32 to vector<2x64xf32>
    %846 = arith.minimumf %845, %844 : vector<2x64xf32>
    %847 = vector.extract_strided_slice %818 {offsets = [0, 128], sizes = [2, 64], strides = [1, 1]} : vector<2x192xf32> to vector<2x64xf32>
    %848 = math.tanh %837 : vector<2x64xf32>
    %849 = arith.mulf %847, %848 : vector<2x64xf32>
    %850 = arith.truncf %849 : vector<2x64xf32> to vector<2x64xbf16>
    %cst_331 = arith.constant dense<0.000000e+00> : vector<2x32xf32>
    %851 = tpu.matmul %850, %650, %cst_331 {dimension_numbers = #tpu.dot_dimension_numbers<[1], [0], [0], [1], [0, 0, 1, 1], [], []>} : vector<2x64xbf16>, vector<64x32xbf16>, vector<2x32xf32> -> vector<2x32xf32>
    %cst_332 = arith.constant -3.000000e+00 : f32
    %cst_333 = arith.constant 3.000000e+00 : f32
    %852 = vector.broadcast %cst_332 : f32 to vector<2x32xf32>
    %853 = arith.maximumf %852, %851 : vector<2x32xf32>
    %854 = vector.broadcast %cst_333 : f32 to vector<2x32xf32>
    %855 = arith.minimumf %854, %853 : vector<2x32xf32>
    %856 = vector.extract_strided_slice %824 {offsets = [0, 128], sizes = [2, 64], strides = [1, 1]} : vector<2x192xf32> to vector<2x64xf32>
    %857 = math.tanh %846 : vector<2x64xf32>
    %858 = arith.mulf %856, %857 : vector<2x64xf32>
    %859 = arith.truncf %858 : vector<2x64xf32> to vector<2x64xbf16>
    %cst_334 = arith.constant dense<0.000000e+00> : vector<2x32xf32>
    %860 = tpu.matmul %859, %652, %cst_334 {dimension_numbers = #tpu.dot_dimension_numbers<[1], [0], [0], [1], [0, 0, 1, 1], [], []>} : vector<2x64xbf16>, vector<64x32xbf16>, vector<2x32xf32> -> vector<2x32xf32>
    %cst_335 = arith.constant -3.000000e+00 : f32
    %cst_336 = arith.constant 3.000000e+00 : f32
    %861 = vector.broadcast %cst_335 : f32 to vector<2x32xf32>
    %862 = arith.maximumf %861, %860 : vector<2x32xf32>
    %863 = vector.broadcast %cst_336 : f32 to vector<2x32xf32>
    %864 = arith.minimumf %863, %862 : vector<2x32xf32>
    %c2_337 = arith.constant 2 : index
    %c4_338 = arith.constant 4 : index
    %c0_339 = arith.constant 0 : index
    %865 = vector.load %arg13[%c2_337, %c4_338, %c0_339] : memref<3x16x64xf32, #tpu.memory_space<vmem>>, vector<1x2x32xf32>
    %866 = vector.shape_cast %865 : vector<1x2x32xf32> to vector<2x32xf32>
    %867 = vector.shape_cast %855 : vector<2x32xf32> to vector<1x2x32xf32>
    tpu.vector_store %arg13[%c2_337, %c4_338, %c0_339], %867 {strides = array<i32>} : memref<3x16x64xf32, #tpu.memory_space<vmem>>, vector<1x2x32xf32>,
    %c2_340 = arith.constant 2 : index
    %c10_341 = arith.constant 10 : index
    %c32_342 = arith.constant 32 : index
    %868 = vector.load %arg13[%c2_340, %c10_341, %c32_342] : memref<3x16x64xf32, #tpu.memory_space<vmem>>, vector<1x2x32xf32>
    %869 = vector.shape_cast %868 : vector<1x2x32xf32> to vector<2x32xf32>
    %870 = vector.shape_cast %864 : vector<2x32xf32> to vector<1x2x32xf32>
    tpu.vector_store %arg13[%c2_340, %c10_341, %c32_342], %870 {strides = array<i32>} : memref<3x16x64xf32, #tpu.memory_space<vmem>>, vector<1x2x32xf32>,
    %871 = vector.extract_strided_slice %660 {offsets = [6, 0], sizes = [2, 256], strides = [1, 1]} : vector<16x256xf32> to vector<2x256xf32>
    %872 = arith.truncf %855 : vector<2x32xf32> to vector<2x32xbf16>
    %cst_343 = arith.constant dense<0.000000e+00> : vector<2x256xf32>
    %873 = tpu.matmul %872, %644, %cst_343 {dimension_numbers = #tpu.dot_dimension_numbers<[1], [0], [0], [1], [0, 0, 1, 1], [], []>} : vector<2x32xbf16>, vector<32x256xbf16>, vector<2x256xf32> -> vector<2x256xf32>
    %874 = arith.addf %871, %873 : vector<2x256xf32>
    %875 = vector.extract_strided_slice %668 {offsets = [8, 0], sizes = [2, 256], strides = [1, 1]} : vector<16x256xf32> to vector<2x256xf32>
    %876 = arith.truncf %864 : vector<2x32xf32> to vector<2x32xbf16>
    %cst_344 = arith.constant dense<0.000000e+00> : vector<2x256xf32>
    %877 = tpu.matmul %876, %648, %cst_344 {dimension_numbers = #tpu.dot_dimension_numbers<[1], [0], [0], [1], [0, 0, 1, 1], [], []>} : vector<2x32xbf16>, vector<32x256xbf16>, vector<2x256xf32> -> vector<2x256xf32>
    %878 = arith.addf %875, %877 : vector<2x256xf32>
    %879 = vector.extract_strided_slice %874 {offsets = [0, 0], sizes = [2, 192], strides = [1, 1]} : vector<2x256xf32> to vector<2x192xf32>
    %880 = arith.negf %879 : vector<2x192xf32>
    %881 = math.exp %880 : vector<2x192xf32>
    %cst_345 = arith.constant 1.000000e+00 : f32
    %882 = vector.broadcast %cst_345 : f32 to vector<2x192xf32>
    %883 = arith.addf %882, %881 : vector<2x192xf32>
    %884 = arith.divf %882, %883 : vector<2x192xf32>
    %885 = vector.extract_strided_slice %878 {offsets = [0, 0], sizes = [2, 192], strides = [1, 1]} : vector<2x256xf32> to vector<2x192xf32>
    %886 = arith.negf %885 : vector<2x192xf32>
    %887 = math.exp %886 : vector<2x192xf32>
    %cst_346 = arith.constant 1.000000e+00 : f32
    %888 = vector.broadcast %cst_346 : f32 to vector<2x192xf32>
    %889 = arith.addf %888, %887 : vector<2x192xf32>
    %890 = arith.divf %888, %889 : vector<2x192xf32>
    %891 = vector.extract_strided_slice %874 {offsets = [0, 192], sizes = [2, 64], strides = [1, 1]} : vector<2x256xf32> to vector<2x64xf32>
    %892 = math.tanh %891 : vector<2x64xf32>
    %893 = vector.extract_strided_slice %878 {offsets = [0, 192], sizes = [2, 64], strides = [1, 1]} : vector<2x256xf32> to vector<2x64xf32>
    %894 = math.tanh %893 : vector<2x64xf32>
    %895 = vector.extract_strided_slice %884 {offsets = [0, 64], sizes = [2, 64], strides = [1, 1]} : vector<2x192xf32> to vector<2x64xf32>
    %896 = arith.mulf %895, %837 : vector<2x64xf32>
    %897 = vector.extract_strided_slice %884 {offsets = [0, 0], sizes = [2, 64], strides = [1, 1]} : vector<2x192xf32> to vector<2x64xf32>
    %898 = arith.mulf %897, %892 : vector<2x64xf32>
    %899 = arith.addf %896, %898 : vector<2x64xf32>
    %cst_347 = arith.constant -3.000000e+00 : f32
    %cst_348 = arith.constant 3.000000e+00 : f32
    %900 = vector.broadcast %cst_347 : f32 to vector<2x64xf32>
    %901 = arith.maximumf %900, %899 : vector<2x64xf32>
    %902 = vector.broadcast %cst_348 : f32 to vector<2x64xf32>
    %903 = arith.minimumf %902, %901 : vector<2x64xf32>
    %904 = vector.extract_strided_slice %890 {offsets = [0, 64], sizes = [2, 64], strides = [1, 1]} : vector<2x192xf32> to vector<2x64xf32>
    %905 = arith.mulf %904, %846 : vector<2x64xf32>
    %906 = vector.extract_strided_slice %890 {offsets = [0, 0], sizes = [2, 64], strides = [1, 1]} : vector<2x192xf32> to vector<2x64xf32>
    %907 = arith.mulf %906, %894 : vector<2x64xf32>
    %908 = arith.addf %905, %907 : vector<2x64xf32>
    %cst_349 = arith.constant -3.000000e+00 : f32
    %cst_350 = arith.constant 3.000000e+00 : f32
    %909 = vector.broadcast %cst_349 : f32 to vector<2x64xf32>
    %910 = arith.maximumf %909, %908 : vector<2x64xf32>
    %911 = vector.broadcast %cst_350 : f32 to vector<2x64xf32>
    %912 = arith.minimumf %911, %910 : vector<2x64xf32>
    %913 = vector.extract_strided_slice %884 {offsets = [0, 128], sizes = [2, 64], strides = [1, 1]} : vector<2x192xf32> to vector<2x64xf32>
    %914 = math.tanh %903 : vector<2x64xf32>
    %915 = arith.mulf %913, %914 : vector<2x64xf32>
    %916 = arith.truncf %915 : vector<2x64xf32> to vector<2x64xbf16>
    %cst_351 = arith.constant dense<0.000000e+00> : vector<2x32xf32>
    %917 = tpu.matmul %916, %650, %cst_351 {dimension_numbers = #tpu.dot_dimension_numbers<[1], [0], [0], [1], [0, 0, 1, 1], [], []>} : vector<2x64xbf16>, vector<64x32xbf16>, vector<2x32xf32> -> vector<2x32xf32>
    %cst_352 = arith.constant -3.000000e+00 : f32
    %cst_353 = arith.constant 3.000000e+00 : f32
    %918 = vector.broadcast %cst_352 : f32 to vector<2x32xf32>
    %919 = arith.maximumf %918, %917 : vector<2x32xf32>
    %920 = vector.broadcast %cst_353 : f32 to vector<2x32xf32>
    %921 = arith.minimumf %920, %919 : vector<2x32xf32>
    %922 = vector.extract_strided_slice %890 {offsets = [0, 128], sizes = [2, 64], strides = [1, 1]} : vector<2x192xf32> to vector<2x64xf32>
    %923 = math.tanh %912 : vector<2x64xf32>
    %924 = arith.mulf %922, %923 : vector<2x64xf32>
    %925 = arith.truncf %924 : vector<2x64xf32> to vector<2x64xbf16>
    %cst_354 = arith.constant dense<0.000000e+00> : vector<2x32xf32>
    %926 = tpu.matmul %925, %652, %cst_354 {dimension_numbers = #tpu.dot_dimension_numbers<[1], [0], [0], [1], [0, 0, 1, 1], [], []>} : vector<2x64xbf16>, vector<64x32xbf16>, vector<2x32xf32> -> vector<2x32xf32>
    %cst_355 = arith.constant -3.000000e+00 : f32
    %cst_356 = arith.constant 3.000000e+00 : f32
    %927 = vector.broadcast %cst_355 : f32 to vector<2x32xf32>
    %928 = arith.maximumf %927, %926 : vector<2x32xf32>
    %929 = vector.broadcast %cst_356 : f32 to vector<2x32xf32>
    %930 = arith.minimumf %929, %928 : vector<2x32xf32>
    %c2_357 = arith.constant 2 : index
    %c6_358 = arith.constant 6 : index
    %c0_359 = arith.constant 0 : index
    %931 = vector.load %arg13[%c2_357, %c6_358, %c0_359] : memref<3x16x64xf32, #tpu.memory_space<vmem>>, vector<1x2x32xf32>
    %932 = vector.shape_cast %931 : vector<1x2x32xf32> to vector<2x32xf32>
    %933 = vector.shape_cast %921 : vector<2x32xf32> to vector<1x2x32xf32>
    tpu.vector_store %arg13[%c2_357, %c6_358, %c0_359], %933 {strides = array<i32>} : memref<3x16x64xf32, #tpu.memory_space<vmem>>, vector<1x2x32xf32>,
    %c2_360 = arith.constant 2 : index
    %c8_361 = arith.constant 8 : index
    %c32_362 = arith.constant 32 : index
    %934 = vector.load %arg13[%c2_360, %c8_361, %c32_362] : memref<3x16x64xf32, #tpu.memory_space<vmem>>, vector<1x2x32xf32>
    %935 = vector.shape_cast %934 : vector<1x2x32xf32> to vector<2x32xf32>
    %936 = vector.shape_cast %930 : vector<2x32xf32> to vector<1x2x32xf32>
    tpu.vector_store %arg13[%c2_360, %c8_361, %c32_362], %936 {strides = array<i32>} : memref<3x16x64xf32, #tpu.memory_space<vmem>>, vector<1x2x32xf32>,
    %937 = vector.extract_strided_slice %660 {offsets = [8, 0], sizes = [2, 256], strides = [1, 1]} : vector<16x256xf32> to vector<2x256xf32>
    %938 = arith.truncf %921 : vector<2x32xf32> to vector<2x32xbf16>
    %cst_363 = arith.constant dense<0.000000e+00> : vector<2x256xf32>
    %939 = tpu.matmul %938, %644, %cst_363 {dimension_numbers = #tpu.dot_dimension_numbers<[1], [0], [0], [1], [0, 0, 1, 1], [], []>} : vector<2x32xbf16>, vector<32x256xbf16>, vector<2x256xf32> -> vector<2x256xf32>
    %940 = arith.addf %937, %939 : vector<2x256xf32>
    %941 = vector.extract_strided_slice %668 {offsets = [6, 0], sizes = [2, 256], strides = [1, 1]} : vector<16x256xf32> to vector<2x256xf32>
    %942 = arith.truncf %930 : vector<2x32xf32> to vector<2x32xbf16>
    %cst_364 = arith.constant dense<0.000000e+00> : vector<2x256xf32>
    %943 = tpu.matmul %942, %648, %cst_364 {dimension_numbers = #tpu.dot_dimension_numbers<[1], [0], [0], [1], [0, 0, 1, 1], [], []>} : vector<2x32xbf16>, vector<32x256xbf16>, vector<2x256xf32> -> vector<2x256xf32>
    %944 = arith.addf %941, %943 : vector<2x256xf32>
    %945 = vector.extract_strided_slice %940 {offsets = [0, 0], sizes = [2, 192], strides = [1, 1]} : vector<2x256xf32> to vector<2x192xf32>
    %946 = arith.negf %945 : vector<2x192xf32>
    %947 = math.exp %946 : vector<2x192xf32>
    %cst_365 = arith.constant 1.000000e+00 : f32
    %948 = vector.broadcast %cst_365 : f32 to vector<2x192xf32>
    %949 = arith.addf %948, %947 : vector<2x192xf32>
    %950 = arith.divf %948, %949 : vector<2x192xf32>
    %951 = vector.extract_strided_slice %944 {offsets = [0, 0], sizes = [2, 192], strides = [1, 1]} : vector<2x256xf32> to vector<2x192xf32>
    %952 = arith.negf %951 : vector<2x192xf32>
    %953 = math.exp %952 : vector<2x192xf32>
    %cst_366 = arith.constant 1.000000e+00 : f32
    %954 = vector.broadcast %cst_366 : f32 to vector<2x192xf32>
    %955 = arith.addf %954, %953 : vector<2x192xf32>
    %956 = arith.divf %954, %955 : vector<2x192xf32>
    %957 = vector.extract_strided_slice %940 {offsets = [0, 192], sizes = [2, 64], strides = [1, 1]} : vector<2x256xf32> to vector<2x64xf32>
    %958 = math.tanh %957 : vector<2x64xf32>
    %959 = vector.extract_strided_slice %944 {offsets = [0, 192], sizes = [2, 64], strides = [1, 1]} : vector<2x256xf32> to vector<2x64xf32>
    %960 = math.tanh %959 : vector<2x64xf32>
    %961 = vector.extract_strided_slice %950 {offsets = [0, 64], sizes = [2, 64], strides = [1, 1]} : vector<2x192xf32> to vector<2x64xf32>
    %962 = arith.mulf %961, %903 : vector<2x64xf32>
    %963 = vector.extract_strided_slice %950 {offsets = [0, 0], sizes = [2, 64], strides = [1, 1]} : vector<2x192xf32> to vector<2x64xf32>
    %964 = arith.mulf %963, %958 : vector<2x64xf32>
    %965 = arith.addf %962, %964 : vector<2x64xf32>
    %cst_367 = arith.constant -3.000000e+00 : f32
    %cst_368 = arith.constant 3.000000e+00 : f32
    %966 = vector.broadcast %cst_367 : f32 to vector<2x64xf32>
    %967 = arith.maximumf %966, %965 : vector<2x64xf32>
    %968 = vector.broadcast %cst_368 : f32 to vector<2x64xf32>
    %969 = arith.minimumf %968, %967 : vector<2x64xf32>
    %970 = vector.extract_strided_slice %956 {offsets = [0, 64], sizes = [2, 64], strides = [1, 1]} : vector<2x192xf32> to vector<2x64xf32>
    %971 = arith.mulf %970, %912 : vector<2x64xf32>
    %972 = vector.extract_strided_slice %956 {offsets = [0, 0], sizes = [2, 64], strides = [1, 1]} : vector<2x192xf32> to vector<2x64xf32>
    %973 = arith.mulf %972, %960 : vector<2x64xf32>
    %974 = arith.addf %971, %973 : vector<2x64xf32>
    %cst_369 = arith.constant -3.000000e+00 : f32
    %cst_370 = arith.constant 3.000000e+00 : f32
    %975 = vector.broadcast %cst_369 : f32 to vector<2x64xf32>
    %976 = arith.maximumf %975, %974 : vector<2x64xf32>
    %977 = vector.broadcast %cst_370 : f32 to vector<2x64xf32>
    %978 = arith.minimumf %977, %976 : vector<2x64xf32>
    %979 = vector.extract_strided_slice %950 {offsets = [0, 128], sizes = [2, 64], strides = [1, 1]} : vector<2x192xf32> to vector<2x64xf32>
    %980 = math.tanh %969 : vector<2x64xf32>
    %981 = arith.mulf %979, %980 : vector<2x64xf32>
    %982 = arith.truncf %981 : vector<2x64xf32> to vector<2x64xbf16>
    %cst_371 = arith.constant dense<0.000000e+00> : vector<2x32xf32>
    %983 = tpu.matmul %982, %650, %cst_371 {dimension_numbers = #tpu.dot_dimension_numbers<[1], [0], [0], [1], [0, 0, 1, 1], [], []>} : vector<2x64xbf16>, vector<64x32xbf16>, vector<2x32xf32> -> vector<2x32xf32>
    %cst_372 = arith.constant -3.000000e+00 : f32
    %cst_373 = arith.constant 3.000000e+00 : f32
    %984 = vector.broadcast %cst_372 : f32 to vector<2x32xf32>
    %985 = arith.maximumf %984, %983 : vector<2x32xf32>
    %986 = vector.broadcast %cst_373 : f32 to vector<2x32xf32>
    %987 = arith.minimumf %986, %985 : vector<2x32xf32>
    %988 = vector.extract_strided_slice %956 {offsets = [0, 128], sizes = [2, 64], strides = [1, 1]} : vector<2x192xf32> to vector<2x64xf32>
    %989 = math.tanh %978 : vector<2x64xf32>
    %990 = arith.mulf %988, %989 : vector<2x64xf32>
    %991 = arith.truncf %990 : vector<2x64xf32> to vector<2x64xbf16>
    %cst_374 = arith.constant dense<0.000000e+00> : vector<2x32xf32>
    %992 = tpu.matmul %991, %652, %cst_374 {dimension_numbers = #tpu.dot_dimension_numbers<[1], [0], [0], [1], [0, 0, 1, 1], [], []>} : vector<2x64xbf16>, vector<64x32xbf16>, vector<2x32xf32> -> vector<2x32xf32>
    %cst_375 = arith.constant -3.000000e+00 : f32
    %cst_376 = arith.constant 3.000000e+00 : f32
    %993 = vector.broadcast %cst_375 : f32 to vector<2x32xf32>
    %994 = arith.maximumf %993, %992 : vector<2x32xf32>
    %995 = vector.broadcast %cst_376 : f32 to vector<2x32xf32>
    %996 = arith.minimumf %995, %994 : vector<2x32xf32>
    %c2_377 = arith.constant 2 : index
    %c8_378 = arith.constant 8 : index
    %c0_379 = arith.constant 0 : index
    %997 = vector.load %arg13[%c2_377, %c8_378, %c0_379] : memref<3x16x64xf32, #tpu.memory_space<vmem>>, vector<1x2x32xf32>
    %998 = vector.shape_cast %997 : vector<1x2x32xf32> to vector<2x32xf32>
    %999 = vector.shape_cast %987 : vector<2x32xf32> to vector<1x2x32xf32>
    tpu.vector_store %arg13[%c2_377, %c8_378, %c0_379], %999 {strides = array<i32>} : memref<3x16x64xf32, #tpu.memory_space<vmem>>, vector<1x2x32xf32>,
    %c2_380 = arith.constant 2 : index
    %c6_381 = arith.constant 6 : index
    %c32_382 = arith.constant 32 : index
    %1000 = vector.load %arg13[%c2_380, %c6_381, %c32_382] : memref<3x16x64xf32, #tpu.memory_space<vmem>>, vector<1x2x32xf32>
    %1001 = vector.shape_cast %1000 : vector<1x2x32xf32> to vector<2x32xf32>
    %1002 = vector.shape_cast %996 : vector<2x32xf32> to vector<1x2x32xf32>
    tpu.vector_store %arg13[%c2_380, %c6_381, %c32_382], %1002 {strides = array<i32>} : memref<3x16x64xf32, #tpu.memory_space<vmem>>, vector<1x2x32xf32>,
    %1003 = vector.extract_strided_slice %660 {offsets = [10, 0], sizes = [2, 256], strides = [1, 1]} : vector<16x256xf32> to vector<2x256xf32>
    %1004 = arith.truncf %987 : vector<2x32xf32> to vector<2x32xbf16>
    %cst_383 = arith.constant dense<0.000000e+00> : vector<2x256xf32>
    %1005 = tpu.matmul %1004, %644, %cst_383 {dimension_numbers = #tpu.dot_dimension_numbers<[1], [0], [0], [1], [0, 0, 1, 1], [], []>} : vector<2x32xbf16>, vector<32x256xbf16>, vector<2x256xf32> -> vector<2x256xf32>
    %1006 = arith.addf %1003, %1005 : vector<2x256xf32>
    %1007 = vector.extract_strided_slice %668 {offsets = [4, 0], sizes = [2, 256], strides = [1, 1]} : vector<16x256xf32> to vector<2x256xf32>
    %1008 = arith.truncf %996 : vector<2x32xf32> to vector<2x32xbf16>
    %cst_384 = arith.constant dense<0.000000e+00> : vector<2x256xf32>
    %1009 = tpu.matmul %1008, %648, %cst_384 {dimension_numbers = #tpu.dot_dimension_numbers<[1], [0], [0], [1], [0, 0, 1, 1], [], []>} : vector<2x32xbf16>, vector<32x256xbf16>, vector<2x256xf32> -> vector<2x256xf32>
    %1010 = arith.addf %1007, %1009 : vector<2x256xf32>
    %1011 = vector.extract_strided_slice %1006 {offsets = [0, 0], sizes = [2, 192], strides = [1, 1]} : vector<2x256xf32> to vector<2x192xf32>
    %1012 = arith.negf %1011 : vector<2x192xf32>
    %1013 = math.exp %1012 : vector<2x192xf32>
    %cst_385 = arith.constant 1.000000e+00 : f32
    %1014 = vector.broadcast %cst_385 : f32 to vector<2x192xf32>
    %1015 = arith.addf %1014, %1013 : vector<2x192xf32>
    %1016 = arith.divf %1014, %1015 : vector<2x192xf32>
    %1017 = vector.extract_strided_slice %1010 {offsets = [0, 0], sizes = [2, 192], strides = [1, 1]} : vector<2x256xf32> to vector<2x192xf32>
    %1018 = arith.negf %1017 : vector<2x192xf32>
    %1019 = math.exp %1018 : vector<2x192xf32>
    %cst_386 = arith.constant 1.000000e+00 : f32
    %1020 = vector.broadcast %cst_386 : f32 to vector<2x192xf32>
    %1021 = arith.addf %1020, %1019 : vector<2x192xf32>
    %1022 = arith.divf %1020, %1021 : vector<2x192xf32>
    %1023 = vector.extract_strided_slice %1006 {offsets = [0, 192], sizes = [2, 64], strides = [1, 1]} : vector<2x256xf32> to vector<2x64xf32>
    %1024 = math.tanh %1023 : vector<2x64xf32>
    %1025 = vector.extract_strided_slice %1010 {offsets = [0, 192], sizes = [2, 64], strides = [1, 1]} : vector<2x256xf32> to vector<2x64xf32>
    %1026 = math.tanh %1025 : vector<2x64xf32>
    %1027 = vector.extract_strided_slice %1016 {offsets = [0, 64], sizes = [2, 64], strides = [1, 1]} : vector<2x192xf32> to vector<2x64xf32>
    %1028 = arith.mulf %1027, %969 : vector<2x64xf32>
    %1029 = vector.extract_strided_slice %1016 {offsets = [0, 0], sizes = [2, 64], strides = [1, 1]} : vector<2x192xf32> to vector<2x64xf32>
    %1030 = arith.mulf %1029, %1024 : vector<2x64xf32>
    %1031 = arith.addf %1028, %1030 : vector<2x64xf32>
    %cst_387 = arith.constant -3.000000e+00 : f32
    %cst_388 = arith.constant 3.000000e+00 : f32
    %1032 = vector.broadcast %cst_387 : f32 to vector<2x64xf32>
    %1033 = arith.maximumf %1032, %1031 : vector<2x64xf32>
    %1034 = vector.broadcast %cst_388 : f32 to vector<2x64xf32>
    %1035 = arith.minimumf %1034, %1033 : vector<2x64xf32>
    %1036 = vector.extract_strided_slice %1022 {offsets = [0, 64], sizes = [2, 64], strides = [1, 1]} : vector<2x192xf32> to vector<2x64xf32>
    %1037 = arith.mulf %1036, %978 : vector<2x64xf32>
    %1038 = vector.extract_strided_slice %1022 {offsets = [0, 0], sizes = [2, 64], strides = [1, 1]} : vector<2x192xf32> to vector<2x64xf32>
    %1039 = arith.mulf %1038, %1026 : vector<2x64xf32>
    %1040 = arith.addf %1037, %1039 : vector<2x64xf32>
    %cst_389 = arith.constant -3.000000e+00 : f32
    %cst_390 = arith.constant 3.000000e+00 : f32
    %1041 = vector.broadcast %cst_389 : f32 to vector<2x64xf32>
    %1042 = arith.maximumf %1041, %1040 : vector<2x64xf32>
    %1043 = vector.broadcast %cst_390 : f32 to vector<2x64xf32>
    %1044 = arith.minimumf %1043, %1042 : vector<2x64xf32>
    %1045 = vector.extract_strided_slice %1016 {offsets = [0, 128], sizes = [2, 64], strides = [1, 1]} : vector<2x192xf32> to vector<2x64xf32>
    %1046 = math.tanh %1035 : vector<2x64xf32>
    %1047 = arith.mulf %1045, %1046 : vector<2x64xf32>
    %1048 = arith.truncf %1047 : vector<2x64xf32> to vector<2x64xbf16>
    %cst_391 = arith.constant dense<0.000000e+00> : vector<2x32xf32>
    %1049 = tpu.matmul %1048, %650, %cst_391 {dimension_numbers = #tpu.dot_dimension_numbers<[1], [0], [0], [1], [0, 0, 1, 1], [], []>} : vector<2x64xbf16>, vector<64x32xbf16>, vector<2x32xf32> -> vector<2x32xf32>
    %cst_392 = arith.constant -3.000000e+00 : f32
    %cst_393 = arith.constant 3.000000e+00 : f32
    %1050 = vector.broadcast %cst_392 : f32 to vector<2x32xf32>
    %1051 = arith.maximumf %1050, %1049 : vector<2x32xf32>
    %1052 = vector.broadcast %cst_393 : f32 to vector<2x32xf32>
    %1053 = arith.minimumf %1052, %1051 : vector<2x32xf32>
    %1054 = vector.extract_strided_slice %1022 {offsets = [0, 128], sizes = [2, 64], strides = [1, 1]} : vector<2x192xf32> to vector<2x64xf32>
    %1055 = math.tanh %1044 : vector<2x64xf32>
    %1056 = arith.mulf %1054, %1055 : vector<2x64xf32>
    %1057 = arith.truncf %1056 : vector<2x64xf32> to vector<2x64xbf16>
    %cst_394 = arith.constant dense<0.000000e+00> : vector<2x32xf32>
    %1058 = tpu.matmul %1057, %652, %cst_394 {dimension_numbers = #tpu.dot_dimension_numbers<[1], [0], [0], [1], [0, 0, 1, 1], [], []>} : vector<2x64xbf16>, vector<64x32xbf16>, vector<2x32xf32> -> vector<2x32xf32>
    %cst_395 = arith.constant -3.000000e+00 : f32
    %cst_396 = arith.constant 3.000000e+00 : f32
    %1059 = vector.broadcast %cst_395 : f32 to vector<2x32xf32>
    %1060 = arith.maximumf %1059, %1058 : vector<2x32xf32>
    %1061 = vector.broadcast %cst_396 : f32 to vector<2x32xf32>
    %1062 = arith.minimumf %1061, %1060 : vector<2x32xf32>
    %c2_397 = arith.constant 2 : index
    %c10_398 = arith.constant 10 : index
    %c0_399 = arith.constant 0 : index
    %1063 = vector.load %arg13[%c2_397, %c10_398, %c0_399] : memref<3x16x64xf32, #tpu.memory_space<vmem>>, vector<1x2x32xf32>
    %1064 = vector.shape_cast %1063 : vector<1x2x32xf32> to vector<2x32xf32>
    %1065 = vector.shape_cast %1053 : vector<2x32xf32> to vector<1x2x32xf32>
    tpu.vector_store %arg13[%c2_397, %c10_398, %c0_399], %1065 {strides = array<i32>} : memref<3x16x64xf32, #tpu.memory_space<vmem>>, vector<1x2x32xf32>,
    %c2_400 = arith.constant 2 : index
    %c4_401 = arith.constant 4 : index
    %c32_402 = arith.constant 32 : index
    %1066 = vector.load %arg13[%c2_400, %c4_401, %c32_402] : memref<3x16x64xf32, #tpu.memory_space<vmem>>, vector<1x2x32xf32>
    %1067 = vector.shape_cast %1066 : vector<1x2x32xf32> to vector<2x32xf32>
    %1068 = vector.shape_cast %1062 : vector<2x32xf32> to vector<1x2x32xf32>
    tpu.vector_store %arg13[%c2_400, %c4_401, %c32_402], %1068 {strides = array<i32>} : memref<3x16x64xf32, #tpu.memory_space<vmem>>, vector<1x2x32xf32>,
    %1069 = vector.extract_strided_slice %660 {offsets = [12, 0], sizes = [2, 256], strides = [1, 1]} : vector<16x256xf32> to vector<2x256xf32>
    %1070 = arith.truncf %1053 : vector<2x32xf32> to vector<2x32xbf16>
    %cst_403 = arith.constant dense<0.000000e+00> : vector<2x256xf32>
    %1071 = tpu.matmul %1070, %644, %cst_403 {dimension_numbers = #tpu.dot_dimension_numbers<[1], [0], [0], [1], [0, 0, 1, 1], [], []>} : vector<2x32xbf16>, vector<32x256xbf16>, vector<2x256xf32> -> vector<2x256xf32>
    %1072 = arith.addf %1069, %1071 : vector<2x256xf32>
    %1073 = vector.extract_strided_slice %668 {offsets = [2, 0], sizes = [2, 256], strides = [1, 1]} : vector<16x256xf32> to vector<2x256xf32>
    %1074 = arith.truncf %1062 : vector<2x32xf32> to vector<2x32xbf16>
    %cst_404 = arith.constant dense<0.000000e+00> : vector<2x256xf32>
    %1075 = tpu.matmul %1074, %648, %cst_404 {dimension_numbers = #tpu.dot_dimension_numbers<[1], [0], [0], [1], [0, 0, 1, 1], [], []>} : vector<2x32xbf16>, vector<32x256xbf16>, vector<2x256xf32> -> vector<2x256xf32>
    %1076 = arith.addf %1073, %1075 : vector<2x256xf32>
    %1077 = vector.extract_strided_slice %1072 {offsets = [0, 0], sizes = [2, 192], strides = [1, 1]} : vector<2x256xf32> to vector<2x192xf32>
    %1078 = arith.negf %1077 : vector<2x192xf32>
    %1079 = math.exp %1078 : vector<2x192xf32>
    %cst_405 = arith.constant 1.000000e+00 : f32
    %1080 = vector.broadcast %cst_405 : f32 to vector<2x192xf32>
    %1081 = arith.addf %1080, %1079 : vector<2x192xf32>
    %1082 = arith.divf %1080, %1081 : vector<2x192xf32>
    %1083 = vector.extract_strided_slice %1076 {offsets = [0, 0], sizes = [2, 192], strides = [1, 1]} : vector<2x256xf32> to vector<2x192xf32>
    %1084 = arith.negf %1083 : vector<2x192xf32>
    %1085 = math.exp %1084 : vector<2x192xf32>
    %cst_406 = arith.constant 1.000000e+00 : f32
    %1086 = vector.broadcast %cst_406 : f32 to vector<2x192xf32>
    %1087 = arith.addf %1086, %1085 : vector<2x192xf32>
    %1088 = arith.divf %1086, %1087 : vector<2x192xf32>
    %1089 = vector.extract_strided_slice %1072 {offsets = [0, 192], sizes = [2, 64], strides = [1, 1]} : vector<2x256xf32> to vector<2x64xf32>
    %1090 = math.tanh %1089 : vector<2x64xf32>
    %1091 = vector.extract_strided_slice %1076 {offsets = [0, 192], sizes = [2, 64], strides = [1, 1]} : vector<2x256xf32> to vector<2x64xf32>
    %1092 = math.tanh %1091 : vector<2x64xf32>
    %1093 = vector.extract_strided_slice %1082 {offsets = [0, 64], sizes = [2, 64], strides = [1, 1]} : vector<2x192xf32> to vector<2x64xf32>
    %1094 = arith.mulf %1093, %1035 : vector<2x64xf32>
    %1095 = vector.extract_strided_slice %1082 {offsets = [0, 0], sizes = [2, 64], strides = [1, 1]} : vector<2x192xf32> to vector<2x64xf32>
    %1096 = arith.mulf %1095, %1090 : vector<2x64xf32>
    %1097 = arith.addf %1094, %1096 : vector<2x64xf32>
    %cst_407 = arith.constant -3.000000e+00 : f32
    %cst_408 = arith.constant 3.000000e+00 : f32
    %1098 = vector.broadcast %cst_407 : f32 to vector<2x64xf32>
    %1099 = arith.maximumf %1098, %1097 : vector<2x64xf32>
    %1100 = vector.broadcast %cst_408 : f32 to vector<2x64xf32>
    %1101 = arith.minimumf %1100, %1099 : vector<2x64xf32>
    %1102 = vector.extract_strided_slice %1088 {offsets = [0, 64], sizes = [2, 64], strides = [1, 1]} : vector<2x192xf32> to vector<2x64xf32>
    %1103 = arith.mulf %1102, %1044 : vector<2x64xf32>
    %1104 = vector.extract_strided_slice %1088 {offsets = [0, 0], sizes = [2, 64], strides = [1, 1]} : vector<2x192xf32> to vector<2x64xf32>
    %1105 = arith.mulf %1104, %1092 : vector<2x64xf32>
    %1106 = arith.addf %1103, %1105 : vector<2x64xf32>
    %cst_409 = arith.constant -3.000000e+00 : f32
    %cst_410 = arith.constant 3.000000e+00 : f32
    %1107 = vector.broadcast %cst_409 : f32 to vector<2x64xf32>
    %1108 = arith.maximumf %1107, %1106 : vector<2x64xf32>
    %1109 = vector.broadcast %cst_410 : f32 to vector<2x64xf32>
    %1110 = arith.minimumf %1109, %1108 : vector<2x64xf32>
    %1111 = vector.extract_strided_slice %1082 {offsets = [0, 128], sizes = [2, 64], strides = [1, 1]} : vector<2x192xf32> to vector<2x64xf32>
    %1112 = math.tanh %1101 : vector<2x64xf32>
    %1113 = arith.mulf %1111, %1112 : vector<2x64xf32>
    %1114 = arith.truncf %1113 : vector<2x64xf32> to vector<2x64xbf16>
    %cst_411 = arith.constant dense<0.000000e+00> : vector<2x32xf32>
    %1115 = tpu.matmul %1114, %650, %cst_411 {dimension_numbers = #tpu.dot_dimension_numbers<[1], [0], [0], [1], [0, 0, 1, 1], [], []>} : vector<2x64xbf16>, vector<64x32xbf16>, vector<2x32xf32> -> vector<2x32xf32>
    %cst_412 = arith.constant -3.000000e+00 : f32
    %cst_413 = arith.constant 3.000000e+00 : f32
    %1116 = vector.broadcast %cst_412 : f32 to vector<2x32xf32>
    %1117 = arith.maximumf %1116, %1115 : vector<2x32xf32>
    %1118 = vector.broadcast %cst_413 : f32 to vector<2x32xf32>
    %1119 = arith.minimumf %1118, %1117 : vector<2x32xf32>
    %1120 = vector.extract_strided_slice %1088 {offsets = [0, 128], sizes = [2, 64], strides = [1, 1]} : vector<2x192xf32> to vector<2x64xf32>
    %1121 = math.tanh %1110 : vector<2x64xf32>
    %1122 = arith.mulf %1120, %1121 : vector<2x64xf32>
    %1123 = arith.truncf %1122 : vector<2x64xf32> to vector<2x64xbf16>
    %cst_414 = arith.constant dense<0.000000e+00> : vector<2x32xf32>
    %1124 = tpu.matmul %1123, %652, %cst_414 {dimension_numbers = #tpu.dot_dimension_numbers<[1], [0], [0], [1], [0, 0, 1, 1], [], []>} : vector<2x64xbf16>, vector<64x32xbf16>, vector<2x32xf32> -> vector<2x32xf32>
    %cst_415 = arith.constant -3.000000e+00 : f32
    %cst_416 = arith.constant 3.000000e+00 : f32
    %1125 = vector.broadcast %cst_415 : f32 to vector<2x32xf32>
    %1126 = arith.maximumf %1125, %1124 : vector<2x32xf32>
    %1127 = vector.broadcast %cst_416 : f32 to vector<2x32xf32>
    %1128 = arith.minimumf %1127, %1126 : vector<2x32xf32>
    %c2_417 = arith.constant 2 : index
    %c12_418 = arith.constant 12 : index
    %c0_419 = arith.constant 0 : index
    %1129 = vector.load %arg13[%c2_417, %c12_418, %c0_419] : memref<3x16x64xf32, #tpu.memory_space<vmem>>, vector<1x2x32xf32>
    %1130 = vector.shape_cast %1129 : vector<1x2x32xf32> to vector<2x32xf32>
    %1131 = vector.shape_cast %1119 : vector<2x32xf32> to vector<1x2x32xf32>
    tpu.vector_store %arg13[%c2_417, %c12_418, %c0_419], %1131 {strides = array<i32>} : memref<3x16x64xf32, #tpu.memory_space<vmem>>, vector<1x2x32xf32>,
    %c2_420 = arith.constant 2 : index
    %c2_421 = arith.constant 2 : index
    %c32_422 = arith.constant 32 : index
    %1132 = vector.load %arg13[%c2_420, %c2_421, %c32_422] : memref<3x16x64xf32, #tpu.memory_space<vmem>>, vector<1x2x32xf32>
    %1133 = vector.shape_cast %1132 : vector<1x2x32xf32> to vector<2x32xf32>
    %1134 = vector.shape_cast %1128 : vector<2x32xf32> to vector<1x2x32xf32>
    tpu.vector_store %arg13[%c2_420, %c2_421, %c32_422], %1134 {strides = array<i32>} : memref<3x16x64xf32, #tpu.memory_space<vmem>>, vector<1x2x32xf32>,
    %1135 = vector.extract_strided_slice %660 {offsets = [14, 0], sizes = [2, 256], strides = [1, 1]} : vector<16x256xf32> to vector<2x256xf32>
    %1136 = arith.truncf %1119 : vector<2x32xf32> to vector<2x32xbf16>
    %cst_423 = arith.constant dense<0.000000e+00> : vector<2x256xf32>
    %1137 = tpu.matmul %1136, %644, %cst_423 {dimension_numbers = #tpu.dot_dimension_numbers<[1], [0], [0], [1], [0, 0, 1, 1], [], []>} : vector<2x32xbf16>, vector<32x256xbf16>, vector<2x256xf32> -> vector<2x256xf32>
    %1138 = arith.addf %1135, %1137 : vector<2x256xf32>
    %1139 = vector.extract_strided_slice %668 {offsets = [0, 0], sizes = [2, 256], strides = [1, 1]} : vector<16x256xf32> to vector<2x256xf32>
    %1140 = arith.truncf %1128 : vector<2x32xf32> to vector<2x32xbf16>
    %cst_424 = arith.constant dense<0.000000e+00> : vector<2x256xf32>
    %1141 = tpu.matmul %1140, %648, %cst_424 {dimension_numbers = #tpu.dot_dimension_numbers<[1], [0], [0], [1], [0, 0, 1, 1], [], []>} : vector<2x32xbf16>, vector<32x256xbf16>, vector<2x256xf32> -> vector<2x256xf32>
    %1142 = arith.addf %1139, %1141 : vector<2x256xf32>
    %1143 = vector.extract_strided_slice %1138 {offsets = [0, 0], sizes = [2, 192], strides = [1, 1]} : vector<2x256xf32> to vector<2x192xf32>
    %1144 = arith.negf %1143 : vector<2x192xf32>
    %1145 = math.exp %1144 : vector<2x192xf32>
    %cst_425 = arith.constant 1.000000e+00 : f32
    %1146 = vector.broadcast %cst_425 : f32 to vector<2x192xf32>
    %1147 = arith.addf %1146, %1145 : vector<2x192xf32>
    %1148 = arith.divf %1146, %1147 : vector<2x192xf32>
    %1149 = vector.extract_strided_slice %1142 {offsets = [0, 0], sizes = [2, 192], strides = [1, 1]} : vector<2x256xf32> to vector<2x192xf32>
    %1150 = arith.negf %1149 : vector<2x192xf32>
    %1151 = math.exp %1150 : vector<2x192xf32>
    %cst_426 = arith.constant 1.000000e+00 : f32
    %1152 = vector.broadcast %cst_426 : f32 to vector<2x192xf32>
    %1153 = arith.addf %1152, %1151 : vector<2x192xf32>
    %1154 = arith.divf %1152, %1153 : vector<2x192xf32>
    %1155 = vector.extract_strided_slice %1138 {offsets = [0, 192], sizes = [2, 64], strides = [1, 1]} : vector<2x256xf32> to vector<2x64xf32>
    %1156 = math.tanh %1155 : vector<2x64xf32>
    %1157 = vector.extract_strided_slice %1142 {offsets = [0, 192], sizes = [2, 64], strides = [1, 1]} : vector<2x256xf32> to vector<2x64xf32>
    %1158 = math.tanh %1157 : vector<2x64xf32>
    %1159 = vector.extract_strided_slice %1148 {offsets = [0, 64], sizes = [2, 64], strides = [1, 1]} : vector<2x192xf32> to vector<2x64xf32>
    %1160 = arith.mulf %1159, %1101 : vector<2x64xf32>
    %1161 = vector.extract_strided_slice %1148 {offsets = [0, 0], sizes = [2, 64], strides = [1, 1]} : vector<2x192xf32> to vector<2x64xf32>
    %1162 = arith.mulf %1161, %1156 : vector<2x64xf32>
    %1163 = arith.addf %1160, %1162 : vector<2x64xf32>
    %cst_427 = arith.constant -3.000000e+00 : f32
    %cst_428 = arith.constant 3.000000e+00 : f32
    %1164 = vector.broadcast %cst_427 : f32 to vector<2x64xf32>
    %1165 = arith.maximumf %1164, %1163 : vector<2x64xf32>
    %1166 = vector.broadcast %cst_428 : f32 to vector<2x64xf32>
    %1167 = arith.minimumf %1166, %1165 : vector<2x64xf32>
    %1168 = vector.extract_strided_slice %1154 {offsets = [0, 64], sizes = [2, 64], strides = [1, 1]} : vector<2x192xf32> to vector<2x64xf32>
    %1169 = arith.mulf %1168, %1110 : vector<2x64xf32>
    %1170 = vector.extract_strided_slice %1154 {offsets = [0, 0], sizes = [2, 64], strides = [1, 1]} : vector<2x192xf32> to vector<2x64xf32>
    %1171 = arith.mulf %1170, %1158 : vector<2x64xf32>
    %1172 = arith.addf %1169, %1171 : vector<2x64xf32>
    %cst_429 = arith.constant -3.000000e+00 : f32
    %cst_430 = arith.constant 3.000000e+00 : f32
    %1173 = vector.broadcast %cst_429 : f32 to vector<2x64xf32>
    %1174 = arith.maximumf %1173, %1172 : vector<2x64xf32>
    %1175 = vector.broadcast %cst_430 : f32 to vector<2x64xf32>
    %1176 = arith.minimumf %1175, %1174 : vector<2x64xf32>
    %1177 = vector.extract_strided_slice %1148 {offsets = [0, 128], sizes = [2, 64], strides = [1, 1]} : vector<2x192xf32> to vector<2x64xf32>
    %1178 = math.tanh %1167 : vector<2x64xf32>
    %1179 = arith.mulf %1177, %1178 : vector<2x64xf32>
    %1180 = arith.truncf %1179 : vector<2x64xf32> to vector<2x64xbf16>
    %cst_431 = arith.constant dense<0.000000e+00> : vector<2x32xf32>
    %1181 = tpu.matmul %1180, %650, %cst_431 {dimension_numbers = #tpu.dot_dimension_numbers<[1], [0], [0], [1], [0, 0, 1, 1], [], []>} : vector<2x64xbf16>, vector<64x32xbf16>, vector<2x32xf32> -> vector<2x32xf32>
    %cst_432 = arith.constant -3.000000e+00 : f32
    %cst_433 = arith.constant 3.000000e+00 : f32
    %1182 = vector.broadcast %cst_432 : f32 to vector<2x32xf32>
    %1183 = arith.maximumf %1182, %1181 : vector<2x32xf32>
    %1184 = vector.broadcast %cst_433 : f32 to vector<2x32xf32>
    %1185 = arith.minimumf %1184, %1183 : vector<2x32xf32>
    %1186 = vector.extract_strided_slice %1154 {offsets = [0, 128], sizes = [2, 64], strides = [1, 1]} : vector<2x192xf32> to vector<2x64xf32>
    %1187 = math.tanh %1176 : vector<2x64xf32>
    %1188 = arith.mulf %1186, %1187 : vector<2x64xf32>
    %1189 = arith.truncf %1188 : vector<2x64xf32> to vector<2x64xbf16>
    %cst_434 = arith.constant dense<0.000000e+00> : vector<2x32xf32>
    %1190 = tpu.matmul %1189, %652, %cst_434 {dimension_numbers = #tpu.dot_dimension_numbers<[1], [0], [0], [1], [0, 0, 1, 1], [], []>} : vector<2x64xbf16>, vector<64x32xbf16>, vector<2x32xf32> -> vector<2x32xf32>
    %cst_435 = arith.constant -3.000000e+00 : f32
    %cst_436 = arith.constant 3.000000e+00 : f32
    %1191 = vector.broadcast %cst_435 : f32 to vector<2x32xf32>
    %1192 = arith.maximumf %1191, %1190 : vector<2x32xf32>
    %1193 = vector.broadcast %cst_436 : f32 to vector<2x32xf32>
    %1194 = arith.minimumf %1193, %1192 : vector<2x32xf32>
    %c2_437 = arith.constant 2 : index
    %c14_438 = arith.constant 14 : index
    %c0_439 = arith.constant 0 : index
    %1195 = vector.load %arg13[%c2_437, %c14_438, %c0_439] : memref<3x16x64xf32, #tpu.memory_space<vmem>>, vector<1x2x32xf32>
    %1196 = vector.shape_cast %1195 : vector<1x2x32xf32> to vector<2x32xf32>
    %1197 = vector.shape_cast %1185 : vector<2x32xf32> to vector<1x2x32xf32>
    tpu.vector_store %arg13[%c2_437, %c14_438, %c0_439], %1197 {strides = array<i32>} : memref<3x16x64xf32, #tpu.memory_space<vmem>>, vector<1x2x32xf32>,
    %c2_440 = arith.constant 2 : index
    %c0_441 = arith.constant 0 : index
    %c32_442 = arith.constant 32 : index
    %1198 = vector.load %arg13[%c2_440, %c0_441, %c32_442] : memref<3x16x64xf32, #tpu.memory_space<vmem>>, vector<1x2x32xf32>
    %1199 = vector.shape_cast %1198 : vector<1x2x32xf32> to vector<2x32xf32>
    %1200 = vector.shape_cast %1194 : vector<2x32xf32> to vector<1x2x32xf32>
    tpu.vector_store %arg13[%c2_440, %c0_441, %c32_442], %1200 {strides = array<i32>} : memref<3x16x64xf32, #tpu.memory_space<vmem>>, vector<1x2x32xf32>,
    %c0_443 = arith.constant 0 : index
    %1201 = memref.load %arg11[%c0_443] : memref<4xf32, #tpu.memory_space<smem>>
    %c1_444 = arith.constant 1 : index
    %1202 = memref.load %arg11[%c1_444] : memref<4xf32, #tpu.memory_space<smem>>
    %c2_445 = arith.constant 2 : index
    %1203 = memref.load %arg11[%c2_445] : memref<4xf32, #tpu.memory_space<smem>>
    %c3 = arith.constant 3 : index
    %1204 = memref.load %arg11[%c3] : memref<4xf32, #tpu.memory_space<smem>>
    %c0_446 = arith.constant 0 : index
    %c0_447 = arith.constant 0 : index
    %c0_448 = arith.constant 0 : index
    %1205 = vector.load %arg13[%c0_446, %c0_447, %c0_448] : memref<3x16x64xf32, #tpu.memory_space<vmem>>, vector<1x16x64xf32>
    %1206 = vector.shape_cast %1205 : vector<1x16x64xf32> to vector<16x64xf32>
    %c1_449 = arith.constant 1 : index
    %c0_450 = arith.constant 0 : index
    %c0_451 = arith.constant 0 : index
    %1207 = vector.load %arg13[%c1_449, %c0_450, %c0_451] : memref<3x16x64xf32, #tpu.memory_space<vmem>>, vector<1x16x64xf32>
    %1208 = vector.shape_cast %1207 : vector<1x16x64xf32> to vector<16x64xf32>
    %c2_452 = arith.constant 2 : index
    %c0_453 = arith.constant 0 : index
    %c0_454 = arith.constant 0 : index
    %1209 = vector.load %arg13[%c2_452, %c0_453, %c0_454] : memref<3x16x64xf32, #tpu.memory_space<vmem>>, vector<1x16x64xf32>
    %1210 = vector.shape_cast %1209 : vector<1x16x64xf32> to vector<16x64xf32>
    %1211 = vector.broadcast %1201 : f32 to vector<16x64xf32>
    %1212 = arith.mulf %1211, %1206 : vector<16x64xf32>
    %1213 = vector.broadcast %1202 : f32 to vector<16x64xf32>
    %1214 = arith.mulf %1213, %1208 : vector<16x64xf32>
    %1215 = arith.addf %1212, %1214 : vector<16x64xf32>
    %1216 = arith.addf %1210, %1208 : vector<16x64xf32>
    %1217 = vector.broadcast %1203 : f32 to vector<16x64xf32>
    %1218 = arith.mulf %1217, %1216 : vector<16x64xf32>
    %1219 = arith.addf %1215, %1218 : vector<16x64xf32>
    %1220 = vector.broadcast %1204 : f32 to vector<16x64xf32>
    %1221 = arith.mulf %1220, %1219 : vector<16x64xf32>
    %c0_455 = arith.constant 0 : index
    %c0_456 = arith.constant 0 : index
    %1222 = vector.load %arg12[%c0_455, %c0_456] : memref<16x64xf32, #tpu.memory_space<vmem>>, vector<16x64xf32>
    tpu.vector_store %arg12[%c0_455, %c0_456], %1221 {strides = array<i32>} : memref<16x64xf32, #tpu.memory_space<vmem>>, vector<16x64xf32>,
    return
  }
}

</mosaic_0001>

<llo_original>
// kernel: elmo_embedding_forward.1
$region0: #{elmo_embedding_forward.1}
  #allocation0 [shape = 'u32[]', space=smem, size = 0x4, offset = 0x4, fixed_abs, tag = 'smem constant byte address 0x4 - core index']
  #allocation1 [shape = 'u32[144,128]{1,0:T(1,128)}', space=vmem, size = 0x12000, scoped, tag = 'internal scratch']
  #allocation2 [shape = 'f32[3,16,64]{2,1,0:T(8,128)}', space=vmem, size = 0x6000, scoped, tag = 'scratch operand']
  %s0 = inlined_call_operand.vmem [shape: s32[128,1], index: 0, kind: input, shape index: {}]
  %s1 = inlined_call_operand.vmem [shape: bf16[64,16], index: 1, kind: input, shape index: {}]
  %s2 = inlined_call_operand.vmem [shape: bf16[48,64], index: 2, kind: input, shape index: {}]
  %s3 = inlined_call_operand.vmem [shape: f32[1,64], index: 3, kind: input, shape index: {}]
  %s4 = inlined_call_operand.vmem [shape: bf16[64,128], index: 4, kind: input, shape index: {}]
  %s5 = inlined_call_operand.vmem [shape: f32[1,128], index: 5, kind: input, shape index: {}]
  %s6 = inlined_call_operand.vmem [shape: bf16[64,32], index: 6, kind: input, shape index: {}]
  %s7 = inlined_call_operand.vmem [shape: f32[1,32], index: 7, kind: input, shape index: {}]
  %s8 = inlined_call_operand.vmem [shape: bf16[2,2,64,256], index: 8, kind: input, shape index: {}]
  %s9 = inlined_call_operand.vmem [shape: f32[2,2,1,256], index: 9, kind: input, shape index: {}]
  %s10 = inlined_call_operand.vmem [shape: bf16[2,2,64,32], index: 10, kind: input, shape index: {}]
  %s11 = inlined_call_operand.vmem [shape: f32[4], index: 11, kind: input, shape index: {}]
  %s12 = inlined_call_operand.vmem [shape: f32[16,64], index: 12, kind: output, shape index: {}]
  %s13 = sld [smem:[#allocation0]]
  $region62: #{elmo_embedding_forward.1} parent=0
    _
  %s15 = ssub.s32 1, %s13
  %s16 = scalar_select 0, %s15, %s13
  $region1: #{elmo_embedding_forward.1} parent=0
    #allocation3 [shape = 'u8[512]{0}', space=smem, size = 0x200, scoped, tag = 'input window, operand 11, single buffered']
    #allocation4 [shape = 's32[1]{0}', space=sflag, size = 0x4, scoped, tag = 'scoped memory for elmo_embedding_forward.1']
    %17 = vsyncpa [#allocation4], 0
    // Predicated region
    $region2: #{elmo_embedding_forward.1} parent=1 // pred_check
      _
    $region3: #{elmo_embedding_forward.1} parent=1 // pred_check_branch
      %19 = sbr.rel (0) target = $region5
    $region4: #{elmo_embedding_forward.1} parent=1 // pred_region
      _
    $region5: #{elmo_embedding_forward.1} parent=1 // pred_fallthru
      _
    // Predicated region
    $region6: #{elmo_embedding_forward.1} parent=1 // pred_check
      _
    $region7: #{elmo_embedding_forward.1} parent=1 // pred_check_branch
      %21 = sbr.rel (0) target = $region9
    $region8: #{elmo_embedding_forward.1} parent=1 // pred_region
      _
    $region9: #{elmo_embedding_forward.1} parent=1 // pred_fallthru
      _
    // Predicated region
    $region10: #{elmo_embedding_forward.1} parent=1 // pred_check
      _
    $region11: #{elmo_embedding_forward.1} parent=1 // pred_check_branch
      %23 = sbr.rel (0) target = $region13
    $region12: #{elmo_embedding_forward.1} parent=1 // pred_region
      _
    $region13: #{elmo_embedding_forward.1} parent=1 // pred_fallthru
      _
    // Predicated region
    $region14: #{elmo_embedding_forward.1} parent=1 // pred_check
      _
    $region15: #{elmo_embedding_forward.1} parent=1 // pred_check_branch
      %25 = sbr.rel (0) target = $region17
    $region16: #{elmo_embedding_forward.1} parent=1 // pred_region
      _
    $region17: #{elmo_embedding_forward.1} parent=1 // pred_fallthru
      _
    // Predicated region
    $region18: #{elmo_embedding_forward.1} parent=1 // pred_check
      _
    $region19: #{elmo_embedding_forward.1} parent=1 // pred_check_branch
      %27 = sbr.rel (0) target = $region21
    $region20: #{elmo_embedding_forward.1} parent=1 // pred_region
      _
    $region21: #{elmo_embedding_forward.1} parent=1 // pred_fallthru
      _
    // Predicated region
    $region22: #{elmo_embedding_forward.1} parent=1 // pred_check
      _
    $region23: #{elmo_embedding_forward.1} parent=1 // pred_check_branch
      %29 = sbr.rel (0) target = $region25
    $region24: #{elmo_embedding_forward.1} parent=1 // pred_region
      _
    $region25: #{elmo_embedding_forward.1} parent=1 // pred_fallthru
      _
    // Predicated region
    $region26: #{elmo_embedding_forward.1} parent=1 // pred_check
      _
    $region27: #{elmo_embedding_forward.1} parent=1 // pred_check_branch
      %31 = sbr.rel (0) target = $region29
    $region28: #{elmo_embedding_forward.1} parent=1 // pred_region
      _
    $region29: #{elmo_embedding_forward.1} parent=1 // pred_fallthru
      _
    // Predicated region
    $region30: #{elmo_embedding_forward.1} parent=1 // pred_check
      _
    $region31: #{elmo_embedding_forward.1} parent=1 // pred_check_branch
      %33 = sbr.rel (0) target = $region33
    $region32: #{elmo_embedding_forward.1} parent=1 // pred_region
      _
    $region33: #{elmo_embedding_forward.1} parent=1 // pred_fallthru
      _
    // Predicated region
    $region34: #{elmo_embedding_forward.1} parent=1 // pred_check
      _
    $region35: #{elmo_embedding_forward.1} parent=1 // pred_check_branch
      %35 = sbr.rel (0) target = $region37
    $region36: #{elmo_embedding_forward.1} parent=1 // pred_region
      _
    $region37: #{elmo_embedding_forward.1} parent=1 // pred_fallthru
      _
    // Predicated region
    $region38: #{elmo_embedding_forward.1} parent=1 // pred_check
      _
    $region39: #{elmo_embedding_forward.1} parent=1 // pred_check_branch
      %37 = sbr.rel (0) target = $region41
    $region40: #{elmo_embedding_forward.1} parent=1 // pred_region
      _
    $region41: #{elmo_embedding_forward.1} parent=1 // pred_fallthru
      _
    // Predicated region
    $region42: #{elmo_embedding_forward.1} parent=1 // pred_check
      _
    $region43: #{elmo_embedding_forward.1} parent=1 // pred_check_branch
      %39 = sbr.rel (0) target = $region45
    $region44: #{elmo_embedding_forward.1} parent=1 // pred_region
      _
    $region45: #{elmo_embedding_forward.1} parent=1 // pred_fallthru
      _
    // Predicated region
    $region46: #{elmo_embedding_forward.1} parent=1 // pred_check
      _
    $region47: #{elmo_embedding_forward.1} parent=1 // pred_check_branch
      %41 = sbr.rel (0) target = $region49
    $region48: #{elmo_embedding_forward.1} parent=1 // pred_region
      %s43 = ssub.s32 16, 16
      %44 = vsyncadd [#allocation4], %s43
      %s46 = sshll.u32 %s11, 4
      %s47 = int_to_ptr.vmem [resolvable:$true] %s46
      %49 = dma.vmem_to_smem %s47, 16, [#allocation3], [#allocation4]
    $region49: #{elmo_embedding_forward.1} parent=1 // pred_fallthru
      _
    // Predicated region
    $region50: #{elmo_embedding_forward.1} parent=1 // pred_check
      _
    $region51: #{elmo_embedding_forward.1} parent=1 // pred_check_branch
      %51 = sbr.rel (0) target = $region53
    $region52: #{elmo_embedding_forward.1} parent=1 // pred_region
      %52 = dma.done [#allocation4], 16
    $region53: #{elmo_embedding_forward.1} parent=1 // pred_fallthru
      _
    %53 = sfence
    %v55 = vld [vmem:[%s0] sm:$0xff]
    %v56 = vld [vmem:[%s0 + $0x8] sm:$0xff]
    %v57 = vld [vmem:[%s0 + $0x10] sm:$0xff]
    %v58 = vld [vmem:[%s0 + $0x18] sm:$0xff]
    %v59 = vld [vmem:[%s0 + $0x20] sm:$0xff]
    %v60 = vld [vmem:[%s0 + $0x28] sm:$0xff]
    %v61 = vld [vmem:[%s0 + $0x30] sm:$0xff]
    %v62 = vld [vmem:[%s0 + $0x38] sm:$0xff]
    %v63 = vld [vmem:[%s0 + $0x40] sm:$0xff]
    %v64 = vld [vmem:[%s0 + $0x48] sm:$0xff]
    %v65 = vld [vmem:[%s0 + $0x50] sm:$0xff]
    %v66 = vld [vmem:[%s0 + $0x58] sm:$0xff]
    %v67 = vld [vmem:[%s0 + $0x60] sm:$0xff]
    %v68 = vld [vmem:[%s0 + $0x68] sm:$0xff]
    %v69 = vld [vmem:[%s0 + $0x70] sm:$0xff]
    %v70 = vld [vmem:[%s0 + $0x78] sm:$0xff]
    %v71 = vlaneseq
    %v72 = vand.u32 %v71, 127
    %73 = vset.pattern.permute.xlu0 0
    %74 = vperm.xlu0 %73, %v55
    %v75 = vpop.permute.xlu0 %74
    %76 = vset.pattern.permute.xlu0 0
    %77 = vperm.xlu0 %76, %v56
    %v78 = vpop.permute.xlu0 %77
    %79 = vset.pattern.permute.xlu0 0
    %80 = vperm.xlu0 %79, %v57
    %v81 = vpop.permute.xlu0 %80
    %82 = vset.pattern.permute.xlu0 0
    %83 = vperm.xlu0 %82, %v58
    %v84 = vpop.permute.xlu0 %83
    %85 = vset.pattern.permute.xlu0 0
    %86 = vperm.xlu0 %85, %v59
    %v87 = vpop.permute.xlu0 %86
    %88 = vset.pattern.permute.xlu0 0
    %89 = vperm.xlu0 %88, %v60
    %v90 = vpop.permute.xlu0 %89
    %91 = vset.pattern.permute.xlu0 0
    %92 = vperm.xlu0 %91, %v61
    %v93 = vpop.permute.xlu0 %92
    %94 = vset.pattern.permute.xlu0 0
    %95 = vperm.xlu0 %94, %v62
    %v96 = vpop.permute.xlu0 %95
    %97 = vset.pattern.permute.xlu0 0
    %98 = vperm.xlu0 %97, %v63
    %v99 = vpop.permute.xlu0 %98
    %100 = vset.pattern.permute.xlu0 0
    %101 = vperm.xlu0 %100, %v64
    %v102 = vpop.permute.xlu0 %101
    %103 = vset.pattern.permute.xlu0 0
    %104 = vperm.xlu0 %103, %v65
    %v105 = vpop.permute.xlu0 %104
    %106 = vset.pattern.permute.xlu0 0
    %107 = vperm.xlu0 %106, %v66
    %v108 = vpop.permute.xlu0 %107
    %109 = vset.pattern.permute.xlu0 0
    %110 = vperm.xlu0 %109, %v67
    %v111 = vpop.permute.xlu0 %110
    %112 = vset.pattern.permute.xlu0 0
    %113 = vperm.xlu0 %112, %v68
    %v114 = vpop.permute.xlu0 %113
    %115 = vset.pattern.permute.xlu0 0
    %116 = vperm.xlu0 %115, %v69
    %v117 = vpop.permute.xlu0 %116
    %118 = vset.pattern.permute.xlu0 0
    %119 = vperm.xlu0 %118, %v70
    %v120 = vpop.permute.xlu0 %119
    %vm121 = vcmp.eq.s32.totalorder %v75, %v72
    %vm122 = vcmp.eq.s32.totalorder %v78, %v72
    %vm123 = vcmp.eq.s32.totalorder %v81, %v72
    %vm124 = vcmp.eq.s32.totalorder %v84, %v72
    %vm125 = vcmp.eq.s32.totalorder %v87, %v72
    %vm126 = vcmp.eq.s32.totalorder %v90, %v72
    %vm127 = vcmp.eq.s32.totalorder %v93, %v72
    %vm128 = vcmp.eq.s32.totalorder %v96, %v72
    %vm129 = vcmp.eq.s32.totalorder %v99, %v72
    %vm130 = vcmp.eq.s32.totalorder %v102, %v72
    %vm131 = vcmp.eq.s32.totalorder %v105, %v72
    %vm132 = vcmp.eq.s32.totalorder %v108, %v72
    %vm133 = vcmp.eq.s32.totalorder %v111, %v72
    %vm134 = vcmp.eq.s32.totalorder %v114, %v72
    %vm135 = vcmp.eq.s32.totalorder %v117, %v72
    %vm136 = vcmp.eq.s32.totalorder %v120, %v72
    %v137 = vsel %vm121, 1.0, 0.0
    %v138 = vsel %vm122, 1.0, 0.0
    %v139 = vsel %vm123, 1.0, 0.0
    %v140 = vsel %vm124, 1.0, 0.0
    %v141 = vsel %vm125, 1.0, 0.0
    %v142 = vsel %vm126, 1.0, 0.0
    %v143 = vsel %vm127, 1.0, 0.0
    %v144 = vsel %vm128, 1.0, 0.0
    %v145 = vsel %vm129, 1.0, 0.0
    %v146 = vsel %vm130, 1.0, 0.0
    %v147 = vsel %vm131, 1.0, 0.0
    %v148 = vsel %vm132, 1.0, 0.0
    %v149 = vsel %vm133, 1.0, 0.0
    %v150 = vsel %vm134, 1.0, 0.0
    %v151 = vsel %vm135, 1.0, 0.0
    %v152 = vsel %vm136, 1.0, 0.0
    %v153 = vpack.c.bf16 %v138, %v137
    %v154 = vpack.c.bf16 %v140, %v139
    %v155 = vpack.c.bf16 %v142, %v141
    %v156 = vpack.c.bf16 %v144, %v143
    %v157 = vpack.c.bf16 %v146, %v145
    %v158 = vpack.c.bf16 %v148, %v147
    %v159 = vpack.c.bf16 %v150, %v149
    %v160 = vpack.c.bf16 %v152, %v151
    %v161 = vld [vmem:[%s1] sm:$0xf]
    %v162 = vld [vmem:[%s1 + $0x4] sm:$0xf]
    %v163 = vld [vmem:[%s1 + $0x8] sm:$0xf]
    %v164 = vld [vmem:[%s1 + $0xc] sm:$0xf]
    %v165 = vld [vmem:[%s1 + $0x10] sm:$0xf]
    %v166 = vld [vmem:[%s1 + $0x14] sm:$0xf]
    %v167 = vld [vmem:[%s1 + $0x18] sm:$0xf]
    %v168 = vld [vmem:[%s1 + $0x1c] sm:$0xf]
    %v177 = vunpack.c.l.b16 %v161
    %v178 = vunpack.c.l.b16 %v162
    %v179 = vunpack.c.l.b16 %v163
    %v180 = vunpack.c.l.b16 %v164
    %v181 = vunpack.c.l.b16 %v165
    %v182 = vunpack.c.l.b16 %v166
    %v183 = vunpack.c.l.b16 %v167
    %v184 = vunpack.c.l.b16 %v168
    %v185 = vpack.c.b16 %v178, %v177
    %v186 = vpack.c.b16 %v180, %v179
    %v187 = vpack.c.b16 %v182, %v181
    %v188 = vpack.c.b16 %v184, %v183
    %vm193 = vcmask 523264
    %v195 = vsel %vm193, %v153, 0
    %v198 = vsel %vm193, %v154, 0
    %v201 = vsel %vm193, %v155, 0
    %v204 = vsel %vm193, %v156, 0
    %v207 = vsel %vm193, %v157, 0
    %v210 = vsel %vm193, %v158, 0
    %v213 = vsel %vm193, %v159, 0
    %v216 = vsel %vm193, %v160, 0
    %218 = vmatprep.subr.bf16.mxu0 0
    %219 = vmatpush1.bf16.msra.mxu0 %v185
    %220 = vmatprep.subr.bf16.mxu0 0
    %221 = vmatpush1.bf16.msra.mxu0 %v186
    %222 = vmatprep.subr.bf16.mxu0 0
    %223 = vmatpush1.bf16.msra.mxu0 %v187
    %224 = vmatprep.subr.bf16.mxu0 0
    %225 = vmatpush1.bf16.msra.mxu0 %v188
    %226 = vmatprep.subr.bf16.mxu0 0
    %227 = vmatpush1.bf16.msra.mxu0 0
    %228 = vmatprep.subr.bf16.mxu0 0
    %229 = vmatpush1.bf16.msra.mxu0 0
    %230 = vmatprep.subr.bf16.mxu0 0
    %231 = vmatpush1.bf16.msra.mxu0 0
    %232 = vmatprep.subr.bf16.mxu0 0
    %233 = vmatpush1.bf16.msra.mxu0 0
    %234 = vmatprep.subr.bf16.mxu0 0
    %235 = vmatpush1.bf16.msra.mxu0 0
    %236 = vmatprep.subr.bf16.mxu0 0
    %237 = vmatpush1.bf16.msra.mxu0 0
    %238 = vmatprep.subr.bf16.mxu0 0
    %239 = vmatpush1.bf16.msra.mxu0 0
    %240 = vmatprep.subr.bf16.mxu0 0
    %241 = vmatpush1.bf16.msra.mxu0 0
    %242 = vmatprep.subr.bf16.mxu0 0
    %243 = vmatpush1.bf16.msra.mxu0 0
    %244 = vmatprep.subr.bf16.mxu0 0
    %245 = vmatpush1.bf16.msra.mxu0 0
    %246 = vmatprep.subr.bf16.mxu0 0
    %247 = vmatpush1.bf16.msra.mxu0 0
    %248 = vmatprep.subr.bf16.mxu0 0
    %249 = vmatpush1.bf16.msra.mxu0 0
    %250 = vmatprep.mubr.bf16.mxu0 0
    %251 = vmatmul.mubr.bf16.gmra.mrb[0].mxu0 %v195
    %v252 = vpop.f32.mrb[0].mxu0
    %v253 = vadd.f32 0.0, %v252
    %v254 = vpop.f32.mrb[0].mxu0
    %v255 = vpop.f32.mrb[0].mxu0
    %v256 = vadd.f32 0.0, %v255
    %v257 = vpop.f32.mrb[0].mxu0
    %258 = vmatprep.mubr.bf16.mxu0 0
    %259 = vmatmul.mubr.bf16.gmra.mrb[0].mxu0 %v198
    %v260 = vpop.f32.mrb[0].mxu0
    %v261 = vadd.f32 0.0, %v260
    %v262 = vpop.f32.mrb[0].mxu0
    %v263 = vpop.f32.mrb[0].mxu0
    %v264 = vadd.f32 0.0, %v263
    %v265 = vpop.f32.mrb[0].mxu0
    %266 = vmatprep.mubr.bf16.mxu0 0
    %267 = vmatmul.mubr.bf16.gmra.mrb[0].mxu0 %v201
    %v268 = vpop.f32.mrb[0].mxu0
    %v269 = vadd.f32 0.0, %v268
    %v270 = vpop.f32.mrb[0].mxu0
    %v271 = vpop.f32.mrb[0].mxu0
    %v272 = vadd.f32 0.0, %v271
    %v273 = vpop.f32.mrb[0].mxu0
    %274 = vmatprep.mubr.bf16.mxu0 0
    %275 = vmatmul.mubr.bf16.gmra.mrb[0].mxu0 %v204
    %v276 = vpop.f32.mrb[0].mxu0
    %v277 = vadd.f32 0.0, %v276
    %v278 = vpop.f32.mrb[0].mxu0
    %v279 = vpop.f32.mrb[0].mxu0
    %v280 = vadd.f32 0.0, %v279
    %v281 = vpop.f32.mrb[0].mxu0
    %282 = vmatprep.mubr.bf16.mxu0 0
    %283 = vmatmul.mubr.bf16.gmra.mrb[0].mxu0 %v207
    %v284 = vpop.f32.mrb[0].mxu0
    %v285 = vadd.f32 0.0, %v284
    %v286 = vpop.f32.mrb[0].mxu0
    %v287 = vpop.f32.mrb[0].mxu0
    %v288 = vadd.f32 0.0, %v287
    %v289 = vpop.f32.mrb[0].mxu0
    %290 = vmatprep.mubr.bf16.mxu0 0
    %291 = vmatmul.mubr.bf16.gmra.mrb[0].mxu0 %v210
    %v292 = vpop.f32.mrb[0].mxu0
    %v293 = vadd.f32 0.0, %v292
    %v294 = vpop.f32.mrb[0].mxu0
    %v295 = vpop.f32.mrb[0].mxu0
    %v296 = vadd.f32 0.0, %v295
    %v297 = vpop.f32.mrb[0].mxu0
    %298 = vmatprep.mubr.bf16.mxu0 0
    %299 = vmatmul.mubr.bf16.gmra.mrb[0].mxu0 %v213
    %v300 = vpop.f32.mrb[0].mxu0
    %v301 = vadd.f32 0.0, %v300
    %v302 = vpop.f32.mrb[0].mxu0
    %v303 = vpop.f32.mrb[0].mxu0
    %v304 = vadd.f32 0.0, %v303
    %v305 = vpop.f32.mrb[0].mxu0
    %306 = vmatprep.mubr.bf16.mxu0 0
    %307 = vmatmul.mubr.bf16.gmra.mrb[0].mxu0 %v216
    %v308 = vpop.f32.mrb[0].mxu0
    %v309 = vadd.f32 0.0, %v308
    %v310 = vpop.f32.mrb[0].mxu0
    %v311 = vpop.f32.mrb[0].mxu0
    %v312 = vadd.f32 0.0, %v311
    %v313 = vpop.f32.mrb[0].mxu0
    %314 = vdwg.mxu0
    %v315 = vpack.c.bf16 %v256, %v253
    %v316 = vpack.c.bf16 %v264, %v261
    %v317 = vpack.c.bf16 %v272, %v269
    %v318 = vpack.c.bf16 %v280, %v277
    %v319 = vpack.c.bf16 %v288, %v285
    %v320 = vpack.c.bf16 %v296, %v293
    %v321 = vpack.c.bf16 %v304, %v301
    %v322 = vpack.c.bf16 %v312, %v309
    %v323 = vld [vmem:[%s2] sm:$0xf]
    %v324 = vld [vmem:[%s2 + $0x4] sm:$0xf]
    %v325 = vld [vmem:[%s3] sm:$0x1]
    %v327 = vlaneseq
    %v328 = vshrl.u32 %v327, 7
    %v329 = vsub.s32 0, %v328
    %v330 = vrot.slane %v325, %v329
    %v334 = vunpack.c.l.b16 %v323
    %v335 = vunpack.c.l.b16 %v324
    %v336 = vpack.c.b16 %v335, %v334
    %vm338 = vcmask 130048
    %v340 = vsel %vm338, %v315, 0
    %v343 = vsel %vm338, %v316, 0
    %v346 = vsel %vm338, %v317, 0
    %v349 = vsel %vm338, %v318, 0
    %v352 = vsel %vm338, %v319, 0
    %v355 = vsel %vm338, %v320, 0
    %v358 = vsel %vm338, %v321, 0
    %v361 = vsel %vm338, %v322, 0
    %363 = vmatprep.subr.bf16.mxu0 0
    %364 = vmatpush1.bf16.msra.mxu0 %v336
    %365 = vmatprep.subr.bf16.mxu0 0
    %366 = vmatpush1.bf16.msra.mxu0 0
    %367 = vmatprep.subr.bf16.mxu0 0
    %368 = vmatpush1.bf16.msra.mxu0 0
    %369 = vmatprep.subr.bf16.mxu0 0
    %370 = vmatpush1.bf16.msra.mxu0 0
    %371 = vmatprep.subr.bf16.mxu0 0
    %372 = vmatpush1.bf16.msra.mxu0 0
    %373 = vmatprep.subr.bf16.mxu0 0
    %374 = vmatpush1.bf16.msra.mxu0 0
    %375 = vmatprep.subr.bf16.mxu0 0
    %376 = vmatpush1.bf16.msra.mxu0 0
    %377 = vmatprep.subr.bf16.mxu0 0
    %378 = vmatpush1.bf16.msra.mxu0 0
    %379 = vmatprep.subr.bf16.mxu0 0
    %380 = vmatpush1.bf16.msra.mxu0 0
    %381 = vmatprep.subr.bf16.mxu0 0
    %382 = vmatpush1.bf16.msra.mxu0 0
    %383 = vmatprep.subr.bf16.mxu0 0
    %384 = vmatpush1.bf16.msra.mxu0 0
    %385 = vmatprep.subr.bf16.mxu0 0
    %386 = vmatpush1.bf16.msra.mxu0 0
    %387 = vmatprep.subr.bf16.mxu0 0
    %388 = vmatpush1.bf16.msra.mxu0 0
    %389 = vmatprep.subr.bf16.mxu0 0
    %390 = vmatpush1.bf16.msra.mxu0 0
    %391 = vmatprep.subr.bf16.mxu0 0
    %392 = vmatpush1.bf16.msra.mxu0 0
    %393 = vmatprep.subr.bf16.mxu0 0
    %394 = vmatpush1.bf16.msra.mxu0 0
    %395 = vmatprep.mubr.bf16.mxu0 0
    %396 = vmatmul.mubr.bf16.gmra.mrb[0].mxu0 %v340
    %v397 = vpop.f32.mrb[0].mxu0
    %v398 = vadd.f32 %v330, %v397
    %v399 = vpop.f32.mrb[0].mxu0
    %v400 = vpop.f32.mrb[0].mxu0
    %v401 = vadd.f32 %v330, %v400
    %v402 = vpop.f32.mrb[0].mxu0
    %403 = vmatprep.mubr.bf16.mxu0 0
    %404 = vmatmul.mubr.bf16.gmra.mrb[0].mxu0 %v343
    %v405 = vpop.f32.mrb[0].mxu0
    %v406 = vadd.f32 %v330, %v405
    %v407 = vpop.f32.mrb[0].mxu0
    %v408 = vpop.f32.mrb[0].mxu0
    %v409 = vadd.f32 %v330, %v408
    %v410 = vpop.f32.mrb[0].mxu0
    %411 = vmatprep.mubr.bf16.mxu0 0
    %412 = vmatmul.mubr.bf16.gmra.mrb[0].mxu0 %v346
    %v413 = vpop.f32.mrb[0].mxu0
    %v414 = vadd.f32 %v330, %v413
    %v415 = vpop.f32.mrb[0].mxu0
    %v416 = vpop.f32.mrb[0].mxu0
    %v417 = vadd.f32 %v330, %v416
    %v418 = vpop.f32.mrb[0].mxu0
    %419 = vmatprep.mubr.bf16.mxu0 0
    %420 = vmatmul.mubr.bf16.gmra.mrb[0].mxu0 %v349
    %v421 = vpop.f32.mrb[0].mxu0
    %v422 = vadd.f32 %v330, %v421
    %v423 = vpop.f32.mrb[0].mxu0
    %v424 = vpop.f32.mrb[0].mxu0
    %v425 = vadd.f32 %v330, %v424
    %v426 = vpop.f32.mrb[0].mxu0
    %427 = vmatprep.mubr.bf16.mxu0 0
    %428 = vmatmul.mubr.bf16.gmra.mrb[0].mxu0 %v352
    %v429 = vpop.f32.mrb[0].mxu0
    %v430 = vadd.f32 %v330, %v429
    %v431 = vpop.f32.mrb[0].mxu0
    %v432 = vpop.f32.mrb[0].mxu0
    %v433 = vadd.f32 %v330, %v432
    %v434 = vpop.f32.mrb[0].mxu0
    %435 = vmatprep.mubr.bf16.mxu0 0
    %436 = vmatmul.mubr.bf16.gmra.mrb[0].mxu0 %v355
    %v437 = vpop.f32.mrb[0].mxu0
    %v438 = vadd.f32 %v330, %v437
    %v439 = vpop.f32.mrb[0].mxu0
    %v440 = vpop.f32.mrb[0].mxu0
    %v441 = vadd.f32 %v330, %v440
    %v442 = vpop.f32.mrb[0].mxu0
    %443 = vmatprep.mubr.bf16.mxu0 0
    %444 = vmatmul.mubr.bf16.gmra.mrb[0].mxu0 %v358
    %v445 = vpop.f32.mrb[0].mxu0
    %v446 = vadd.f32 %v330, %v445
    %v447 = vpop.f32.mrb[0].mxu0
    %v448 = vpop.f32.mrb[0].mxu0
    %v449 = vadd.f32 %v330, %v448
    %v450 = vpop.f32.mrb[0].mxu0
    %451 = vmatprep.mubr.bf16.mxu0 0
    %452 = vmatmul.mubr.bf16.gmra.mrb[0].mxu0 %v361
    %v453 = vpop.f32.mrb[0].mxu0
    %v454 = vadd.f32 %v330, %v453
    %v455 = vpop.f32.mrb[0].mxu0
    %v456 = vpop.f32.mrb[0].mxu0
    %v457 = vadd.f32 %v330, %v456
    %v458 = vpop.f32.mrb[0].mxu0
    %459 = vdwg.mxu0
    %v460 = vmax.f32 %v398, 0.0
    %v461 = vmax.f32 %v401, 0.0
    %v462 = vmax.f32 %v406, 0.0
    %v463 = vmax.f32 %v409, 0.0
    %v464 = vmax.f32 %v414, 0.0
    %v465 = vmax.f32 %v417, 0.0
    %v466 = vmax.f32 %v422, 0.0
    %v467 = vmax.f32 %v425, 0.0
    %v468 = vmax.f32 %v430, 0.0
    %v469 = vmax.f32 %v433, 0.0
    %v470 = vmax.f32 %v438, 0.0
    %v471 = vmax.f32 %v441, 0.0
    %v472 = vmax.f32 %v446, 0.0
    %v473 = vmax.f32 %v449, 0.0
    %v474 = vmax.f32 %v454, 0.0
    %v475 = vmax.f32 %v457, 0.0
    %v476 = vsel %vm338, %v460, -inf
    %v477 = vsel %vm338, %v462, -inf
    %v478 = vsel %vm338, %v464, -inf
    %v479 = vmax.f32 %v476, %v478
    %v480 = vsel %vm338, %v466, -inf
    %v481 = vmax.f32 %v477, %v480
    %v482 = vsel %vm338, %v468, -inf
    %v483 = vmax.f32 %v479, %v482
    %v484 = vsel %vm338, %v470, -inf
    %v485 = vmax.f32 %v481, %v484
    %v486 = vsel %vm338, %v472, -inf
    %v487 = vmax.f32 %v483, %v486
    %v488 = vsel %vm338, %v474, -inf
    %v489 = vmax.f32 %v485, %v488
    %v490 = vmax.f32 %v487, %v489
    %v491 = vsel %vm338, %v461, -inf
    %v492 = vsel %vm338, %v463, -inf
    %v493 = vsel %vm338, %v465, -inf
    %v494 = vmax.f32 %v491, %v493
    %v495 = vsel %vm338, %v467, -inf
    %v496 = vmax.f32 %v492, %v495
    %v497 = vsel %vm338, %v469, -inf
    %v498 = vmax.f32 %v494, %v497
    %v499 = vsel %vm338, %v471, -inf
    %v500 = vmax.f32 %v496, %v499
    %v501 = vsel %vm338, %v473, -inf
    %v502 = vmax.f32 %v498, %v501
    %v503 = vsel %vm338, %v475, -inf
    %v504 = vmax.f32 %v500, %v503
    %v505 = vmax.f32 %v502, %v504
    %513 = vrot.lane.b32.xlu0 %v316, 16
    %v514 = vpop.permute.xlu0 %513
    %515 = vrot.lane.b32.xlu0 %v317, 16
    %v516 = vpop.permute.xlu0 %515
    %517 = vrot.lane.b32.xlu0 %v318, 16
    %v518 = vpop.permute.xlu0 %517
    %519 = vrot.lane.b32.xlu0 %v319, 16
    %v520 = vpop.permute.xlu0 %519
    %521 = vrot.lane.b32.xlu0 %v320, 16
    %v522 = vpop.permute.xlu0 %521
    %523 = vrot.lane.b32.xlu0 %v321, 16
    %v524 = vpop.permute.xlu0 %523
    %525 = vrot.lane.b32.xlu0 %v322, 16
    %v526 = vpop.permute.xlu0 %525
    %v528 = vsel %vm338, %v315, %v514
    %v530 = vsel %vm338, %v316, %v516
    %v532 = vsel %vm338, %v317, %v518
    %v534 = vsel %vm338, %v318, %v520
    %v536 = vsel %vm338, %v319, %v522
    %v538 = vsel %vm338, %v320, %v524
    %v540 = vsel %vm338, %v321, %v526
    %v541 = vld [vmem:[%s2] sm:$0xf]
    %v542 = vld [vmem:[%s2 + $0x4] sm:$0xf]
    %v543 = vld [vmem:[%s2 + $0x8] sm:$0xf]
    %v544 = vld [vmem:[%s2 + $0xc] sm:$0xf]
    %v549 = vunpack.c.l.b16 %v541
    %v550 = vunpack.c.l.b16 %v542
    %v551 = vunpack.c.l.b16 %v543
    %v552 = vunpack.c.l.b16 %v544
    %v553 = vpack.c.b16 %v550, %v549
    %v554 = vpack.c.b16 %v552, %v551
    %555 = vrot.lane.b32.xlu0 %v553, 112
    %v556 = vpop.permute.xlu0 %555
    %557 = vrot.lane.b32.xlu0 %v554, 112
    %v558 = vpop.permute.xlu0 %557
    %561 = vrot.lane.b32.xlu0 %v330, 112
    %v562 = vpop.permute.xlu0 %561
    %vm564 = vcmask 261120
    %v565 = vsel %vm564, %v528, 0
    %v567 = vsel %vm564, %v530, 0
    %v569 = vsel %vm564, %v532, 0
    %v571 = vsel %vm564, %v534, 0
    %v573 = vsel %vm564, %v536, 0
    %v575 = vsel %vm564, %v538, 0
    %v577 = vsel %vm564, %v540, 0
    %579 = vmatprep.subr.bf16.mxu0 0
    %580 = vmatpush1.bf16.msra.mxu0 %v556
    %581 = vmatprep.subr.bf16.mxu0 0
    %582 = vmatpush1.bf16.msra.mxu0 %v558
    %583 = vmatprep.subr.bf16.mxu0 0
    %584 = vmatpush1.bf16.msra.mxu0 0
    %585 = vmatprep.subr.bf16.mxu0 0
    %586 = vmatpush1.bf16.msra.mxu0 0
    %587 = vmatprep.subr.bf16.mxu0 0
    %588 = vmatpush1.bf16.msra.mxu0 0
    %589 = vmatprep.subr.bf16.mxu0 0
    %590 = vmatpush1.bf16.msra.mxu0 0
    %591 = vmatprep.subr.bf16.mxu0 0
    %592 = vmatpush1.bf16.msra.mxu0 0
    %593 = vmatprep.subr.bf16.mxu0 0
    %594 = vmatpush1.bf16.msra.mxu0 0
    %595 = vmatprep.subr.bf16.mxu0 0
    %596 = vmatpush1.bf16.msra.mxu0 0
    %597 = vmatprep.subr.bf16.mxu0 0
    %598 = vmatpush1.bf16.msra.mxu0 0
    %599 = vmatprep.subr.bf16.mxu0 0
    %600 = vmatpush1.bf16.msra.mxu0 0
    %601 = vmatprep.subr.bf16.mxu0 0
    %602 = vmatpush1.bf16.msra.mxu0 0
    %603 = vmatprep.subr.bf16.mxu0 0
    %604 = vmatpush1.bf16.msra.mxu0 0
    %605 = vmatprep.subr.bf16.mxu0 0
    %606 = vmatpush1.bf16.msra.mxu0 0
    %607 = vmatprep.subr.bf16.mxu0 0
    %608 = vmatpush1.bf16.msra.mxu0 0
    %609 = vmatprep.subr.bf16.mxu0 0
    %610 = vmatpush1.bf16.msra.mxu0 0
    %611 = vmatprep.mubr.bf16.mxu0 0
    %612 = vmatmul.mubr.bf16.gmra.mrb[0].mxu0 %v565
    %v613 = vpop.f32.mrb[0].mxu0
    %v614 = vadd.f32 %v562, %v613
    %v615 = vpop.f32.mrb[0].mxu0
    %v616 = vpop.f32.mrb[0].mxu0
    %v617 = vadd.f32 %v562, %v616
    %v618 = vpop.f32.mrb[0].mxu0
    %619 = vmatprep.mubr.bf16.mxu0 0
    %620 = vmatmul.mubr.bf16.gmra.mrb[0].mxu0 %v567
    %v621 = vpop.f32.mrb[0].mxu0
    %v622 = vadd.f32 %v562, %v621
    %v623 = vpop.f32.mrb[0].mxu0
    %v624 = vpop.f32.mrb[0].mxu0
    %v625 = vadd.f32 %v562, %v624
    %v626 = vpop.f32.mrb[0].mxu0
    %627 = vmatprep.mubr.bf16.mxu0 0
    %628 = vmatmul.mubr.bf16.gmra.mrb[0].mxu0 %v569
    %v629 = vpop.f32.mrb[0].mxu0
    %v630 = vadd.f32 %v562, %v629
    %v631 = vpop.f32.mrb[0].mxu0
    %v632 = vpop.f32.mrb[0].mxu0
    %v633 = vadd.f32 %v562, %v632
    %v634 = vpop.f32.mrb[0].mxu0
    %635 = vmatprep.mubr.bf16.mxu0 0
    %636 = vmatmul.mubr.bf16.gmra.mrb[0].mxu0 %v571
    %v637 = vpop.f32.mrb[0].mxu0
    %v638 = vadd.f32 %v562, %v637
    %v639 = vpop.f32.mrb[0].mxu0
    %v640 = vpop.f32.mrb[0].mxu0
    %v641 = vadd.f32 %v562, %v640
    %v642 = vpop.f32.mrb[0].mxu0
    %643 = vmatprep.mubr.bf16.mxu0 0
    %644 = vmatmul.mubr.bf16.gmra.mrb[0].mxu0 %v573
    %v645 = vpop.f32.mrb[0].mxu0
    %v646 = vadd.f32 %v562, %v645
    %v647 = vpop.f32.mrb[0].mxu0
    %v648 = vpop.f32.mrb[0].mxu0
    %v649 = vadd.f32 %v562, %v648
    %v650 = vpop.f32.mrb[0].mxu0
    %651 = vmatprep.mubr.bf16.mxu0 0
    %652 = vmatmul.mubr.bf16.gmra.mrb[0].mxu0 %v575
    %v653 = vpop.f32.mrb[0].mxu0
    %v654 = vadd.f32 %v562, %v653
    %v655 = vpop.f32.mrb[0].mxu0
    %v656 = vpop.f32.mrb[0].mxu0
    %v657 = vadd.f32 %v562, %v656
    %v658 = vpop.f32.mrb[0].mxu0
    %659 = vmatprep.mubr.bf16.mxu0 0
    %660 = vmatmul.mubr.bf16.gmra.mrb[0].mxu0 %v577
    %v661 = vpop.f32.mrb[0].mxu0
    %v662 = vadd.f32 %v562, %v661
    %v663 = vpop.f32.mrb[0].mxu0
    %v664 = vpop.f32.mrb[0].mxu0
    %v665 = vadd.f32 %v562, %v664
    %v666 = vpop.f32.mrb[0].mxu0
    %667 = vdwg.mxu0
    %v668 = vmax.f32 %v614, 0.0
    %v669 = vmax.f32 %v617, 0.0
    %v670 = vmax.f32 %v622, 0.0
    %v671 = vmax.f32 %v625, 0.0
    %v672 = vmax.f32 %v630, 0.0
    %v673 = vmax.f32 %v633, 0.0
    %v674 = vmax.f32 %v638, 0.0
    %v675 = vmax.f32 %v641, 0.0
    %v676 = vmax.f32 %v646, 0.0
    %v677 = vmax.f32 %v649, 0.0
    %v678 = vmax.f32 %v654, 0.0
    %v679 = vmax.f32 %v657, 0.0
    %v680 = vmax.f32 %v662, 0.0
    %v681 = vmax.f32 %v665, 0.0
    %v682 = vsel %vm338, %v668, -inf
    %v683 = vsel %vm338, %v670, -inf
    %v684 = vsel %vm338, %v672, -inf
    %v685 = vmax.f32 %v682, %v684
    %v686 = vsel %vm338, %v674, -inf
    %v687 = vmax.f32 %v683, %v686
    %v688 = vsel %vm338, %v676, -inf
    %v689 = vmax.f32 %v685, %v688
    %v690 = vsel %vm338, %v678, -inf
    %v691 = vmax.f32 %v687, %v690
    %v692 = vsel %vm338, %v680, -inf
    %v693 = vmax.f32 %v689, %v692
    %v694 = vmax.f32 %v693, %v691
    %v695 = vsel %vm338, %v669, -inf
    %v696 = vsel %vm338, %v671, -inf
    %v697 = vsel %vm338, %v673, -inf
    %v698 = vmax.f32 %v695, %v697
    %v699 = vsel %vm338, %v675, -inf
    %v700 = vmax.f32 %v696, %v699
    %v701 = vsel %vm338, %v677, -inf
    %v702 = vmax.f32 %v698, %v701
    %v703 = vsel %vm338, %v679, -inf
    %v704 = vmax.f32 %v700, %v703
    %v705 = vsel %vm338, %v681, -inf
    %v706 = vmax.f32 %v702, %v705
    %v707 = vmax.f32 %v706, %v704
    %708 = vrot.lane.b32.xlu0 %v317, 32
    %v709 = vpop.permute.xlu0 %708
    %710 = vrot.lane.b32.xlu0 %v318, 32
    %v711 = vpop.permute.xlu0 %710
    %712 = vrot.lane.b32.xlu0 %v319, 32
    %v713 = vpop.permute.xlu0 %712
    %714 = vrot.lane.b32.xlu0 %v320, 32
    %v715 = vpop.permute.xlu0 %714
    %716 = vrot.lane.b32.xlu0 %v321, 32
    %v717 = vpop.permute.xlu0 %716
    %718 = vrot.lane.b32.xlu0 %v322, 32
    %v719 = vpop.permute.xlu0 %718
    %v721 = vsel %vm564, %v528, %v709
    %v723 = vsel %vm564, %v530, %v711
    %v725 = vsel %vm564, %v532, %v713
    %v727 = vsel %vm564, %v534, %v715
    %v729 = vsel %vm564, %v536, %v717
    %v731 = vsel %vm564, %v538, %v719
    %v732 = vld [vmem:[%s2] sm:$0xf]
    %v733 = vld [vmem:[%s2 + $0x4] sm:$0xf]
    %v734 = vld [vmem:[%s2 + $0x8] sm:$0xf]
    %v735 = vld [vmem:[%s2 + $0xc] sm:$0xf]
    %v736 = vld [vmem:[%s2 + $0x10] sm:$0xf]
    %v737 = vld [vmem:[%s2 + $0x14] sm:$0xf]
    %v744 = vunpack.c.l.b16 %v732
    %v745 = vunpack.c.l.b16 %v733
    %v746 = vunpack.c.l.b16 %v734
    %v747 = vunpack.c.l.b16 %v735
    %v748 = vunpack.c.l.b16 %v736
    %v749 = vunpack.c.l.b16 %v737
    %v750 = vpack.c.b16 %v745, %v744
    %v751 = vpack.c.b16 %v747, %v746
    %v752 = vpack.c.b16 %v749, %v748
    %753 = vrot.lane.b32.xlu0 %v750, 96
    %v754 = vpop.permute.xlu0 %753
    %755 = vrot.lane.b32.xlu0 %v751, 96
    %v756 = vpop.permute.xlu0 %755
    %757 = vrot.lane.b32.xlu0 %v752, 96
    %v758 = vpop.permute.xlu0 %757
    %762 = vrot.lane.b32.xlu0 %v330, 96
    %v763 = vpop.permute.xlu0 %762
    %vm765 = vcmask 392192
    %v766 = vsel %vm765, %v721, 0
    %v768 = vsel %vm765, %v723, 0
    %v770 = vsel %vm765, %v725, 0
    %v772 = vsel %vm765, %v727, 0
    %v774 = vsel %vm765, %v729, 0
    %v776 = vsel %vm765, %v731, 0
    %778 = vmatprep.subr.bf16.mxu0 0
    %779 = vmatpush1.bf16.msra.mxu0 %v754
    %780 = vmatprep.subr.bf16.mxu0 0
    %781 = vmatpush1.bf16.msra.mxu0 %v756
    %782 = vmatprep.subr.bf16.mxu0 0
    %783 = vmatpush1.bf16.msra.mxu0 %v758
    %784 = vmatprep.subr.bf16.mxu0 0
    %785 = vmatpush1.bf16.msra.mxu0 0
    %786 = vmatprep.subr.bf16.mxu0 0
    %787 = vmatpush1.bf16.msra.mxu0 0
    %788 = vmatprep.subr.bf16.mxu0 0
    %789 = vmatpush1.bf16.msra.mxu0 0
    %790 = vmatprep.subr.bf16.mxu0 0
    %791 = vmatpush1.bf16.msra.mxu0 0
    %792 = vmatprep.subr.bf16.mxu0 0
    %793 = vmatpush1.bf16.msra.mxu0 0
    %794 = vmatprep.subr.bf16.mxu0 0
    %795 = vmatpush1.bf16.msra.mxu0 0
    %796 = vmatprep.subr.bf16.mxu0 0
    %797 = vmatpush1.bf16.msra.mxu0 0
    %798 = vmatprep.subr.bf16.mxu0 0
    %799 = vmatpush1.bf16.msra.mxu0 0
    %800 = vmatprep.subr.bf16.mxu0 0
    %801 = vmatpush1.bf16.msra.mxu0 0
    %802 = vmatprep.subr.bf16.mxu0 0
    %803 = vmatpush1.bf16.msra.mxu0 0
    %804 = vmatprep.subr.bf16.mxu0 0
    %805 = vmatpush1.bf16.msra.mxu0 0
    %806 = vmatprep.subr.bf16.mxu0 0
    %807 = vmatpush1.bf16.msra.mxu0 0
    %808 = vmatprep.subr.bf16.mxu0 0
    %809 = vmatpush1.bf16.msra.mxu0 0
    %810 = vmatprep.mubr.bf16.mxu0 0
    %811 = vmatmul.mubr.bf16.gmra.mrb[0].mxu0 %v766
    %v812 = vpop.f32.mrb[0].mxu0
    %v813 = vadd.f32 %v763, %v812
    %v814 = vpop.f32.mrb[0].mxu0
    %v815 = vpop.f32.mrb[0].mxu0
    %v816 = vadd.f32 %v763, %v815
    %v817 = vpop.f32.mrb[0].mxu0
    %818 = vmatprep.mubr.bf16.mxu0 0
    %819 = vmatmul.mubr.bf16.gmra.mrb[0].mxu0 %v768
    %v820 = vpop.f32.mrb[0].mxu0
    %v821 = vadd.f32 %v763, %v820
    %v822 = vpop.f32.mrb[0].mxu0
    %v823 = vpop.f32.mrb[0].mxu0
    %v824 = vadd.f32 %v763, %v823
    %v825 = vpop.f32.mrb[0].mxu0
    %826 = vmatprep.mubr.bf16.mxu0 0
    %827 = vmatmul.mubr.bf16.gmra.mrb[0].mxu0 %v770
    %v828 = vpop.f32.mrb[0].mxu0
    %v829 = vadd.f32 %v763, %v828
    %v830 = vpop.f32.mrb[0].mxu0
    %v831 = vpop.f32.mrb[0].mxu0
    %v832 = vadd.f32 %v763, %v831
    %v833 = vpop.f32.mrb[0].mxu0
    %834 = vmatprep.mubr.bf16.mxu0 0
    %835 = vmatmul.mubr.bf16.gmra.mrb[0].mxu0 %v772
    %v836 = vpop.f32.mrb[0].mxu0
    %v837 = vadd.f32 %v763, %v836
    %v838 = vpop.f32.mrb[0].mxu0
    %v839 = vpop.f32.mrb[0].mxu0
    %v840 = vadd.f32 %v763, %v839
    %v841 = vpop.f32.mrb[0].mxu0
    %842 = vmatprep.mubr.bf16.mxu0 0
    %843 = vmatmul.mubr.bf16.gmra.mrb[0].mxu0 %v774
    %v844 = vpop.f32.mrb[0].mxu0
    %v845 = vadd.f32 %v763, %v844
    %v846 = vpop.f32.mrb[0].mxu0
    %v847 = vpop.f32.mrb[0].mxu0
    %v848 = vadd.f32 %v763, %v847
    %v849 = vpop.f32.mrb[0].mxu0
    %850 = vmatprep.mubr.bf16.mxu0 0
    %851 = vmatmul.mubr.bf16.gmra.mrb[0].mxu0 %v776
    %v852 = vpop.f32.mrb[0].mxu0
    %v853 = vadd.f32 %v763, %v852
    %v854 = vpop.f32.mrb[0].mxu0
    %v855 = vpop.f32.mrb[0].mxu0
    %v856 = vadd.f32 %v763, %v855
    %v857 = vpop.f32.mrb[0].mxu0
    %858 = vdwg.mxu0
    %v859 = vmax.f32 %v813, 0.0
    %v860 = vmax.f32 %v816, 0.0
    %v861 = vmax.f32 %v821, 0.0
    %v862 = vmax.f32 %v824, 0.0
    %v863 = vmax.f32 %v829, 0.0
    %v864 = vmax.f32 %v832, 0.0
    %v865 = vmax.f32 %v837, 0.0
    %v866 = vmax.f32 %v840, 0.0
    %v867 = vmax.f32 %v845, 0.0
    %v868 = vmax.f32 %v848, 0.0
    %v869 = vmax.f32 %v853, 0.0
    %v870 = vmax.f32 %v856, 0.0
    %v871 = vsel %vm564, %v859, -inf
    %v872 = vsel %vm564, %v861, -inf
    %v873 = vsel %vm564, %v863, -inf
    %v874 = vmax.f32 %v871, %v873
    %v875 = vsel %vm564, %v865, -inf
    %v876 = vmax.f32 %v872, %v875
    %v877 = vsel %vm564, %v867, -inf
    %v878 = vmax.f32 %v874, %v877
    %v879 = vsel %vm564, %v869, -inf
    %v880 = vmax.f32 %v876, %v879
    %v881 = vmax.f32 %v878, %v880
    %v882 = vsel %vm564, %v860, -inf
    %v883 = vsel %vm564, %v862, -inf
    %v884 = vsel %vm564, %v864, -inf
    %v885 = vmax.f32 %v882, %v884
    %v886 = vsel %vm564, %v866, -inf
    %v887 = vmax.f32 %v883, %v886
    %v888 = vsel %vm564, %v868, -inf
    %v889 = vmax.f32 %v885, %v888
    %v890 = vsel %vm564, %v870, -inf
    %v891 = vmax.f32 %v887, %v890
    %v892 = vmax.f32 %v889, %v891
    %895 = vrot.lane.b32.xlu0 %v694, 16
    %v896 = vpop.permute.xlu0 %895
    %897 = vrot.lane.b32.xlu0 %v707, 16
    %v898 = vpop.permute.xlu0 %897
    %903 = vrot.lane.b32.xlu0 %v881, 32
    %v904 = vpop.permute.xlu0 %903
    %905 = vrot.lane.b32.xlu0 %v892, 32
    %v906 = vpop.permute.xlu0 %905
    %v909 = vsel %vm338, %v490, %v896
    %v910 = vsel %vm338, %v505, %v898
    %v911 = vsel %vm564, %v909, %v904
    %v912 = vsel %vm564, %v910, %v906
    %v913 = vpack.c.bf16 %v912, %v911
    %v914 = vld [vmem:[%s4] sm:$0xf]
    %v915 = vld [vmem:[%s4 + $0x4] sm:$0xf]
    %v916 = vld [vmem:[%s4 + $0x8] sm:$0xf]
    %v917 = vld [vmem:[%s4 + $0xc] sm:$0xf]
    %v918 = vld [vmem:[%s4 + $0x10] sm:$0xf]
    %v919 = vld [vmem:[%s4 + $0x14] sm:$0xf]
    %v920 = vld [vmem:[%s4 + $0x18] sm:$0xf]
    %v921 = vld [vmem:[%s4 + $0x1c] sm:$0xf]
    %v922 = vld [vmem:[%s5] sm:$0x1]
    %v924 = vlaneseq
    %v925 = vshrl.u32 %v924, 7
    %v926 = vsub.s32 0, %v925
    %v927 = vrot.slane %v922, %v926
    %v937 = vunpack.c.l.b16 %v914
    %v938 = vunpack.c.l.b16 %v915
    %v939 = vunpack.c.l.b16 %v916
    %v940 = vunpack.c.l.b16 %v917
    %v941 = vunpack.c.l.b16 %v918
    %v942 = vunpack.c.l.b16 %v919
    %v943 = vunpack.c.l.b16 %v920
    %v944 = vunpack.c.l.b16 %v921
    %v945 = vpack.c.b16 %v938, %v937
    %v946 = vpack.c.b16 %v940, %v939
    %v947 = vpack.c.b16 %v942, %v941
    %v948 = vpack.c.b16 %v944, %v943
    %v954 = vsel %vm193, %v913, 0
    %956 = vmatprep.subr.bf16.mxu0 0
    %957 = vmatpush1.bf16.msra.mxu0 %v945
    %958 = vmatprep.subr.bf16.mxu0 0
    %959 = vmatpush1.bf16.msra.mxu0 %v946
    %960 = vmatprep.subr.bf16.mxu0 0
    %961 = vmatpush1.bf16.msra.mxu0 %v947
    %962 = vmatprep.subr.bf16.mxu0 0
    %963 = vmatpush1.bf16.msra.mxu0 %v948
    %964 = vmatprep.subr.bf16.mxu0 0
    %965 = vmatpush1.bf16.msra.mxu0 0
    %966 = vmatprep.subr.bf16.mxu0 0
    %967 = vmatpush1.bf16.msra.mxu0 0
    %968 = vmatprep.subr.bf16.mxu0 0
    %969 = vmatpush1.bf16.msra.mxu0 0
    %970 = vmatprep.subr.bf16.mxu0 0
    %971 = vmatpush1.bf16.msra.mxu0 0
    %972 = vmatprep.subr.bf16.mxu0 0
    %973 = vmatpush1.bf16.msra.mxu0 0
    %974 = vmatprep.subr.bf16.mxu0 0
    %975 = vmatpush1.bf16.msra.mxu0 0
    %976 = vmatprep.subr.bf16.mxu0 0
    %977 = vmatpush1.bf16.msra.mxu0 0
    %978 = vmatprep.subr.bf16.mxu0 0
    %979 = vmatpush1.bf16.msra.mxu0 0
    %980 = vmatprep.subr.bf16.mxu0 0
    %981 = vmatpush1.bf16.msra.mxu0 0
    %982 = vmatprep.subr.bf16.mxu0 0
    %983 = vmatpush1.bf16.msra.mxu0 0
    %984 = vmatprep.subr.bf16.mxu0 0
    %985 = vmatpush1.bf16.msra.mxu0 0
    %986 = vmatprep.subr.bf16.mxu0 0
    %987 = vmatpush1.bf16.msra.mxu0 0
    %988 = vmatprep.mubr.bf16.mxu0 0
    %989 = vmatmul.mubr.bf16.gmra.mrb[0].mxu0 %v954
    %v990 = vpop.f32.mrb[0].mxu0
    %v991 = vadd.f32 %v927, %v990
    %v992 = vpop.f32.mrb[0].mxu0
    %v993 = vpop.f32.mrb[0].mxu0
    %v994 = vadd.f32 %v927, %v993
    %v995 = vpop.f32.mrb[0].mxu0
    %996 = vdwg.mxu0
    %v997 = vxor.u32 %v991, 2147483648
    %v998 = vxor.u32 %v994, 2147483648
    %v999 = vmul.f32 %v997, 1.442695
    %v1000 = vpow.pop %v999
    %v1001 = vmul.f32 %v998, 1.442695
    %v1002 = vpow.pop %v1001
    %v1003 = vadd.f32 %v1000, 1.0
    %v1004 = vadd.f32 %v1002, 1.0
    %v1005 = vrcp.pop %v1003
    %v1006 = vmul.f32 1.0, %v1005
    %v1007 = vrcp.pop %v1004
    %v1008 = vmul.f32 1.0, %v1007
    %v1009 = vmax.f32 %v991, 0.0
    %v1010 = vmax.f32 %v994, 0.0
    %v1011 = vmul.f32 %v1006, %v911
    %v1012 = vmul.f32 %v1008, %v912
    %v1013 = vsub.f32 1.0, %v1006
    %v1014 = vsub.f32 1.0, %v1008
    %1017 = vrot.lane.b32.xlu0 %v1009, 64
    %v1018 = vpop.permute.xlu0 %1017
    %1019 = vrot.lane.b32.xlu0 %v1010, 64
    %v1020 = vpop.permute.xlu0 %1019
    %v1023 = vmul.f32 %v1013, %v1018
    %v1024 = vmul.f32 %v1014, %v1020
    %v1025 = vadd.f32 %v1011, %v1023
    %v1026 = vadd.f32 %v1012, %v1024
    %v1027 = vpack.c.bf16 %v1026, %v1025
    %v1028 = vld [vmem:[%s6] sm:$0xf]
    %v1029 = vld [vmem:[%s6 + $0x4] sm:$0xf]
    %v1030 = vld [vmem:[%s6 + $0x8] sm:$0xf]
    %v1031 = vld [vmem:[%s6 + $0xc] sm:$0xf]
    %v1032 = vld [vmem:[%s6 + $0x10] sm:$0xf]
    %v1033 = vld [vmem:[%s6 + $0x14] sm:$0xf]
    %v1034 = vld [vmem:[%s6 + $0x18] sm:$0xf]
    %v1035 = vld [vmem:[%s6 + $0x1c] sm:$0xf]
    %v1036 = vld [vmem:[%s7] sm:$0x1]
    %v1038 = vlaneseq
    %v1039 = vshrl.u32 %v1038, 7
    %v1040 = vsub.s32 0, %v1039
    %v1041 = vrot.slane %v1036, %v1040
    %v1051 = vunpack.c.l.b16 %v1028
    %v1052 = vunpack.c.l.b16 %v1029
    %v1053 = vunpack.c.l.b16 %v1030
    %v1054 = vunpack.c.l.b16 %v1031
    %v1055 = vunpack.c.l.b16 %v1032
    %v1056 = vunpack.c.l.b16 %v1033
    %v1057 = vunpack.c.l.b16 %v1034
    %v1058 = vunpack.c.l.b16 %v1035
    %v1059 = vpack.c.b16 %v1052, %v1051
    %v1060 = vpack.c.b16 %v1054, %v1053
    %v1061 = vpack.c.b16 %v1056, %v1055
    %v1062 = vpack.c.b16 %v1058, %v1057
    %v1068 = vsel %vm193, %v1027, 0
    %1070 = vmatprep.subr.bf16.mxu0 0
    %1071 = vmatpush1.bf16.msra.mxu0 %v1059
    %1072 = vmatprep.subr.bf16.mxu0 0
    %1073 = vmatpush1.bf16.msra.mxu0 %v1060
    %1074 = vmatprep.subr.bf16.mxu0 0
    %1075 = vmatpush1.bf16.msra.mxu0 %v1061
    %1076 = vmatprep.subr.bf16.mxu0 0
    %1077 = vmatpush1.bf16.msra.mxu0 %v1062
    %1078 = vmatprep.subr.bf16.mxu0 0
    %1079 = vmatpush1.bf16.msra.mxu0 0
    %1080 = vmatprep.subr.bf16.mxu0 0
    %1081 = vmatpush1.bf16.msra.mxu0 0
    %1082 = vmatprep.subr.bf16.mxu0 0
    %1083 = vmatpush1.bf16.msra.mxu0 0
    %1084 = vmatprep.subr.bf16.mxu0 0
    %1085 = vmatpush1.bf16.msra.mxu0 0
    %1086 = vmatprep.subr.bf16.mxu0 0
    %1087 = vmatpush1.bf16.msra.mxu0 0
    %1088 = vmatprep.subr.bf16.mxu0 0
    %1089 = vmatpush1.bf16.msra.mxu0 0
    %1090 = vmatprep.subr.bf16.mxu0 0
    %1091 = vmatpush1.bf16.msra.mxu0 0
    %1092 = vmatprep.subr.bf16.mxu0 0
    %1093 = vmatpush1.bf16.msra.mxu0 0
    %1094 = vmatprep.subr.bf16.mxu0 0
    %1095 = vmatpush1.bf16.msra.mxu0 0
    %1096 = vmatprep.subr.bf16.mxu0 0
    %1097 = vmatpush1.bf16.msra.mxu0 0
    %1098 = vmatprep.subr.bf16.mxu0 0
    %1099 = vmatpush1.bf16.msra.mxu0 0
    %1100 = vmatprep.subr.bf16.mxu0 0
    %1101 = vmatpush1.bf16.msra.mxu0 0
    %1102 = vmatprep.mubr.bf16.mxu0 0
    %1103 = vmatmul.mubr.bf16.gmra.mrb[0].mxu0 %v1068
    %v1104 = vpop.f32.mrb[0].mxu0
    %v1105 = vadd.f32 %v1041, %v1104
    %v1106 = vpop.f32.mrb[0].mxu0
    %v1107 = vpop.f32.mrb[0].mxu0
    %v1108 = vadd.f32 %v1041, %v1107
    %v1109 = vpop.f32.mrb[0].mxu0
    %1110 = vdwg.mxu0
    %1111 = vst.msk [vmem:[#allocation2] sm:$0xff] %vm564, %v1105
    %1112 = vst.msk [vmem:[#allocation2 + $0x8] sm:$0xff] %vm564, %v1108
    %1115 = vrot.lane.b32.xlu0 %v1105, 32
    %v1116 = vpop.permute.xlu0 %1115
    %1117 = vrot.lane.b32.xlu0 %v1108, 32
    %v1118 = vpop.permute.xlu0 %1117
    %vm1121 = vcmask 523520
    %1122 = vst.msk [vmem:[#allocation2] sm:$0xff] %vm1121, %v1116
    %1123 = vst.msk [vmem:[#allocation2 + $0x8] sm:$0xff] %vm1121, %v1118
    %v1124 = vld [vmem:[%s8] sm:$0xff]
    %v1125 = vld [vmem:[%s8 + $0x8] sm:$0xff]
    %v1126 = vld [vmem:[%s8 + $0x10] sm:$0xff]
    %v1127 = vld [vmem:[%s8 + $0x18] sm:$0xff]
    %v1128 = vld [vmem:[%s8 + $0x20] sm:$0xff]
    %v1129 = vld [vmem:[%s8 + $0x28] sm:$0xff]
    %v1130 = vld [vmem:[%s8 + $0x30] sm:$0xff]
    %v1131 = vld [vmem:[%s8 + $0x38] sm:$0xff]
    %s1132 = scalar_lea.vmem %s8, 64
    %v1133 = vld [vmem:[%s1132] sm:$0xff]
    %v1134 = vld [vmem:[%s1132 + $0x8] sm:$0xff]
    %v1135 = vld [vmem:[%s1132 + $0x10] sm:$0xff]
    %v1136 = vld [vmem:[%s1132 + $0x18] sm:$0xff]
    %v1137 = vld [vmem:[%s1132 + $0x20] sm:$0xff]
    %v1138 = vld [vmem:[%s1132 + $0x28] sm:$0xff]
    %v1139 = vld [vmem:[%s1132 + $0x30] sm:$0xff]
    %v1140 = vld [vmem:[%s1132 + $0x38] sm:$0xff]
    %v1141 = vld [vmem:[%s10] sm:$0xf]
    %v1142 = vld [vmem:[%s10 + $0x4] sm:$0xf]
    %v1143 = vld [vmem:[%s10 + $0x8] sm:$0xf]
    %v1144 = vld [vmem:[%s10 + $0xc] sm:$0xf]
    %v1145 = vld [vmem:[%s10 + $0x10] sm:$0xf]
    %v1146 = vld [vmem:[%s10 + $0x14] sm:$0xf]
    %v1147 = vld [vmem:[%s10 + $0x18] sm:$0xf]
    %v1148 = vld [vmem:[%s10 + $0x1c] sm:$0xf]
    %s1149 = scalar_lea.vmem %s10, 32
    %v1150 = vld [vmem:[%s1149] sm:$0xf]
    %v1151 = vld [vmem:[%s1149 + $0x4] sm:$0xf]
    %v1152 = vld [vmem:[%s1149 + $0x8] sm:$0xf]
    %v1153 = vld [vmem:[%s1149 + $0xc] sm:$0xf]
    %v1154 = vld [vmem:[%s1149 + $0x10] sm:$0xf]
    %v1155 = vld [vmem:[%s1149 + $0x14] sm:$0xf]
    %v1156 = vld [vmem:[%s1149 + $0x18] sm:$0xf]
    %v1157 = vld [vmem:[%s1149 + $0x1c] sm:$0xf]
    %v1158 = vld [vmem:[#allocation2] sm:$0xff]
    %v1159 = vld [vmem:[#allocation2 + $0x8] sm:$0xff]
    %v1160 = vpack.c.bf16 %v1159, %v1158
    %v1161 = vld [vmem:[%s9] sm:$0x3]
    %v1163 = vlaneseq
    %v1164 = vshrl.u32 %v1163, 7
    %v1165 = vsub.s32 0, %v1164
    %v1166 = vrot.slane %v1161, %v1165
    %v1167 = vlaneseq
    %v1168 = vshrl.u32 %v1167, 7
    %v1169 = vsub.s32 1, %v1168
    %v1170 = vrot.slane %v1161, %v1169
    %v1177 = vunpack.c.l.b16 %v1124
    %v1178 = vunpack.c.h.b16 %v1124
    %v1179 = vunpack.c.l.b16 %v1125
    %v1180 = vunpack.c.h.b16 %v1125
    %v1181 = vunpack.c.l.b16 %v1126
    %v1182 = vunpack.c.h.b16 %v1126
    %v1183 = vunpack.c.l.b16 %v1127
    %v1184 = vunpack.c.h.b16 %v1127
    %v1185 = vpack.c.b16 %v1179, %v1177
    %v1186 = vpack.c.b16 %v1180, %v1178
    %v1187 = vpack.c.b16 %v1183, %v1181
    %v1188 = vpack.c.b16 %v1184, %v1182
    %v1194 = vsel %vm564, %v1160, 0
    %1196 = vmatprep.subr.bf16.mxu0 %v1186
    %1197 = vmatpush1.bf16.msra.mxu0 %v1185
    %1198 = vmatprep.subr.bf16.mxu0 %v1188
    %1199 = vmatpush1.bf16.msra.mxu0 %v1187
    %1200 = vmatprep.subr.bf16.mxu0 0
    %1201 = vmatpush1.bf16.msra.mxu0 0
    %1202 = vmatprep.subr.bf16.mxu0 0
    %1203 = vmatpush1.bf16.msra.mxu0 0
    %1204 = vmatprep.subr.bf16.mxu0 0
    %1205 = vmatpush1.bf16.msra.mxu0 0
    %1206 = vmatprep.subr.bf16.mxu0 0
    %1207 = vmatpush1.bf16.msra.mxu0 0
    %1208 = vmatprep.subr.bf16.mxu0 0
    %1209 = vmatpush1.bf16.msra.mxu0 0
    %1210 = vmatprep.subr.bf16.mxu0 0
    %1211 = vmatpush1.bf16.msra.mxu0 0
    %1212 = vmatprep.subr.bf16.mxu0 0
    %1213 = vmatpush1.bf16.msra.mxu0 0
    %1214 = vmatprep.subr.bf16.mxu0 0
    %1215 = vmatpush1.bf16.msra.mxu0 0
    %1216 = vmatprep.subr.bf16.mxu0 0
    %1217 = vmatpush1.bf16.msra.mxu0 0
    %1218 = vmatprep.subr.bf16.mxu0 0
    %1219 = vmatpush1.bf16.msra.mxu0 0
    %1220 = vmatprep.subr.bf16.mxu0 0
    %1221 = vmatpush1.bf16.msra.mxu0 0
    %1222 = vmatprep.subr.bf16.mxu0 0
    %1223 = vmatpush1.bf16.msra.mxu0 0
    %1224 = vmatprep.subr.bf16.mxu0 0
    %1225 = vmatpush1.bf16.msra.mxu0 0
    %1226 = vmatprep.subr.bf16.mxu0 0
    %1227 = vmatpush1.bf16.msra.mxu0 0
    %1228 = vmatprep.mubr.bf16.mxu0 0
    %1229 = vmatmul.mubr.bf16.gmra.mrb[0].mxu0 %v1194
    %v1230 = vpop.f32.mrb[0].mxu0
    %v1231 = vadd.f32 %v1166, %v1230
    %v1232 = vpop.f32.mrb[0].mxu0
    %v1233 = vadd.f32 %v1170, %v1232
    %v1234 = vpop.f32.mrb[0].mxu0
    %v1235 = vadd.f32 %v1166, %v1234
    %v1236 = vpop.f32.mrb[0].mxu0
    %v1237 = vadd.f32 %v1170, %v1236
    %1238 = vdwg.mxu0
    %s1239 = scalar_lea.vmem %s9, 2
    %v1240 = vld [vmem:[%s1239] sm:$0x3]
    %v1242 = vlaneseq
    %v1243 = vshrl.u32 %v1242, 7
    %v1244 = vsub.s32 0, %v1243
    %v1245 = vrot.slane %v1240, %v1244
    %v1246 = vlaneseq
    %v1247 = vshrl.u32 %v1246, 7
    %v1248 = vsub.s32 1, %v1247
    %v1249 = vrot.slane %v1240, %v1248
    %1253 = vrot.lane.b32.xlu0 %v1160, 96
    %v1254 = vpop.permute.xlu0 %1253
    %v1259 = vunpack.c.l.b16 %v1133
    %v1260 = vunpack.c.h.b16 %v1133
    %v1261 = vunpack.c.l.b16 %v1134
    %v1262 = vunpack.c.h.b16 %v1134
    %v1263 = vunpack.c.l.b16 %v1135
    %v1264 = vunpack.c.h.b16 %v1135
    %v1265 = vunpack.c.l.b16 %v1136
    %v1266 = vunpack.c.h.b16 %v1136
    %v1267 = vpack.c.b16 %v1261, %v1259
    %v1268 = vpack.c.b16 %v1262, %v1260
    %v1269 = vpack.c.b16 %v1265, %v1263
    %v1270 = vpack.c.b16 %v1266, %v1264
    %v1276 = vsel %vm564, %v1254, 0
    %1278 = vmatprep.subr.bf16.mxu0 %v1268
    %1279 = vmatpush1.bf16.msra.mxu0 %v1267
    %1280 = vmatprep.subr.bf16.mxu0 %v1270
    %1281 = vmatpush1.bf16.msra.mxu0 %v1269
    %1282 = vmatprep.subr.bf16.mxu0 0
    %1283 = vmatpush1.bf16.msra.mxu0 0
    %1284 = vmatprep.subr.bf16.mxu0 0
    %1285 = vmatpush1.bf16.msra.mxu0 0
    %1286 = vmatprep.subr.bf16.mxu0 0
    %1287 = vmatpush1.bf16.msra.mxu0 0
    %1288 = vmatprep.subr.bf16.mxu0 0
    %1289 = vmatpush1.bf16.msra.mxu0 0
    %1290 = vmatprep.subr.bf16.mxu0 0
    %1291 = vmatpush1.bf16.msra.mxu0 0
    %1292 = vmatprep.subr.bf16.mxu0 0
    %1293 = vmatpush1.bf16.msra.mxu0 0
    %1294 = vmatprep.subr.bf16.mxu0 0
    %1295 = vmatpush1.bf16.msra.mxu0 0
    %1296 = vmatprep.subr.bf16.mxu0 0
    %1297 = vmatpush1.bf16.msra.mxu0 0
    %1298 = vmatprep.subr.bf16.mxu0 0
    %1299 = vmatpush1.bf16.msra.mxu0 0
    %1300 = vmatprep.subr.bf16.mxu0 0
    %1301 = vmatpush1.bf16.msra.mxu0 0
    %1302 = vmatprep.subr.bf16.mxu0 0
    %1303 = vmatpush1.bf16.msra.mxu0 0
    %1304 = vmatprep.subr.bf16.mxu0 0
    %1305 = vmatpush1.bf16.msra.mxu0 0
    %1306 = vmatprep.subr.bf16.mxu0 0
    %1307 = vmatpush1.bf16.msra.mxu0 0
    %1308 = vmatprep.subr.bf16.mxu0 0
    %1309 = vmatpush1.bf16.msra.mxu0 0
    %1310 = vmatprep.mubr.bf16.mxu0 0
    %1311 = vmatmul.mubr.bf16.gmra.mrb[0].mxu0 %v1276
    %v1312 = vpop.f32.mrb[0].mxu0
    %v1313 = vadd.f32 %v1245, %v1312
    %v1314 = vpop.f32.mrb[0].mxu0
    %v1315 = vadd.f32 %v1249, %v1314
    %v1316 = vpop.f32.mrb[0].mxu0
    %v1317 = vadd.f32 %v1245, %v1316
    %v1318 = vpop.f32.mrb[0].mxu0
    %v1319 = vadd.f32 %v1249, %v1318
    %1320 = vdwg.mxu0
    %v1325 = vunpack.c.l.b16 %v1128
    %v1326 = vunpack.c.h.b16 %v1128
    %v1327 = vunpack.c.l.b16 %v1129
    %v1328 = vunpack.c.h.b16 %v1129
    %v1329 = vunpack.c.l.b16 %v1130
    %v1330 = vunpack.c.h.b16 %v1130
    %v1331 = vunpack.c.l.b16 %v1131
    %v1332 = vunpack.c.h.b16 %v1131
    %v1333 = vpack.c.b16 %v1327, %v1325
    %v1334 = vpack.c.b16 %v1328, %v1326
    %v1335 = vpack.c.b16 %v1331, %v1329
    %v1336 = vpack.c.b16 %v1332, %v1330
    %v1342 = vsel %vm564, 0, 0
    %1344 = vmatprep.subr.bf16.mxu0 %v1334
    %1345 = vmatpush1.bf16.msra.mxu0 %v1333
    %1346 = vmatprep.subr.bf16.mxu0 %v1336
    %1347 = vmatpush1.bf16.msra.mxu0 %v1335
    %1348 = vmatprep.subr.bf16.mxu0 0
    %1349 = vmatpush1.bf16.msra.mxu0 0
    %1350 = vmatprep.subr.bf16.mxu0 0
    %1351 = vmatpush1.bf16.msra.mxu0 0
    %1352 = vmatprep.subr.bf16.mxu0 0
    %1353 = vmatpush1.bf16.msra.mxu0 0
    %1354 = vmatprep.subr.bf16.mxu0 0
    %1355 = vmatpush1.bf16.msra.mxu0 0
    %1356 = vmatprep.subr.bf16.mxu0 0
    %1357 = vmatpush1.bf16.msra.mxu0 0
    %1358 = vmatprep.subr.bf16.mxu0 0
    %1359 = vmatpush1.bf16.msra.mxu0 0
    %1360 = vmatprep.subr.bf16.mxu0 0
    %1361 = vmatpush1.bf16.msra.mxu0 0
    %1362 = vmatprep.subr.bf16.mxu0 0
    %1363 = vmatpush1.bf16.msra.mxu0 0
    %1364 = vmatprep.subr.bf16.mxu0 0
    %1365 = vmatpush1.bf16.msra.mxu0 0
    %1366 = vmatprep.subr.bf16.mxu0 0
    %1367 = vmatpush1.bf16.msra.mxu0 0
    %1368 = vmatprep.subr.bf16.mxu0 0
    %1369 = vmatpush1.bf16.msra.mxu0 0
    %1370 = vmatprep.subr.bf16.mxu0 0
    %1371 = vmatpush1.bf16.msra.mxu0 0
    %1372 = vmatprep.subr.bf16.mxu0 0
    %1373 = vmatpush1.bf16.msra.mxu0 0
    %1374 = vmatprep.subr.bf16.mxu0 0
    %1375 = vmatpush1.bf16.msra.mxu0 0
    %1376 = vmatprep.mubr.bf16.mxu0 0
    %1377 = vmatmul.mubr.bf16.gmra.mrb[0].mxu0 %v1342
    %v1378 = vpop.f32.mrb[0].mxu0
    %v1379 = vadd.f32 0.0, %v1378
    %v1380 = vpop.f32.mrb[0].mxu0
    %v1381 = vadd.f32 0.0, %v1380
    %v1382 = vpop.f32.mrb[0].mxu0
    %v1383 = vpop.f32.mrb[0].mxu0
    %1384 = vdwg.mxu0
    %v1385 = vadd.f32 %v1231, %v1379
    %v1386 = vadd.f32 %v1233, %v1381
    %v1391 = vunpack.c.l.b16 %v1137
    %v1392 = vunpack.c.h.b16 %v1137
    %v1393 = vunpack.c.l.b16 %v1138
    %v1394 = vunpack.c.h.b16 %v1138
    %v1395 = vunpack.c.l.b16 %v1139
    %v1396 = vunpack.c.h.b16 %v1139
    %v1397 = vunpack.c.l.b16 %v1140
    %v1398 = vunpack.c.h.b16 %v1140
    %v1399 = vpack.c.b16 %v1393, %v1391
    %v1400 = vpack.c.b16 %v1394, %v1392
    %v1401 = vpack.c.b16 %v1397, %v1395
    %v1402 = vpack.c.b16 %v1398, %v1396
    %1407 = vmatprep.subr.bf16.mxu0 %v1400
    %1408 = vmatpush1.bf16.msra.mxu0 %v1399
    %1409 = vmatprep.subr.bf16.mxu0 %v1402
    %1410 = vmatpush1.bf16.msra.mxu0 %v1401
    %1411 = vmatprep.subr.bf16.mxu0 0
    %1412 = vmatpush1.bf16.msra.mxu0 0
    %1413 = vmatprep.subr.bf16.mxu0 0
    %1414 = vmatpush1.bf16.msra.mxu0 0
    %1415 = vmatprep.subr.bf16.mxu0 0
    %1416 = vmatpush1.bf16.msra.mxu0 0
    %1417 = vmatprep.subr.bf16.mxu0 0
    %1418 = vmatpush1.bf16.msra.mxu0 0
    %1419 = vmatprep.subr.bf16.mxu0 0
    %1420 = vmatpush1.bf16.msra.mxu0 0
    %1421 = vmatprep.subr.bf16.mxu0 0
    %1422 = vmatpush1.bf16.msra.mxu0 0
    %1423 = vmatprep.subr.bf16.mxu0 0
    %1424 = vmatpush1.bf16.msra.mxu0 0
    %1425 = vmatprep.subr.bf16.mxu0 0
    %1426 = vmatpush1.bf16.msra.mxu0 0
    %1427 = vmatprep.subr.bf16.mxu0 0
    %1428 = vmatpush1.bf16.msra.mxu0 0
    %1429 = vmatprep.subr.bf16.mxu0 0
    %1430 = vmatpush1.bf16.msra.mxu0 0
    %1431 = vmatprep.subr.bf16.mxu0 0
    %1432 = vmatpush1.bf16.msra.mxu0 0
    %1433 = vmatprep.subr.bf16.mxu0 0
    %1434 = vmatpush1.bf16.msra.mxu0 0
    %1435 = vmatprep.subr.bf16.mxu0 0
    %1436 = vmatpush1.bf16.msra.mxu0 0
    %1437 = vmatprep.subr.bf16.mxu0 0
    %1438 = vmatpush1.bf16.msra.mxu0 0
    %1439 = vmatprep.mubr.bf16.mxu0 0
    %1440 = vmatmul.mubr.bf16.gmra.mrb[0].mxu0 %v1342
    %v1441 = vpop.f32.mrb[0].mxu0
    %v1442 = vadd.f32 0.0, %v1441
    %v1443 = vpop.f32.mrb[0].mxu0
    %v1444 = vadd.f32 0.0, %v1443
    %v1445 = vpop.f32.mrb[0].mxu0
    %v1446 = vpop.f32.mrb[0].mxu0
    %1447 = vdwg.mxu0
    %v1450 = vrot.slane %v1442, 2
    %v1451 = vrot.slane %v1444, 2
    %v1454 = vadd.f32 %v1317, %v1450
    %v1455 = vadd.f32 %v1319, %v1451
    %v1456 = vxor.u32 %v1385, 2147483648
    %v1457 = vxor.u32 %v1386, 2147483648
    %v1458 = vmul.f32 %v1456, 1.442695
    %v1459 = vpow.pop %v1458
    %v1460 = vmul.f32 %v1457, 1.442695
    %v1461 = vpow.pop %v1460
    %v1462 = vadd.f32 %v1459, 1.0
    %v1463 = vadd.f32 %v1461, 1.0
    %v1464 = vrcp.pop %v1462
    %v1465 = vmul.f32 1.0, %v1464
    %v1466 = vrcp.pop %v1463
    %v1467 = vmul.f32 1.0, %v1466
    %v1468 = vxor.u32 %v1454, 2147483648
    %v1469 = vxor.u32 %v1455, 2147483648
    %v1470 = vmul.f32 %v1468, 1.442695
    %v1471 = vpow.pop %v1470
    %v1472 = vmul.f32 %v1469, 1.442695
    %v1473 = vpow.pop %v1472
    %v1474 = vadd.f32 %v1471, 1.0
    %v1475 = vadd.f32 %v1473, 1.0
    %v1476 = vrcp.pop %v1474
    %v1477 = vmul.f32 1.0, %v1476
    %v1478 = vrcp.pop %v1475
    %v1479 = vmul.f32 1.0, %v1478
    %v1480 = vtanh.pop %v1386
    %v1481 = vtanh.pop %v1455
    %v1482 = vmul.f32 %v1465, 0.0
    %1484 = vrot.lane.b32.xlu0 %v1480, 64
    %v1485 = vpop.permute.xlu0 %1484
    %v1487 = vmul.f32 %v1465, %v1485
    %1489 = vrot.lane.b32.xlu0 %v1487, 64
    %v1490 = vpop.permute.xlu0 %1489
    %v1492 = vadd.f32 %v1482, %v1490
    %v1493 = vmax.f32 %v1492, -3.0
    %v1494 = vmin.f32 %v1493, 3.0
    %v1495 = vmul.f32 %v1477, 0.0
    %1497 = vrot.lane.b32.xlu0 %v1481, 64
    %v1498 = vpop.permute.xlu0 %1497
    %v1500 = vmul.f32 %v1477, %v1498
    %1502 = vrot.lane.b32.xlu0 %v1500, 64
    %v1503 = vpop.permute.xlu0 %1502
    %v1505 = vadd.f32 %v1495, %v1503
    %v1506 = vmax.f32 %v1505, -3.0
    %v1507 = vmin.f32 %v1506, 3.0
    %v1508 = vtanh.pop %v1494
    %1510 = vrot.lane.b32.xlu0 %v1508, 64
    %v1511 = vpop.permute.xlu0 %1510
    %v1513 = vmul.f32 %v1467, %v1511
    %v1514 = vpack.c.bf16 %v1513, %v1513
    %v1523 = vunpack.c.l.b16 %v1141
    %v1524 = vunpack.c.l.b16 %v1142
    %v1525 = vunpack.c.l.b16 %v1143
    %v1526 = vunpack.c.l.b16 %v1144
    %v1527 = vunpack.c.l.b16 %v1145
    %v1528 = vunpack.c.l.b16 %v1146
    %v1529 = vunpack.c.l.b16 %v1147
    %v1530 = vunpack.c.l.b16 %v1148
    %v1531 = vpack.c.b16 %v1524, %v1523
    %v1532 = vpack.c.b16 %v1526, %v1525
    %v1533 = vpack.c.b16 %v1528, %v1527
    %v1534 = vpack.c.b16 %v1530, %v1529
    %v1540 = vsel %vm193, %v1514, 0
    %1542 = vmatprep.subr.bf16.mxu0 0
    %1543 = vmatpush1.bf16.msra.mxu0 %v1531
    %1544 = vmatprep.subr.bf16.mxu0 0
    %1545 = vmatpush1.bf16.msra.mxu0 %v1532
    %1546 = vmatprep.subr.bf16.mxu0 0
    %1547 = vmatpush1.bf16.msra.mxu0 %v1533
    %1548 = vmatprep.subr.bf16.mxu0 0
    %1549 = vmatpush1.bf16.msra.mxu0 %v1534
    %1550 = vmatprep.subr.bf16.mxu0 0
    %1551 = vmatpush1.bf16.msra.mxu0 0
    %1552 = vmatprep.subr.bf16.mxu0 0
    %1553 = vmatpush1.bf16.msra.mxu0 0
    %1554 = vmatprep.subr.bf16.mxu0 0
    %1555 = vmatpush1.bf16.msra.mxu0 0
    %1556 = vmatprep.subr.bf16.mxu0 0
    %1557 = vmatpush1.bf16.msra.mxu0 0
    %1558 = vmatprep.subr.bf16.mxu0 0
    %1559 = vmatpush1.bf16.msra.mxu0 0
    %1560 = vmatprep.subr.bf16.mxu0 0
    %1561 = vmatpush1.bf16.msra.mxu0 0
    %1562 = vmatprep.subr.bf16.mxu0 0
    %1563 = vmatpush1.bf16.msra.mxu0 0
    %1564 = vmatprep.subr.bf16.mxu0 0
    %1565 = vmatpush1.bf16.msra.mxu0 0
    %1566 = vmatprep.subr.bf16.mxu0 0
    %1567 = vmatpush1.bf16.msra.mxu0 0
    %1568 = vmatprep.subr.bf16.mxu0 0
    %1569 = vmatpush1.bf16.msra.mxu0 0
    %1570 = vmatprep.subr.bf16.mxu0 0
    %1571 = vmatpush1.bf16.msra.mxu0 0
    %1572 = vmatprep.subr.bf16.mxu0 0
    %1573 = vmatpush1.bf16.msra.mxu0 0
    %1574 = vmatprep.mubr.bf16.mxu0 0
    %1575 = vmatmul.mubr.bf16.gmra.mrb[0].mxu0 %v1540
    %v1576 = vpop.f32.mrb[0].mxu0
    %v1577 = vadd.f32 0.0, %v1576
    %v1578 = vpop.f32.mrb[0].mxu0
    %v1579 = vpop.f32.mrb[0].mxu0
    %v1580 = vpop.f32.mrb[0].mxu0
    %1581 = vdwg.mxu0
    %v1582 = vmax.f32 %v1577, -3.0
    %v1583 = vmin.f32 %v1582, 3.0
    %v1584 = vtanh.pop %v1507
    %1586 = vrot.lane.b32.xlu0 %v1584, 64
    %v1587 = vpop.permute.xlu0 %1586
    %v1589 = vmul.f32 %v1479, %v1587
    %v1590 = vpack.c.bf16 %v1589, %v1589
    %v1592 = vrot.slane %v1590, 3
    %v1601 = vunpack.c.l.b16 %v1150
    %v1602 = vunpack.c.l.b16 %v1151
    %v1603 = vunpack.c.l.b16 %v1152
    %v1604 = vunpack.c.l.b16 %v1153
    %v1605 = vunpack.c.l.b16 %v1154
    %v1606 = vunpack.c.l.b16 %v1155
    %v1607 = vunpack.c.l.b16 %v1156
    %v1608 = vunpack.c.l.b16 %v1157
    %v1609 = vpack.c.b16 %v1602, %v1601
    %v1610 = vpack.c.b16 %v1604, %v1603
    %v1611 = vpack.c.b16 %v1606, %v1605
    %v1612 = vpack.c.b16 %v1608, %v1607
    %v1618 = vsel %vm193, %v1592, 0
    %1620 = vmatprep.subr.bf16.mxu0 0
    %1621 = vmatpush1.bf16.msra.mxu0 %v1609
    %1622 = vmatprep.subr.bf16.mxu0 0
    %1623 = vmatpush1.bf16.msra.mxu0 %v1610
    %1624 = vmatprep.subr.bf16.mxu0 0
    %1625 = vmatpush1.bf16.msra.mxu0 %v1611
    %1626 = vmatprep.subr.bf16.mxu0 0
    %1627 = vmatpush1.bf16.msra.mxu0 %v1612
    %1628 = vmatprep.subr.bf16.mxu0 0
    %1629 = vmatpush1.bf16.msra.mxu0 0
    %1630 = vmatprep.subr.bf16.mxu0 0
    %1631 = vmatpush1.bf16.msra.mxu0 0
    %1632 = vmatprep.subr.bf16.mxu0 0
    %1633 = vmatpush1.bf16.msra.mxu0 0
    %1634 = vmatprep.subr.bf16.mxu0 0
    %1635 = vmatpush1.bf16.msra.mxu0 0
    %1636 = vmatprep.subr.bf16.mxu0 0
    %1637 = vmatpush1.bf16.msra.mxu0 0
    %1638 = vmatprep.subr.bf16.mxu0 0
    %1639 = vmatpush1.bf16.msra.mxu0 0
    %1640 = vmatprep.subr.bf16.mxu0 0
    %1641 = vmatpush1.bf16.msra.mxu0 0
    %1642 = vmatprep.subr.bf16.mxu0 0
    %1643 = vmatpush1.bf16.msra.mxu0 0
    %1644 = vmatprep.subr.bf16.mxu0 0
    %1645 = vmatpush1.bf16.msra.mxu0 0
    %1646 = vmatprep.subr.bf16.mxu0 0
    %1647 = vmatpush1.bf16.msra.mxu0 0
    %1648 = vmatprep.subr.bf16.mxu0 0
    %1649 = vmatpush1.bf16.msra.mxu0 0
    %1650 = vmatprep.subr.bf16.mxu0 0
    %1651 = vmatpush1.bf16.msra.mxu0 0
    %1652 = vmatprep.mubr.bf16.mxu0 0
    %1653 = vmatmul.mubr.bf16.gmra.mrb[0].mxu0 %v1618
    %v1654 = vpop.f32.mrb[0].mxu0
    %v1655 = vadd.f32 0.0, %v1654
    %v1656 = vpop.f32.mrb[0].mxu0
    %v1657 = vpop.f32.mrb[0].mxu0
    %v1658 = vpop.f32.mrb[0].mxu0
    %1659 = vdwg.mxu0
    %v1660 = vmax.f32 %v1655, -3.0
    %v1661 = vmin.f32 %v1660, 3.0
    %s1662 = scalar_lea.vmem [#allocation2], 16
    %vm1663 = vcmask 254976
    %1664 = vst.msk [vmem:[%s1662] sm:$0x3] %vm1663, %v1583
    %1666 = vrot.lane.b32.xlu0 %v1661, 32
    %v1667 = vpop.permute.xlu0 %1666
    %vm1669 = vcmask 517376
    %1670 = vst.msk [vmem:[%s1662 + $0xe] sm:$0x3] %vm1669, %v1667
    %v1671 = vpack.c.bf16 %v1583, %v1583
    %v1673 = vsel %vm564, %v1671, 0
    %1675 = vmatprep.subr.bf16.mxu0 %v1334
    %1676 = vmatpush1.bf16.msra.mxu0 %v1333
    %1677 = vmatprep.subr.bf16.mxu0 %v1336
    %1678 = vmatpush1.bf16.msra.mxu0 %v1335
    %1679 = vmatprep.subr.bf16.mxu0 0
    %1680 = vmatpush1.bf16.msra.mxu0 0
    %1681 = vmatprep.subr.bf16.mxu0 0
    %1682 = vmatpush1.bf16.msra.mxu0 0
    %1683 = vmatprep.subr.bf16.mxu0 0
    %1684 = vmatpush1.bf16.msra.mxu0 0
    %1685 = vmatprep.subr.bf16.mxu0 0
    %1686 = vmatpush1.bf16.msra.mxu0 0
    %1687 = vmatprep.subr.bf16.mxu0 0
    %1688 = vmatpush1.bf16.msra.mxu0 0
    %1689 = vmatprep.subr.bf16.mxu0 0
    %1690 = vmatpush1.bf16.msra.mxu0 0
    %1691 = vmatprep.subr.bf16.mxu0 0
    %1692 = vmatpush1.bf16.msra.mxu0 0
    %1693 = vmatprep.subr.bf16.mxu0 0
    %1694 = vmatpush1.bf16.msra.mxu0 0
    %1695 = vmatprep.subr.bf16.mxu0 0
    %1696 = vmatpush1.bf16.msra.mxu0 0
    %1697 = vmatprep.subr.bf16.mxu0 0
    %1698 = vmatpush1.bf16.msra.mxu0 0
    %1699 = vmatprep.subr.bf16.mxu0 0
    %1700 = vmatpush1.bf16.msra.mxu0 0
    %1701 = vmatprep.subr.bf16.mxu0 0
    %1702 = vmatpush1.bf16.msra.mxu0 0
    %1703 = vmatprep.subr.bf16.mxu0 0
    %1704 = vmatpush1.bf16.msra.mxu0 0
    %1705 = vmatprep.subr.bf16.mxu0 0
    %1706 = vmatpush1.bf16.msra.mxu0 0
    %1707 = vmatprep.mubr.bf16.mxu0 0
    %1708 = vmatmul.mubr.bf16.gmra.mrb[0].mxu0 %v1673
    %v1709 = vpop.f32.mrb[0].mxu0
    %v1710 = vadd.f32 0.0, %v1709
    %v1711 = vpop.f32.mrb[0].mxu0
    %v1712 = vadd.f32 0.0, %v1711
    %v1713 = vpop.f32.mrb[0].mxu0
    %v1714 = vpop.f32.mrb[0].mxu0
    %1715 = vdwg.mxu0
    %v1718 = vrot.slane %v1710, 6
    %v1719 = vrot.slane %v1712, 6
    %v1722 = vadd.f32 %v1231, %v1718
    %v1723 = vadd.f32 %v1233, %v1719
    %v1724 = vpack.c.bf16 %v1661, %v1661
    %v1726 = vsel %vm564, %v1724, 0
    %1728 = vmatprep.subr.bf16.mxu0 %v1400
    %1729 = vmatpush1.bf16.msra.mxu0 %v1399
    %1730 = vmatprep.subr.bf16.mxu0 %v1402
    %1731 = vmatpush1.bf16.msra.mxu0 %v1401
    %1732 = vmatprep.subr.bf16.mxu0 0
    %1733 = vmatpush1.bf16.msra.mxu0 0
    %1734 = vmatprep.subr.bf16.mxu0 0
    %1735 = vmatpush1.bf16.msra.mxu0 0
    %1736 = vmatprep.subr.bf16.mxu0 0
    %1737 = vmatpush1.bf16.msra.mxu0 0
    %1738 = vmatprep.subr.bf16.mxu0 0
    %1739 = vmatpush1.bf16.msra.mxu0 0
    %1740 = vmatprep.subr.bf16.mxu0 0
    %1741 = vmatpush1.bf16.msra.mxu0 0
    %1742 = vmatprep.subr.bf16.mxu0 0
    %1743 = vmatpush1.bf16.msra.mxu0 0
    %1744 = vmatprep.subr.bf16.mxu0 0
    %1745 = vmatpush1.bf16.msra.mxu0 0
    %1746 = vmatprep.subr.bf16.mxu0 0
    %1747 = vmatpush1.bf16.msra.mxu0 0
    %1748 = vmatprep.subr.bf16.mxu0 0
    %1749 = vmatpush1.bf16.msra.mxu0 0
    %1750 = vmatprep.subr.bf16.mxu0 0
    %1751 = vmatpush1.bf16.msra.mxu0 0
    %1752 = vmatprep.subr.bf16.mxu0 0
    %1753 = vmatpush1.bf16.msra.mxu0 0
    %1754 = vmatprep.subr.bf16.mxu0 0
    %1755 = vmatpush1.bf16.msra.mxu0 0
    %1756 = vmatprep.subr.bf16.mxu0 0
    %1757 = vmatpush1.bf16.msra.mxu0 0
    %1758 = vmatprep.subr.bf16.mxu0 0
    %1759 = vmatpush1.bf16.msra.mxu0 0
    %1760 = vmatprep.mubr.bf16.mxu0 0
    %1761 = vmatmul.mubr.bf16.gmra.mrb[0].mxu0 %v1726
    %v1762 = vpop.f32.mrb[0].mxu0
    %v1763 = vadd.f32 0.0, %v1762
    %v1764 = vpop.f32.mrb[0].mxu0
    %v1765 = vadd.f32 0.0, %v1764
    %v1766 = vpop.f32.mrb[0].mxu0
    %v1767 = vpop.f32.mrb[0].mxu0
    %1768 = vdwg.mxu0
    %v1771 = vrot.slane %v1763, 4
    %v1772 = vrot.slane %v1765, 4
    %v1775 = vadd.f32 %v1317, %v1771
    %v1776 = vadd.f32 %v1319, %v1772
    %v1777 = vxor.u32 %v1722, 2147483648
    %v1778 = vxor.u32 %v1723, 2147483648
    %v1779 = vmul.f32 %v1777, 1.442695
    %v1780 = vpow.pop %v1779
    %v1781 = vmul.f32 %v1778, 1.442695
    %v1782 = vpow.pop %v1781
    %v1783 = vadd.f32 %v1780, 1.0
    %v1784 = vadd.f32 %v1782, 1.0
    %v1785 = vrcp.pop %v1783
    %v1786 = vmul.f32 1.0, %v1785
    %v1787 = vrcp.pop %v1784
    %v1788 = vmul.f32 1.0, %v1787
    %v1789 = vxor.u32 %v1775, 2147483648
    %v1790 = vxor.u32 %v1776, 2147483648
    %v1791 = vmul.f32 %v1789, 1.442695
    %v1792 = vpow.pop %v1791
    %v1793 = vmul.f32 %v1790, 1.442695
    %v1794 = vpow.pop %v1793
    %v1795 = vadd.f32 %v1792, 1.0
    %v1796 = vadd.f32 %v1794, 1.0
    %v1797 = vrcp.pop %v1795
    %v1798 = vmul.f32 1.0, %v1797
    %v1799 = vrcp.pop %v1796
    %v1800 = vmul.f32 1.0, %v1799
    %v1801 = vtanh.pop %v1723
    %v1802 = vtanh.pop %v1776
    %v1804 = vrot.slane %v1494, 6
    %v1806 = vmul.f32 %v1786, %v1804
    %1808 = vrot.lane.b32.xlu0 %v1801, 64
    %v1809 = vpop.permute.xlu0 %1808
    %v1811 = vmul.f32 %v1786, %v1809
    %1813 = vrot.lane.b32.xlu0 %v1811, 64
    %v1814 = vpop.permute.xlu0 %1813
    %v1816 = vadd.f32 %v1806, %v1814
    %v1817 = vmax.f32 %v1816, -3.0
    %v1818 = vmin.f32 %v1817, 3.0
    %v1820 = vrot.slane %v1507, 2
    %v1822 = vmul.f32 %v1798, %v1820
    %1824 = vrot.lane.b32.xlu0 %v1802, 64
    %v1825 = vpop.permute.xlu0 %1824
    %v1827 = vmul.f32 %v1798, %v1825
    %1829 = vrot.lane.b32.xlu0 %v1827, 64
    %v1830 = vpop.permute.xlu0 %1829
    %v1832 = vadd.f32 %v1822, %v1830
    %v1833 = vmax.f32 %v1832, -3.0
    %v1834 = vmin.f32 %v1833, 3.0
    %v1835 = vtanh.pop %v1818
    %1837 = vrot.lane.b32.xlu0 %v1835, 64
    %v1838 = vpop.permute.xlu0 %1837
    %v1840 = vmul.f32 %v1788, %v1838
    %v1841 = vpack.c.bf16 %v1840, %v1840
    %v1843 = vrot.slane %v1841, 1
    %v1845 = vsel %vm193, %v1843, 0
    %1847 = vmatprep.subr.bf16.mxu0 0
    %1848 = vmatpush1.bf16.msra.mxu0 %v1531
    %1849 = vmatprep.subr.bf16.mxu0 0
    %1850 = vmatpush1.bf16.msra.mxu0 %v1532
    %1851 = vmatprep.subr.bf16.mxu0 0
    %1852 = vmatpush1.bf16.msra.mxu0 %v1533
    %1853 = vmatprep.subr.bf16.mxu0 0
    %1854 = vmatpush1.bf16.msra.mxu0 %v1534
    %1855 = vmatprep.subr.bf16.mxu0 0
    %1856 = vmatpush1.bf16.msra.mxu0 0
    %1857 = vmatprep.subr.bf16.mxu0 0
    %1858 = vmatpush1.bf16.msra.mxu0 0
    %1859 = vmatprep.subr.bf16.mxu0 0
    %1860 = vmatpush1.bf16.msra.mxu0 0
    %1861 = vmatprep.subr.bf16.mxu0 0
    %1862 = vmatpush1.bf16.msra.mxu0 0
    %1863 = vmatprep.subr.bf16.mxu0 0
    %1864 = vmatpush1.bf16.msra.mxu0 0
    %1865 = vmatprep.subr.bf16.mxu0 0
    %1866 = vmatpush1.bf16.msra.mxu0 0
    %1867 = vmatprep.subr.bf16.mxu0 0
    %1868 = vmatpush1.bf16.msra.mxu0 0
    %1869 = vmatprep.subr.bf16.mxu0 0
    %1870 = vmatpush1.bf16.msra.mxu0 0
    %1871 = vmatprep.subr.bf16.mxu0 0
    %1872 = vmatpush1.bf16.msra.mxu0 0
    %1873 = vmatprep.subr.bf16.mxu0 0
    %1874 = vmatpush1.bf16.msra.mxu0 0
    %1875 = vmatprep.subr.bf16.mxu0 0
    %1876 = vmatpush1.bf16.msra.mxu0 0
    %1877 = vmatprep.subr.bf16.mxu0 0
    %1878 = vmatpush1.bf16.msra.mxu0 0
    %1879 = vmatprep.mubr.bf16.mxu0 0
    %1880 = vmatmul.mubr.bf16.gmra.mrb[0].mxu0 %v1845
    %v1881 = vpop.f32.mrb[0].mxu0
    %v1882 = vadd.f32 0.0, %v1881
    %v1883 = vpop.f32.mrb[0].mxu0
    %v1884 = vpop.f32.mrb[0].mxu0
    %v1885 = vpop.f32.mrb[0].mxu0
    %1886 = vdwg.mxu0
    %v1887 = vmax.f32 %v1882, -3.0
    %v1888 = vmin.f32 %v1887, 3.0
    %v1889 = vtanh.pop %v1834
    %1891 = vrot.lane.b32.xlu0 %v1889, 64
    %v1892 = vpop.permute.xlu0 %1891
    %v1894 = vmul.f32 %v1800, %v1892
    %v1895 = vpack.c.bf16 %v1894, %v1894
    %v1897 = vrot.slane %v1895, 2
    %v1899 = vsel %vm193, %v1897, 0
    %1901 = vmatprep.subr.bf16.mxu0 0
    %1902 = vmatpush1.bf16.msra.mxu0 %v1609
    %1903 = vmatprep.subr.bf16.mxu0 0
    %1904 = vmatpush1.bf16.msra.mxu0 %v1610
    %1905 = vmatprep.subr.bf16.mxu0 0
    %1906 = vmatpush1.bf16.msra.mxu0 %v1611
    %1907 = vmatprep.subr.bf16.mxu0 0
    %1908 = vmatpush1.bf16.msra.mxu0 %v1612
    %1909 = vmatprep.subr.bf16.mxu0 0
    %1910 = vmatpush1.bf16.msra.mxu0 0
    %1911 = vmatprep.subr.bf16.mxu0 0
    %1912 = vmatpush1.bf16.msra.mxu0 0
    %1913 = vmatprep.subr.bf16.mxu0 0
    %1914 = vmatpush1.bf16.msra.mxu0 0
    %1915 = vmatprep.subr.bf16.mxu0 0
    %1916 = vmatpush1.bf16.msra.mxu0 0
    %1917 = vmatprep.subr.bf16.mxu0 0
    %1918 = vmatpush1.bf16.msra.mxu0 0
    %1919 = vmatprep.subr.bf16.mxu0 0
    %1920 = vmatpush1.bf16.msra.mxu0 0
    %1921 = vmatprep.subr.bf16.mxu0 0
    %1922 = vmatpush1.bf16.msra.mxu0 0
    %1923 = vmatprep.subr.bf16.mxu0 0
    %1924 = vmatpush1.bf16.msra.mxu0 0
    %1925 = vmatprep.subr.bf16.mxu0 0
    %1926 = vmatpush1.bf16.msra.mxu0 0
    %1927 = vmatprep.subr.bf16.mxu0 0
    %1928 = vmatpush1.bf16.msra.mxu0 0
    %1929 = vmatprep.subr.bf16.mxu0 0
    %1930 = vmatpush1.bf16.msra.mxu0 0
    %1931 = vmatprep.subr.bf16.mxu0 0
    %1932 = vmatpush1.bf16.msra.mxu0 0
    %1933 = vmatprep.mubr.bf16.mxu0 0
    %1934 = vmatmul.mubr.bf16.gmra.mrb[0].mxu0 %v1899
    %v1935 = vpop.f32.mrb[0].mxu0
    %v1936 = vadd.f32 0.0, %v1935
    %v1937 = vpop.f32.mrb[0].mxu0
    %v1938 = vpop.f32.mrb[0].mxu0
    %v1939 = vpop.f32.mrb[0].mxu0
    %1940 = vdwg.mxu0
    %v1941 = vmax.f32 %v1936, -3.0
    %v1942 = vmin.f32 %v1941, 3.0
    %1943 = vst.msk [vmem:[%s1662 + $0x2] sm:$0x3] %vm1663, %v1888
    %1945 = vrot.lane.b32.xlu0 %v1942, 32
    %v1946 = vpop.permute.xlu0 %1945
    %1948 = vst.msk [vmem:[%s1662 + $0xc] sm:$0x3] %vm1669, %v1946
    %v1949 = vpack.c.bf16 %v1888, %v1888
    %v1951 = vsel %vm564, %v1949, 0
    %1953 = vmatprep.subr.bf16.mxu0 %v1334
    %1954 = vmatpush1.bf16.msra.mxu0 %v1333
    %1955 = vmatprep.subr.bf16.mxu0 %v1336
    %1956 = vmatpush1.bf16.msra.mxu0 %v1335
    %1957 = vmatprep.subr.bf16.mxu0 0
    %1958 = vmatpush1.bf16.msra.mxu0 0
    %1959 = vmatprep.subr.bf16.mxu0 0
    %1960 = vmatpush1.bf16.msra.mxu0 0
    %1961 = vmatprep.subr.bf16.mxu0 0
    %1962 = vmatpush1.bf16.msra.mxu0 0
    %1963 = vmatprep.subr.bf16.mxu0 0
    %1964 = vmatpush1.bf16.msra.mxu0 0
    %1965 = vmatprep.subr.bf16.mxu0 0
    %1966 = vmatpush1.bf16.msra.mxu0 0
    %1967 = vmatprep.subr.bf16.mxu0 0
    %1968 = vmatpush1.bf16.msra.mxu0 0
    %1969 = vmatprep.subr.bf16.mxu0 0
    %1970 = vmatpush1.bf16.msra.mxu0 0
    %1971 = vmatprep.subr.bf16.mxu0 0
    %1972 = vmatpush1.bf16.msra.mxu0 0
    %1973 = vmatprep.subr.bf16.mxu0 0
    %1974 = vmatpush1.bf16.msra.mxu0 0
    %1975 = vmatprep.subr.bf16.mxu0 0
    %1976 = vmatpush1.bf16.msra.mxu0 0
    %1977 = vmatprep.subr.bf16.mxu0 0
    %1978 = vmatpush1.bf16.msra.mxu0 0
    %1979 = vmatprep.subr.bf16.mxu0 0
    %1980 = vmatpush1.bf16.msra.mxu0 0
    %1981 = vmatprep.subr.bf16.mxu0 0
    %1982 = vmatpush1.bf16.msra.mxu0 0
    %1983 = vmatprep.subr.bf16.mxu0 0
    %1984 = vmatpush1.bf16.msra.mxu0 0
    %1985 = vmatprep.mubr.bf16.mxu0 0
    %1986 = vmatmul.mubr.bf16.gmra.mrb[0].mxu0 %v1951
    %v1987 = vpop.f32.mrb[0].mxu0
    %v1988 = vadd.f32 0.0, %v1987
    %v1989 = vpop.f32.mrb[0].mxu0
    %v1990 = vadd.f32 0.0, %v1989
    %v1991 = vpop.f32.mrb[0].mxu0
    %v1992 = vpop.f32.mrb[0].mxu0
    %1993 = vdwg.mxu0
    %v1996 = vrot.slane %v1988, 4
    %v1997 = vrot.slane %v1990, 4
    %v2000 = vadd.f32 %v1231, %v1996
    %v2001 = vadd.f32 %v1233, %v1997
    %v2002 = vpack.c.bf16 %v1942, %v1942
    %v2004 = vsel %vm564, %v2002, 0
    %2006 = vmatprep.subr.bf16.mxu0 %v1400
    %2007 = vmatpush1.bf16.msra.mxu0 %v1399
    %2008 = vmatprep.subr.bf16.mxu0 %v1402
    %2009 = vmatpush1.bf16.msra.mxu0 %v1401
    %2010 = vmatprep.subr.bf16.mxu0 0
    %2011 = vmatpush1.bf16.msra.mxu0 0
    %2012 = vmatprep.subr.bf16.mxu0 0
    %2013 = vmatpush1.bf16.msra.mxu0 0
    %2014 = vmatprep.subr.bf16.mxu0 0
    %2015 = vmatpush1.bf16.msra.mxu0 0
    %2016 = vmatprep.subr.bf16.mxu0 0
    %2017 = vmatpush1.bf16.msra.mxu0 0
    %2018 = vmatprep.subr.bf16.mxu0 0
    %2019 = vmatpush1.bf16.msra.mxu0 0
    %2020 = vmatprep.subr.bf16.mxu0 0
    %2021 = vmatpush1.bf16.msra.mxu0 0
    %2022 = vmatprep.subr.bf16.mxu0 0
    %2023 = vmatpush1.bf16.msra.mxu0 0
    %2024 = vmatprep.subr.bf16.mxu0 0
    %2025 = vmatpush1.bf16.msra.mxu0 0
    %2026 = vmatprep.subr.bf16.mxu0 0
    %2027 = vmatpush1.bf16.msra.mxu0 0
    %2028 = vmatprep.subr.bf16.mxu0 0
    %2029 = vmatpush1.bf16.msra.mxu0 0
    %2030 = vmatprep.subr.bf16.mxu0 0
    %2031 = vmatpush1.bf16.msra.mxu0 0
    %2032 = vmatprep.subr.bf16.mxu0 0
    %2033 = vmatpush1.bf16.msra.mxu0 0
    %2034 = vmatprep.subr.bf16.mxu0 0
    %2035 = vmatpush1.bf16.msra.mxu0 0
    %2036 = vmatprep.subr.bf16.mxu0 0
    %2037 = vmatpush1.bf16.msra.mxu0 0
    %2038 = vmatprep.mubr.bf16.mxu0 0
    %2039 = vmatmul.mubr.bf16.gmra.mrb[0].mxu0 %v2004
    %v2040 = vpop.f32.mrb[0].mxu0
    %v2041 = vadd.f32 0.0, %v2040
    %v2042 = vpop.f32.mrb[0].mxu0
    %v2043 = vadd.f32 0.0, %v2042
    %v2044 = vpop.f32.mrb[0].mxu0
    %v2045 = vpop.f32.mrb[0].mxu0
    %2046 = vdwg.mxu0
    %v2049 = vrot.slane %v2041, 6
    %v2050 = vrot.slane %v2043, 6
    %v2053 = vadd.f32 %v1317, %v2049
    %v2054 = vadd.f32 %v1319, %v2050
    %v2055 = vxor.u32 %v2000, 2147483648
    %v2056 = vxor.u32 %v2001, 2147483648
    %v2057 = vmul.f32 %v2055, 1.442695
    %v2058 = vpow.pop %v2057
    %v2059 = vmul.f32 %v2056, 1.442695
    %v2060 = vpow.pop %v2059
    %v2061 = vadd.f32 %v2058, 1.0
    %v2062 = vadd.f32 %v2060, 1.0
    %v2063 = vrcp.pop %v2061
    %v2064 = vmul.f32 1.0, %v2063
    %v2065 = vrcp.pop %v2062
    %v2066 = vmul.f32 1.0, %v2065
    %v2067 = vxor.u32 %v2053, 2147483648
    %v2068 = vxor.u32 %v2054, 2147483648
    %v2069 = vmul.f32 %v2067, 1.442695
    %v2070 = vpow.pop %v2069
    %v2071 = vmul.f32 %v2068, 1.442695
    %v2072 = vpow.pop %v2071
    %v2073 = vadd.f32 %v2070, 1.0
    %v2074 = vadd.f32 %v2072, 1.0
    %v2075 = vrcp.pop %v2073
    %v2076 = vmul.f32 1.0, %v2075
    %v2077 = vrcp.pop %v2074
    %v2078 = vmul.f32 1.0, %v2077
    %v2079 = vtanh.pop %v2001
    %v2080 = vtanh.pop %v2054
    %v2082 = vrot.slane %v1818, 6
    %v2084 = vmul.f32 %v2064, %v2082
    %2086 = vrot.lane.b32.xlu0 %v2079, 64
    %v2087 = vpop.permute.xlu0 %2086
    %v2089 = vmul.f32 %v2064, %v2087
    %2091 = vrot.lane.b32.xlu0 %v2089, 64
    %v2092 = vpop.permute.xlu0 %2091
    %v2094 = vadd.f32 %v2084, %v2092
    %v2095 = vmax.f32 %v2094, -3.0
    %v2096 = vmin.f32 %v2095, 3.0
    %v2098 = vrot.slane %v1834, 2
    %v2100 = vmul.f32 %v2076, %v2098
    %2102 = vrot.lane.b32.xlu0 %v2080, 64
    %v2103 = vpop.permute.xlu0 %2102
    %v2105 = vmul.f32 %v2076, %v2103
    %2107 = vrot.lane.b32.xlu0 %v2105, 64
    %v2108 = vpop.permute.xlu0 %2107
    %v2110 = vadd.f32 %v2100, %v2108
    %v2111 = vmax.f32 %v2110, -3.0
    %v2112 = vmin.f32 %v2111, 3.0
    %v2113 = vtanh.pop %v2096
    %2115 = vrot.lane.b32.xlu0 %v2113, 64
    %v2116 = vpop.permute.xlu0 %2115
    %v2118 = vmul.f32 %v2066, %v2116
    %v2119 = vpack.c.bf16 %v2118, %v2118
    %v2121 = vrot.slane %v2119, 2
    %v2123 = vsel %vm193, %v2121, 0
    %2125 = vmatprep.subr.bf16.mxu0 0
    %2126 = vmatpush1.bf16.msra.mxu0 %v1531
    %2127 = vmatprep.subr.bf16.mxu0 0
    %2128 = vmatpush1.bf16.msra.mxu0 %v1532
    %2129 = vmatprep.subr.bf16.mxu0 0
    %2130 = vmatpush1.bf16.msra.mxu0 %v1533
    %2131 = vmatprep.subr.bf16.mxu0 0
    %2132 = vmatpush1.bf16.msra.mxu0 %v1534
    %2133 = vmatprep.subr.bf16.mxu0 0
    %2134 = vmatpush1.bf16.msra.mxu0 0
    %2135 = vmatprep.subr.bf16.mxu0 0
    %2136 = vmatpush1.bf16.msra.mxu0 0
    %2137 = vmatprep.subr.bf16.mxu0 0
    %2138 = vmatpush1.bf16.msra.mxu0 0
    %2139 = vmatprep.subr.bf16.mxu0 0
    %2140 = vmatpush1.bf16.msra.mxu0 0
    %2141 = vmatprep.subr.bf16.mxu0 0
    %2142 = vmatpush1.bf16.msra.mxu0 0
    %2143 = vmatprep.subr.bf16.mxu0 0
    %2144 = vmatpush1.bf16.msra.mxu0 0
    %2145 = vmatprep.subr.bf16.mxu0 0
    %2146 = vmatpush1.bf16.msra.mxu0 0
    %2147 = vmatprep.subr.bf16.mxu0 0
    %2148 = vmatpush1.bf16.msra.mxu0 0
    %2149 = vmatprep.subr.bf16.mxu0 0
    %2150 = vmatpush1.bf16.msra.mxu0 0
    %2151 = vmatprep.subr.bf16.mxu0 0
    %2152 = vmatpush1.bf16.msra.mxu0 0
    %2153 = vmatprep.subr.bf16.mxu0 0
    %2154 = vmatpush1.bf16.msra.mxu0 0
    %2155 = vmatprep.subr.bf16.mxu0 0
    %2156 = vmatpush1.bf16.msra.mxu0 0
    %2157 = vmatprep.mubr.bf16.mxu0 0
    %2158 = vmatmul.mubr.bf16.gmra.mrb[0].mxu0 %v2123
    %v2159 = vpop.f32.mrb[0].mxu0
    %v2160 = vadd.f32 0.0, %v2159
    %v2161 = vpop.f32.mrb[0].mxu0
    %v2162 = vpop.f32.mrb[0].mxu0
    %v2163 = vpop.f32.mrb[0].mxu0
    %2164 = vdwg.mxu0
    %v2165 = vmax.f32 %v2160, -3.0
    %v2166 = vmin.f32 %v2165, 3.0
    %v2167 = vtanh.pop %v2112
    %2169 = vrot.lane.b32.xlu0 %v2167, 64
    %v2170 = vpop.permute.xlu0 %2169
    %v2172 = vmul.f32 %v2078, %v2170
    %v2173 = vpack.c.bf16 %v2172, %v2172
    %v2175 = vrot.slane %v2173, 1
    %v2177 = vsel %vm193, %v2175, 0
    %2179 = vmatprep.subr.bf16.mxu0 0
    %2180 = vmatpush1.bf16.msra.mxu0 %v1609
    %2181 = vmatprep.subr.bf16.mxu0 0
    %2182 = vmatpush1.bf16.msra.mxu0 %v1610
    %2183 = vmatprep.subr.bf16.mxu0 0
    %2184 = vmatpush1.bf16.msra.mxu0 %v1611
    %2185 = vmatprep.subr.bf16.mxu0 0
    %2186 = vmatpush1.bf16.msra.mxu0 %v1612
    %2187 = vmatprep.subr.bf16.mxu0 0
    %2188 = vmatpush1.bf16.msra.mxu0 0
    %2189 = vmatprep.subr.bf16.mxu0 0
    %2190 = vmatpush1.bf16.msra.mxu0 0
    %2191 = vmatprep.subr.bf16.mxu0 0
    %2192 = vmatpush1.bf16.msra.mxu0 0
    %2193 = vmatprep.subr.bf16.mxu0 0
    %2194 = vmatpush1.bf16.msra.mxu0 0
    %2195 = vmatprep.subr.bf16.mxu0 0
    %2196 = vmatpush1.bf16.msra.mxu0 0
    %2197 = vmatprep.subr.bf16.mxu0 0
    %2198 = vmatpush1.bf16.msra.mxu0 0
    %2199 = vmatprep.subr.bf16.mxu0 0
    %2200 = vmatpush1.bf16.msra.mxu0 0
    %2201 = vmatprep.subr.bf16.mxu0 0
    %2202 = vmatpush1.bf16.msra.mxu0 0
    %2203 = vmatprep.subr.bf16.mxu0 0
    %2204 = vmatpush1.bf16.msra.mxu0 0
    %2205 = vmatprep.subr.bf16.mxu0 0
    %2206 = vmatpush1.bf16.msra.mxu0 0
    %2207 = vmatprep.subr.bf16.mxu0 0
    %2208 = vmatpush1.bf16.msra.mxu0 0
    %2209 = vmatprep.subr.bf16.mxu0 0
    %2210 = vmatpush1.bf16.msra.mxu0 0
    %2211 = vmatprep.mubr.bf16.mxu0 0
    %2212 = vmatmul.mubr.bf16.gmra.mrb[0].mxu0 %v2177
    %v2213 = vpop.f32.mrb[0].mxu0
    %v2214 = vadd.f32 0.0, %v2213
    %v2215 = vpop.f32.mrb[0].mxu0
    %v2216 = vpop.f32.mrb[0].mxu0
    %v2217 = vpop.f32.mrb[0].mxu0
    %2218 = vdwg.mxu0
    %v2219 = vmax.f32 %v2214, -3.0
    %v2220 = vmin.f32 %v2219, 3.0
    %2221 = vst.msk [vmem:[%s1662 + $0x4] sm:$0x3] %vm1663, %v2166
    %2223 = vrot.lane.b32.xlu0 %v2220, 32
    %v2224 = vpop.permute.xlu0 %2223
    %2226 = vst.msk [vmem:[%s1662 + $0xa] sm:$0x3] %vm1669, %v2224
    %v2227 = vpack.c.bf16 %v2166, %v2166
    %v2229 = vsel %vm564, %v2227, 0
    %2231 = vmatprep.subr.bf16.mxu0 %v1334
    %2232 = vmatpush1.bf16.msra.mxu0 %v1333
    %2233 = vmatprep.subr.bf16.mxu0 %v1336
    %2234 = vmatpush1.bf16.msra.mxu0 %v1335
    %2235 = vmatprep.subr.bf16.mxu0 0
    %2236 = vmatpush1.bf16.msra.mxu0 0
    %2237 = vmatprep.subr.bf16.mxu0 0
    %2238 = vmatpush1.bf16.msra.mxu0 0
    %2239 = vmatprep.subr.bf16.mxu0 0
    %2240 = vmatpush1.bf16.msra.mxu0 0
    %2241 = vmatprep.subr.bf16.mxu0 0
    %2242 = vmatpush1.bf16.msra.mxu0 0
    %2243 = vmatprep.subr.bf16.mxu0 0
    %2244 = vmatpush1.bf16.msra.mxu0 0
    %2245 = vmatprep.subr.bf16.mxu0 0
    %2246 = vmatpush1.bf16.msra.mxu0 0
    %2247 = vmatprep.subr.bf16.mxu0 0
    %2248 = vmatpush1.bf16.msra.mxu0 0
    %2249 = vmatprep.subr.bf16.mxu0 0
    %2250 = vmatpush1.bf16.msra.mxu0 0
    %2251 = vmatprep.subr.bf16.mxu0 0
    %2252 = vmatpush1.bf16.msra.mxu0 0
    %2253 = vmatprep.subr.bf16.mxu0 0
    %2254 = vmatpush1.bf16.msra.mxu0 0
    %2255 = vmatprep.subr.bf16.mxu0 0
    %2256 = vmatpush1.bf16.msra.mxu0 0
    %2257 = vmatprep.subr.bf16.mxu0 0
    %2258 = vmatpush1.bf16.msra.mxu0 0
    %2259 = vmatprep.subr.bf16.mxu0 0
    %2260 = vmatpush1.bf16.msra.mxu0 0
    %2261 = vmatprep.subr.bf16.mxu0 0
    %2262 = vmatpush1.bf16.msra.mxu0 0
    %2263 = vmatprep.mubr.bf16.mxu0 0
    %2264 = vmatmul.mubr.bf16.gmra.mrb[0].mxu0 %v2229
    %v2265 = vpop.f32.mrb[0].mxu0
    %v2266 = vadd.f32 0.0, %v2265
    %v2267 = vpop.f32.mrb[0].mxu0
    %v2268 = vadd.f32 0.0, %v2267
    %v2269 = vpop.f32.mrb[0].mxu0
    %v2270 = vpop.f32.mrb[0].mxu0
    %2271 = vdwg.mxu0
    %v2274 = vrot.slane %v2266, 2
    %v2275 = vrot.slane %v2268, 2
    %v2278 = vadd.f32 %v1231, %v2274
    %v2279 = vadd.f32 %v1233, %v2275
    %v2280 = vpack.c.bf16 %v2220, %v2220
    %v2282 = vsel %vm564, %v2280, 0
    %2284 = vmatprep.subr.bf16.mxu0 %v1400
    %2285 = vmatpush1.bf16.msra.mxu0 %v1399
    %2286 = vmatprep.subr.bf16.mxu0 %v1402
    %2287 = vmatpush1.bf16.msra.mxu0 %v1401
    %2288 = vmatprep.subr.bf16.mxu0 0
    %2289 = vmatpush1.bf16.msra.mxu0 0
    %2290 = vmatprep.subr.bf16.mxu0 0
    %2291 = vmatpush1.bf16.msra.mxu0 0
    %2292 = vmatprep.subr.bf16.mxu0 0
    %2293 = vmatpush1.bf16.msra.mxu0 0
    %2294 = vmatprep.subr.bf16.mxu0 0
    %2295 = vmatpush1.bf16.msra.mxu0 0
    %2296 = vmatprep.subr.bf16.mxu0 0
    %2297 = vmatpush1.bf16.msra.mxu0 0
    %2298 = vmatprep.subr.bf16.mxu0 0
    %2299 = vmatpush1.bf16.msra.mxu0 0
    %2300 = vmatprep.subr.bf16.mxu0 0
    %2301 = vmatpush1.bf16.msra.mxu0 0
    %2302 = vmatprep.subr.bf16.mxu0 0
    %2303 = vmatpush1.bf16.msra.mxu0 0
    %2304 = vmatprep.subr.bf16.mxu0 0
    %2305 = vmatpush1.bf16.msra.mxu0 0
    %2306 = vmatprep.subr.bf16.mxu0 0
    %2307 = vmatpush1.bf16.msra.mxu0 0
    %2308 = vmatprep.subr.bf16.mxu0 0
    %2309 = vmatpush1.bf16.msra.mxu0 0
    %2310 = vmatprep.subr.bf16.mxu0 0
    %2311 = vmatpush1.bf16.msra.mxu0 0
    %2312 = vmatprep.subr.bf16.mxu0 0
    %2313 = vmatpush1.bf16.msra.mxu0 0
    %2314 = vmatprep.subr.bf16.mxu0 0
    %2315 = vmatpush1.bf16.msra.mxu0 0
    %2316 = vmatprep.mubr.bf16.mxu0 0
    %2317 = vmatmul.mubr.bf16.gmra.mrb[0].mxu0 %v2282
    %v2318 = vpop.f32.mrb[0].mxu0
    %v2319 = vadd.f32 0.0, %v2318
    %v2320 = vpop.f32.mrb[0].mxu0
    %v2321 = vadd.f32 0.0, %v2320
    %v2322 = vpop.f32.mrb[0].mxu0
    %v2323 = vpop.f32.mrb[0].mxu0
    %2324 = vdwg.mxu0
    %v2325 = vadd.f32 %v1317, %v2319
    %v2326 = vadd.f32 %v1319, %v2321
    %v2327 = vxor.u32 %v2278, 2147483648
    %v2328 = vxor.u32 %v2279, 2147483648
    %v2329 = vmul.f32 %v2327, 1.442695
    %v2330 = vpow.pop %v2329
    %v2331 = vmul.f32 %v2328, 1.442695
    %v2332 = vpow.pop %v2331
    %v2333 = vadd.f32 %v2330, 1.0
    %v2334 = vadd.f32 %v2332, 1.0
    %v2335 = vrcp.pop %v2333
    %v2336 = vmul.f32 1.0, %v2335
    %v2337 = vrcp.pop %v2334
    %v2338 = vmul.f32 1.0, %v2337
    %v2339 = vxor.u32 %v2325, 2147483648
    %v2340 = vxor.u32 %v2326, 2147483648
    %v2341 = vmul.f32 %v2339, 1.442695
    %v2342 = vpow.pop %v2341
    %v2343 = vmul.f32 %v2340, 1.442695
    %v2344 = vpow.pop %v2343
    %v2345 = vadd.f32 %v2342, 1.0
    %v2346 = vadd.f32 %v2344, 1.0
    %v2347 = vrcp.pop %v2345
    %v2348 = vmul.f32 1.0, %v2347
    %v2349 = vrcp.pop %v2346
    %v2350 = vmul.f32 1.0, %v2349
    %v2351 = vtanh.pop %v2279
    %v2352 = vtanh.pop %v2326
    %v2354 = vrot.slane %v2096, 6
    %v2356 = vmul.f32 %v2336, %v2354
    %2358 = vrot.lane.b32.xlu0 %v2351, 64
    %v2359 = vpop.permute.xlu0 %2358
    %v2361 = vmul.f32 %v2336, %v2359
    %2363 = vrot.lane.b32.xlu0 %v2361, 64
    %v2364 = vpop.permute.xlu0 %2363
    %v2366 = vadd.f32 %v2356, %v2364
    %v2367 = vmax.f32 %v2366, -3.0
    %v2368 = vmin.f32 %v2367, 3.0
    %v2370 = vrot.slane %v2112, 2
    %v2372 = vmul.f32 %v2348, %v2370
    %2374 = vrot.lane.b32.xlu0 %v2352, 64
    %v2375 = vpop.permute.xlu0 %2374
    %v2377 = vmul.f32 %v2348, %v2375
    %2379 = vrot.lane.b32.xlu0 %v2377, 64
    %v2380 = vpop.permute.xlu0 %2379
    %v2382 = vadd.f32 %v2372, %v2380
    %v2383 = vmax.f32 %v2382, -3.0
    %v2384 = vmin.f32 %v2383, 3.0
    %v2385 = vtanh.pop %v2368
    %2387 = vrot.lane.b32.xlu0 %v2385, 64
    %v2388 = vpop.permute.xlu0 %2387
    %v2390 = vmul.f32 %v2338, %v2388
    %v2391 = vpack.c.bf16 %v2390, %v2390
    %v2393 = vrot.slane %v2391, 3
    %v2395 = vsel %vm193, %v2393, 0
    %2397 = vmatprep.subr.bf16.mxu0 0
    %2398 = vmatpush1.bf16.msra.mxu0 %v1531
    %2399 = vmatprep.subr.bf16.mxu0 0
    %2400 = vmatpush1.bf16.msra.mxu0 %v1532
    %2401 = vmatprep.subr.bf16.mxu0 0
    %2402 = vmatpush1.bf16.msra.mxu0 %v1533
    %2403 = vmatprep.subr.bf16.mxu0 0
    %2404 = vmatpush1.bf16.msra.mxu0 %v1534
    %2405 = vmatprep.subr.bf16.mxu0 0
    %2406 = vmatpush1.bf16.msra.mxu0 0
    %2407 = vmatprep.subr.bf16.mxu0 0
    %2408 = vmatpush1.bf16.msra.mxu0 0
    %2409 = vmatprep.subr.bf16.mxu0 0
    %2410 = vmatpush1.bf16.msra.mxu0 0
    %2411 = vmatprep.subr.bf16.mxu0 0
    %2412 = vmatpush1.bf16.msra.mxu0 0
    %2413 = vmatprep.subr.bf16.mxu0 0
    %2414 = vmatpush1.bf16.msra.mxu0 0
    %2415 = vmatprep.subr.bf16.mxu0 0
    %2416 = vmatpush1.bf16.msra.mxu0 0
    %2417 = vmatprep.subr.bf16.mxu0 0
    %2418 = vmatpush1.bf16.msra.mxu0 0
    %2419 = vmatprep.subr.bf16.mxu0 0
    %2420 = vmatpush1.bf16.msra.mxu0 0
    %2421 = vmatprep.subr.bf16.mxu0 0
    %2422 = vmatpush1.bf16.msra.mxu0 0
    %2423 = vmatprep.subr.bf16.mxu0 0
    %2424 = vmatpush1.bf16.msra.mxu0 0
    %2425 = vmatprep.subr.bf16.mxu0 0
    %2426 = vmatpush1.bf16.msra.mxu0 0
    %2427 = vmatprep.subr.bf16.mxu0 0
    %2428 = vmatpush1.bf16.msra.mxu0 0
    %2429 = vmatprep.mubr.bf16.mxu0 0
    %2430 = vmatmul.mubr.bf16.gmra.mrb[0].mxu0 %v2395
    %v2431 = vpop.f32.mrb[0].mxu0
    %v2432 = vadd.f32 0.0, %v2431
    %v2433 = vpop.f32.mrb[0].mxu0
    %v2434 = vpop.f32.mrb[0].mxu0
    %v2435 = vpop.f32.mrb[0].mxu0
    %2436 = vdwg.mxu0
    %v2437 = vmax.f32 %v2432, -3.0
    %v2438 = vmin.f32 %v2437, 3.0
    %v2439 = vtanh.pop %v2384
    %2441 = vrot.lane.b32.xlu0 %v2439, 64
    %v2442 = vpop.permute.xlu0 %2441
    %v2444 = vmul.f32 %v2350, %v2442
    %v2445 = vpack.c.bf16 %v2444, %v2444
    %v2447 = vsel %vm193, %v2445, 0
    %2449 = vmatprep.subr.bf16.mxu0 0
    %2450 = vmatpush1.bf16.msra.mxu0 %v1609
    %2451 = vmatprep.subr.bf16.mxu0 0
    %2452 = vmatpush1.bf16.msra.mxu0 %v1610
    %2453 = vmatprep.subr.bf16.mxu0 0
    %2454 = vmatpush1.bf16.msra.mxu0 %v1611
    %2455 = vmatprep.subr.bf16.mxu0 0
    %2456 = vmatpush1.bf16.msra.mxu0 %v1612
    %2457 = vmatprep.subr.bf16.mxu0 0
    %2458 = vmatpush1.bf16.msra.mxu0 0
    %2459 = vmatprep.subr.bf16.mxu0 0
    %2460 = vmatpush1.bf16.msra.mxu0 0
    %2461 = vmatprep.subr.bf16.mxu0 0
    %2462 = vmatpush1.bf16.msra.mxu0 0
    %2463 = vmatprep.subr.bf16.mxu0 0
    %2464 = vmatpush1.bf16.msra.mxu0 0
    %2465 = vmatprep.subr.bf16.mxu0 0
    %2466 = vmatpush1.bf16.msra.mxu0 0
    %2467 = vmatprep.subr.bf16.mxu0 0
    %2468 = vmatpush1.bf16.msra.mxu0 0
    %2469 = vmatprep.subr.bf16.mxu0 0
    %2470 = vmatpush1.bf16.msra.mxu0 0
    %2471 = vmatprep.subr.bf16.mxu0 0
    %2472 = vmatpush1.bf16.msra.mxu0 0
    %2473 = vmatprep.subr.bf16.mxu0 0
    %2474 = vmatpush1.bf16.msra.mxu0 0
    %2475 = vmatprep.subr.bf16.mxu0 0
    %2476 = vmatpush1.bf16.msra.mxu0 0
    %2477 = vmatprep.subr.bf16.mxu0 0
    %2478 = vmatpush1.bf16.msra.mxu0 0
    %2479 = vmatprep.subr.bf16.mxu0 0
    %2480 = vmatpush1.bf16.msra.mxu0 0
    %2481 = vmatprep.mubr.bf16.mxu0 0
    %2482 = vmatmul.mubr.bf16.gmra.mrb[0].mxu0 %v2447
    %v2483 = vpop.f32.mrb[0].mxu0
    %v2484 = vadd.f32 0.0, %v2483
    %v2485 = vpop.f32.mrb[0].mxu0
    %v2486 = vpop.f32.mrb[0].mxu0
    %v2487 = vpop.f32.mrb[0].mxu0
    %2488 = vdwg.mxu0
    %v2489 = vmax.f32 %v2484, -3.0
    %v2490 = vmin.f32 %v2489, 3.0
    %2491 = vst.msk [vmem:[%s1662 + $0x6] sm:$0x3] %vm1663, %v2438
    %2493 = vrot.lane.b32.xlu0 %v2490, 32
    %v2494 = vpop.permute.xlu0 %2493
    %2496 = vst.msk [vmem:[%s1662 + $0x8] sm:$0x3] %vm1669, %v2494
    %v2497 = vpack.c.bf16 %v2438, %v2438
    %v2499 = vsel %vm564, %v2497, 0
    %2501 = vmatprep.subr.bf16.mxu0 %v1334
    %2502 = vmatpush1.bf16.msra.mxu0 %v1333
    %2503 = vmatprep.subr.bf16.mxu0 %v1336
    %2504 = vmatpush1.bf16.msra.mxu0 %v1335
    %2505 = vmatprep.subr.bf16.mxu0 0
    %2506 = vmatpush1.bf16.msra.mxu0 0
    %2507 = vmatprep.subr.bf16.mxu0 0
    %2508 = vmatpush1.bf16.msra.mxu0 0
    %2509 = vmatprep.subr.bf16.mxu0 0
    %2510 = vmatpush1.bf16.msra.mxu0 0
    %2511 = vmatprep.subr.bf16.mxu0 0
    %2512 = vmatpush1.bf16.msra.mxu0 0
    %2513 = vmatprep.subr.bf16.mxu0 0
    %2514 = vmatpush1.bf16.msra.mxu0 0
    %2515 = vmatprep.subr.bf16.mxu0 0
    %2516 = vmatpush1.bf16.msra.mxu0 0
    %2517 = vmatprep.subr.bf16.mxu0 0
    %2518 = vmatpush1.bf16.msra.mxu0 0
    %2519 = vmatprep.subr.bf16.mxu0 0
    %2520 = vmatpush1.bf16.msra.mxu0 0
    %2521 = vmatprep.subr.bf16.mxu0 0
    %2522 = vmatpush1.bf16.msra.mxu0 0
    %2523 = vmatprep.subr.bf16.mxu0 0
    %2524 = vmatpush1.bf16.msra.mxu0 0
    %2525 = vmatprep.subr.bf16.mxu0 0
    %2526 = vmatpush1.bf16.msra.mxu0 0
    %2527 = vmatprep.subr.bf16.mxu0 0
    %2528 = vmatpush1.bf16.msra.mxu0 0
    %2529 = vmatprep.subr.bf16.mxu0 0
    %2530 = vmatpush1.bf16.msra.mxu0 0
    %2531 = vmatprep.subr.bf16.mxu0 0
    %2532 = vmatpush1.bf16.msra.mxu0 0
    %2533 = vmatprep.mubr.bf16.mxu0 0
    %2534 = vmatmul.mubr.bf16.gmra.mrb[0].mxu0 %v2499
    %v2535 = vpop.f32.mrb[0].mxu0
    %v2536 = vadd.f32 0.0, %v2535
    %v2537 = vpop.f32.mrb[0].mxu0
    %v2538 = vadd.f32 0.0, %v2537
    %v2539 = vpop.f32.mrb[0].mxu0
    %v2540 = vpop.f32.mrb[0].mxu0
    %2541 = vdwg.mxu0
    %v2542 = vadd.f32 %v1235, %v2536
    %v2543 = vadd.f32 %v1237, %v2538
    %v2544 = vpack.c.bf16 %v2490, %v2490
    %v2546 = vsel %vm564, %v2544, 0
    %2548 = vmatprep.subr.bf16.mxu0 %v1400
    %2549 = vmatpush1.bf16.msra.mxu0 %v1399
    %2550 = vmatprep.subr.bf16.mxu0 %v1402
    %2551 = vmatpush1.bf16.msra.mxu0 %v1401
    %2552 = vmatprep.subr.bf16.mxu0 0
    %2553 = vmatpush1.bf16.msra.mxu0 0
    %2554 = vmatprep.subr.bf16.mxu0 0
    %2555 = vmatpush1.bf16.msra.mxu0 0
    %2556 = vmatprep.subr.bf16.mxu0 0
    %2557 = vmatpush1.bf16.msra.mxu0 0
    %2558 = vmatprep.subr.bf16.mxu0 0
    %2559 = vmatpush1.bf16.msra.mxu0 0
    %2560 = vmatprep.subr.bf16.mxu0 0
    %2561 = vmatpush1.bf16.msra.mxu0 0
    %2562 = vmatprep.subr.bf16.mxu0 0
    %2563 = vmatpush1.bf16.msra.mxu0 0
    %2564 = vmatprep.subr.bf16.mxu0 0
    %2565 = vmatpush1.bf16.msra.mxu0 0
    %2566 = vmatprep.subr.bf16.mxu0 0
    %2567 = vmatpush1.bf16.msra.mxu0 0
    %2568 = vmatprep.subr.bf16.mxu0 0
    %2569 = vmatpush1.bf16.msra.mxu0 0
    %2570 = vmatprep.subr.bf16.mxu0 0
    %2571 = vmatpush1.bf16.msra.mxu0 0
    %2572 = vmatprep.subr.bf16.mxu0 0
    %2573 = vmatpush1.bf16.msra.mxu0 0
    %2574 = vmatprep.subr.bf16.mxu0 0
    %2575 = vmatpush1.bf16.msra.mxu0 0
    %2576 = vmatprep.subr.bf16.mxu0 0
    %2577 = vmatpush1.bf16.msra.mxu0 0
    %2578 = vmatprep.subr.bf16.mxu0 0
    %2579 = vmatpush1.bf16.msra.mxu0 0
    %2580 = vmatprep.mubr.bf16.mxu0 0
    %2581 = vmatmul.mubr.bf16.gmra.mrb[0].mxu0 %v2546
    %v2582 = vpop.f32.mrb[0].mxu0
    %v2583 = vadd.f32 0.0, %v2582
    %v2584 = vpop.f32.mrb[0].mxu0
    %v2585 = vadd.f32 0.0, %v2584
    %v2586 = vpop.f32.mrb[0].mxu0
    %v2587 = vpop.f32.mrb[0].mxu0
    %2588 = vdwg.mxu0
    %v2591 = vrot.slane %v2583, 2
    %v2592 = vrot.slane %v2585, 2
    %v2595 = vadd.f32 %v1313, %v2591
    %v2596 = vadd.f32 %v1315, %v2592
    %v2597 = vxor.u32 %v2542, 2147483648
    %v2598 = vxor.u32 %v2543, 2147483648
    %v2599 = vmul.f32 %v2597, 1.442695
    %v2600 = vpow.pop %v2599
    %v2601 = vmul.f32 %v2598, 1.442695
    %v2602 = vpow.pop %v2601
    %v2603 = vadd.f32 %v2600, 1.0
    %v2604 = vadd.f32 %v2602, 1.0
    %v2605 = vrcp.pop %v2603
    %v2606 = vmul.f32 1.0, %v2605
    %v2607 = vrcp.pop %v2604
    %v2608 = vmul.f32 1.0, %v2607
    %v2609 = vxor.u32 %v2595, 2147483648
    %v2610 = vxor.u32 %v2596, 2147483648
    %v2611 = vmul.f32 %v2609, 1.442695
    %v2612 = vpow.pop %v2611
    %v2613 = vmul.f32 %v2610, 1.442695
    %v2614 = vpow.pop %v2613
    %v2615 = vadd.f32 %v2612, 1.0
    %v2616 = vadd.f32 %v2614, 1.0
    %v2617 = vrcp.pop %v2615
    %v2618 = vmul.f32 1.0, %v2617
    %v2619 = vrcp.pop %v2616
    %v2620 = vmul.f32 1.0, %v2619
    %v2621 = vtanh.pop %v2543
    %v2622 = vtanh.pop %v2596
    %v2624 = vrot.slane %v2368, 6
    %v2626 = vmul.f32 %v2606, %v2624
    %2628 = vrot.lane.b32.xlu0 %v2621, 64
    %v2629 = vpop.permute.xlu0 %2628
    %v2631 = vmul.f32 %v2606, %v2629
    %2633 = vrot.lane.b32.xlu0 %v2631, 64
    %v2634 = vpop.permute.xlu0 %2633
    %v2636 = vadd.f32 %v2626, %v2634
    %v2637 = vmax.f32 %v2636, -3.0
    %v2638 = vmin.f32 %v2637, 3.0
    %v2640 = vrot.slane %v2384, 2
    %v2642 = vmul.f32 %v2618, %v2640
    %2644 = vrot.lane.b32.xlu0 %v2622, 64
    %v2645 = vpop.permute.xlu0 %2644
    %v2647 = vmul.f32 %v2618, %v2645
    %2649 = vrot.lane.b32.xlu0 %v2647, 64
    %v2650 = vpop.permute.xlu0 %2649
    %v2652 = vadd.f32 %v2642, %v2650
    %v2653 = vmax.f32 %v2652, -3.0
    %v2654 = vmin.f32 %v2653, 3.0
    %v2655 = vtanh.pop %v2638
    %2657 = vrot.lane.b32.xlu0 %v2655, 64
    %v2658 = vpop.permute.xlu0 %2657
    %v2660 = vmul.f32 %v2608, %v2658
    %v2661 = vpack.c.bf16 %v2660, %v2660
    %v2663 = vsel %vm193, %v2661, 0
    %2665 = vmatprep.subr.bf16.mxu0 0
    %2666 = vmatpush1.bf16.msra.mxu0 %v1531
    %2667 = vmatprep.subr.bf16.mxu0 0
    %2668 = vmatpush1.bf16.msra.mxu0 %v1532
    %2669 = vmatprep.subr.bf16.mxu0 0
    %2670 = vmatpush1.bf16.msra.mxu0 %v1533
    %2671 = vmatprep.subr.bf16.mxu0 0
    %2672 = vmatpush1.bf16.msra.mxu0 %v1534
    %2673 = vmatprep.subr.bf16.mxu0 0
    %2674 = vmatpush1.bf16.msra.mxu0 0
    %2675 = vmatprep.subr.bf16.mxu0 0
    %2676 = vmatpush1.bf16.msra.mxu0 0
    %2677 = vmatprep.subr.bf16.mxu0 0
    %2678 = vmatpush1.bf16.msra.mxu0 0
    %2679 = vmatprep.subr.bf16.mxu0 0
    %2680 = vmatpush1.bf16.msra.mxu0 0
    %2681 = vmatprep.subr.bf16.mxu0 0
    %2682 = vmatpush1.bf16.msra.mxu0 0
    %2683 = vmatprep.subr.bf16.mxu0 0
    %2684 = vmatpush1.bf16.msra.mxu0 0
    %2685 = vmatprep.subr.bf16.mxu0 0
    %2686 = vmatpush1.bf16.msra.mxu0 0
    %2687 = vmatprep.subr.bf16.mxu0 0
    %2688 = vmatpush1.bf16.msra.mxu0 0
    %2689 = vmatprep.subr.bf16.mxu0 0
    %2690 = vmatpush1.bf16.msra.mxu0 0
    %2691 = vmatprep.subr.bf16.mxu0 0
    %2692 = vmatpush1.bf16.msra.mxu0 0
    %2693 = vmatprep.subr.bf16.mxu0 0
    %2694 = vmatpush1.bf16.msra.mxu0 0
    %2695 = vmatprep.subr.bf16.mxu0 0
    %2696 = vmatpush1.bf16.msra.mxu0 0
    %2697 = vmatprep.mubr.bf16.mxu0 0
    %2698 = vmatmul.mubr.bf16.gmra.mrb[0].mxu0 %v2663
    %v2699 = vpop.f32.mrb[0].mxu0
    %v2700 = vadd.f32 0.0, %v2699
    %v2701 = vpop.f32.mrb[0].mxu0
    %v2702 = vpop.f32.mrb[0].mxu0
    %v2703 = vpop.f32.mrb[0].mxu0
    %2704 = vdwg.mxu0
    %v2705 = vmax.f32 %v2700, -3.0
    %v2706 = vmin.f32 %v2705, 3.0
    %v2707 = vtanh.pop %v2654
    %2709 = vrot.lane.b32.xlu0 %v2707, 64
    %v2710 = vpop.permute.xlu0 %2709
    %v2712 = vmul.f32 %v2620, %v2710
    %v2713 = vpack.c.bf16 %v2712, %v2712
    %v2715 = vrot.slane %v2713, 3
    %v2717 = vsel %vm193, %v2715, 0
    %2719 = vmatprep.subr.bf16.mxu0 0
    %2720 = vmatpush1.bf16.msra.mxu0 %v1609
    %2721 = vmatprep.subr.bf16.mxu0 0
    %2722 = vmatpush1.bf16.msra.mxu0 %v1610
    %2723 = vmatprep.subr.bf16.mxu0 0
    %2724 = vmatpush1.bf16.msra.mxu0 %v1611
    %2725 = vmatprep.subr.bf16.mxu0 0
    %2726 = vmatpush1.bf16.msra.mxu0 %v1612
    %2727 = vmatprep.subr.bf16.mxu0 0
    %2728 = vmatpush1.bf16.msra.mxu0 0
    %2729 = vmatprep.subr.bf16.mxu0 0
    %2730 = vmatpush1.bf16.msra.mxu0 0
    %2731 = vmatprep.subr.bf16.mxu0 0
    %2732 = vmatpush1.bf16.msra.mxu0 0
    %2733 = vmatprep.subr.bf16.mxu0 0
    %2734 = vmatpush1.bf16.msra.mxu0 0
    %2735 = vmatprep.subr.bf16.mxu0 0
    %2736 = vmatpush1.bf16.msra.mxu0 0
    %2737 = vmatprep.subr.bf16.mxu0 0
    %2738 = vmatpush1.bf16.msra.mxu0 0
    %2739 = vmatprep.subr.bf16.mxu0 0
    %2740 = vmatpush1.bf16.msra.mxu0 0
    %2741 = vmatprep.subr.bf16.mxu0 0
    %2742 = vmatpush1.bf16.msra.mxu0 0
    %2743 = vmatprep.subr.bf16.mxu0 0
    %2744 = vmatpush1.bf16.msra.mxu0 0
    %2745 = vmatprep.subr.bf16.mxu0 0
    %2746 = vmatpush1.bf16.msra.mxu0 0
    %2747 = vmatprep.subr.bf16.mxu0 0
    %2748 = vmatpush1.bf16.msra.mxu0 0
    %2749 = vmatprep.subr.bf16.mxu0 0
    %2750 = vmatpush1.bf16.msra.mxu0 0
    %2751 = vmatprep.mubr.bf16.mxu0 0
    %2752 = vmatmul.mubr.bf16.gmra.mrb[0].mxu0 %v2717
    %v2753 = vpop.f32.mrb[0].mxu0
    %v2754 = vadd.f32 0.0, %v2753
    %v2755 = vpop.f32.mrb[0].mxu0
    %v2756 = vpop.f32.mrb[0].mxu0
    %v2757 = vpop.f32.mrb[0].mxu0
    %2758 = vdwg.mxu0
    %v2759 = vmax.f32 %v2754, -3.0
    %v2760 = vmin.f32 %v2759, 3.0
    %2761 = vst.msk [vmem:[%s1662 + $0x8] sm:$0x3] %vm1663, %v2706
    %2763 = vrot.lane.b32.xlu0 %v2760, 32
    %v2764 = vpop.permute.xlu0 %2763
    %2766 = vst.msk [vmem:[%s1662 + $0x6] sm:$0x3] %vm1669, %v2764
    %v2767 = vpack.c.bf16 %v2706, %v2706
    %v2769 = vsel %vm564, %v2767, 0
    %2771 = vmatprep.subr.bf16.mxu0 %v1334
    %2772 = vmatpush1.bf16.msra.mxu0 %v1333
    %2773 = vmatprep.subr.bf16.mxu0 %v1336
    %2774 = vmatpush1.bf16.msra.mxu0 %v1335
    %2775 = vmatprep.subr.bf16.mxu0 0
    %2776 = vmatpush1.bf16.msra.mxu0 0
    %2777 = vmatprep.subr.bf16.mxu0 0
    %2778 = vmatpush1.bf16.msra.mxu0 0
    %2779 = vmatprep.subr.bf16.mxu0 0
    %2780 = vmatpush1.bf16.msra.mxu0 0
    %2781 = vmatprep.subr.bf16.mxu0 0
    %2782 = vmatpush1.bf16.msra.mxu0 0
    %2783 = vmatprep.subr.bf16.mxu0 0
    %2784 = vmatpush1.bf16.msra.mxu0 0
    %2785 = vmatprep.subr.bf16.mxu0 0
    %2786 = vmatpush1.bf16.msra.mxu0 0
    %2787 = vmatprep.subr.bf16.mxu0 0
    %2788 = vmatpush1.bf16.msra.mxu0 0
    %2789 = vmatprep.subr.bf16.mxu0 0
    %2790 = vmatpush1.bf16.msra.mxu0 0
    %2791 = vmatprep.subr.bf16.mxu0 0
    %2792 = vmatpush1.bf16.msra.mxu0 0
    %2793 = vmatprep.subr.bf16.mxu0 0
    %2794 = vmatpush1.bf16.msra.mxu0 0
    %2795 = vmatprep.subr.bf16.mxu0 0
    %2796 = vmatpush1.bf16.msra.mxu0 0
    %2797 = vmatprep.subr.bf16.mxu0 0
    %2798 = vmatpush1.bf16.msra.mxu0 0
    %2799 = vmatprep.subr.bf16.mxu0 0
    %2800 = vmatpush1.bf16.msra.mxu0 0
    %2801 = vmatprep.subr.bf16.mxu0 0
    %2802 = vmatpush1.bf16.msra.mxu0 0
    %2803 = vmatprep.mubr.bf16.mxu0 0
    %2804 = vmatmul.mubr.bf16.gmra.mrb[0].mxu0 %v2769
    %v2805 = vpop.f32.mrb[0].mxu0
    %v2806 = vadd.f32 0.0, %v2805
    %v2807 = vpop.f32.mrb[0].mxu0
    %v2808 = vadd.f32 0.0, %v2807
    %v2809 = vpop.f32.mrb[0].mxu0
    %v2810 = vpop.f32.mrb[0].mxu0
    %2811 = vdwg.mxu0
    %v2814 = vrot.slane %v2806, 6
    %v2815 = vrot.slane %v2808, 6
    %v2818 = vadd.f32 %v1235, %v2814
    %v2819 = vadd.f32 %v1237, %v2815
    %v2820 = vpack.c.bf16 %v2760, %v2760
    %v2822 = vsel %vm564, %v2820, 0
    %2824 = vmatprep.subr.bf16.mxu0 %v1400
    %2825 = vmatpush1.bf16.msra.mxu0 %v1399
    %2826 = vmatprep.subr.bf16.mxu0 %v1402
    %2827 = vmatpush1.bf16.msra.mxu0 %v1401
    %2828 = vmatprep.subr.bf16.mxu0 0
    %2829 = vmatpush1.bf16.msra.mxu0 0
    %2830 = vmatprep.subr.bf16.mxu0 0
    %2831 = vmatpush1.bf16.msra.mxu0 0
    %2832 = vmatprep.subr.bf16.mxu0 0
    %2833 = vmatpush1.bf16.msra.mxu0 0
    %2834 = vmatprep.subr.bf16.mxu0 0
    %2835 = vmatpush1.bf16.msra.mxu0 0
    %2836 = vmatprep.subr.bf16.mxu0 0
    %2837 = vmatpush1.bf16.msra.mxu0 0
    %2838 = vmatprep.subr.bf16.mxu0 0
    %2839 = vmatpush1.bf16.msra.mxu0 0
    %2840 = vmatprep.subr.bf16.mxu0 0
    %2841 = vmatpush1.bf16.msra.mxu0 0
    %2842 = vmatprep.subr.bf16.mxu0 0
    %2843 = vmatpush1.bf16.msra.mxu0 0
    %2844 = vmatprep.subr.bf16.mxu0 0
    %2845 = vmatpush1.bf16.msra.mxu0 0
    %2846 = vmatprep.subr.bf16.mxu0 0
    %2847 = vmatpush1.bf16.msra.mxu0 0
    %2848 = vmatprep.subr.bf16.mxu0 0
    %2849 = vmatpush1.bf16.msra.mxu0 0
    %2850 = vmatprep.subr.bf16.mxu0 0
    %2851 = vmatpush1.bf16.msra.mxu0 0
    %2852 = vmatprep.subr.bf16.mxu0 0
    %2853 = vmatpush1.bf16.msra.mxu0 0
    %2854 = vmatprep.subr.bf16.mxu0 0
    %2855 = vmatpush1.bf16.msra.mxu0 0
    %2856 = vmatprep.mubr.bf16.mxu0 0
    %2857 = vmatmul.mubr.bf16.gmra.mrb[0].mxu0 %v2822
    %v2858 = vpop.f32.mrb[0].mxu0
    %v2859 = vadd.f32 0.0, %v2858
    %v2860 = vpop.f32.mrb[0].mxu0
    %v2861 = vadd.f32 0.0, %v2860
    %v2862 = vpop.f32.mrb[0].mxu0
    %v2863 = vpop.f32.mrb[0].mxu0
    %2864 = vdwg.mxu0
    %v2867 = vrot.slane %v2859, 4
    %v2868 = vrot.slane %v2861, 4
    %v2871 = vadd.f32 %v1313, %v2867
    %v2872 = vadd.f32 %v1315, %v2868
    %v2873 = vxor.u32 %v2818, 2147483648
    %v2874 = vxor.u32 %v2819, 2147483648
    %v2875 = vmul.f32 %v2873, 1.442695
    %v2876 = vpow.pop %v2875
    %v2877 = vmul.f32 %v2874, 1.442695
    %v2878 = vpow.pop %v2877
    %v2879 = vadd.f32 %v2876, 1.0
    %v2880 = vadd.f32 %v2878, 1.0
    %v2881 = vrcp.pop %v2879
    %v2882 = vmul.f32 1.0, %v2881
    %v2883 = vrcp.pop %v2880
    %v2884 = vmul.f32 1.0, %v2883
    %v2885 = vxor.u32 %v2871, 2147483648
    %v2886 = vxor.u32 %v2872, 2147483648
    %v2887 = vmul.f32 %v2885, 1.442695
    %v2888 = vpow.pop %v2887
    %v2889 = vmul.f32 %v2886, 1.442695
    %v2890 = vpow.pop %v2889
    %v2891 = vadd.f32 %v2888, 1.0
    %v2892 = vadd.f32 %v2890, 1.0
    %v2893 = vrcp.pop %v2891
    %v2894 = vmul.f32 1.0, %v2893
    %v2895 = vrcp.pop %v2892
    %v2896 = vmul.f32 1.0, %v2895
    %v2897 = vtanh.pop %v2819
    %v2898 = vtanh.pop %v2872
    %v2900 = vrot.slane %v2638, 6
    %v2902 = vmul.f32 %v2882, %v2900
    %2904 = vrot.lane.b32.xlu0 %v2897, 64
    %v2905 = vpop.permute.xlu0 %2904
    %v2907 = vmul.f32 %v2882, %v2905
    %2909 = vrot.lane.b32.xlu0 %v2907, 64
    %v2910 = vpop.permute.xlu0 %2909
    %v2912 = vadd.f32 %v2902, %v2910
    %v2913 = vmax.f32 %v2912, -3.0
    %v2914 = vmin.f32 %v2913, 3.0
    %v2916 = vrot.slane %v2654, 2
    %v2918 = vmul.f32 %v2894, %v2916
    %2920 = vrot.lane.b32.xlu0 %v2898, 64
    %v2921 = vpop.permute.xlu0 %2920
    %v2923 = vmul.f32 %v2894, %v2921
    %2925 = vrot.lane.b32.xlu0 %v2923, 64
    %v2926 = vpop.permute.xlu0 %2925
    %v2928 = vadd.f32 %v2918, %v2926
    %v2929 = vmax.f32 %v2928, -3.0
    %v2930 = vmin.f32 %v2929, 3.0
    %v2931 = vtanh.pop %v2914
    %2933 = vrot.lane.b32.xlu0 %v2931, 64
    %v2934 = vpop.permute.xlu0 %2933
    %v2936 = vmul.f32 %v2884, %v2934
    %v2937 = vpack.c.bf16 %v2936, %v2936
    %v2939 = vrot.slane %v2937, 1
    %v2941 = vsel %vm193, %v2939, 0
    %2943 = vmatprep.subr.bf16.mxu0 0
    %2944 = vmatpush1.bf16.msra.mxu0 %v1531
    %2945 = vmatprep.subr.bf16.mxu0 0
    %2946 = vmatpush1.bf16.msra.mxu0 %v1532
    %2947 = vmatprep.subr.bf16.mxu0 0
    %2948 = vmatpush1.bf16.msra.mxu0 %v1533
    %2949 = vmatprep.subr.bf16.mxu0 0
    %2950 = vmatpush1.bf16.msra.mxu0 %v1534
    %2951 = vmatprep.subr.bf16.mxu0 0
    %2952 = vmatpush1.bf16.msra.mxu0 0
    %2953 = vmatprep.subr.bf16.mxu0 0
    %2954 = vmatpush1.bf16.msra.mxu0 0
    %2955 = vmatprep.subr.bf16.mxu0 0
    %2956 = vmatpush1.bf16.msra.mxu0 0
    %2957 = vmatprep.subr.bf16.mxu0 0
    %2958 = vmatpush1.bf16.msra.mxu0 0
    %2959 = vmatprep.subr.bf16.mxu0 0
    %2960 = vmatpush1.bf16.msra.mxu0 0
    %2961 = vmatprep.subr.bf16.mxu0 0
    %2962 = vmatpush1.bf16.msra.mxu0 0
    %2963 = vmatprep.subr.bf16.mxu0 0
    %2964 = vmatpush1.bf16.msra.mxu0 0
    %2965 = vmatprep.subr.bf16.mxu0 0
    %2966 = vmatpush1.bf16.msra.mxu0 0
    %2967 = vmatprep.subr.bf16.mxu0 0
    %2968 = vmatpush1.bf16.msra.mxu0 0
    %2969 = vmatprep.subr.bf16.mxu0 0
    %2970 = vmatpush1.bf16.msra.mxu0 0
    %2971 = vmatprep.subr.bf16.mxu0 0
    %2972 = vmatpush1.bf16.msra.mxu0 0
    %2973 = vmatprep.subr.bf16.mxu0 0
    %2974 = vmatpush1.bf16.msra.mxu0 0
    %2975 = vmatprep.mubr.bf16.mxu0 0
    %2976 = vmatmul.mubr.bf16.gmra.mrb[0].mxu0 %v2941
    %v2977 = vpop.f32.mrb[0].mxu0
    %v2978 = vadd.f32 0.0, %v2977
    %v2979 = vpop.f32.mrb[0].mxu0
    %v2980 = vpop.f32.mrb[0].mxu0
    %v2981 = vpop.f32.mrb[0].mxu0
    %2982 = vdwg.mxu0
    %v2983 = vmax.f32 %v2978, -3.0
    %v2984 = vmin.f32 %v2983, 3.0
    %v2985 = vtanh.pop %v2930
    %2987 = vrot.lane.b32.xlu0 %v2985, 64
    %v2988 = vpop.permute.xlu0 %2987
    %v2990 = vmul.f32 %v2896, %v2988
    %v2991 = vpack.c.bf16 %v2990, %v2990
    %v2993 = vrot.slane %v2991, 2
    %v2995 = vsel %vm193, %v2993, 0
    %2997 = vmatprep.subr.bf16.mxu0 0
    %2998 = vmatpush1.bf16.msra.mxu0 %v1609
    %2999 = vmatprep.subr.bf16.mxu0 0
    %3000 = vmatpush1.bf16.msra.mxu0 %v1610
    %3001 = vmatprep.subr.bf16.mxu0 0
    %3002 = vmatpush1.bf16.msra.mxu0 %v1611
    %3003 = vmatprep.subr.bf16.mxu0 0
    %3004 = vmatpush1.bf16.msra.mxu0 %v1612
    %3005 = vmatprep.subr.bf16.mxu0 0
    %3006 = vmatpush1.bf16.msra.mxu0 0
    %3007 = vmatprep.subr.bf16.mxu0 0
    %3008 = vmatpush1.bf16.msra.mxu0 0
    %3009 = vmatprep.subr.bf16.mxu0 0
    %3010 = vmatpush1.bf16.msra.mxu0 0
    %3011 = vmatprep.subr.bf16.mxu0 0
    %3012 = vmatpush1.bf16.msra.mxu0 0
    %3013 = vmatprep.subr.bf16.mxu0 0
    %3014 = vmatpush1.bf16.msra.mxu0 0
    %3015 = vmatprep.subr.bf16.mxu0 0
    %3016 = vmatpush1.bf16.msra.mxu0 0
    %3017 = vmatprep.subr.bf16.mxu0 0
    %3018 = vmatpush1.bf16.msra.mxu0 0
    %3019 = vmatprep.subr.bf16.mxu0 0
    %3020 = vmatpush1.bf16.msra.mxu0 0
    %3021 = vmatprep.subr.bf16.mxu0 0
    %3022 = vmatpush1.bf16.msra.mxu0 0
    %3023 = vmatprep.subr.bf16.mxu0 0
    %3024 = vmatpush1.bf16.msra.mxu0 0
    %3025 = vmatprep.subr.bf16.mxu0 0
    %3026 = vmatpush1.bf16.msra.mxu0 0
    %3027 = vmatprep.subr.bf16.mxu0 0
    %3028 = vmatpush1.bf16.msra.mxu0 0
    %3029 = vmatprep.mubr.bf16.mxu0 0
    %3030 = vmatmul.mubr.bf16.gmra.mrb[0].mxu0 %v2995
    %v3031 = vpop.f32.mrb[0].mxu0
    %v3032 = vadd.f32 0.0, %v3031
    %v3033 = vpop.f32.mrb[0].mxu0
    %v3034 = vpop.f32.mrb[0].mxu0
    %v3035 = vpop.f32.mrb[0].mxu0
    %3036 = vdwg.mxu0
    %v3037 = vmax.f32 %v3032, -3.0
    %v3038 = vmin.f32 %v3037, 3.0
    %3039 = vst.msk [vmem:[%s1662 + $0xa] sm:$0x3] %vm1663, %v2984
    %3041 = vrot.lane.b32.xlu0 %v3038, 32
    %v3042 = vpop.permute.xlu0 %3041
    %3044 = vst.msk [vmem:[%s1662 + $0x4] sm:$0x3] %vm1669, %v3042
    %v3045 = vpack.c.bf16 %v2984, %v2984
    %v3047 = vsel %vm564, %v3045, 0
    %3049 = vmatprep.subr.bf16.mxu0 %v1334
    %3050 = vmatpush1.bf16.msra.mxu0 %v1333
    %3051 = vmatprep.subr.bf16.mxu0 %v1336
    %3052 = vmatpush1.bf16.msra.mxu0 %v1335
    %3053 = vmatprep.subr.bf16.mxu0 0
    %3054 = vmatpush1.bf16.msra.mxu0 0
    %3055 = vmatprep.subr.bf16.mxu0 0
    %3056 = vmatpush1.bf16.msra.mxu0 0
    %3057 = vmatprep.subr.bf16.mxu0 0
    %3058 = vmatpush1.bf16.msra.mxu0 0
    %3059 = vmatprep.subr.bf16.mxu0 0
    %3060 = vmatpush1.bf16.msra.mxu0 0
    %3061 = vmatprep.subr.bf16.mxu0 0
    %3062 = vmatpush1.bf16.msra.mxu0 0
    %3063 = vmatprep.subr.bf16.mxu0 0
    %3064 = vmatpush1.bf16.msra.mxu0 0
    %3065 = vmatprep.subr.bf16.mxu0 0
    %3066 = vmatpush1.bf16.msra.mxu0 0
    %3067 = vmatprep.subr.bf16.mxu0 0
    %3068 = vmatpush1.bf16.msra.mxu0 0
    %3069 = vmatprep.subr.bf16.mxu0 0
    %3070 = vmatpush1.bf16.msra.mxu0 0
    %3071 = vmatprep.subr.bf16.mxu0 0
    %3072 = vmatpush1.bf16.msra.mxu0 0
    %3073 = vmatprep.subr.bf16.mxu0 0
    %3074 = vmatpush1.bf16.msra.mxu0 0
    %3075 = vmatprep.subr.bf16.mxu0 0
    %3076 = vmatpush1.bf16.msra.mxu0 0
    %3077 = vmatprep.subr.bf16.mxu0 0
    %3078 = vmatpush1.bf16.msra.mxu0 0
    %3079 = vmatprep.subr.bf16.mxu0 0
    %3080 = vmatpush1.bf16.msra.mxu0 0
    %3081 = vmatprep.mubr.bf16.mxu0 0
    %3082 = vmatmul.mubr.bf16.gmra.mrb[0].mxu0 %v3047
    %v3083 = vpop.f32.mrb[0].mxu0
    %v3084 = vadd.f32 0.0, %v3083
    %v3085 = vpop.f32.mrb[0].mxu0
    %v3086 = vadd.f32 0.0, %v3085
    %v3087 = vpop.f32.mrb[0].mxu0
    %v3088 = vpop.f32.mrb[0].mxu0
    %3089 = vdwg.mxu0
    %v3092 = vrot.slane %v3084, 4
    %v3093 = vrot.slane %v3086, 4
    %v3096 = vadd.f32 %v1235, %v3092
    %v3097 = vadd.f32 %v1237, %v3093
    %v3098 = vpack.c.bf16 %v3038, %v3038
    %v3100 = vsel %vm564, %v3098, 0
    %3102 = vmatprep.subr.bf16.mxu0 %v1400
    %3103 = vmatpush1.bf16.msra.mxu0 %v1399
    %3104 = vmatprep.subr.bf16.mxu0 %v1402
    %3105 = vmatpush1.bf16.msra.mxu0 %v1401
    %3106 = vmatprep.subr.bf16.mxu0 0
    %3107 = vmatpush1.bf16.msra.mxu0 0
    %3108 = vmatprep.subr.bf16.mxu0 0
    %3109 = vmatpush1.bf16.msra.mxu0 0
    %3110 = vmatprep.subr.bf16.mxu0 0
    %3111 = vmatpush1.bf16.msra.mxu0 0
    %3112 = vmatprep.subr.bf16.mxu0 0
    %3113 = vmatpush1.bf16.msra.mxu0 0
    %3114 = vmatprep.subr.bf16.mxu0 0
    %3115 = vmatpush1.bf16.msra.mxu0 0
    %3116 = vmatprep.subr.bf16.mxu0 0
    %3117 = vmatpush1.bf16.msra.mxu0 0
    %3118 = vmatprep.subr.bf16.mxu0 0
    %3119 = vmatpush1.bf16.msra.mxu0 0
    %3120 = vmatprep.subr.bf16.mxu0 0
    %3121 = vmatpush1.bf16.msra.mxu0 0
    %3122 = vmatprep.subr.bf16.mxu0 0
    %3123 = vmatpush1.bf16.msra.mxu0 0
    %3124 = vmatprep.subr.bf16.mxu0 0
    %3125 = vmatpush1.bf16.msra.mxu0 0
    %3126 = vmatprep.subr.bf16.mxu0 0
    %3127 = vmatpush1.bf16.msra.mxu0 0
    %3128 = vmatprep.subr.bf16.mxu0 0
    %3129 = vmatpush1.bf16.msra.mxu0 0
    %3130 = vmatprep.subr.bf16.mxu0 0
    %3131 = vmatpush1.bf16.msra.mxu0 0
    %3132 = vmatprep.subr.bf16.mxu0 0
    %3133 = vmatpush1.bf16.msra.mxu0 0
    %3134 = vmatprep.mubr.bf16.mxu0 0
    %3135 = vmatmul.mubr.bf16.gmra.mrb[0].mxu0 %v3100
    %v3136 = vpop.f32.mrb[0].mxu0
    %v3137 = vadd.f32 0.0, %v3136
    %v3138 = vpop.f32.mrb[0].mxu0
    %v3139 = vadd.f32 0.0, %v3138
    %v3140 = vpop.f32.mrb[0].mxu0
    %v3141 = vpop.f32.mrb[0].mxu0
    %3142 = vdwg.mxu0
    %v3145 = vrot.slane %v3137, 6
    %v3146 = vrot.slane %v3139, 6
    %v3149 = vadd.f32 %v1313, %v3145
    %v3150 = vadd.f32 %v1315, %v3146
    %v3151 = vxor.u32 %v3096, 2147483648
    %v3152 = vxor.u32 %v3097, 2147483648
    %v3153 = vmul.f32 %v3151, 1.442695
    %v3154 = vpow.pop %v3153
    %v3155 = vmul.f32 %v3152, 1.442695
    %v3156 = vpow.pop %v3155
    %v3157 = vadd.f32 %v3154, 1.0
    %v3158 = vadd.f32 %v3156, 1.0
    %v3159 = vrcp.pop %v3157
    %v3160 = vmul.f32 1.0, %v3159
    %v3161 = vrcp.pop %v3158
    %v3162 = vmul.f32 1.0, %v3161
    %v3163 = vxor.u32 %v3149, 2147483648
    %v3164 = vxor.u32 %v3150, 2147483648
    %v3165 = vmul.f32 %v3163, 1.442695
    %v3166 = vpow.pop %v3165
    %v3167 = vmul.f32 %v3164, 1.442695
    %v3168 = vpow.pop %v3167
    %v3169 = vadd.f32 %v3166, 1.0
    %v3170 = vadd.f32 %v3168, 1.0
    %v3171 = vrcp.pop %v3169
    %v3172 = vmul.f32 1.0, %v3171
    %v3173 = vrcp.pop %v3170
    %v3174 = vmul.f32 1.0, %v3173
    %v3175 = vtanh.pop %v3097
    %v3176 = vtanh.pop %v3150
    %v3178 = vrot.slane %v2914, 6
    %v3180 = vmul.f32 %v3160, %v3178
    %3182 = vrot.lane.b32.xlu0 %v3175, 64
    %v3183 = vpop.permute.xlu0 %3182
    %v3185 = vmul.f32 %v3160, %v3183
    %3187 = vrot.lane.b32.xlu0 %v3185, 64
    %v3188 = vpop.permute.xlu0 %3187
    %v3190 = vadd.f32 %v3180, %v3188
    %v3191 = vmax.f32 %v3190, -3.0
    %v3192 = vmin.f32 %v3191, 3.0
    %v3194 = vrot.slane %v2930, 2
    %v3196 = vmul.f32 %v3172, %v3194
    %3198 = vrot.lane.b32.xlu0 %v3176, 64
    %v3199 = vpop.permute.xlu0 %3198
    %v3201 = vmul.f32 %v3172, %v3199
    %3203 = vrot.lane.b32.xlu0 %v3201, 64
    %v3204 = vpop.permute.xlu0 %3203
    %v3206 = vadd.f32 %v3196, %v3204
    %v3207 = vmax.f32 %v3206, -3.0
    %v3208 = vmin.f32 %v3207, 3.0
    %v3209 = vtanh.pop %v3192
    %3211 = vrot.lane.b32.xlu0 %v3209, 64
    %v3212 = vpop.permute.xlu0 %3211
    %v3214 = vmul.f32 %v3162, %v3212
    %v3215 = vpack.c.bf16 %v3214, %v3214
    %v3217 = vrot.slane %v3215, 2
    %v3219 = vsel %vm193, %v3217, 0
    %3221 = vmatprep.subr.bf16.mxu0 0
    %3222 = vmatpush1.bf16.msra.mxu0 %v1531
    %3223 = vmatprep.subr.bf16.mxu0 0
    %3224 = vmatpush1.bf16.msra.mxu0 %v1532
    %3225 = vmatprep.subr.bf16.mxu0 0
    %3226 = vmatpush1.bf16.msra.mxu0 %v1533
    %3227 = vmatprep.subr.bf16.mxu0 0
    %3228 = vmatpush1.bf16.msra.mxu0 %v1534
    %3229 = vmatprep.subr.bf16.mxu0 0
    %3230 = vmatpush1.bf16.msra.mxu0 0
    %3231 = vmatprep.subr.bf16.mxu0 0
    %3232 = vmatpush1.bf16.msra.mxu0 0
    %3233 = vmatprep.subr.bf16.mxu0 0
    %3234 = vmatpush1.bf16.msra.mxu0 0
    %3235 = vmatprep.subr.bf16.mxu0 0
    %3236 = vmatpush1.bf16.msra.mxu0 0
    %3237 = vmatprep.subr.bf16.mxu0 0
    %3238 = vmatpush1.bf16.msra.mxu0 0
    %3239 = vmatprep.subr.bf16.mxu0 0
    %3240 = vmatpush1.bf16.msra.mxu0 0
    %3241 = vmatprep.subr.bf16.mxu0 0
    %3242 = vmatpush1.bf16.msra.mxu0 0
    %3243 = vmatprep.subr.bf16.mxu0 0
    %3244 = vmatpush1.bf16.msra.mxu0 0
    %3245 = vmatprep.subr.bf16.mxu0 0
    %3246 = vmatpush1.bf16.msra.mxu0 0
    %3247 = vmatprep.subr.bf16.mxu0 0
    %3248 = vmatpush1.bf16.msra.mxu0 0
    %3249 = vmatprep.subr.bf16.mxu0 0
    %3250 = vmatpush1.bf16.msra.mxu0 0
    %3251 = vmatprep.subr.bf16.mxu0 0
    %3252 = vmatpush1.bf16.msra.mxu0 0
    %3253 = vmatprep.mubr.bf16.mxu0 0
    %3254 = vmatmul.mubr.bf16.gmra.mrb[0].mxu0 %v3219
    %v3255 = vpop.f32.mrb[0].mxu0
    %v3256 = vadd.f32 0.0, %v3255
    %v3257 = vpop.f32.mrb[0].mxu0
    %v3258 = vpop.f32.mrb[0].mxu0
    %v3259 = vpop.f32.mrb[0].mxu0
    %3260 = vdwg.mxu0
    %v3261 = vmax.f32 %v3256, -3.0
    %v3262 = vmin.f32 %v3261, 3.0
    %v3263 = vtanh.pop %v3208
    %3265 = vrot.lane.b32.xlu0 %v3263, 64
    %v3266 = vpop.permute.xlu0 %3265
    %v3268 = vmul.f32 %v3174, %v3266
    %v3269 = vpack.c.bf16 %v3268, %v3268
    %v3271 = vrot.slane %v3269, 1
    %v3273 = vsel %vm193, %v3271, 0
    %3275 = vmatprep.subr.bf16.mxu0 0
    %3276 = vmatpush1.bf16.msra.mxu0 %v1609
    %3277 = vmatprep.subr.bf16.mxu0 0
    %3278 = vmatpush1.bf16.msra.mxu0 %v1610
    %3279 = vmatprep.subr.bf16.mxu0 0
    %3280 = vmatpush1.bf16.msra.mxu0 %v1611
    %3281 = vmatprep.subr.bf16.mxu0 0
    %3282 = vmatpush1.bf16.msra.mxu0 %v1612
    %3283 = vmatprep.subr.bf16.mxu0 0
    %3284 = vmatpush1.bf16.msra.mxu0 0
    %3285 = vmatprep.subr.bf16.mxu0 0
    %3286 = vmatpush1.bf16.msra.mxu0 0
    %3287 = vmatprep.subr.bf16.mxu0 0
    %3288 = vmatpush1.bf16.msra.mxu0 0
    %3289 = vmatprep.subr.bf16.mxu0 0
    %3290 = vmatpush1.bf16.msra.mxu0 0
    %3291 = vmatprep.subr.bf16.mxu0 0
    %3292 = vmatpush1.bf16.msra.mxu0 0
    %3293 = vmatprep.subr.bf16.mxu0 0
    %3294 = vmatpush1.bf16.msra.mxu0 0
    %3295 = vmatprep.subr.bf16.mxu0 0
    %3296 = vmatpush1.bf16.msra.mxu0 0
    %3297 = vmatprep.subr.bf16.mxu0 0
    %3298 = vmatpush1.bf16.msra.mxu0 0
    %3299 = vmatprep.subr.bf16.mxu0 0
    %3300 = vmatpush1.bf16.msra.mxu0 0
    %3301 = vmatprep.subr.bf16.mxu0 0
    %3302 = vmatpush1.bf16.msra.mxu0 0
    %3303 = vmatprep.subr.bf16.mxu0 0
    %3304 = vmatpush1.bf16.msra.mxu0 0
    %3305 = vmatprep.subr.bf16.mxu0 0
    %3306 = vmatpush1.bf16.msra.mxu0 0
    %3307 = vmatprep.mubr.bf16.mxu0 0
    %3308 = vmatmul.mubr.bf16.gmra.mrb[0].mxu0 %v3273
    %v3309 = vpop.f32.mrb[0].mxu0
    %v3310 = vadd.f32 0.0, %v3309
    %v3311 = vpop.f32.mrb[0].mxu0
    %v3312 = vpop.f32.mrb[0].mxu0
    %v3313 = vpop.f32.mrb[0].mxu0
    %3314 = vdwg.mxu0
    %v3315 = vmax.f32 %v3310, -3.0
    %v3316 = vmin.f32 %v3315, 3.0
    %3317 = vst.msk [vmem:[%s1662 + $0xc] sm:$0x3] %vm1663, %v3262
    %3319 = vrot.lane.b32.xlu0 %v3316, 32
    %v3320 = vpop.permute.xlu0 %3319
    %3322 = vst.msk [vmem:[%s1662 + $0x2] sm:$0x3] %vm1669, %v3320
    %v3323 = vpack.c.bf16 %v3262, %v3262
    %v3325 = vsel %vm564, %v3323, 0
    %3327 = vmatprep.subr.bf16.mxu0 %v1334
    %3328 = vmatpush1.bf16.msra.mxu0 %v1333
    %3329 = vmatprep.subr.bf16.mxu0 %v1336
    %3330 = vmatpush1.bf16.msra.mxu0 %v1335
    %3331 = vmatprep.subr.bf16.mxu0 0
    %3332 = vmatpush1.bf16.msra.mxu0 0
    %3333 = vmatprep.subr.bf16.mxu0 0
    %3334 = vmatpush1.bf16.msra.mxu0 0
    %3335 = vmatprep.subr.bf16.mxu0 0
    %3336 = vmatpush1.bf16.msra.mxu0 0
    %3337 = vmatprep.subr.bf16.mxu0 0
    %3338 = vmatpush1.bf16.msra.mxu0 0
    %3339 = vmatprep.subr.bf16.mxu0 0
    %3340 = vmatpush1.bf16.msra.mxu0 0
    %3341 = vmatprep.subr.bf16.mxu0 0
    %3342 = vmatpush1.bf16.msra.mxu0 0
    %3343 = vmatprep.subr.bf16.mxu0 0
    %3344 = vmatpush1.bf16.msra.mxu0 0
    %3345 = vmatprep.subr.bf16.mxu0 0
    %3346 = vmatpush1.bf16.msra.mxu0 0
    %3347 = vmatprep.subr.bf16.mxu0 0
    %3348 = vmatpush1.bf16.msra.mxu0 0
    %3349 = vmatprep.subr.bf16.mxu0 0
    %3350 = vmatpush1.bf16.msra.mxu0 0
    %3351 = vmatprep.subr.bf16.mxu0 0
    %3352 = vmatpush1.bf16.msra.mxu0 0
    %3353 = vmatprep.subr.bf16.mxu0 0
    %3354 = vmatpush1.bf16.msra.mxu0 0
    %3355 = vmatprep.subr.bf16.mxu0 0
    %3356 = vmatpush1.bf16.msra.mxu0 0
    %3357 = vmatprep.subr.bf16.mxu0 0
    %3358 = vmatpush1.bf16.msra.mxu0 0
    %3359 = vmatprep.mubr.bf16.mxu0 0
    %3360 = vmatmul.mubr.bf16.gmra.mrb[0].mxu0 %v3325
    %v3361 = vpop.f32.mrb[0].mxu0
    %v3362 = vadd.f32 0.0, %v3361
    %v3363 = vpop.f32.mrb[0].mxu0
    %v3364 = vadd.f32 0.0, %v3363
    %v3365 = vpop.f32.mrb[0].mxu0
    %v3366 = vpop.f32.mrb[0].mxu0
    %3367 = vdwg.mxu0
    %v3370 = vrot.slane %v3362, 2
    %v3371 = vrot.slane %v3364, 2
    %v3374 = vadd.f32 %v1235, %v3370
    %v3375 = vadd.f32 %v1237, %v3371
    %v3376 = vpack.c.bf16 %v3316, %v3316
    %v3378 = vsel %vm564, %v3376, 0
    %3380 = vmatprep.subr.bf16.mxu0 %v1400
    %3381 = vmatpush1.bf16.msra.mxu0 %v1399
    %3382 = vmatprep.subr.bf16.mxu0 %v1402
    %3383 = vmatpush1.bf16.msra.mxu0 %v1401
    %3384 = vmatprep.subr.bf16.mxu0 0
    %3385 = vmatpush1.bf16.msra.mxu0 0
    %3386 = vmatprep.subr.bf16.mxu0 0
    %3387 = vmatpush1.bf16.msra.mxu0 0
    %3388 = vmatprep.subr.bf16.mxu0 0
    %3389 = vmatpush1.bf16.msra.mxu0 0
    %3390 = vmatprep.subr.bf16.mxu0 0
    %3391 = vmatpush1.bf16.msra.mxu0 0
    %3392 = vmatprep.subr.bf16.mxu0 0
    %3393 = vmatpush1.bf16.msra.mxu0 0
    %3394 = vmatprep.subr.bf16.mxu0 0
    %3395 = vmatpush1.bf16.msra.mxu0 0
    %3396 = vmatprep.subr.bf16.mxu0 0
    %3397 = vmatpush1.bf16.msra.mxu0 0
    %3398 = vmatprep.subr.bf16.mxu0 0
    %3399 = vmatpush1.bf16.msra.mxu0 0
    %3400 = vmatprep.subr.bf16.mxu0 0
    %3401 = vmatpush1.bf16.msra.mxu0 0
    %3402 = vmatprep.subr.bf16.mxu0 0
    %3403 = vmatpush1.bf16.msra.mxu0 0
    %3404 = vmatprep.subr.bf16.mxu0 0
    %3405 = vmatpush1.bf16.msra.mxu0 0
    %3406 = vmatprep.subr.bf16.mxu0 0
    %3407 = vmatpush1.bf16.msra.mxu0 0
    %3408 = vmatprep.subr.bf16.mxu0 0
    %3409 = vmatpush1.bf16.msra.mxu0 0
    %3410 = vmatprep.subr.bf16.mxu0 0
    %3411 = vmatpush1.bf16.msra.mxu0 0
    %3412 = vmatprep.mubr.bf16.mxu0 0
    %3413 = vmatmul.mubr.bf16.gmra.mrb[0].mxu0 %v3378
    %v3414 = vpop.f32.mrb[0].mxu0
    %v3415 = vadd.f32 0.0, %v3414
    %v3416 = vpop.f32.mrb[0].mxu0
    %v3417 = vadd.f32 0.0, %v3416
    %v3418 = vpop.f32.mrb[0].mxu0
    %v3419 = vpop.f32.mrb[0].mxu0
    %3420 = vdwg.mxu0
    %v3421 = vadd.f32 %v1313, %v3415
    %v3422 = vadd.f32 %v1315, %v3417
    %v3423 = vxor.u32 %v3374, 2147483648
    %v3424 = vxor.u32 %v3375, 2147483648
    %v3425 = vmul.f32 %v3423, 1.442695
    %v3426 = vpow.pop %v3425
    %v3427 = vmul.f32 %v3424, 1.442695
    %v3428 = vpow.pop %v3427
    %v3429 = vadd.f32 %v3426, 1.0
    %v3430 = vadd.f32 %v3428, 1.0
    %v3431 = vrcp.pop %v3429
    %v3432 = vmul.f32 1.0, %v3431
    %v3433 = vrcp.pop %v3430
    %v3434 = vmul.f32 1.0, %v3433
    %v3435 = vxor.u32 %v3421, 2147483648
    %v3436 = vxor.u32 %v3422, 2147483648
    %v3437 = vmul.f32 %v3435, 1.442695
    %v3438 = vpow.pop %v3437
    %v3439 = vmul.f32 %v3436, 1.442695
    %v3440 = vpow.pop %v3439
    %v3441 = vadd.f32 %v3438, 1.0
    %v3442 = vadd.f32 %v3440, 1.0
    %v3443 = vrcp.pop %v3441
    %v3444 = vmul.f32 1.0, %v3443
    %v3445 = vrcp.pop %v3442
    %v3446 = vmul.f32 1.0, %v3445
    %v3447 = vtanh.pop %v3375
    %v3448 = vtanh.pop %v3422
    %v3450 = vrot.slane %v3192, 6
    %v3452 = vmul.f32 %v3432, %v3450
    %3454 = vrot.lane.b32.xlu0 %v3447, 64
    %v3455 = vpop.permute.xlu0 %3454
    %v3457 = vmul.f32 %v3432, %v3455
    %3459 = vrot.lane.b32.xlu0 %v3457, 64
    %v3460 = vpop.permute.xlu0 %3459
    %v3462 = vadd.f32 %v3452, %v3460
    %v3463 = vmax.f32 %v3462, -3.0
    %v3464 = vmin.f32 %v3463, 3.0
    %v3466 = vrot.slane %v3208, 2
    %v3468 = vmul.f32 %v3444, %v3466
    %3470 = vrot.lane.b32.xlu0 %v3448, 64
    %v3471 = vpop.permute.xlu0 %3470
    %v3473 = vmul.f32 %v3444, %v3471
    %3475 = vrot.lane.b32.xlu0 %v3473, 64
    %v3476 = vpop.permute.xlu0 %3475
    %v3478 = vadd.f32 %v3468, %v3476
    %v3479 = vmax.f32 %v3478, -3.0
    %v3480 = vmin.f32 %v3479, 3.0
    %v3481 = vtanh.pop %v3464
    %3483 = vrot.lane.b32.xlu0 %v3481, 64
    %v3484 = vpop.permute.xlu0 %3483
    %v3486 = vmul.f32 %v3434, %v3484
    %v3487 = vpack.c.bf16 %v3486, %v3486
    %v3489 = vrot.slane %v3487, 3
    %v3491 = vsel %vm193, %v3489, 0
    %3493 = vmatprep.subr.bf16.mxu0 0
    %3494 = vmatpush1.bf16.msra.mxu0 %v1531
    %3495 = vmatprep.subr.bf16.mxu0 0
    %3496 = vmatpush1.bf16.msra.mxu0 %v1532
    %3497 = vmatprep.subr.bf16.mxu0 0
    %3498 = vmatpush1.bf16.msra.mxu0 %v1533
    %3499 = vmatprep.subr.bf16.mxu0 0
    %3500 = vmatpush1.bf16.msra.mxu0 %v1534
    %3501 = vmatprep.subr.bf16.mxu0 0
    %3502 = vmatpush1.bf16.msra.mxu0 0
    %3503 = vmatprep.subr.bf16.mxu0 0
    %3504 = vmatpush1.bf16.msra.mxu0 0
    %3505 = vmatprep.subr.bf16.mxu0 0
    %3506 = vmatpush1.bf16.msra.mxu0 0
    %3507 = vmatprep.subr.bf16.mxu0 0
    %3508 = vmatpush1.bf16.msra.mxu0 0
    %3509 = vmatprep.subr.bf16.mxu0 0
    %3510 = vmatpush1.bf16.msra.mxu0 0
    %3511 = vmatprep.subr.bf16.mxu0 0
    %3512 = vmatpush1.bf16.msra.mxu0 0
    %3513 = vmatprep.subr.bf16.mxu0 0
    %3514 = vmatpush1.bf16.msra.mxu0 0
    %3515 = vmatprep.subr.bf16.mxu0 0
    %3516 = vmatpush1.bf16.msra.mxu0 0
    %3517 = vmatprep.subr.bf16.mxu0 0
    %3518 = vmatpush1.bf16.msra.mxu0 0
    %3519 = vmatprep.subr.bf16.mxu0 0
    %3520 = vmatpush1.bf16.msra.mxu0 0
    %3521 = vmatprep.subr.bf16.mxu0 0
    %3522 = vmatpush1.bf16.msra.mxu0 0
    %3523 = vmatprep.subr.bf16.mxu0 0
    %3524 = vmatpush1.bf16.msra.mxu0 0
    %3525 = vmatprep.mubr.bf16.mxu0 0
    %3526 = vmatmul.mubr.bf16.gmra.mrb[0].mxu0 %v3491
    %v3527 = vpop.f32.mrb[0].mxu0
    %v3528 = vadd.f32 0.0, %v3527
    %v3529 = vpop.f32.mrb[0].mxu0
    %v3530 = vpop.f32.mrb[0].mxu0
    %v3531 = vpop.f32.mrb[0].mxu0
    %3532 = vdwg.mxu0
    %v3533 = vmax.f32 %v3528, -3.0
    %v3534 = vmin.f32 %v3533, 3.0
    %v3535 = vtanh.pop %v3480
    %3537 = vrot.lane.b32.xlu0 %v3535, 64
    %v3538 = vpop.permute.xlu0 %3537
    %v3540 = vmul.f32 %v3446, %v3538
    %v3541 = vpack.c.bf16 %v3540, %v3540
    %v3543 = vsel %vm193, %v3541, 0
    %3545 = vmatprep.subr.bf16.mxu0 0
    %3546 = vmatpush1.bf16.msra.mxu0 %v1609
    %3547 = vmatprep.subr.bf16.mxu0 0
    %3548 = vmatpush1.bf16.msra.mxu0 %v1610
    %3549 = vmatprep.subr.bf16.mxu0 0
    %3550 = vmatpush1.bf16.msra.mxu0 %v1611
    %3551 = vmatprep.subr.bf16.mxu0 0
    %3552 = vmatpush1.bf16.msra.mxu0 %v1612
    %3553 = vmatprep.subr.bf16.mxu0 0
    %3554 = vmatpush1.bf16.msra.mxu0 0
    %3555 = vmatprep.subr.bf16.mxu0 0
    %3556 = vmatpush1.bf16.msra.mxu0 0
    %3557 = vmatprep.subr.bf16.mxu0 0
    %3558 = vmatpush1.bf16.msra.mxu0 0
    %3559 = vmatprep.subr.bf16.mxu0 0
    %3560 = vmatpush1.bf16.msra.mxu0 0
    %3561 = vmatprep.subr.bf16.mxu0 0
    %3562 = vmatpush1.bf16.msra.mxu0 0
    %3563 = vmatprep.subr.bf16.mxu0 0
    %3564 = vmatpush1.bf16.msra.mxu0 0
    %3565 = vmatprep.subr.bf16.mxu0 0
    %3566 = vmatpush1.bf16.msra.mxu0 0
    %3567 = vmatprep.subr.bf16.mxu0 0
    %3568 = vmatpush1.bf16.msra.mxu0 0
    %3569 = vmatprep.subr.bf16.mxu0 0
    %3570 = vmatpush1.bf16.msra.mxu0 0
    %3571 = vmatprep.subr.bf16.mxu0 0
    %3572 = vmatpush1.bf16.msra.mxu0 0
    %3573 = vmatprep.subr.bf16.mxu0 0
    %3574 = vmatpush1.bf16.msra.mxu0 0
    %3575 = vmatprep.subr.bf16.mxu0 0
    %3576 = vmatpush1.bf16.msra.mxu0 0
    %3577 = vmatprep.mubr.bf16.mxu0 0
    %3578 = vmatmul.mubr.bf16.gmra.mrb[0].mxu0 %v3543
    %v3579 = vpop.f32.mrb[0].mxu0
    %v3580 = vadd.f32 0.0, %v3579
    %v3581 = vpop.f32.mrb[0].mxu0
    %v3582 = vpop.f32.mrb[0].mxu0
    %v3583 = vpop.f32.mrb[0].mxu0
    %3584 = vdwg.mxu0
    %v3585 = vmax.f32 %v3580, -3.0
    %v3586 = vmin.f32 %v3585, 3.0
    %3587 = vst.msk [vmem:[%s1662 + $0xe] sm:$0x3] %vm1663, %v3534
    %3589 = vrot.lane.b32.xlu0 %v3586, 32
    %v3590 = vpop.permute.xlu0 %3589
    %3592 = vst.msk [vmem:[%s1662] sm:$0x3] %vm1669, %v3590
    %s3593 = scalar_lea.vmem %s8, 128
    %v3594 = vld [vmem:[%s3593] sm:$0xff]
    %v3595 = vld [vmem:[%s3593 + $0x8] sm:$0xff]
    %v3596 = vld [vmem:[%s3593 + $0x10] sm:$0xff]
    %v3597 = vld [vmem:[%s3593 + $0x18] sm:$0xff]
    %v3598 = vld [vmem:[%s3593 + $0x20] sm:$0xff]
    %v3599 = vld [vmem:[%s3593 + $0x28] sm:$0xff]
    %v3600 = vld [vmem:[%s3593 + $0x30] sm:$0xff]
    %v3601 = vld [vmem:[%s3593 + $0x38] sm:$0xff]
    %s3602 = scalar_lea.vmem %s8, 192
    %v3603 = vld [vmem:[%s3602] sm:$0xff]
    %v3604 = vld [vmem:[%s3602 + $0x8] sm:$0xff]
    %v3605 = vld [vmem:[%s3602 + $0x10] sm:$0xff]
    %v3606 = vld [vmem:[%s3602 + $0x18] sm:$0xff]
    %v3607 = vld [vmem:[%s3602 + $0x20] sm:$0xff]
    %v3608 = vld [vmem:[%s3602 + $0x28] sm:$0xff]
    %v3609 = vld [vmem:[%s3602 + $0x30] sm:$0xff]
    %v3610 = vld [vmem:[%s3602 + $0x38] sm:$0xff]
    %s3611 = scalar_lea.vmem %s10, 64
    %v3612 = vld [vmem:[%s3611] sm:$0xf]
    %v3613 = vld [vmem:[%s3611 + $0x4] sm:$0xf]
    %v3614 = vld [vmem:[%s3611 + $0x8] sm:$0xf]
    %v3615 = vld [vmem:[%s3611 + $0xc] sm:$0xf]
    %v3616 = vld [vmem:[%s3611 + $0x10] sm:$0xf]
    %v3617 = vld [vmem:[%s3611 + $0x14] sm:$0xf]
    %v3618 = vld [vmem:[%s3611 + $0x18] sm:$0xf]
    %v3619 = vld [vmem:[%s3611 + $0x1c] sm:$0xf]
    %s3620 = scalar_lea.vmem %s10, 96
    %v3621 = vld [vmem:[%s3620] sm:$0xf]
    %v3622 = vld [vmem:[%s3620 + $0x4] sm:$0xf]
    %v3623 = vld [vmem:[%s3620 + $0x8] sm:$0xf]
    %v3624 = vld [vmem:[%s3620 + $0xc] sm:$0xf]
    %v3625 = vld [vmem:[%s3620 + $0x10] sm:$0xf]
    %v3626 = vld [vmem:[%s3620 + $0x14] sm:$0xf]
    %v3627 = vld [vmem:[%s3620 + $0x18] sm:$0xf]
    %v3628 = vld [vmem:[%s3620 + $0x1c] sm:$0xf]
    %v3629 = vld [vmem:[%s1662] sm:$0xff]
    %v3630 = vld [vmem:[%s1662 + $0x8] sm:$0xff]
    %v3631 = vpack.c.bf16 %v3630, %v3629
    %s3632 = scalar_lea.vmem %s9, 4
    %v3633 = vld [vmem:[%s3632] sm:$0x3]
    %v3635 = vlaneseq
    %v3636 = vshrl.u32 %v3635, 7
    %v3637 = vsub.s32 0, %v3636
    %v3638 = vrot.slane %v3633, %v3637
    %v3639 = vlaneseq
    %v3640 = vshrl.u32 %v3639, 7
    %v3641 = vsub.s32 1, %v3640
    %v3642 = vrot.slane %v3633, %v3641
    %v3649 = vunpack.c.l.b16 %v3594
    %v3650 = vunpack.c.h.b16 %v3594
    %v3651 = vunpack.c.l.b16 %v3595
    %v3652 = vunpack.c.h.b16 %v3595
    %v3653 = vunpack.c.l.b16 %v3596
    %v3654 = vunpack.c.h.b16 %v3596
    %v3655 = vunpack.c.l.b16 %v3597
    %v3656 = vunpack.c.h.b16 %v3597
    %v3657 = vpack.c.b16 %v3651, %v3649
    %v3658 = vpack.c.b16 %v3652, %v3650
    %v3659 = vpack.c.b16 %v3655, %v3653
    %v3660 = vpack.c.b16 %v3656, %v3654
    %v3666 = vsel %vm564, %v3631, 0
    %3668 = vmatprep.subr.bf16.mxu0 %v3658
    %3669 = vmatpush1.bf16.msra.mxu0 %v3657
    %3670 = vmatprep.subr.bf16.mxu0 %v3660
    %3671 = vmatpush1.bf16.msra.mxu0 %v3659
    %3672 = vmatprep.subr.bf16.mxu0 0
    %3673 = vmatpush1.bf16.msra.mxu0 0
    %3674 = vmatprep.subr.bf16.mxu0 0
    %3675 = vmatpush1.bf16.msra.mxu0 0
    %3676 = vmatprep.subr.bf16.mxu0 0
    %3677 = vmatpush1.bf16.msra.mxu0 0
    %3678 = vmatprep.subr.bf16.mxu0 0
    %3679 = vmatpush1.bf16.msra.mxu0 0
    %3680 = vmatprep.subr.bf16.mxu0 0
    %3681 = vmatpush1.bf16.msra.mxu0 0
    %3682 = vmatprep.subr.bf16.mxu0 0
    %3683 = vmatpush1.bf16.msra.mxu0 0
    %3684 = vmatprep.subr.bf16.mxu0 0
    %3685 = vmatpush1.bf16.msra.mxu0 0
    %3686 = vmatprep.subr.bf16.mxu0 0
    %3687 = vmatpush1.bf16.msra.mxu0 0
    %3688 = vmatprep.subr.bf16.mxu0 0
    %3689 = vmatpush1.bf16.msra.mxu0 0
    %3690 = vmatprep.subr.bf16.mxu0 0
    %3691 = vmatpush1.bf16.msra.mxu0 0
    %3692 = vmatprep.subr.bf16.mxu0 0
    %3693 = vmatpush1.bf16.msra.mxu0 0
    %3694 = vmatprep.subr.bf16.mxu0 0
    %3695 = vmatpush1.bf16.msra.mxu0 0
    %3696 = vmatprep.subr.bf16.mxu0 0
    %3697 = vmatpush1.bf16.msra.mxu0 0
    %3698 = vmatprep.subr.bf16.mxu0 0
    %3699 = vmatpush1.bf16.msra.mxu0 0
    %3700 = vmatprep.mubr.bf16.mxu0 0
    %3701 = vmatmul.mubr.bf16.gmra.mrb[0].mxu0 %v3666
    %v3702 = vpop.f32.mrb[0].mxu0
    %v3703 = vadd.f32 %v3638, %v3702
    %v3704 = vpop.f32.mrb[0].mxu0
    %v3705 = vadd.f32 %v3642, %v3704
    %v3706 = vpop.f32.mrb[0].mxu0
    %v3707 = vadd.f32 %v3638, %v3706
    %v3708 = vpop.f32.mrb[0].mxu0
    %v3709 = vadd.f32 %v3642, %v3708
    %3710 = vdwg.mxu0
    %s3711 = scalar_lea.vmem %s9, 6
    %v3712 = vld [vmem:[%s3711] sm:$0x3]
    %v3714 = vlaneseq
    %v3715 = vshrl.u32 %v3714, 7
    %v3716 = vsub.s32 0, %v3715
    %v3717 = vrot.slane %v3712, %v3716
    %v3718 = vlaneseq
    %v3719 = vshrl.u32 %v3718, 7
    %v3720 = vsub.s32 1, %v3719
    %v3721 = vrot.slane %v3712, %v3720
    %3725 = vrot.lane.b32.xlu0 %v3631, 96
    %v3726 = vpop.permute.xlu0 %3725
    %v3731 = vunpack.c.l.b16 %v3603
    %v3732 = vunpack.c.h.b16 %v3603
    %v3733 = vunpack.c.l.b16 %v3604
    %v3734 = vunpack.c.h.b16 %v3604
    %v3735 = vunpack.c.l.b16 %v3605
    %v3736 = vunpack.c.h.b16 %v3605
    %v3737 = vunpack.c.l.b16 %v3606
    %v3738 = vunpack.c.h.b16 %v3606
    %v3739 = vpack.c.b16 %v3733, %v3731
    %v3740 = vpack.c.b16 %v3734, %v3732
    %v3741 = vpack.c.b16 %v3737, %v3735
    %v3742 = vpack.c.b16 %v3738, %v3736
    %v3748 = vsel %vm564, %v3726, 0
    %3750 = vmatprep.subr.bf16.mxu0 %v3740
    %3751 = vmatpush1.bf16.msra.mxu0 %v3739
    %3752 = vmatprep.subr.bf16.mxu0 %v3742
    %3753 = vmatpush1.bf16.msra.mxu0 %v3741
    %3754 = vmatprep.subr.bf16.mxu0 0
    %3755 = vmatpush1.bf16.msra.mxu0 0
    %3756 = vmatprep.subr.bf16.mxu0 0
    %3757 = vmatpush1.bf16.msra.mxu0 0
    %3758 = vmatprep.subr.bf16.mxu0 0
    %3759 = vmatpush1.bf16.msra.mxu0 0
    %3760 = vmatprep.subr.bf16.mxu0 0
    %3761 = vmatpush1.bf16.msra.mxu0 0
    %3762 = vmatprep.subr.bf16.mxu0 0
    %3763 = vmatpush1.bf16.msra.mxu0 0
    %3764 = vmatprep.subr.bf16.mxu0 0
    %3765 = vmatpush1.bf16.msra.mxu0 0
    %3766 = vmatprep.subr.bf16.mxu0 0
    %3767 = vmatpush1.bf16.msra.mxu0 0
    %3768 = vmatprep.subr.bf16.mxu0 0
    %3769 = vmatpush1.bf16.msra.mxu0 0
    %3770 = vmatprep.subr.bf16.mxu0 0
    %3771 = vmatpush1.bf16.msra.mxu0 0
    %3772 = vmatprep.subr.bf16.mxu0 0
    %3773 = vmatpush1.bf16.msra.mxu0 0
    %3774 = vmatprep.subr.bf16.mxu0 0
    %3775 = vmatpush1.bf16.msra.mxu0 0
    %3776 = vmatprep.subr.bf16.mxu0 0
    %3777 = vmatpush1.bf16.msra.mxu0 0
    %3778 = vmatprep.subr.bf16.mxu0 0
    %3779 = vmatpush1.bf16.msra.mxu0 0
    %3780 = vmatprep.subr.bf16.mxu0 0
    %3781 = vmatpush1.bf16.msra.mxu0 0
    %3782 = vmatprep.mubr.bf16.mxu0 0
    %3783 = vmatmul.mubr.bf16.gmra.mrb[0].mxu0 %v3748
    %v3784 = vpop.f32.mrb[0].mxu0
    %v3785 = vadd.f32 %v3717, %v3784
    %v3786 = vpop.f32.mrb[0].mxu0
    %v3787 = vadd.f32 %v3721, %v3786
    %v3788 = vpop.f32.mrb[0].mxu0
    %v3789 = vadd.f32 %v3717, %v3788
    %v3790 = vpop.f32.mrb[0].mxu0
    %v3791 = vadd.f32 %v3721, %v3790
    %3792 = vdwg.mxu0
    %v3797 = vunpack.c.l.b16 %v3598
    %v3798 = vunpack.c.h.b16 %v3598
    %v3799 = vunpack.c.l.b16 %v3599
    %v3800 = vunpack.c.h.b16 %v3599
    %v3801 = vunpack.c.l.b16 %v3600
    %v3802 = vunpack.c.h.b16 %v3600
    %v3803 = vunpack.c.l.b16 %v3601
    %v3804 = vunpack.c.h.b16 %v3601
    %v3805 = vpack.c.b16 %v3799, %v3797
    %v3806 = vpack.c.b16 %v3800, %v3798
    %v3807 = vpack.c.b16 %v3803, %v3801
    %v3808 = vpack.c.b16 %v3804, %v3802
    %3813 = vmatprep.subr.bf16.mxu0 %v3806
    %3814 = vmatpush1.bf16.msra.mxu0 %v3805
    %3815 = vmatprep.subr.bf16.mxu0 %v3808
    %3816 = vmatpush1.bf16.msra.mxu0 %v3807
    %3817 = vmatprep.subr.bf16.mxu0 0
    %3818 = vmatpush1.bf16.msra.mxu0 0
    %3819 = vmatprep.subr.bf16.mxu0 0
    %3820 = vmatpush1.bf16.msra.mxu0 0
    %3821 = vmatprep.subr.bf16.mxu0 0
    %3822 = vmatpush1.bf16.msra.mxu0 0
    %3823 = vmatprep.subr.bf16.mxu0 0
    %3824 = vmatpush1.bf16.msra.mxu0 0
    %3825 = vmatprep.subr.bf16.mxu0 0
    %3826 = vmatpush1.bf16.msra.mxu0 0
    %3827 = vmatprep.subr.bf16.mxu0 0
    %3828 = vmatpush1.bf16.msra.mxu0 0
    %3829 = vmatprep.subr.bf16.mxu0 0
    %3830 = vmatpush1.bf16.msra.mxu0 0
    %3831 = vmatprep.subr.bf16.mxu0 0
    %3832 = vmatpush1.bf16.msra.mxu0 0
    %3833 = vmatprep.subr.bf16.mxu0 0
    %3834 = vmatpush1.bf16.msra.mxu0 0
    %3835 = vmatprep.subr.bf16.mxu0 0
    %3836 = vmatpush1.bf16.msra.mxu0 0
    %3837 = vmatprep.subr.bf16.mxu0 0
    %3838 = vmatpush1.bf16.msra.mxu0 0
    %3839 = vmatprep.subr.bf16.mxu0 0
    %3840 = vmatpush1.bf16.msra.mxu0 0
    %3841 = vmatprep.subr.bf16.mxu0 0
    %3842 = vmatpush1.bf16.msra.mxu0 0
    %3843 = vmatprep.subr.bf16.mxu0 0
    %3844 = vmatpush1.bf16.msra.mxu0 0
    %3845 = vmatprep.mubr.bf16.mxu0 0
    %3846 = vmatmul.mubr.bf16.gmra.mrb[0].mxu0 %v1342
    %v3847 = vpop.f32.mrb[0].mxu0
    %v3848 = vadd.f32 0.0, %v3847
    %v3849 = vpop.f32.mrb[0].mxu0
    %v3850 = vadd.f32 0.0, %v3849
    %v3851 = vpop.f32.mrb[0].mxu0
    %v3852 = vpop.f32.mrb[0].mxu0
    %3853 = vdwg.mxu0
    %v3854 = vadd.f32 %v3703, %v3848
    %v3855 = vadd.f32 %v3705, %v3850
    %v3860 = vunpack.c.l.b16 %v3607
    %v3861 = vunpack.c.h.b16 %v3607
    %v3862 = vunpack.c.l.b16 %v3608
    %v3863 = vunpack.c.h.b16 %v3608
    %v3864 = vunpack.c.l.b16 %v3609
    %v3865 = vunpack.c.h.b16 %v3609
    %v3866 = vunpack.c.l.b16 %v3610
    %v3867 = vunpack.c.h.b16 %v3610
    %v3868 = vpack.c.b16 %v3862, %v3860
    %v3869 = vpack.c.b16 %v3863, %v3861
    %v3870 = vpack.c.b16 %v3866, %v3864
    %v3871 = vpack.c.b16 %v3867, %v3865
    %3876 = vmatprep.subr.bf16.mxu0 %v3869
    %3877 = vmatpush1.bf16.msra.mxu0 %v3868
    %3878 = vmatprep.subr.bf16.mxu0 %v3871
    %3879 = vmatpush1.bf16.msra.mxu0 %v3870
    %3880 = vmatprep.subr.bf16.mxu0 0
    %3881 = vmatpush1.bf16.msra.mxu0 0
    %3882 = vmatprep.subr.bf16.mxu0 0
    %3883 = vmatpush1.bf16.msra.mxu0 0
    %3884 = vmatprep.subr.bf16.mxu0 0
    %3885 = vmatpush1.bf16.msra.mxu0 0
    %3886 = vmatprep.subr.bf16.mxu0 0
    %3887 = vmatpush1.bf16.msra.mxu0 0
    %3888 = vmatprep.subr.bf16.mxu0 0
    %3889 = vmatpush1.bf16.msra.mxu0 0
    %3890 = vmatprep.subr.bf16.mxu0 0
    %3891 = vmatpush1.bf16.msra.mxu0 0
    %3892 = vmatprep.subr.bf16.mxu0 0
    %3893 = vmatpush1.bf16.msra.mxu0 0
    %3894 = vmatprep.subr.bf16.mxu0 0
    %3895 = vmatpush1.bf16.msra.mxu0 0
    %3896 = vmatprep.subr.bf16.mxu0 0
    %3897 = vmatpush1.bf16.msra.mxu0 0
    %3898 = vmatprep.subr.bf16.mxu0 0
    %3899 = vmatpush1.bf16.msra.mxu0 0
    %3900 = vmatprep.subr.bf16.mxu0 0
    %3901 = vmatpush1.bf16.msra.mxu0 0
    %3902 = vmatprep.subr.bf16.mxu0 0
    %3903 = vmatpush1.bf16.msra.mxu0 0
    %3904 = vmatprep.subr.bf16.mxu0 0
    %3905 = vmatpush1.bf16.msra.mxu0 0
    %3906 = vmatprep.subr.bf16.mxu0 0
    %3907 = vmatpush1.bf16.msra.mxu0 0
    %3908 = vmatprep.mubr.bf16.mxu0 0
    %3909 = vmatmul.mubr.bf16.gmra.mrb[0].mxu0 %v1342
    %v3910 = vpop.f32.mrb[0].mxu0
    %v3911 = vadd.f32 0.0, %v3910
    %v3912 = vpop.f32.mrb[0].mxu0
    %v3913 = vadd.f32 0.0, %v3912
    %v3914 = vpop.f32.mrb[0].mxu0
    %v3915 = vpop.f32.mrb[0].mxu0
    %3916 = vdwg.mxu0
    %v3919 = vrot.slane %v3911, 2
    %v3920 = vrot.slane %v3913, 2
    %v3923 = vadd.f32 %v3789, %v3919
    %v3924 = vadd.f32 %v3791, %v3920
    %v3925 = vxor.u32 %v3854, 2147483648
    %v3926 = vxor.u32 %v3855, 2147483648
    %v3927 = vmul.f32 %v3925, 1.442695
    %v3928 = vpow.pop %v3927
    %v3929 = vmul.f32 %v3926, 1.442695
    %v3930 = vpow.pop %v3929
    %v3931 = vadd.f32 %v3928, 1.0
    %v3932 = vadd.f32 %v3930, 1.0
    %v3933 = vrcp.pop %v3931
    %v3934 = vmul.f32 1.0, %v3933
    %v3935 = vrcp.pop %v3932
    %v3936 = vmul.f32 1.0, %v3935
    %v3937 = vxor.u32 %v3923, 2147483648
    %v3938 = vxor.u32 %v3924, 2147483648
    %v3939 = vmul.f32 %v3937, 1.442695
    %v3940 = vpow.pop %v3939
    %v3941 = vmul.f32 %v3938, 1.442695
    %v3942 = vpow.pop %v3941
    %v3943 = vadd.f32 %v3940, 1.0
    %v3944 = vadd.f32 %v3942, 1.0
    %v3945 = vrcp.pop %v3943
    %v3946 = vmul.f32 1.0, %v3945
    %v3947 = vrcp.pop %v3944
    %v3948 = vmul.f32 1.0, %v3947
    %v3949 = vtanh.pop %v3855
    %v3950 = vtanh.pop %v3924
    %v3951 = vmul.f32 %v3934, 0.0
    %3953 = vrot.lane.b32.xlu0 %v3949, 64
    %v3954 = vpop.permute.xlu0 %3953
    %v3956 = vmul.f32 %v3934, %v3954
    %3958 = vrot.lane.b32.xlu0 %v3956, 64
    %v3959 = vpop.permute.xlu0 %3958
    %v3961 = vadd.f32 %v3951, %v3959
    %v3962 = vmax.f32 %v3961, -3.0
    %v3963 = vmin.f32 %v3962, 3.0
    %v3964 = vmul.f32 %v3946, 0.0
    %3966 = vrot.lane.b32.xlu0 %v3950, 64
    %v3967 = vpop.permute.xlu0 %3966
    %v3969 = vmul.f32 %v3946, %v3967
    %3971 = vrot.lane.b32.xlu0 %v3969, 64
    %v3972 = vpop.permute.xlu0 %3971
    %v3974 = vadd.f32 %v3964, %v3972
    %v3975 = vmax.f32 %v3974, -3.0
    %v3976 = vmin.f32 %v3975, 3.0
    %v3977 = vtanh.pop %v3963
    %3979 = vrot.lane.b32.xlu0 %v3977, 64
    %v3980 = vpop.permute.xlu0 %3979
    %v3982 = vmul.f32 %v3936, %v3980
    %v3983 = vpack.c.bf16 %v3982, %v3982
    %v3992 = vunpack.c.l.b16 %v3612
    %v3993 = vunpack.c.l.b16 %v3613
    %v3994 = vunpack.c.l.b16 %v3614
    %v3995 = vunpack.c.l.b16 %v3615
    %v3996 = vunpack.c.l.b16 %v3616
    %v3997 = vunpack.c.l.b16 %v3617
    %v3998 = vunpack.c.l.b16 %v3618
    %v3999 = vunpack.c.l.b16 %v3619
    %v4000 = vpack.c.b16 %v3993, %v3992
    %v4001 = vpack.c.b16 %v3995, %v3994
    %v4002 = vpack.c.b16 %v3997, %v3996
    %v4003 = vpack.c.b16 %v3999, %v3998
    %v4009 = vsel %vm193, %v3983, 0
    %4011 = vmatprep.subr.bf16.mxu0 0
    %4012 = vmatpush1.bf16.msra.mxu0 %v4000
    %4013 = vmatprep.subr.bf16.mxu0 0
    %4014 = vmatpush1.bf16.msra.mxu0 %v4001
    %4015 = vmatprep.subr.bf16.mxu0 0
    %4016 = vmatpush1.bf16.msra.mxu0 %v4002
    %4017 = vmatprep.subr.bf16.mxu0 0
    %4018 = vmatpush1.bf16.msra.mxu0 %v4003
    %4019 = vmatprep.subr.bf16.mxu0 0
    %4020 = vmatpush1.bf16.msra.mxu0 0
    %4021 = vmatprep.subr.bf16.mxu0 0
    %4022 = vmatpush1.bf16.msra.mxu0 0
    %4023 = vmatprep.subr.bf16.mxu0 0
    %4024 = vmatpush1.bf16.msra.mxu0 0
    %4025 = vmatprep.subr.bf16.mxu0 0
    %4026 = vmatpush1.bf16.msra.mxu0 0
    %4027 = vmatprep.subr.bf16.mxu0 0
    %4028 = vmatpush1.bf16.msra.mxu0 0
    %4029 = vmatprep.subr.bf16.mxu0 0
    %4030 = vmatpush1.bf16.msra.mxu0 0
    %4031 = vmatprep.subr.bf16.mxu0 0
    %4032 = vmatpush1.bf16.msra.mxu0 0
    %4033 = vmatprep.subr.bf16.mxu0 0
    %4034 = vmatpush1.bf16.msra.mxu0 0
    %4035 = vmatprep.subr.bf16.mxu0 0
    %4036 = vmatpush1.bf16.msra.mxu0 0
    %4037 = vmatprep.subr.bf16.mxu0 0
    %4038 = vmatpush1.bf16.msra.mxu0 0
    %4039 = vmatprep.subr.bf16.mxu0 0
    %4040 = vmatpush1.bf16.msra.mxu0 0
    %4041 = vmatprep.subr.bf16.mxu0 0
    %4042 = vmatpush1.bf16.msra.mxu0 0
    %4043 = vmatprep.mubr.bf16.mxu0 0
    %4044 = vmatmul.mubr.bf16.gmra.mrb[0].mxu0 %v4009
    %v4045 = vpop.f32.mrb[0].mxu0
    %v4046 = vadd.f32 0.0, %v4045
    %v4047 = vpop.f32.mrb[0].mxu0
    %v4048 = vpop.f32.mrb[0].mxu0
    %v4049 = vpop.f32.mrb[0].mxu0
    %4050 = vdwg.mxu0
    %v4051 = vmax.f32 %v4046, -3.0
    %v4052 = vmin.f32 %v4051, 3.0
    %v4053 = vtanh.pop %v3976
    %4055 = vrot.lane.b32.xlu0 %v4053, 64
    %v4056 = vpop.permute.xlu0 %4055
    %v4058 = vmul.f32 %v3948, %v4056
    %v4059 = vpack.c.bf16 %v4058, %v4058
    %v4061 = vrot.slane %v4059, 3
    %v4070 = vunpack.c.l.b16 %v3621
    %v4071 = vunpack.c.l.b16 %v3622
    %v4072 = vunpack.c.l.b16 %v3623
    %v4073 = vunpack.c.l.b16 %v3624
    %v4074 = vunpack.c.l.b16 %v3625
    %v4075 = vunpack.c.l.b16 %v3626
    %v4076 = vunpack.c.l.b16 %v3627
    %v4077 = vunpack.c.l.b16 %v3628
    %v4078 = vpack.c.b16 %v4071, %v4070
    %v4079 = vpack.c.b16 %v4073, %v4072
    %v4080 = vpack.c.b16 %v4075, %v4074
    %v4081 = vpack.c.b16 %v4077, %v4076
    %v4087 = vsel %vm193, %v4061, 0
    %4089 = vmatprep.subr.bf16.mxu0 0
    %4090 = vmatpush1.bf16.msra.mxu0 %v4078
    %4091 = vmatprep.subr.bf16.mxu0 0
    %4092 = vmatpush1.bf16.msra.mxu0 %v4079
    %4093 = vmatprep.subr.bf16.mxu0 0
    %4094 = vmatpush1.bf16.msra.mxu0 %v4080
    %4095 = vmatprep.subr.bf16.mxu0 0
    %4096 = vmatpush1.bf16.msra.mxu0 %v4081
    %4097 = vmatprep.subr.bf16.mxu0 0
    %4098 = vmatpush1.bf16.msra.mxu0 0
    %4099 = vmatprep.subr.bf16.mxu0 0
    %4100 = vmatpush1.bf16.msra.mxu0 0
    %4101 = vmatprep.subr.bf16.mxu0 0
    %4102 = vmatpush1.bf16.msra.mxu0 0
    %4103 = vmatprep.subr.bf16.mxu0 0
    %4104 = vmatpush1.bf16.msra.mxu0 0
    %4105 = vmatprep.subr.bf16.mxu0 0
    %4106 = vmatpush1.bf16.msra.mxu0 0
    %4107 = vmatprep.subr.bf16.mxu0 0
    %4108 = vmatpush1.bf16.msra.mxu0 0
    %4109 = vmatprep.subr.bf16.mxu0 0
    %4110 = vmatpush1.bf16.msra.mxu0 0
    %4111 = vmatprep.subr.bf16.mxu0 0
    %4112 = vmatpush1.bf16.msra.mxu0 0
    %4113 = vmatprep.subr.bf16.mxu0 0
    %4114 = vmatpush1.bf16.msra.mxu0 0
    %4115 = vmatprep.subr.bf16.mxu0 0
    %4116 = vmatpush1.bf16.msra.mxu0 0
    %4117 = vmatprep.subr.bf16.mxu0 0
    %4118 = vmatpush1.bf16.msra.mxu0 0
    %4119 = vmatprep.subr.bf16.mxu0 0
    %4120 = vmatpush1.bf16.msra.mxu0 0
    %4121 = vmatprep.mubr.bf16.mxu0 0
    %4122 = vmatmul.mubr.bf16.gmra.mrb[0].mxu0 %v4087
    %v4123 = vpop.f32.mrb[0].mxu0
    %v4124 = vadd.f32 0.0, %v4123
    %v4125 = vpop.f32.mrb[0].mxu0
    %v4126 = vpop.f32.mrb[0].mxu0
    %v4127 = vpop.f32.mrb[0].mxu0
    %4128 = vdwg.mxu0
    %v4129 = vmax.f32 %v4124, -3.0
    %v4130 = vmin.f32 %v4129, 3.0
    %s4131 = scalar_lea.vmem [#allocation2], 32
    %4132 = vst.msk [vmem:[%s4131] sm:$0x3] %vm1663, %v4052
    %4134 = vrot.lane.b32.xlu0 %v4130, 32
    %v4135 = vpop.permute.xlu0 %4134
    %4137 = vst.msk [vmem:[%s4131 + $0xe] sm:$0x3] %vm1669, %v4135
    %v4138 = vpack.c.bf16 %v4052, %v4052
    %v4140 = vsel %vm564, %v4138, 0
    %4142 = vmatprep.subr.bf16.mxu0 %v3806
    %4143 = vmatpush1.bf16.msra.mxu0 %v3805
    %4144 = vmatprep.subr.bf16.mxu0 %v3808
    %4145 = vmatpush1.bf16.msra.mxu0 %v3807
    %4146 = vmatprep.subr.bf16.mxu0 0
    %4147 = vmatpush1.bf16.msra.mxu0 0
    %4148 = vmatprep.subr.bf16.mxu0 0
    %4149 = vmatpush1.bf16.msra.mxu0 0
    %4150 = vmatprep.subr.bf16.mxu0 0
    %4151 = vmatpush1.bf16.msra.mxu0 0
    %4152 = vmatprep.subr.bf16.mxu0 0
    %4153 = vmatpush1.bf16.msra.mxu0 0
    %4154 = vmatprep.subr.bf16.mxu0 0
    %4155 = vmatpush1.bf16.msra.mxu0 0
    %4156 = vmatprep.subr.bf16.mxu0 0
    %4157 = vmatpush1.bf16.msra.mxu0 0
    %4158 = vmatprep.subr.bf16.mxu0 0
    %4159 = vmatpush1.bf16.msra.mxu0 0
    %4160 = vmatprep.subr.bf16.mxu0 0
    %4161 = vmatpush1.bf16.msra.mxu0 0
    %4162 = vmatprep.subr.bf16.mxu0 0
    %4163 = vmatpush1.bf16.msra.mxu0 0
    %4164 = vmatprep.subr.bf16.mxu0 0
    %4165 = vmatpush1.bf16.msra.mxu0 0
    %4166 = vmatprep.subr.bf16.mxu0 0
    %4167 = vmatpush1.bf16.msra.mxu0 0
    %4168 = vmatprep.subr.bf16.mxu0 0
    %4169 = vmatpush1.bf16.msra.mxu0 0
    %4170 = vmatprep.subr.bf16.mxu0 0
    %4171 = vmatpush1.bf16.msra.mxu0 0
    %4172 = vmatprep.subr.bf16.mxu0 0
    %4173 = vmatpush1.bf16.msra.mxu0 0
    %4174 = vmatprep.mubr.bf16.mxu0 0
    %4175 = vmatmul.mubr.bf16.gmra.mrb[0].mxu0 %v4140
    %v4176 = vpop.f32.mrb[0].mxu0
    %v4177 = vadd.f32 0.0, %v4176
    %v4178 = vpop.f32.mrb[0].mxu0
    %v4179 = vadd.f32 0.0, %v4178
    %v4180 = vpop.f32.mrb[0].mxu0
    %v4181 = vpop.f32.mrb[0].mxu0
    %4182 = vdwg.mxu0
    %v4185 = vrot.slane %v4177, 6
    %v4186 = vrot.slane %v4179, 6
    %v4189 = vadd.f32 %v3703, %v4185
    %v4190 = vadd.f32 %v3705, %v4186
    %v4191 = vpack.c.bf16 %v4130, %v4130
    %v4193 = vsel %vm564, %v4191, 0
    %4195 = vmatprep.subr.bf16.mxu0 %v3869
    %4196 = vmatpush1.bf16.msra.mxu0 %v3868
    %4197 = vmatprep.subr.bf16.mxu0 %v3871
    %4198 = vmatpush1.bf16.msra.mxu0 %v3870
    %4199 = vmatprep.subr.bf16.mxu0 0
    %4200 = vmatpush1.bf16.msra.mxu0 0
    %4201 = vmatprep.subr.bf16.mxu0 0
    %4202 = vmatpush1.bf16.msra.mxu0 0
    %4203 = vmatprep.subr.bf16.mxu0 0
    %4204 = vmatpush1.bf16.msra.mxu0 0
    %4205 = vmatprep.subr.bf16.mxu0 0
    %4206 = vmatpush1.bf16.msra.mxu0 0
    %4207 = vmatprep.subr.bf16.mxu0 0
    %4208 = vmatpush1.bf16.msra.mxu0 0
    %4209 = vmatprep.subr.bf16.mxu0 0
    %4210 = vmatpush1.bf16.msra.mxu0 0
    %4211 = vmatprep.subr.bf16.mxu0 0
    %4212 = vmatpush1.bf16.msra.mxu0 0
    %4213 = vmatprep.subr.bf16.mxu0 0
    %4214 = vmatpush1.bf16.msra.mxu0 0
    %4215 = vmatprep.subr.bf16.mxu0 0
    %4216 = vmatpush1.bf16.msra.mxu0 0
    %4217 = vmatprep.subr.bf16.mxu0 0
    %4218 = vmatpush1.bf16.msra.mxu0 0
    %4219 = vmatprep.subr.bf16.mxu0 0
    %4220 = vmatpush1.bf16.msra.mxu0 0
    %4221 = vmatprep.subr.bf16.mxu0 0
    %4222 = vmatpush1.bf16.msra.mxu0 0
    %4223 = vmatprep.subr.bf16.mxu0 0
    %4224 = vmatpush1.bf16.msra.mxu0 0
    %4225 = vmatprep.subr.bf16.mxu0 0
    %4226 = vmatpush1.bf16.msra.mxu0 0
    %4227 = vmatprep.mubr.bf16.mxu0 0
    %4228 = vmatmul.mubr.bf16.gmra.mrb[0].mxu0 %v4193
    %v4229 = vpop.f32.mrb[0].mxu0
    %v4230 = vadd.f32 0.0, %v4229
    %v4231 = vpop.f32.mrb[0].mxu0
    %v4232 = vadd.f32 0.0, %v4231
    %v4233 = vpop.f32.mrb[0].mxu0
    %v4234 = vpop.f32.mrb[0].mxu0
    %4235 = vdwg.mxu0
    %v4238 = vrot.slane %v4230, 4
    %v4239 = vrot.slane %v4232, 4
    %v4242 = vadd.f32 %v3789, %v4238
    %v4243 = vadd.f32 %v3791, %v4239
    %v4244 = vxor.u32 %v4189, 2147483648
    %v4245 = vxor.u32 %v4190, 2147483648
    %v4246 = vmul.f32 %v4244, 1.442695
    %v4247 = vpow.pop %v4246
    %v4248 = vmul.f32 %v4245, 1.442695
    %v4249 = vpow.pop %v4248
    %v4250 = vadd.f32 %v4247, 1.0
    %v4251 = vadd.f32 %v4249, 1.0
    %v4252 = vrcp.pop %v4250
    %v4253 = vmul.f32 1.0, %v4252
    %v4254 = vrcp.pop %v4251
    %v4255 = vmul.f32 1.0, %v4254
    %v4256 = vxor.u32 %v4242, 2147483648
    %v4257 = vxor.u32 %v4243, 2147483648
    %v4258 = vmul.f32 %v4256, 1.442695
    %v4259 = vpow.pop %v4258
    %v4260 = vmul.f32 %v4257, 1.442695
    %v4261 = vpow.pop %v4260
    %v4262 = vadd.f32 %v4259, 1.0
    %v4263 = vadd.f32 %v4261, 1.0
    %v4264 = vrcp.pop %v4262
    %v4265 = vmul.f32 1.0, %v4264
    %v4266 = vrcp.pop %v4263
    %v4267 = vmul.f32 1.0, %v4266
    %v4268 = vtanh.pop %v4190
    %v4269 = vtanh.pop %v4243
    %v4271 = vrot.slane %v3963, 6
    %v4273 = vmul.f32 %v4253, %v4271
    %4275 = vrot.lane.b32.xlu0 %v4268, 64
    %v4276 = vpop.permute.xlu0 %4275
    %v4278 = vmul.f32 %v4253, %v4276
    %4280 = vrot.lane.b32.xlu0 %v4278, 64
    %v4281 = vpop.permute.xlu0 %4280
    %v4283 = vadd.f32 %v4273, %v4281
    %v4284 = vmax.f32 %v4283, -3.0
    %v4285 = vmin.f32 %v4284, 3.0
    %v4287 = vrot.slane %v3976, 2
    %v4289 = vmul.f32 %v4265, %v4287
    %4291 = vrot.lane.b32.xlu0 %v4269, 64
    %v4292 = vpop.permute.xlu0 %4291
    %v4294 = vmul.f32 %v4265, %v4292
    %4296 = vrot.lane.b32.xlu0 %v4294, 64
    %v4297 = vpop.permute.xlu0 %4296
    %v4299 = vadd.f32 %v4289, %v4297
    %v4300 = vmax.f32 %v4299, -3.0
    %v4301 = vmin.f32 %v4300, 3.0
    %v4302 = vtanh.pop %v4285
    %4304 = vrot.lane.b32.xlu0 %v4302, 64
    %v4305 = vpop.permute.xlu0 %4304
    %v4307 = vmul.f32 %v4255, %v4305
    %v4308 = vpack.c.bf16 %v4307, %v4307
    %v4310 = vrot.slane %v4308, 1
    %v4312 = vsel %vm193, %v4310, 0
    %4314 = vmatprep.subr.bf16.mxu0 0
    %4315 = vmatpush1.bf16.msra.mxu0 %v4000
    %4316 = vmatprep.subr.bf16.mxu0 0
    %4317 = vmatpush1.bf16.msra.mxu0 %v4001
    %4318 = vmatprep.subr.bf16.mxu0 0
    %4319 = vmatpush1.bf16.msra.mxu0 %v4002
    %4320 = vmatprep.subr.bf16.mxu0 0
    %4321 = vmatpush1.bf16.msra.mxu0 %v4003
    %4322 = vmatprep.subr.bf16.mxu0 0
    %4323 = vmatpush1.bf16.msra.mxu0 0
    %4324 = vmatprep.subr.bf16.mxu0 0
    %4325 = vmatpush1.bf16.msra.mxu0 0
    %4326 = vmatprep.subr.bf16.mxu0 0
    %4327 = vmatpush1.bf16.msra.mxu0 0
    %4328 = vmatprep.subr.bf16.mxu0 0
    %4329 = vmatpush1.bf16.msra.mxu0 0
    %4330 = vmatprep.subr.bf16.mxu0 0
    %4331 = vmatpush1.bf16.msra.mxu0 0
    %4332 = vmatprep.subr.bf16.mxu0 0
    %4333 = vmatpush1.bf16.msra.mxu0 0
    %4334 = vmatprep.subr.bf16.mxu0 0
    %4335 = vmatpush1.bf16.msra.mxu0 0
    %4336 = vmatprep.subr.bf16.mxu0 0
    %4337 = vmatpush1.bf16.msra.mxu0 0
    %4338 = vmatprep.subr.bf16.mxu0 0
    %4339 = vmatpush1.bf16.msra.mxu0 0
    %4340 = vmatprep.subr.bf16.mxu0 0
    %4341 = vmatpush1.bf16.msra.mxu0 0
    %4342 = vmatprep.subr.bf16.mxu0 0
    %4343 = vmatpush1.bf16.msra.mxu0 0
    %4344 = vmatprep.subr.bf16.mxu0 0
    %4345 = vmatpush1.bf16.msra.mxu0 0
    %4346 = vmatprep.mubr.bf16.mxu0 0
    %4347 = vmatmul.mubr.bf16.gmra.mrb[0].mxu0 %v4312
    %v4348 = vpop.f32.mrb[0].mxu0
    %v4349 = vadd.f32 0.0, %v4348
    %v4350 = vpop.f32.mrb[0].mxu0
    %v4351 = vpop.f32.mrb[0].mxu0
    %v4352 = vpop.f32.mrb[0].mxu0
    %4353 = vdwg.mxu0
    %v4354 = vmax.f32 %v4349, -3.0
    %v4355 = vmin.f32 %v4354, 3.0
    %v4356 = vtanh.pop %v4301
    %4358 = vrot.lane.b32.xlu0 %v4356, 64
    %v4359 = vpop.permute.xlu0 %4358
    %v4361 = vmul.f32 %v4267, %v4359
    %v4362 = vpack.c.bf16 %v4361, %v4361
    %v4364 = vrot.slane %v4362, 2
    %v4366 = vsel %vm193, %v4364, 0
    %4368 = vmatprep.subr.bf16.mxu0 0
    %4369 = vmatpush1.bf16.msra.mxu0 %v4078
    %4370 = vmatprep.subr.bf16.mxu0 0
    %4371 = vmatpush1.bf16.msra.mxu0 %v4079
    %4372 = vmatprep.subr.bf16.mxu0 0
    %4373 = vmatpush1.bf16.msra.mxu0 %v4080
    %4374 = vmatprep.subr.bf16.mxu0 0
    %4375 = vmatpush1.bf16.msra.mxu0 %v4081
    %4376 = vmatprep.subr.bf16.mxu0 0
    %4377 = vmatpush1.bf16.msra.mxu0 0
    %4378 = vmatprep.subr.bf16.mxu0 0
    %4379 = vmatpush1.bf16.msra.mxu0 0
    %4380 = vmatprep.subr.bf16.mxu0 0
    %4381 = vmatpush1.bf16.msra.mxu0 0
    %4382 = vmatprep.subr.bf16.mxu0 0
    %4383 = vmatpush1.bf16.msra.mxu0 0
    %4384 = vmatprep.subr.bf16.mxu0 0
    %4385 = vmatpush1.bf16.msra.mxu0 0
    %4386 = vmatprep.subr.bf16.mxu0 0
    %4387 = vmatpush1.bf16.msra.mxu0 0
    %4388 = vmatprep.subr.bf16.mxu0 0
    %4389 = vmatpush1.bf16.msra.mxu0 0
    %4390 = vmatprep.subr.bf16.mxu0 0
    %4391 = vmatpush1.bf16.msra.mxu0 0
    %4392 = vmatprep.subr.bf16.mxu0 0
    %4393 = vmatpush1.bf16.msra.mxu0 0
    %4394 = vmatprep.subr.bf16.mxu0 0
    %4395 = vmatpush1.bf16.msra.mxu0 0
    %4396 = vmatprep.subr.bf16.mxu0 0
    %4397 = vmatpush1.bf16.msra.mxu0 0
    %4398 = vmatprep.subr.bf16.mxu0 0
    %4399 = vmatpush1.bf16.msra.mxu0 0
    %4400 = vmatprep.mubr.bf16.mxu0 0
    %4401 = vmatmul.mubr.bf16.gmra.mrb[0].mxu0 %v4366
    %v4402 = vpop.f32.mrb[0].mxu0
    %v4403 = vadd.f32 0.0, %v4402
    %v4404 = vpop.f32.mrb[0].mxu0
    %v4405 = vpop.f32.mrb[0].mxu0
    %v4406 = vpop.f32.mrb[0].mxu0
    %4407 = vdwg.mxu0
    %v4408 = vmax.f32 %v4403, -3.0
    %v4409 = vmin.f32 %v4408, 3.0
    %4410 = vst.msk [vmem:[%s4131 + $0x2] sm:$0x3] %vm1663, %v4355
    %4412 = vrot.lane.b32.xlu0 %v4409, 32
    %v4413 = vpop.permute.xlu0 %4412
    %4415 = vst.msk [vmem:[%s4131 + $0xc] sm:$0x3] %vm1669, %v4413
    %v4416 = vpack.c.bf16 %v4355, %v4355
    %v4418 = vsel %vm564, %v4416, 0
    %4420 = vmatprep.subr.bf16.mxu0 %v3806
    %4421 = vmatpush1.bf16.msra.mxu0 %v3805
    %4422 = vmatprep.subr.bf16.mxu0 %v3808
    %4423 = vmatpush1.bf16.msra.mxu0 %v3807
    %4424 = vmatprep.subr.bf16.mxu0 0
    %4425 = vmatpush1.bf16.msra.mxu0 0
    %4426 = vmatprep.subr.bf16.mxu0 0
    %4427 = vmatpush1.bf16.msra.mxu0 0
    %4428 = vmatprep.subr.bf16.mxu0 0
    %4429 = vmatpush1.bf16.msra.mxu0 0
    %4430 = vmatprep.subr.bf16.mxu0 0
    %4431 = vmatpush1.bf16.msra.mxu0 0
    %4432 = vmatprep.subr.bf16.mxu0 0
    %4433 = vmatpush1.bf16.msra.mxu0 0
    %4434 = vmatprep.subr.bf16.mxu0 0
    %4435 = vmatpush1.bf16.msra.mxu0 0
    %4436 = vmatprep.subr.bf16.mxu0 0
    %4437 = vmatpush1.bf16.msra.mxu0 0
    %4438 = vmatprep.subr.bf16.mxu0 0
    %4439 = vmatpush1.bf16.msra.mxu0 0
    %4440 = vmatprep.subr.bf16.mxu0 0
    %4441 = vmatpush1.bf16.msra.mxu0 0
    %4442 = vmatprep.subr.bf16.mxu0 0
    %4443 = vmatpush1.bf16.msra.mxu0 0
    %4444 = vmatprep.subr.bf16.mxu0 0
    %4445 = vmatpush1.bf16.msra.mxu0 0
    %4446 = vmatprep.subr.bf16.mxu0 0
    %4447 = vmatpush1.bf16.msra.mxu0 0
    %4448 = vmatprep.subr.bf16.mxu0 0
    %4449 = vmatpush1.bf16.msra.mxu0 0
    %4450 = vmatprep.subr.bf16.mxu0 0
    %4451 = vmatpush1.bf16.msra.mxu0 0
    %4452 = vmatprep.mubr.bf16.mxu0 0
    %4453 = vmatmul.mubr.bf16.gmra.mrb[0].mxu0 %v4418
    %v4454 = vpop.f32.mrb[0].mxu0
    %v4455 = vadd.f32 0.0, %v4454
    %v4456 = vpop.f32.mrb[0].mxu0
    %v4457 = vadd.f32 0.0, %v4456
    %v4458 = vpop.f32.mrb[0].mxu0
    %v4459 = vpop.f32.mrb[0].mxu0
    %4460 = vdwg.mxu0
    %v4463 = vrot.slane %v4455, 4
    %v4464 = vrot.slane %v4457, 4
    %v4467 = vadd.f32 %v3703, %v4463
    %v4468 = vadd.f32 %v3705, %v4464
    %v4469 = vpack.c.bf16 %v4409, %v4409
    %v4471 = vsel %vm564, %v4469, 0
    %4473 = vmatprep.subr.bf16.mxu0 %v3869
    %4474 = vmatpush1.bf16.msra.mxu0 %v3868
    %4475 = vmatprep.subr.bf16.mxu0 %v3871
    %4476 = vmatpush1.bf16.msra.mxu0 %v3870
    %4477 = vmatprep.subr.bf16.mxu0 0
    %4478 = vmatpush1.bf16.msra.mxu0 0
    %4479 = vmatprep.subr.bf16.mxu0 0
    %4480 = vmatpush1.bf16.msra.mxu0 0
    %4481 = vmatprep.subr.bf16.mxu0 0
    %4482 = vmatpush1.bf16.msra.mxu0 0
    %4483 = vmatprep.subr.bf16.mxu0 0
    %4484 = vmatpush1.bf16.msra.mxu0 0
    %4485 = vmatprep.subr.bf16.mxu0 0
    %4486 = vmatpush1.bf16.msra.mxu0 0
    %4487 = vmatprep.subr.bf16.mxu0 0
    %4488 = vmatpush1.bf16.msra.mxu0 0
    %4489 = vmatprep.subr.bf16.mxu0 0
    %4490 = vmatpush1.bf16.msra.mxu0 0
    %4491 = vmatprep.subr.bf16.mxu0 0
    %4492 = vmatpush1.bf16.msra.mxu0 0
    %4493 = vmatprep.subr.bf16.mxu0 0
    %4494 = vmatpush1.bf16.msra.mxu0 0
    %4495 = vmatprep.subr.bf16.mxu0 0
    %4496 = vmatpush1.bf16.msra.mxu0 0
    %4497 = vmatprep.subr.bf16.mxu0 0
    %4498 = vmatpush1.bf16.msra.mxu0 0
    %4499 = vmatprep.subr.bf16.mxu0 0
    %4500 = vmatpush1.bf16.msra.mxu0 0
    %4501 = vmatprep.subr.bf16.mxu0 0
    %4502 = vmatpush1.bf16.msra.mxu0 0
    %4503 = vmatprep.subr.bf16.mxu0 0
    %4504 = vmatpush1.bf16.msra.mxu0 0
    %4505 = vmatprep.mubr.bf16.mxu0 0
    %4506 = vmatmul.mubr.bf16.gmra.mrb[0].mxu0 %v4471
    %v4507 = vpop.f32.mrb[0].mxu0
    %v4508 = vadd.f32 0.0, %v4507
    %v4509 = vpop.f32.mrb[0].mxu0
    %v4510 = vadd.f32 0.0, %v4509
    %v4511 = vpop.f32.mrb[0].mxu0
    %v4512 = vpop.f32.mrb[0].mxu0
    %4513 = vdwg.mxu0
    %v4516 = vrot.slane %v4508, 6
    %v4517 = vrot.slane %v4510, 6
    %v4520 = vadd.f32 %v3789, %v4516
    %v4521 = vadd.f32 %v3791, %v4517
    %v4522 = vxor.u32 %v4467, 2147483648
    %v4523 = vxor.u32 %v4468, 2147483648
    %v4524 = vmul.f32 %v4522, 1.442695
    %v4525 = vpow.pop %v4524
    %v4526 = vmul.f32 %v4523, 1.442695
    %v4527 = vpow.pop %v4526
    %v4528 = vadd.f32 %v4525, 1.0
    %v4529 = vadd.f32 %v4527, 1.0
    %v4530 = vrcp.pop %v4528
    %v4531 = vmul.f32 1.0, %v4530
    %v4532 = vrcp.pop %v4529
    %v4533 = vmul.f32 1.0, %v4532
    %v4534 = vxor.u32 %v4520, 2147483648
    %v4535 = vxor.u32 %v4521, 2147483648
    %v4536 = vmul.f32 %v4534, 1.442695
    %v4537 = vpow.pop %v4536
    %v4538 = vmul.f32 %v4535, 1.442695
    %v4539 = vpow.pop %v4538
    %v4540 = vadd.f32 %v4537, 1.0
    %v4541 = vadd.f32 %v4539, 1.0
    %v4542 = vrcp.pop %v4540
    %v4543 = vmul.f32 1.0, %v4542
    %v4544 = vrcp.pop %v4541
    %v4545 = vmul.f32 1.0, %v4544
    %v4546 = vtanh.pop %v4468
    %v4547 = vtanh.pop %v4521
    %v4549 = vrot.slane %v4285, 6
    %v4551 = vmul.f32 %v4531, %v4549
    %4553 = vrot.lane.b32.xlu0 %v4546, 64
    %v4554 = vpop.permute.xlu0 %4553
    %v4556 = vmul.f32 %v4531, %v4554
    %4558 = vrot.lane.b32.xlu0 %v4556, 64
    %v4559 = vpop.permute.xlu0 %4558
    %v4561 = vadd.f32 %v4551, %v4559
    %v4562 = vmax.f32 %v4561, -3.0
    %v4563 = vmin.f32 %v4562, 3.0
    %v4565 = vrot.slane %v4301, 2
    %v4567 = vmul.f32 %v4543, %v4565
    %4569 = vrot.lane.b32.xlu0 %v4547, 64
    %v4570 = vpop.permute.xlu0 %4569
    %v4572 = vmul.f32 %v4543, %v4570
    %4574 = vrot.lane.b32.xlu0 %v4572, 64
    %v4575 = vpop.permute.xlu0 %4574
    %v4577 = vadd.f32 %v4567, %v4575
    %v4578 = vmax.f32 %v4577, -3.0
    %v4579 = vmin.f32 %v4578, 3.0
    %v4580 = vtanh.pop %v4563
    %4582 = vrot.lane.b32.xlu0 %v4580, 64
    %v4583 = vpop.permute.xlu0 %4582
    %v4585 = vmul.f32 %v4533, %v4583
    %v4586 = vpack.c.bf16 %v4585, %v4585
    %v4588 = vrot.slane %v4586, 2
    %v4590 = vsel %vm193, %v4588, 0
    %4592 = vmatprep.subr.bf16.mxu0 0
    %4593 = vmatpush1.bf16.msra.mxu0 %v4000
    %4594 = vmatprep.subr.bf16.mxu0 0
    %4595 = vmatpush1.bf16.msra.mxu0 %v4001
    %4596 = vmatprep.subr.bf16.mxu0 0
    %4597 = vmatpush1.bf16.msra.mxu0 %v4002
    %4598 = vmatprep.subr.bf16.mxu0 0
    %4599 = vmatpush1.bf16.msra.mxu0 %v4003
    %4600 = vmatprep.subr.bf16.mxu0 0
    %4601 = vmatpush1.bf16.msra.mxu0 0
    %4602 = vmatprep.subr.bf16.mxu0 0
    %4603 = vmatpush1.bf16.msra.mxu0 0
    %4604 = vmatprep.subr.bf16.mxu0 0
    %4605 = vmatpush1.bf16.msra.mxu0 0
    %4606 = vmatprep.subr.bf16.mxu0 0
    %4607 = vmatpush1.bf16.msra.mxu0 0
    %4608 = vmatprep.subr.bf16.mxu0 0
    %4609 = vmatpush1.bf16.msra.mxu0 0
    %4610 = vmatprep.subr.bf16.mxu0 0
    %4611 = vmatpush1.bf16.msra.mxu0 0
    %4612 = vmatprep.subr.bf16.mxu0 0
    %4613 = vmatpush1.bf16.msra.mxu0 0
    %4614 = vmatprep.subr.bf16.mxu0 0
    %4615 = vmatpush1.bf16.msra.mxu0 0
    %4616 = vmatprep.subr.bf16.mxu0 0
    %4617 = vmatpush1.bf16.msra.mxu0 0
    %4618 = vmatprep.subr.bf16.mxu0 0
    %4619 = vmatpush1.bf16.msra.mxu0 0
    %4620 = vmatprep.subr.bf16.mxu0 0
    %4621 = vmatpush1.bf16.msra.mxu0 0
    %4622 = vmatprep.subr.bf16.mxu0 0
    %4623 = vmatpush1.bf16.msra.mxu0 0
    %4624 = vmatprep.mubr.bf16.mxu0 0
    %4625 = vmatmul.mubr.bf16.gmra.mrb[0].mxu0 %v4590
    %v4626 = vpop.f32.mrb[0].mxu0
    %v4627 = vadd.f32 0.0, %v4626
    %v4628 = vpop.f32.mrb[0].mxu0
    %v4629 = vpop.f32.mrb[0].mxu0
    %v4630 = vpop.f32.mrb[0].mxu0
    %4631 = vdwg.mxu0
    %v4632 = vmax.f32 %v4627, -3.0
    %v4633 = vmin.f32 %v4632, 3.0
    %v4634 = vtanh.pop %v4579
    %4636 = vrot.lane.b32.xlu0 %v4634, 64
    %v4637 = vpop.permute.xlu0 %4636
    %v4639 = vmul.f32 %v4545, %v4637
    %v4640 = vpack.c.bf16 %v4639, %v4639
    %v4642 = vrot.slane %v4640, 1
    %v4644 = vsel %vm193, %v4642, 0
    %4646 = vmatprep.subr.bf16.mxu0 0
    %4647 = vmatpush1.bf16.msra.mxu0 %v4078
    %4648 = vmatprep.subr.bf16.mxu0 0
    %4649 = vmatpush1.bf16.msra.mxu0 %v4079
    %4650 = vmatprep.subr.bf16.mxu0 0
    %4651 = vmatpush1.bf16.msra.mxu0 %v4080
    %4652 = vmatprep.subr.bf16.mxu0 0
    %4653 = vmatpush1.bf16.msra.mxu0 %v4081
    %4654 = vmatprep.subr.bf16.mxu0 0
    %4655 = vmatpush1.bf16.msra.mxu0 0
    %4656 = vmatprep.subr.bf16.mxu0 0
    %4657 = vmatpush1.bf16.msra.mxu0 0
    %4658 = vmatprep.subr.bf16.mxu0 0
    %4659 = vmatpush1.bf16.msra.mxu0 0
    %4660 = vmatprep.subr.bf16.mxu0 0
    %4661 = vmatpush1.bf16.msra.mxu0 0
    %4662 = vmatprep.subr.bf16.mxu0 0
    %4663 = vmatpush1.bf16.msra.mxu0 0
    %4664 = vmatprep.subr.bf16.mxu0 0
    %4665 = vmatpush1.bf16.msra.mxu0 0
    %4666 = vmatprep.subr.bf16.mxu0 0
    %4667 = vmatpush1.bf16.msra.mxu0 0
    %4668 = vmatprep.subr.bf16.mxu0 0
    %4669 = vmatpush1.bf16.msra.mxu0 0
    %4670 = vmatprep.subr.bf16.mxu0 0
    %4671 = vmatpush1.bf16.msra.mxu0 0
    %4672 = vmatprep.subr.bf16.mxu0 0
    %4673 = vmatpush1.bf16.msra.mxu0 0
    %4674 = vmatprep.subr.bf16.mxu0 0
    %4675 = vmatpush1.bf16.msra.mxu0 0
    %4676 = vmatprep.subr.bf16.mxu0 0
    %4677 = vmatpush1.bf16.msra.mxu0 0
    %4678 = vmatprep.mubr.bf16.mxu0 0
    %4679 = vmatmul.mubr.bf16.gmra.mrb[0].mxu0 %v4644
    %v4680 = vpop.f32.mrb[0].mxu0
    %v4681 = vadd.f32 0.0, %v4680
    %v4682 = vpop.f32.mrb[0].mxu0
    %v4683 = vpop.f32.mrb[0].mxu0
    %v4684 = vpop.f32.mrb[0].mxu0
    %4685 = vdwg.mxu0
    %v4686 = vmax.f32 %v4681, -3.0
    %v4687 = vmin.f32 %v4686, 3.0
    %4688 = vst.msk [vmem:[%s4131 + $0x4] sm:$0x3] %vm1663, %v4633
    %4690 = vrot.lane.b32.xlu0 %v4687, 32
    %v4691 = vpop.permute.xlu0 %4690
    %4693 = vst.msk [vmem:[%s4131 + $0xa] sm:$0x3] %vm1669, %v4691
    %v4694 = vpack.c.bf16 %v4633, %v4633
    %v4696 = vsel %vm564, %v4694, 0
    %4698 = vmatprep.subr.bf16.mxu0 %v3806
    %4699 = vmatpush1.bf16.msra.mxu0 %v3805
    %4700 = vmatprep.subr.bf16.mxu0 %v3808
    %4701 = vmatpush1.bf16.msra.mxu0 %v3807
    %4702 = vmatprep.subr.bf16.mxu0 0
    %4703 = vmatpush1.bf16.msra.mxu0 0
    %4704 = vmatprep.subr.bf16.mxu0 0
    %4705 = vmatpush1.bf16.msra.mxu0 0
    %4706 = vmatprep.subr.bf16.mxu0 0
    %4707 = vmatpush1.bf16.msra.mxu0 0
    %4708 = vmatprep.subr.bf16.mxu0 0
    %4709 = vmatpush1.bf16.msra.mxu0 0
    %4710 = vmatprep.subr.bf16.mxu0 0
    %4711 = vmatpush1.bf16.msra.mxu0 0
    %4712 = vmatprep.subr.bf16.mxu0 0
    %4713 = vmatpush1.bf16.msra.mxu0 0
    %4714 = vmatprep.subr.bf16.mxu0 0
    %4715 = vmatpush1.bf16.msra.mxu0 0
    %4716 = vmatprep.subr.bf16.mxu0 0
    %4717 = vmatpush1.bf16.msra.mxu0 0
    %4718 = vmatprep.subr.bf16.mxu0 0
    %4719 = vmatpush1.bf16.msra.mxu0 0
    %4720 = vmatprep.subr.bf16.mxu0 0
    %4721 = vmatpush1.bf16.msra.mxu0 0
    %4722 = vmatprep.subr.bf16.mxu0 0
    %4723 = vmatpush1.bf16.msra.mxu0 0
    %4724 = vmatprep.subr.bf16.mxu0 0
    %4725 = vmatpush1.bf16.msra.mxu0 0
    %4726 = vmatprep.subr.bf16.mxu0 0
    %4727 = vmatpush1.bf16.msra.mxu0 0
    %4728 = vmatprep.subr.bf16.mxu0 0
    %4729 = vmatpush1.bf16.msra.mxu0 0
    %4730 = vmatprep.mubr.bf16.mxu0 0
    %4731 = vmatmul.mubr.bf16.gmra.mrb[0].mxu0 %v4696
    %v4732 = vpop.f32.mrb[0].mxu0
    %v4733 = vadd.f32 0.0, %v4732
    %v4734 = vpop.f32.mrb[0].mxu0
    %v4735 = vadd.f32 0.0, %v4734
    %v4736 = vpop.f32.mrb[0].mxu0
    %v4737 = vpop.f32.mrb[0].mxu0
    %4738 = vdwg.mxu0
    %v4741 = vrot.slane %v4733, 2
    %v4742 = vrot.slane %v4735, 2
    %v4745 = vadd.f32 %v3703, %v4741
    %v4746 = vadd.f32 %v3705, %v4742
    %v4747 = vpack.c.bf16 %v4687, %v4687
    %v4749 = vsel %vm564, %v4747, 0
    %4751 = vmatprep.subr.bf16.mxu0 %v3869
    %4752 = vmatpush1.bf16.msra.mxu0 %v3868
    %4753 = vmatprep.subr.bf16.mxu0 %v3871
    %4754 = vmatpush1.bf16.msra.mxu0 %v3870
    %4755 = vmatprep.subr.bf16.mxu0 0
    %4756 = vmatpush1.bf16.msra.mxu0 0
    %4757 = vmatprep.subr.bf16.mxu0 0
    %4758 = vmatpush1.bf16.msra.mxu0 0
    %4759 = vmatprep.subr.bf16.mxu0 0
    %4760 = vmatpush1.bf16.msra.mxu0 0
    %4761 = vmatprep.subr.bf16.mxu0 0
    %4762 = vmatpush1.bf16.msra.mxu0 0
    %4763 = vmatprep.subr.bf16.mxu0 0
    %4764 = vmatpush1.bf16.msra.mxu0 0
    %4765 = vmatprep.subr.bf16.mxu0 0
    %4766 = vmatpush1.bf16.msra.mxu0 0
    %4767 = vmatprep.subr.bf16.mxu0 0
    %4768 = vmatpush1.bf16.msra.mxu0 0
    %4769 = vmatprep.subr.bf16.mxu0 0
    %4770 = vmatpush1.bf16.msra.mxu0 0
    %4771 = vmatprep.subr.bf16.mxu0 0
    %4772 = vmatpush1.bf16.msra.mxu0 0
    %4773 = vmatprep.subr.bf16.mxu0 0
    %4774 = vmatpush1.bf16.msra.mxu0 0
    %4775 = vmatprep.subr.bf16.mxu0 0
    %4776 = vmatpush1.bf16.msra.mxu0 0
    %4777 = vmatprep.subr.bf16.mxu0 0
    %4778 = vmatpush1.bf16.msra.mxu0 0
    %4779 = vmatprep.subr.bf16.mxu0 0
    %4780 = vmatpush1.bf16.msra.mxu0 0
    %4781 = vmatprep.subr.bf16.mxu0 0
    %4782 = vmatpush1.bf16.msra.mxu0 0
    %4783 = vmatprep.mubr.bf16.mxu0 0
    %4784 = vmatmul.mubr.bf16.gmra.mrb[0].mxu0 %v4749
    %v4785 = vpop.f32.mrb[0].mxu0
    %v4786 = vadd.f32 0.0, %v4785
    %v4787 = vpop.f32.mrb[0].mxu0
    %v4788 = vadd.f32 0.0, %v4787
    %v4789 = vpop.f32.mrb[0].mxu0
    %v4790 = vpop.f32.mrb[0].mxu0
    %4791 = vdwg.mxu0
    %v4792 = vadd.f32 %v3789, %v4786
    %v4793 = vadd.f32 %v3791, %v4788
    %v4794 = vxor.u32 %v4745, 2147483648
    %v4795 = vxor.u32 %v4746, 2147483648
    %v4796 = vmul.f32 %v4794, 1.442695
    %v4797 = vpow.pop %v4796
    %v4798 = vmul.f32 %v4795, 1.442695
    %v4799 = vpow.pop %v4798
    %v4800 = vadd.f32 %v4797, 1.0
    %v4801 = vadd.f32 %v4799, 1.0
    %v4802 = vrcp.pop %v4800
    %v4803 = vmul.f32 1.0, %v4802
    %v4804 = vrcp.pop %v4801
    %v4805 = vmul.f32 1.0, %v4804
    %v4806 = vxor.u32 %v4792, 2147483648
    %v4807 = vxor.u32 %v4793, 2147483648
    %v4808 = vmul.f32 %v4806, 1.442695
    %v4809 = vpow.pop %v4808
    %v4810 = vmul.f32 %v4807, 1.442695
    %v4811 = vpow.pop %v4810
    %v4812 = vadd.f32 %v4809, 1.0
    %v4813 = vadd.f32 %v4811, 1.0
    %v4814 = vrcp.pop %v4812
    %v4815 = vmul.f32 1.0, %v4814
    %v4816 = vrcp.pop %v4813
    %v4817 = vmul.f32 1.0, %v4816
    %v4818 = vtanh.pop %v4746
    %v4819 = vtanh.pop %v4793
    %v4821 = vrot.slane %v4563, 6
    %v4823 = vmul.f32 %v4803, %v4821
    %4825 = vrot.lane.b32.xlu0 %v4818, 64
    %v4826 = vpop.permute.xlu0 %4825
    %v4828 = vmul.f32 %v4803, %v4826
    %4830 = vrot.lane.b32.xlu0 %v4828, 64
    %v4831 = vpop.permute.xlu0 %4830
    %v4833 = vadd.f32 %v4823, %v4831
    %v4834 = vmax.f32 %v4833, -3.0
    %v4835 = vmin.f32 %v4834, 3.0
    %v4837 = vrot.slane %v4579, 2
    %v4839 = vmul.f32 %v4815, %v4837
    %4841 = vrot.lane.b32.xlu0 %v4819, 64
    %v4842 = vpop.permute.xlu0 %4841
    %v4844 = vmul.f32 %v4815, %v4842
    %4846 = vrot.lane.b32.xlu0 %v4844, 64
    %v4847 = vpop.permute.xlu0 %4846
    %v4849 = vadd.f32 %v4839, %v4847
    %v4850 = vmax.f32 %v4849, -3.0
    %v4851 = vmin.f32 %v4850, 3.0
    %v4852 = vtanh.pop %v4835
    %4854 = vrot.lane.b32.xlu0 %v4852, 64
    %v4855 = vpop.permute.xlu0 %4854
    %v4857 = vmul.f32 %v4805, %v4855
    %v4858 = vpack.c.bf16 %v4857, %v4857
    %v4860 = vrot.slane %v4858, 3
    %v4862 = vsel %vm193, %v4860, 0
    %4864 = vmatprep.subr.bf16.mxu0 0
    %4865 = vmatpush1.bf16.msra.mxu0 %v4000
    %4866 = vmatprep.subr.bf16.mxu0 0
    %4867 = vmatpush1.bf16.msra.mxu0 %v4001
    %4868 = vmatprep.subr.bf16.mxu0 0
    %4869 = vmatpush1.bf16.msra.mxu0 %v4002
    %4870 = vmatprep.subr.bf16.mxu0 0
    %4871 = vmatpush1.bf16.msra.mxu0 %v4003
    %4872 = vmatprep.subr.bf16.mxu0 0
    %4873 = vmatpush1.bf16.msra.mxu0 0
    %4874 = vmatprep.subr.bf16.mxu0 0
    %4875 = vmatpush1.bf16.msra.mxu0 0
    %4876 = vmatprep.subr.bf16.mxu0 0
    %4877 = vmatpush1.bf16.msra.mxu0 0
    %4878 = vmatprep.subr.bf16.mxu0 0
    %4879 = vmatpush1.bf16.msra.mxu0 0
    %4880 = vmatprep.subr.bf16.mxu0 0
    %4881 = vmatpush1.bf16.msra.mxu0 0
    %4882 = vmatprep.subr.bf16.mxu0 0
    %4883 = vmatpush1.bf16.msra.mxu0 0
    %4884 = vmatprep.subr.bf16.mxu0 0
    %4885 = vmatpush1.bf16.msra.mxu0 0
    %4886 = vmatprep.subr.bf16.mxu0 0
    %4887 = vmatpush1.bf16.msra.mxu0 0
    %4888 = vmatprep.subr.bf16.mxu0 0
    %4889 = vmatpush1.bf16.msra.mxu0 0
    %4890 = vmatprep.subr.bf16.mxu0 0
    %4891 = vmatpush1.bf16.msra.mxu0 0
    %4892 = vmatprep.subr.bf16.mxu0 0
    %4893 = vmatpush1.bf16.msra.mxu0 0
    %4894 = vmatprep.subr.bf16.mxu0 0
    %4895 = vmatpush1.bf16.msra.mxu0 0
    %4896 = vmatprep.mubr.bf16.mxu0 0
    %4897 = vmatmul.mubr.bf16.gmra.mrb[0].mxu0 %v4862
    %v4898 = vpop.f32.mrb[0].mxu0
    %v4899 = vadd.f32 0.0, %v4898
    %v4900 = vpop.f32.mrb[0].mxu0
    %v4901 = vpop.f32.mrb[0].mxu0
    %v4902 = vpop.f32.mrb[0].mxu0
    %4903 = vdwg.mxu0
    %v4904 = vmax.f32 %v4899, -3.0
    %v4905 = vmin.f32 %v4904, 3.0
    %v4906 = vtanh.pop %v4851
    %4908 = vrot.lane.b32.xlu0 %v4906, 64
    %v4909 = vpop.permute.xlu0 %4908
    %v4911 = vmul.f32 %v4817, %v4909
    %v4912 = vpack.c.bf16 %v4911, %v4911
    %v4914 = vsel %vm193, %v4912, 0
    %4916 = vmatprep.subr.bf16.mxu0 0
    %4917 = vmatpush1.bf16.msra.mxu0 %v4078
    %4918 = vmatprep.subr.bf16.mxu0 0
    %4919 = vmatpush1.bf16.msra.mxu0 %v4079
    %4920 = vmatprep.subr.bf16.mxu0 0
    %4921 = vmatpush1.bf16.msra.mxu0 %v4080
    %4922 = vmatprep.subr.bf16.mxu0 0
    %4923 = vmatpush1.bf16.msra.mxu0 %v4081
    %4924 = vmatprep.subr.bf16.mxu0 0
    %4925 = vmatpush1.bf16.msra.mxu0 0
    %4926 = vmatprep.subr.bf16.mxu0 0
    %4927 = vmatpush1.bf16.msra.mxu0 0
    %4928 = vmatprep.subr.bf16.mxu0 0
    %4929 = vmatpush1.bf16.msra.mxu0 0
    %4930 = vmatprep.subr.bf16.mxu0 0
    %4931 = vmatpush1.bf16.msra.mxu0 0
    %4932 = vmatprep.subr.bf16.mxu0 0
    %4933 = vmatpush1.bf16.msra.mxu0 0
    %4934 = vmatprep.subr.bf16.mxu0 0
    %4935 = vmatpush1.bf16.msra.mxu0 0
    %4936 = vmatprep.subr.bf16.mxu0 0
    %4937 = vmatpush1.bf16.msra.mxu0 0
    %4938 = vmatprep.subr.bf16.mxu0 0
    %4939 = vmatpush1.bf16.msra.mxu0 0
    %4940 = vmatprep.subr.bf16.mxu0 0
    %4941 = vmatpush1.bf16.msra.mxu0 0
    %4942 = vmatprep.subr.bf16.mxu0 0
    %4943 = vmatpush1.bf16.msra.mxu0 0
    %4944 = vmatprep.subr.bf16.mxu0 0
    %4945 = vmatpush1.bf16.msra.mxu0 0
    %4946 = vmatprep.subr.bf16.mxu0 0
    %4947 = vmatpush1.bf16.msra.mxu0 0
    %4948 = vmatprep.mubr.bf16.mxu0 0
    %4949 = vmatmul.mubr.bf16.gmra.mrb[0].mxu0 %v4914
    %v4950 = vpop.f32.mrb[0].mxu0
    %v4951 = vadd.f32 0.0, %v4950
    %v4952 = vpop.f32.mrb[0].mxu0
    %v4953 = vpop.f32.mrb[0].mxu0
    %v4954 = vpop.f32.mrb[0].mxu0
    %4955 = vdwg.mxu0
    %v4956 = vmax.f32 %v4951, -3.0
    %v4957 = vmin.f32 %v4956, 3.0
    %4958 = vst.msk [vmem:[%s4131 + $0x6] sm:$0x3] %vm1663, %v4905
    %4960 = vrot.lane.b32.xlu0 %v4957, 32
    %v4961 = vpop.permute.xlu0 %4960
    %4963 = vst.msk [vmem:[%s4131 + $0x8] sm:$0x3] %vm1669, %v4961
    %v4964 = vpack.c.bf16 %v4905, %v4905
    %v4966 = vsel %vm564, %v4964, 0
    %4968 = vmatprep.subr.bf16.mxu0 %v3806
    %4969 = vmatpush1.bf16.msra.mxu0 %v3805
    %4970 = vmatprep.subr.bf16.mxu0 %v3808
    %4971 = vmatpush1.bf16.msra.mxu0 %v3807
    %4972 = vmatprep.subr.bf16.mxu0 0
    %4973 = vmatpush1.bf16.msra.mxu0 0
    %4974 = vmatprep.subr.bf16.mxu0 0
    %4975 = vmatpush1.bf16.msra.mxu0 0
    %4976 = vmatprep.subr.bf16.mxu0 0
    %4977 = vmatpush1.bf16.msra.mxu0 0
    %4978 = vmatprep.subr.bf16.mxu0 0
    %4979 = vmatpush1.bf16.msra.mxu0 0
    %4980 = vmatprep.subr.bf16.mxu0 0
    %4981 = vmatpush1.bf16.msra.mxu0 0
    %4982 = vmatprep.subr.bf16.mxu0 0
    %4983 = vmatpush1.bf16.msra.mxu0 0
    %4984 = vmatprep.subr.bf16.mxu0 0
    %4985 = vmatpush1.bf16.msra.mxu0 0
    %4986 = vmatprep.subr.bf16.mxu0 0
    %4987 = vmatpush1.bf16.msra.mxu0 0
    %4988 = vmatprep.subr.bf16.mxu0 0
    %4989 = vmatpush1.bf16.msra.mxu0 0
    %4990 = vmatprep.subr.bf16.mxu0 0
    %4991 = vmatpush1.bf16.msra.mxu0 0
    %4992 = vmatprep.subr.bf16.mxu0 0
    %4993 = vmatpush1.bf16.msra.mxu0 0
    %4994 = vmatprep.subr.bf16.mxu0 0
    %4995 = vmatpush1.bf16.msra.mxu0 0
    %4996 = vmatprep.subr.bf16.mxu0 0
    %4997 = vmatpush1.bf16.msra.mxu0 0
    %4998 = vmatprep.subr.bf16.mxu0 0
    %4999 = vmatpush1.bf16.msra.mxu0 0
    %5000 = vmatprep.mubr.bf16.mxu0 0
    %5001 = vmatmul.mubr.bf16.gmra.mrb[0].mxu0 %v4966
    %v5002 = vpop.f32.mrb[0].mxu0
    %v5003 = vadd.f32 0.0, %v5002
    %v5004 = vpop.f32.mrb[0].mxu0
    %v5005 = vadd.f32 0.0, %v5004
    %v5006 = vpop.f32.mrb[0].mxu0
    %v5007 = vpop.f32.mrb[0].mxu0
    %5008 = vdwg.mxu0
    %v5009 = vadd.f32 %v3707, %v5003
    %v5010 = vadd.f32 %v3709, %v5005
    %v5011 = vpack.c.bf16 %v4957, %v4957
    %v5013 = vsel %vm564, %v5011, 0
    %5015 = vmatprep.subr.bf16.mxu0 %v3869
    %5016 = vmatpush1.bf16.msra.mxu0 %v3868
    %5017 = vmatprep.subr.bf16.mxu0 %v3871
    %5018 = vmatpush1.bf16.msra.mxu0 %v3870
    %5019 = vmatprep.subr.bf16.mxu0 0
    %5020 = vmatpush1.bf16.msra.mxu0 0
    %5021 = vmatprep.subr.bf16.mxu0 0
    %5022 = vmatpush1.bf16.msra.mxu0 0
    %5023 = vmatprep.subr.bf16.mxu0 0
    %5024 = vmatpush1.bf16.msra.mxu0 0
    %5025 = vmatprep.subr.bf16.mxu0 0
    %5026 = vmatpush1.bf16.msra.mxu0 0
    %5027 = vmatprep.subr.bf16.mxu0 0
    %5028 = vmatpush1.bf16.msra.mxu0 0
    %5029 = vmatprep.subr.bf16.mxu0 0
    %5030 = vmatpush1.bf16.msra.mxu0 0
    %5031 = vmatprep.subr.bf16.mxu0 0
    %5032 = vmatpush1.bf16.msra.mxu0 0
    %5033 = vmatprep.subr.bf16.mxu0 0
    %5034 = vmatpush1.bf16.msra.mxu0 0
    %5035 = vmatprep.subr.bf16.mxu0 0
    %5036 = vmatpush1.bf16.msra.mxu0 0
    %5037 = vmatprep.subr.bf16.mxu0 0
    %5038 = vmatpush1.bf16.msra.mxu0 0
    %5039 = vmatprep.subr.bf16.mxu0 0
    %5040 = vmatpush1.bf16.msra.mxu0 0
    %5041 = vmatprep.subr.bf16.mxu0 0
    %5042 = vmatpush1.bf16.msra.mxu0 0
    %5043 = vmatprep.subr.bf16.mxu0 0
    %5044 = vmatpush1.bf16.msra.mxu0 0
    %5045 = vmatprep.subr.bf16.mxu0 0
    %5046 = vmatpush1.bf16.msra.mxu0 0
    %5047 = vmatprep.mubr.bf16.mxu0 0
    %5048 = vmatmul.mubr.bf16.gmra.mrb[0].mxu0 %v5013
    %v5049 = vpop.f32.mrb[0].mxu0
    %v5050 = vadd.f32 0.0, %v5049
    %v5051 = vpop.f32.mrb[0].mxu0
    %v5052 = vadd.f32 0.0, %v5051
    %v5053 = vpop.f32.mrb[0].mxu0
    %v5054 = vpop.f32.mrb[0].mxu0
    %5055 = vdwg.mxu0
    %v5058 = vrot.slane %v5050, 2
    %v5059 = vrot.slane %v5052, 2
    %v5062 = vadd.f32 %v3785, %v5058
    %v5063 = vadd.f32 %v3787, %v5059
    %v5064 = vxor.u32 %v5009, 2147483648
    %v5065 = vxor.u32 %v5010, 2147483648
    %v5066 = vmul.f32 %v5064, 1.442695
    %v5067 = vpow.pop %v5066
    %v5068 = vmul.f32 %v5065, 1.442695
    %v5069 = vpow.pop %v5068
    %v5070 = vadd.f32 %v5067, 1.0
    %v5071 = vadd.f32 %v5069, 1.0
    %v5072 = vrcp.pop %v5070
    %v5073 = vmul.f32 1.0, %v5072
    %v5074 = vrcp.pop %v5071
    %v5075 = vmul.f32 1.0, %v5074
    %v5076 = vxor.u32 %v5062, 2147483648
    %v5077 = vxor.u32 %v5063, 2147483648
    %v5078 = vmul.f32 %v5076, 1.442695
    %v5079 = vpow.pop %v5078
    %v5080 = vmul.f32 %v5077, 1.442695
    %v5081 = vpow.pop %v5080
    %v5082 = vadd.f32 %v5079, 1.0
    %v5083 = vadd.f32 %v5081, 1.0
    %v5084 = vrcp.pop %v5082
    %v5085 = vmul.f32 1.0, %v5084
    %v5086 = vrcp.pop %v5083
    %v5087 = vmul.f32 1.0, %v5086
    %v5088 = vtanh.pop %v5010
    %v5089 = vtanh.pop %v5063
    %v5091 = vrot.slane %v4835, 6
    %v5093 = vmul.f32 %v5073, %v5091
    %5095 = vrot.lane.b32.xlu0 %v5088, 64
    %v5096 = vpop.permute.xlu0 %5095
    %v5098 = vmul.f32 %v5073, %v5096
    %5100 = vrot.lane.b32.xlu0 %v5098, 64
    %v5101 = vpop.permute.xlu0 %5100
    %v5103 = vadd.f32 %v5093, %v5101
    %v5104 = vmax.f32 %v5103, -3.0
    %v5105 = vmin.f32 %v5104, 3.0
    %v5107 = vrot.slane %v4851, 2
    %v5109 = vmul.f32 %v5085, %v5107
    %5111 = vrot.lane.b32.xlu0 %v5089, 64
    %v5112 = vpop.permute.xlu0 %5111
    %v5114 = vmul.f32 %v5085, %v5112
    %5116 = vrot.lane.b32.xlu0 %v5114, 64
    %v5117 = vpop.permute.xlu0 %5116
    %v5119 = vadd.f32 %v5109, %v5117
    %v5120 = vmax.f32 %v5119, -3.0
    %v5121 = vmin.f32 %v5120, 3.0
    %v5122 = vtanh.pop %v5105
    %5124 = vrot.lane.b32.xlu0 %v5122, 64
    %v5125 = vpop.permute.xlu0 %5124
    %v5127 = vmul.f32 %v5075, %v5125
    %v5128 = vpack.c.bf16 %v5127, %v5127
    %v5130 = vsel %vm193, %v5128, 0
    %5132 = vmatprep.subr.bf16.mxu0 0
    %5133 = vmatpush1.bf16.msra.mxu0 %v4000
    %5134 = vmatprep.subr.bf16.mxu0 0
    %5135 = vmatpush1.bf16.msra.mxu0 %v4001
    %5136 = vmatprep.subr.bf16.mxu0 0
    %5137 = vmatpush1.bf16.msra.mxu0 %v4002
    %5138 = vmatprep.subr.bf16.mxu0 0
    %5139 = vmatpush1.bf16.msra.mxu0 %v4003
    %5140 = vmatprep.subr.bf16.mxu0 0
    %5141 = vmatpush1.bf16.msra.mxu0 0
    %5142 = vmatprep.subr.bf16.mxu0 0
    %5143 = vmatpush1.bf16.msra.mxu0 0
    %5144 = vmatprep.subr.bf16.mxu0 0
    %5145 = vmatpush1.bf16.msra.mxu0 0
    %5146 = vmatprep.subr.bf16.mxu0 0
    %5147 = vmatpush1.bf16.msra.mxu0 0
    %5148 = vmatprep.subr.bf16.mxu0 0
    %5149 = vmatpush1.bf16.msra.mxu0 0
    %5150 = vmatprep.subr.bf16.mxu0 0
    %5151 = vmatpush1.bf16.msra.mxu0 0
    %5152 = vmatprep.subr.bf16.mxu0 0
    %5153 = vmatpush1.bf16.msra.mxu0 0
    %5154 = vmatprep.subr.bf16.mxu0 0
    %5155 = vmatpush1.bf16.msra.mxu0 0
    %5156 = vmatprep.subr.bf16.mxu0 0
    %5157 = vmatpush1.bf16.msra.mxu0 0
    %5158 = vmatprep.subr.bf16.mxu0 0
    %5159 = vmatpush1.bf16.msra.mxu0 0
    %5160 = vmatprep.subr.bf16.mxu0 0
    %5161 = vmatpush1.bf16.msra.mxu0 0
    %5162 = vmatprep.subr.bf16.mxu0 0
    %5163 = vmatpush1.bf16.msra.mxu0 0
    %5164 = vmatprep.mubr.bf16.mxu0 0
    %5165 = vmatmul.mubr.bf16.gmra.mrb[0].mxu0 %v5130
    %v5166 = vpop.f32.mrb[0].mxu0
    %v5167 = vadd.f32 0.0, %v5166
    %v5168 = vpop.f32.mrb[0].mxu0
    %v5169 = vpop.f32.mrb[0].mxu0
    %v5170 = vpop.f32.mrb[0].mxu0
    %5171 = vdwg.mxu0
    %v5172 = vmax.f32 %v5167, -3.0
    %v5173 = vmin.f32 %v5172, 3.0
    %v5174 = vtanh.pop %v5121
    %5176 = vrot.lane.b32.xlu0 %v5174, 64
    %v5177 = vpop.permute.xlu0 %5176
    %v5179 = vmul.f32 %v5087, %v5177
    %v5180 = vpack.c.bf16 %v5179, %v5179
    %v5182 = vrot.slane %v5180, 3
    %v5184 = vsel %vm193, %v5182, 0
    %5186 = vmatprep.subr.bf16.mxu0 0
    %5187 = vmatpush1.bf16.msra.mxu0 %v4078
    %5188 = vmatprep.subr.bf16.mxu0 0
    %5189 = vmatpush1.bf16.msra.mxu0 %v4079
    %5190 = vmatprep.subr.bf16.mxu0 0
    %5191 = vmatpush1.bf16.msra.mxu0 %v4080
    %5192 = vmatprep.subr.bf16.mxu0 0
    %5193 = vmatpush1.bf16.msra.mxu0 %v4081
    %5194 = vmatprep.subr.bf16.mxu0 0
    %5195 = vmatpush1.bf16.msra.mxu0 0
    %5196 = vmatprep.subr.bf16.mxu0 0
    %5197 = vmatpush1.bf16.msra.mxu0 0
    %5198 = vmatprep.subr.bf16.mxu0 0
    %5199 = vmatpush1.bf16.msra.mxu0 0
    %5200 = vmatprep.subr.bf16.mxu0 0
    %5201 = vmatpush1.bf16.msra.mxu0 0
    %5202 = vmatprep.subr.bf16.mxu0 0
    %5203 = vmatpush1.bf16.msra.mxu0 0
    %5204 = vmatprep.subr.bf16.mxu0 0
    %5205 = vmatpush1.bf16.msra.mxu0 0
    %5206 = vmatprep.subr.bf16.mxu0 0
    %5207 = vmatpush1.bf16.msra.mxu0 0
    %5208 = vmatprep.subr.bf16.mxu0 0
    %5209 = vmatpush1.bf16.msra.mxu0 0
    %5210 = vmatprep.subr.bf16.mxu0 0
    %5211 = vmatpush1.bf16.msra.mxu0 0
    %5212 = vmatprep.subr.bf16.mxu0 0
    %5213 = vmatpush1.bf16.msra.mxu0 0
    %5214 = vmatprep.subr.bf16.mxu0 0
    %5215 = vmatpush1.bf16.msra.mxu0 0
    %5216 = vmatprep.subr.bf16.mxu0 0
    %5217 = vmatpush1.bf16.msra.mxu0 0
    %5218 = vmatprep.mubr.bf16.mxu0 0
    %5219 = vmatmul.mubr.bf16.gmra.mrb[0].mxu0 %v5184
    %v5220 = vpop.f32.mrb[0].mxu0
    %v5221 = vadd.f32 0.0, %v5220
    %v5222 = vpop.f32.mrb[0].mxu0
    %v5223 = vpop.f32.mrb[0].mxu0
    %v5224 = vpop.f32.mrb[0].mxu0
    %5225 = vdwg.mxu0
    %v5226 = vmax.f32 %v5221, -3.0
    %v5227 = vmin.f32 %v5226, 3.0
    %5228 = vst.msk [vmem:[%s4131 + $0x8] sm:$0x3] %vm1663, %v5173
    %5230 = vrot.lane.b32.xlu0 %v5227, 32
    %v5231 = vpop.permute.xlu0 %5230
    %5233 = vst.msk [vmem:[%s4131 + $0x6] sm:$0x3] %vm1669, %v5231
    %v5234 = vpack.c.bf16 %v5173, %v5173
    %v5236 = vsel %vm564, %v5234, 0
    %5238 = vmatprep.subr.bf16.mxu0 %v3806
    %5239 = vmatpush1.bf16.msra.mxu0 %v3805
    %5240 = vmatprep.subr.bf16.mxu0 %v3808
    %5241 = vmatpush1.bf16.msra.mxu0 %v3807
    %5242 = vmatprep.subr.bf16.mxu0 0
    %5243 = vmatpush1.bf16.msra.mxu0 0
    %5244 = vmatprep.subr.bf16.mxu0 0
    %5245 = vmatpush1.bf16.msra.mxu0 0
    %5246 = vmatprep.subr.bf16.mxu0 0
    %5247 = vmatpush1.bf16.msra.mxu0 0
    %5248 = vmatprep.subr.bf16.mxu0 0
    %5249 = vmatpush1.bf16.msra.mxu0 0
    %5250 = vmatprep.subr.bf16.mxu0 0
    %5251 = vmatpush1.bf16.msra.mxu0 0
    %5252 = vmatprep.subr.bf16.mxu0 0
    %5253 = vmatpush1.bf16.msra.mxu0 0
    %5254 = vmatprep.subr.bf16.mxu0 0
    %5255 = vmatpush1.bf16.msra.mxu0 0
    %5256 = vmatprep.subr.bf16.mxu0 0
    %5257 = vmatpush1.bf16.msra.mxu0 0
    %5258 = vmatprep.subr.bf16.mxu0 0
    %5259 = vmatpush1.bf16.msra.mxu0 0
    %5260 = vmatprep.subr.bf16.mxu0 0
    %5261 = vmatpush1.bf16.msra.mxu0 0
    %5262 = vmatprep.subr.bf16.mxu0 0
    %5263 = vmatpush1.bf16.msra.mxu0 0
    %5264 = vmatprep.subr.bf16.mxu0 0
    %5265 = vmatpush1.bf16.msra.mxu0 0
    %5266 = vmatprep.subr.bf16.mxu0 0
    %5267 = vmatpush1.bf16.msra.mxu0 0
    %5268 = vmatprep.subr.bf16.mxu0 0
    %5269 = vmatpush1.bf16.msra.mxu0 0
    %5270 = vmatprep.mubr.bf16.mxu0 0
    %5271 = vmatmul.mubr.bf16.gmra.mrb[0].mxu0 %v5236
    %v5272 = vpop.f32.mrb[0].mxu0
    %v5273 = vadd.f32 0.0, %v5272
    %v5274 = vpop.f32.mrb[0].mxu0
    %v5275 = vadd.f32 0.0, %v5274
    %v5276 = vpop.f32.mrb[0].mxu0
    %v5277 = vpop.f32.mrb[0].mxu0
    %5278 = vdwg.mxu0
    %v5281 = vrot.slane %v5273, 6
    %v5282 = vrot.slane %v5275, 6
    %v5285 = vadd.f32 %v3707, %v5281
    %v5286 = vadd.f32 %v3709, %v5282
    %v5287 = vpack.c.bf16 %v5227, %v5227
    %v5289 = vsel %vm564, %v5287, 0
    %5291 = vmatprep.subr.bf16.mxu0 %v3869
    %5292 = vmatpush1.bf16.msra.mxu0 %v3868
    %5293 = vmatprep.subr.bf16.mxu0 %v3871
    %5294 = vmatpush1.bf16.msra.mxu0 %v3870
    %5295 = vmatprep.subr.bf16.mxu0 0
    %5296 = vmatpush1.bf16.msra.mxu0 0
    %5297 = vmatprep.subr.bf16.mxu0 0
    %5298 = vmatpush1.bf16.msra.mxu0 0
    %5299 = vmatprep.subr.bf16.mxu0 0
    %5300 = vmatpush1.bf16.msra.mxu0 0
    %5301 = vmatprep.subr.bf16.mxu0 0
    %5302 = vmatpush1.bf16.msra.mxu0 0
    %5303 = vmatprep.subr.bf16.mxu0 0
    %5304 = vmatpush1.bf16.msra.mxu0 0
    %5305 = vmatprep.subr.bf16.mxu0 0
    %5306 = vmatpush1.bf16.msra.mxu0 0
    %5307 = vmatprep.subr.bf16.mxu0 0
    %5308 = vmatpush1.bf16.msra.mxu0 0
    %5309 = vmatprep.subr.bf16.mxu0 0
    %5310 = vmatpush1.bf16.msra.mxu0 0
    %5311 = vmatprep.subr.bf16.mxu0 0
    %5312 = vmatpush1.bf16.msra.mxu0 0
    %5313 = vmatprep.subr.bf16.mxu0 0
    %5314 = vmatpush1.bf16.msra.mxu0 0
    %5315 = vmatprep.subr.bf16.mxu0 0
    %5316 = vmatpush1.bf16.msra.mxu0 0
    %5317 = vmatprep.subr.bf16.mxu0 0
    %5318 = vmatpush1.bf16.msra.mxu0 0
    %5319 = vmatprep.subr.bf16.mxu0 0
    %5320 = vmatpush1.bf16.msra.mxu0 0
    %5321 = vmatprep.subr.bf16.mxu0 0
    %5322 = vmatpush1.bf16.msra.mxu0 0
    %5323 = vmatprep.mubr.bf16.mxu0 0
    %5324 = vmatmul.mubr.bf16.gmra.mrb[0].mxu0 %v5289
    %v5325 = vpop.f32.mrb[0].mxu0
    %v5326 = vadd.f32 0.0, %v5325
    %v5327 = vpop.f32.mrb[0].mxu0
    %v5328 = vadd.f32 0.0, %v5327
    %v5329 = vpop.f32.mrb[0].mxu0
    %v5330 = vpop.f32.mrb[0].mxu0
    %5331 = vdwg.mxu0
    %v5334 = vrot.slane %v5326, 4
    %v5335 = vrot.slane %v5328, 4
    %v5338 = vadd.f32 %v3785, %v5334
    %v5339 = vadd.f32 %v3787, %v5335
    %v5340 = vxor.u32 %v5285, 2147483648
    %v5341 = vxor.u32 %v5286, 2147483648
    %v5342 = vmul.f32 %v5340, 1.442695
    %v5343 = vpow.pop %v5342
    %v5344 = vmul.f32 %v5341, 1.442695
    %v5345 = vpow.pop %v5344
    %v5346 = vadd.f32 %v5343, 1.0
    %v5347 = vadd.f32 %v5345, 1.0
    %v5348 = vrcp.pop %v5346
    %v5349 = vmul.f32 1.0, %v5348
    %v5350 = vrcp.pop %v5347
    %v5351 = vmul.f32 1.0, %v5350
    %v5352 = vxor.u32 %v5338, 2147483648
    %v5353 = vxor.u32 %v5339, 2147483648
    %v5354 = vmul.f32 %v5352, 1.442695
    %v5355 = vpow.pop %v5354
    %v5356 = vmul.f32 %v5353, 1.442695
    %v5357 = vpow.pop %v5356
    %v5358 = vadd.f32 %v5355, 1.0
    %v5359 = vadd.f32 %v5357, 1.0
    %v5360 = vrcp.pop %v5358
    %v5361 = vmul.f32 1.0, %v5360
    %v5362 = vrcp.pop %v5359
    %v5363 = vmul.f32 1.0, %v5362
    %v5364 = vtanh.pop %v5286
    %v5365 = vtanh.pop %v5339
    %v5367 = vrot.slane %v5105, 6
    %v5369 = vmul.f32 %v5349, %v5367
    %5371 = vrot.lane.b32.xlu0 %v5364, 64
    %v5372 = vpop.permute.xlu0 %5371
    %v5374 = vmul.f32 %v5349, %v5372
    %5376 = vrot.lane.b32.xlu0 %v5374, 64
    %v5377 = vpop.permute.xlu0 %5376
    %v5379 = vadd.f32 %v5369, %v5377
    %v5380 = vmax.f32 %v5379, -3.0
    %v5381 = vmin.f32 %v5380, 3.0
    %v5383 = vrot.slane %v5121, 2
    %v5385 = vmul.f32 %v5361, %v5383
    %5387 = vrot.lane.b32.xlu0 %v5365, 64
    %v5388 = vpop.permute.xlu0 %5387
    %v5390 = vmul.f32 %v5361, %v5388
    %5392 = vrot.lane.b32.xlu0 %v5390, 64
    %v5393 = vpop.permute.xlu0 %5392
    %v5395 = vadd.f32 %v5385, %v5393
    %v5396 = vmax.f32 %v5395, -3.0
    %v5397 = vmin.f32 %v5396, 3.0
    %v5398 = vtanh.pop %v5381
    %5400 = vrot.lane.b32.xlu0 %v5398, 64
    %v5401 = vpop.permute.xlu0 %5400
    %v5403 = vmul.f32 %v5351, %v5401
    %v5404 = vpack.c.bf16 %v5403, %v5403
    %v5406 = vrot.slane %v5404, 1
    %v5408 = vsel %vm193, %v5406, 0
    %5410 = vmatprep.subr.bf16.mxu0 0
    %5411 = vmatpush1.bf16.msra.mxu0 %v4000
    %5412 = vmatprep.subr.bf16.mxu0 0
    %5413 = vmatpush1.bf16.msra.mxu0 %v4001
    %5414 = vmatprep.subr.bf16.mxu0 0
    %5415 = vmatpush1.bf16.msra.mxu0 %v4002
    %5416 = vmatprep.subr.bf16.mxu0 0
    %5417 = vmatpush1.bf16.msra.mxu0 %v4003
    %5418 = vmatprep.subr.bf16.mxu0 0
    %5419 = vmatpush1.bf16.msra.mxu0 0
    %5420 = vmatprep.subr.bf16.mxu0 0
    %5421 = vmatpush1.bf16.msra.mxu0 0
    %5422 = vmatprep.subr.bf16.mxu0 0
    %5423 = vmatpush1.bf16.msra.mxu0 0
    %5424 = vmatprep.subr.bf16.mxu0 0
    %5425 = vmatpush1.bf16.msra.mxu0 0
    %5426 = vmatprep.subr.bf16.mxu0 0
    %5427 = vmatpush1.bf16.msra.mxu0 0
    %5428 = vmatprep.subr.bf16.mxu0 0
    %5429 = vmatpush1.bf16.msra.mxu0 0
    %5430 = vmatprep.subr.bf16.mxu0 0
    %5431 = vmatpush1.bf16.msra.mxu0 0
    %5432 = vmatprep.subr.bf16.mxu0 0
    %5433 = vmatpush1.bf16.msra.mxu0 0
    %5434 = vmatprep.subr.bf16.mxu0 0
    %5435 = vmatpush1.bf16.msra.mxu0 0
    %5436 = vmatprep.subr.bf16.mxu0 0
    %5437 = vmatpush1.bf16.msra.mxu0 0
    %5438 = vmatprep.subr.bf16.mxu0 0
    %5439 = vmatpush1.bf16.msra.mxu0 0
    %5440 = vmatprep.subr.bf16.mxu0 0
    %5441 = vmatpush1.bf16.msra.mxu0 0
    %5442 = vmatprep.mubr.bf16.mxu0 0
    %5443 = vmatmul.mubr.bf16.gmra.mrb[0].mxu0 %v5408
    %v5444 = vpop.f32.mrb[0].mxu0
    %v5445 = vadd.f32 0.0, %v5444
    %v5446 = vpop.f32.mrb[0].mxu0
    %v5447 = vpop.f32.mrb[0].mxu0
    %v5448 = vpop.f32.mrb[0].mxu0
    %5449 = vdwg.mxu0
    %v5450 = vmax.f32 %v5445, -3.0
    %v5451 = vmin.f32 %v5450, 3.0
    %v5452 = vtanh.pop %v5397
    %5454 = vrot.lane.b32.xlu0 %v5452, 64
    %v5455 = vpop.permute.xlu0 %5454
    %v5457 = vmul.f32 %v5363, %v5455
    %v5458 = vpack.c.bf16 %v5457, %v5457
    %v5460 = vrot.slane %v5458, 2
    %v5462 = vsel %vm193, %v5460, 0
    %5464 = vmatprep.subr.bf16.mxu0 0
    %5465 = vmatpush1.bf16.msra.mxu0 %v4078
    %5466 = vmatprep.subr.bf16.mxu0 0
    %5467 = vmatpush1.bf16.msra.mxu0 %v4079
    %5468 = vmatprep.subr.bf16.mxu0 0
    %5469 = vmatpush1.bf16.msra.mxu0 %v4080
    %5470 = vmatprep.subr.bf16.mxu0 0
    %5471 = vmatpush1.bf16.msra.mxu0 %v4081
    %5472 = vmatprep.subr.bf16.mxu0 0
    %5473 = vmatpush1.bf16.msra.mxu0 0
    %5474 = vmatprep.subr.bf16.mxu0 0
    %5475 = vmatpush1.bf16.msra.mxu0 0
    %5476 = vmatprep.subr.bf16.mxu0 0
    %5477 = vmatpush1.bf16.msra.mxu0 0
    %5478 = vmatprep.subr.bf16.mxu0 0
    %5479 = vmatpush1.bf16.msra.mxu0 0
    %5480 = vmatprep.subr.bf16.mxu0 0
    %5481 = vmatpush1.bf16.msra.mxu0 0
    %5482 = vmatprep.subr.bf16.mxu0 0
    %5483 = vmatpush1.bf16.msra.mxu0 0
    %5484 = vmatprep.subr.bf16.mxu0 0
    %5485 = vmatpush1.bf16.msra.mxu0 0
    %5486 = vmatprep.subr.bf16.mxu0 0
    %5487 = vmatpush1.bf16.msra.mxu0 0
    %5488 = vmatprep.subr.bf16.mxu0 0
    %5489 = vmatpush1.bf16.msra.mxu0 0
    %5490 = vmatprep.subr.bf16.mxu0 0
    %5491 = vmatpush1.bf16.msra.mxu0 0
    %5492 = vmatprep.subr.bf16.mxu0 0
    %5493 = vmatpush1.bf16.msra.mxu0 0
    %5494 = vmatprep.subr.bf16.mxu0 0
    %5495 = vmatpush1.bf16.msra.mxu0 0
    %5496 = vmatprep.mubr.bf16.mxu0 0
    %5497 = vmatmul.mubr.bf16.gmra.mrb[0].mxu0 %v5462
    %v5498 = vpop.f32.mrb[0].mxu0
    %v5499 = vadd.f32 0.0, %v5498
    %v5500 = vpop.f32.mrb[0].mxu0
    %v5501 = vpop.f32.mrb[0].mxu0
    %v5502 = vpop.f32.mrb[0].mxu0
    %5503 = vdwg.mxu0
    %v5504 = vmax.f32 %v5499, -3.0
    %v5505 = vmin.f32 %v5504, 3.0
    %5506 = vst.msk [vmem:[%s4131 + $0xa] sm:$0x3] %vm1663, %v5451
    %5508 = vrot.lane.b32.xlu0 %v5505, 32
    %v5509 = vpop.permute.xlu0 %5508
    %5511 = vst.msk [vmem:[%s4131 + $0x4] sm:$0x3] %vm1669, %v5509
    %v5512 = vpack.c.bf16 %v5451, %v5451
    %v5514 = vsel %vm564, %v5512, 0
    %5516 = vmatprep.subr.bf16.mxu0 %v3806
    %5517 = vmatpush1.bf16.msra.mxu0 %v3805
    %5518 = vmatprep.subr.bf16.mxu0 %v3808
    %5519 = vmatpush1.bf16.msra.mxu0 %v3807
    %5520 = vmatprep.subr.bf16.mxu0 0
    %5521 = vmatpush1.bf16.msra.mxu0 0
    %5522 = vmatprep.subr.bf16.mxu0 0
    %5523 = vmatpush1.bf16.msra.mxu0 0
    %5524 = vmatprep.subr.bf16.mxu0 0
    %5525 = vmatpush1.bf16.msra.mxu0 0
    %5526 = vmatprep.subr.bf16.mxu0 0
    %5527 = vmatpush1.bf16.msra.mxu0 0
    %5528 = vmatprep.subr.bf16.mxu0 0
    %5529 = vmatpush1.bf16.msra.mxu0 0
    %5530 = vmatprep.subr.bf16.mxu0 0
    %5531 = vmatpush1.bf16.msra.mxu0 0
    %5532 = vmatprep.subr.bf16.mxu0 0
    %5533 = vmatpush1.bf16.msra.mxu0 0
    %5534 = vmatprep.subr.bf16.mxu0 0
    %5535 = vmatpush1.bf16.msra.mxu0 0
    %5536 = vmatprep.subr.bf16.mxu0 0
    %5537 = vmatpush1.bf16.msra.mxu0 0
    %5538 = vmatprep.subr.bf16.mxu0 0
    %5539 = vmatpush1.bf16.msra.mxu0 0
    %5540 = vmatprep.subr.bf16.mxu0 0
    %5541 = vmatpush1.bf16.msra.mxu0 0
    %5542 = vmatprep.subr.bf16.mxu0 0
    %5543 = vmatpush1.bf16.msra.mxu0 0
    %5544 = vmatprep.subr.bf16.mxu0 0
    %5545 = vmatpush1.bf16.msra.mxu0 0
    %5546 = vmatprep.subr.bf16.mxu0 0
    %5547 = vmatpush1.bf16.msra.mxu0 0
    %5548 = vmatprep.mubr.bf16.mxu0 0
    %5549 = vmatmul.mubr.bf16.gmra.mrb[0].mxu0 %v5514
    %v5550 = vpop.f32.mrb[0].mxu0
    %v5551 = vadd.f32 0.0, %v5550
    %v5552 = vpop.f32.mrb[0].mxu0
    %v5553 = vadd.f32 0.0, %v5552
    %v5554 = vpop.f32.mrb[0].mxu0
    %v5555 = vpop.f32.mrb[0].mxu0
    %5556 = vdwg.mxu0
    %v5559 = vrot.slane %v5551, 4
    %v5560 = vrot.slane %v5553, 4
    %v5563 = vadd.f32 %v3707, %v5559
    %v5564 = vadd.f32 %v3709, %v5560
    %v5565 = vpack.c.bf16 %v5505, %v5505
    %v5567 = vsel %vm564, %v5565, 0
    %5569 = vmatprep.subr.bf16.mxu0 %v3869
    %5570 = vmatpush1.bf16.msra.mxu0 %v3868
    %5571 = vmatprep.subr.bf16.mxu0 %v3871
    %5572 = vmatpush1.bf16.msra.mxu0 %v3870
    %5573 = vmatprep.subr.bf16.mxu0 0
    %5574 = vmatpush1.bf16.msra.mxu0 0
    %5575 = vmatprep.subr.bf16.mxu0 0
    %5576 = vmatpush1.bf16.msra.mxu0 0
    %5577 = vmatprep.subr.bf16.mxu0 0
    %5578 = vmatpush1.bf16.msra.mxu0 0
    %5579 = vmatprep.subr.bf16.mxu0 0
    %5580 = vmatpush1.bf16.msra.mxu0 0
    %5581 = vmatprep.subr.bf16.mxu0 0
    %5582 = vmatpush1.bf16.msra.mxu0 0
    %5583 = vmatprep.subr.bf16.mxu0 0
    %5584 = vmatpush1.bf16.msra.mxu0 0
    %5585 = vmatprep.subr.bf16.mxu0 0
    %5586 = vmatpush1.bf16.msra.mxu0 0
    %5587 = vmatprep.subr.bf16.mxu0 0
    %5588 = vmatpush1.bf16.msra.mxu0 0
    %5589 = vmatprep.subr.bf16.mxu0 0
    %5590 = vmatpush1.bf16.msra.mxu0 0
    %5591 = vmatprep.subr.bf16.mxu0 0
    %5592 = vmatpush1.bf16.msra.mxu0 0
    %5593 = vmatprep.subr.bf16.mxu0 0
    %5594 = vmatpush1.bf16.msra.mxu0 0
    %5595 = vmatprep.subr.bf16.mxu0 0
    %5596 = vmatpush1.bf16.msra.mxu0 0
    %5597 = vmatprep.subr.bf16.mxu0 0
    %5598 = vmatpush1.bf16.msra.mxu0 0
    %5599 = vmatprep.subr.bf16.mxu0 0
    %5600 = vmatpush1.bf16.msra.mxu0 0
    %5601 = vmatprep.mubr.bf16.mxu0 0
    %5602 = vmatmul.mubr.bf16.gmra.mrb[0].mxu0 %v5567
    %v5603 = vpop.f32.mrb[0].mxu0
    %v5604 = vadd.f32 0.0, %v5603
    %v5605 = vpop.f32.mrb[0].mxu0
    %v5606 = vadd.f32 0.0, %v5605
    %v5607 = vpop.f32.mrb[0].mxu0
    %v5608 = vpop.f32.mrb[0].mxu0
    %5609 = vdwg.mxu0
    %v5612 = vrot.slane %v5604, 6
    %v5613 = vrot.slane %v5606, 6
    %v5616 = vadd.f32 %v3785, %v5612
    %v5617 = vadd.f32 %v3787, %v5613
    %v5618 = vxor.u32 %v5563, 2147483648
    %v5619 = vxor.u32 %v5564, 2147483648
    %v5620 = vmul.f32 %v5618, 1.442695
    %v5621 = vpow.pop %v5620
    %v5622 = vmul.f32 %v5619, 1.442695
    %v5623 = vpow.pop %v5622
    %v5624 = vadd.f32 %v5621, 1.0
    %v5625 = vadd.f32 %v5623, 1.0
    %v5626 = vrcp.pop %v5624
    %v5627 = vmul.f32 1.0, %v5626
    %v5628 = vrcp.pop %v5625
    %v5629 = vmul.f32 1.0, %v5628
    %v5630 = vxor.u32 %v5616, 2147483648
    %v5631 = vxor.u32 %v5617, 2147483648
    %v5632 = vmul.f32 %v5630, 1.442695
    %v5633 = vpow.pop %v5632
    %v5634 = vmul.f32 %v5631, 1.442695
    %v5635 = vpow.pop %v5634
    %v5636 = vadd.f32 %v5633, 1.0
    %v5637 = vadd.f32 %v5635, 1.0
    %v5638 = vrcp.pop %v5636
    %v5639 = vmul.f32 1.0, %v5638
    %v5640 = vrcp.pop %v5637
    %v5641 = vmul.f32 1.0, %v5640
    %v5642 = vtanh.pop %v5564
    %v5643 = vtanh.pop %v5617
    %v5645 = vrot.slane %v5381, 6
    %v5647 = vmul.f32 %v5627, %v5645
    %5649 = vrot.lane.b32.xlu0 %v5642, 64
    %v5650 = vpop.permute.xlu0 %5649
    %v5652 = vmul.f32 %v5627, %v5650
    %5654 = vrot.lane.b32.xlu0 %v5652, 64
    %v5655 = vpop.permute.xlu0 %5654
    %v5657 = vadd.f32 %v5647, %v5655
    %v5658 = vmax.f32 %v5657, -3.0
    %v5659 = vmin.f32 %v5658, 3.0
    %v5661 = vrot.slane %v5397, 2
    %v5663 = vmul.f32 %v5639, %v5661
    %5665 = vrot.lane.b32.xlu0 %v5643, 64
    %v5666 = vpop.permute.xlu0 %5665
    %v5668 = vmul.f32 %v5639, %v5666
    %5670 = vrot.lane.b32.xlu0 %v5668, 64
    %v5671 = vpop.permute.xlu0 %5670
    %v5673 = vadd.f32 %v5663, %v5671
    %v5674 = vmax.f32 %v5673, -3.0
    %v5675 = vmin.f32 %v5674, 3.0
    %v5676 = vtanh.pop %v5659
    %5678 = vrot.lane.b32.xlu0 %v5676, 64
    %v5679 = vpop.permute.xlu0 %5678
    %v5681 = vmul.f32 %v5629, %v5679
    %v5682 = vpack.c.bf16 %v5681, %v5681
    %v5684 = vrot.slane %v5682, 2
    %v5686 = vsel %vm193, %v5684, 0
    %5688 = vmatprep.subr.bf16.mxu0 0
    %5689 = vmatpush1.bf16.msra.mxu0 %v4000
    %5690 = vmatprep.subr.bf16.mxu0 0
    %5691 = vmatpush1.bf16.msra.mxu0 %v4001
    %5692 = vmatprep.subr.bf16.mxu0 0
    %5693 = vmatpush1.bf16.msra.mxu0 %v4002
    %5694 = vmatprep.subr.bf16.mxu0 0
    %5695 = vmatpush1.bf16.msra.mxu0 %v4003
    %5696 = vmatprep.subr.bf16.mxu0 0
    %5697 = vmatpush1.bf16.msra.mxu0 0
    %5698 = vmatprep.subr.bf16.mxu0 0
    %5699 = vmatpush1.bf16.msra.mxu0 0
    %5700 = vmatprep.subr.bf16.mxu0 0
    %5701 = vmatpush1.bf16.msra.mxu0 0
    %5702 = vmatprep.subr.bf16.mxu0 0
    %5703 = vmatpush1.bf16.msra.mxu0 0
    %5704 = vmatprep.subr.bf16.mxu0 0
    %5705 = vmatpush1.bf16.msra.mxu0 0
    %5706 = vmatprep.subr.bf16.mxu0 0
    %5707 = vmatpush1.bf16.msra.mxu0 0
    %5708 = vmatprep.subr.bf16.mxu0 0
    %5709 = vmatpush1.bf16.msra.mxu0 0
    %5710 = vmatprep.subr.bf16.mxu0 0
    %5711 = vmatpush1.bf16.msra.mxu0 0
    %5712 = vmatprep.subr.bf16.mxu0 0
    %5713 = vmatpush1.bf16.msra.mxu0 0
    %5714 = vmatprep.subr.bf16.mxu0 0
    %5715 = vmatpush1.bf16.msra.mxu0 0
    %5716 = vmatprep.subr.bf16.mxu0 0
    %5717 = vmatpush1.bf16.msra.mxu0 0
    %5718 = vmatprep.subr.bf16.mxu0 0
    %5719 = vmatpush1.bf16.msra.mxu0 0
    %5720 = vmatprep.mubr.bf16.mxu0 0
    %5721 = vmatmul.mubr.bf16.gmra.mrb[0].mxu0 %v5686
    %v5722 = vpop.f32.mrb[0].mxu0
    %v5723 = vadd.f32 0.0, %v5722
    %v5724 = vpop.f32.mrb[0].mxu0
    %v5725 = vpop.f32.mrb[0].mxu0
    %v5726 = vpop.f32.mrb[0].mxu0
    %5727 = vdwg.mxu0
    %v5728 = vmax.f32 %v5723, -3.0
    %v5729 = vmin.f32 %v5728, 3.0
    %v5730 = vtanh.pop %v5675
    %5732 = vrot.lane.b32.xlu0 %v5730, 64
    %v5733 = vpop.permute.xlu0 %5732
    %v5735 = vmul.f32 %v5641, %v5733
    %v5736 = vpack.c.bf16 %v5735, %v5735
    %v5738 = vrot.slane %v5736, 1
    %v5740 = vsel %vm193, %v5738, 0
    %5742 = vmatprep.subr.bf16.mxu0 0
    %5743 = vmatpush1.bf16.msra.mxu0 %v4078
    %5744 = vmatprep.subr.bf16.mxu0 0
    %5745 = vmatpush1.bf16.msra.mxu0 %v4079
    %5746 = vmatprep.subr.bf16.mxu0 0
    %5747 = vmatpush1.bf16.msra.mxu0 %v4080
    %5748 = vmatprep.subr.bf16.mxu0 0
    %5749 = vmatpush1.bf16.msra.mxu0 %v4081
    %5750 = vmatprep.subr.bf16.mxu0 0
    %5751 = vmatpush1.bf16.msra.mxu0 0
    %5752 = vmatprep.subr.bf16.mxu0 0
    %5753 = vmatpush1.bf16.msra.mxu0 0
    %5754 = vmatprep.subr.bf16.mxu0 0
    %5755 = vmatpush1.bf16.msra.mxu0 0
    %5756 = vmatprep.subr.bf16.mxu0 0
    %5757 = vmatpush1.bf16.msra.mxu0 0
    %5758 = vmatprep.subr.bf16.mxu0 0
    %5759 = vmatpush1.bf16.msra.mxu0 0
    %5760 = vmatprep.subr.bf16.mxu0 0
    %5761 = vmatpush1.bf16.msra.mxu0 0
    %5762 = vmatprep.subr.bf16.mxu0 0
    %5763 = vmatpush1.bf16.msra.mxu0 0
    %5764 = vmatprep.subr.bf16.mxu0 0
    %5765 = vmatpush1.bf16.msra.mxu0 0
    %5766 = vmatprep.subr.bf16.mxu0 0
    %5767 = vmatpush1.bf16.msra.mxu0 0
    %5768 = vmatprep.subr.bf16.mxu0 0
    %5769 = vmatpush1.bf16.msra.mxu0 0
    %5770 = vmatprep.subr.bf16.mxu0 0
    %5771 = vmatpush1.bf16.msra.mxu0 0
    %5772 = vmatprep.subr.bf16.mxu0 0
    %5773 = vmatpush1.bf16.msra.mxu0 0
    %5774 = vmatprep.mubr.bf16.mxu0 0
    %5775 = vmatmul.mubr.bf16.gmra.mrb[0].mxu0 %v5740
    %v5776 = vpop.f32.mrb[0].mxu0
    %v5777 = vadd.f32 0.0, %v5776
    %v5778 = vpop.f32.mrb[0].mxu0
    %v5779 = vpop.f32.mrb[0].mxu0
    %v5780 = vpop.f32.mrb[0].mxu0
    %5781 = vdwg.mxu0
    %v5782 = vmax.f32 %v5777, -3.0
    %v5783 = vmin.f32 %v5782, 3.0
    %5784 = vst.msk [vmem:[%s4131 + $0xc] sm:$0x3] %vm1663, %v5729
    %5786 = vrot.lane.b32.xlu0 %v5783, 32
    %v5787 = vpop.permute.xlu0 %5786
    %5789 = vst.msk [vmem:[%s4131 + $0x2] sm:$0x3] %vm1669, %v5787
    %v5790 = vpack.c.bf16 %v5729, %v5729
    %v5792 = vsel %vm564, %v5790, 0
    %5794 = vmatprep.subr.bf16.mxu0 %v3806
    %5795 = vmatpush1.bf16.msra.mxu0 %v3805
    %5796 = vmatprep.subr.bf16.mxu0 %v3808
    %5797 = vmatpush1.bf16.msra.mxu0 %v3807
    %5798 = vmatprep.subr.bf16.mxu0 0
    %5799 = vmatpush1.bf16.msra.mxu0 0
    %5800 = vmatprep.subr.bf16.mxu0 0
    %5801 = vmatpush1.bf16.msra.mxu0 0
    %5802 = vmatprep.subr.bf16.mxu0 0
    %5803 = vmatpush1.bf16.msra.mxu0 0
    %5804 = vmatprep.subr.bf16.mxu0 0
    %5805 = vmatpush1.bf16.msra.mxu0 0
    %5806 = vmatprep.subr.bf16.mxu0 0
    %5807 = vmatpush1.bf16.msra.mxu0 0
    %5808 = vmatprep.subr.bf16.mxu0 0
    %5809 = vmatpush1.bf16.msra.mxu0 0
    %5810 = vmatprep.subr.bf16.mxu0 0
    %5811 = vmatpush1.bf16.msra.mxu0 0
    %5812 = vmatprep.subr.bf16.mxu0 0
    %5813 = vmatpush1.bf16.msra.mxu0 0
    %5814 = vmatprep.subr.bf16.mxu0 0
    %5815 = vmatpush1.bf16.msra.mxu0 0
    %5816 = vmatprep.subr.bf16.mxu0 0
    %5817 = vmatpush1.bf16.msra.mxu0 0
    %5818 = vmatprep.subr.bf16.mxu0 0
    %5819 = vmatpush1.bf16.msra.mxu0 0
    %5820 = vmatprep.subr.bf16.mxu0 0
    %5821 = vmatpush1.bf16.msra.mxu0 0
    %5822 = vmatprep.subr.bf16.mxu0 0
    %5823 = vmatpush1.bf16.msra.mxu0 0
    %5824 = vmatprep.subr.bf16.mxu0 0
    %5825 = vmatpush1.bf16.msra.mxu0 0
    %5826 = vmatprep.mubr.bf16.mxu0 0
    %5827 = vmatmul.mubr.bf16.gmra.mrb[0].mxu0 %v5792
    %v5828 = vpop.f32.mrb[0].mxu0
    %v5829 = vadd.f32 0.0, %v5828
    %v5830 = vpop.f32.mrb[0].mxu0
    %v5831 = vadd.f32 0.0, %v5830
    %v5832 = vpop.f32.mrb[0].mxu0
    %v5833 = vpop.f32.mrb[0].mxu0
    %5834 = vdwg.mxu0
    %v5837 = vrot.slane %v5829, 2
    %v5838 = vrot.slane %v5831, 2
    %v5841 = vadd.f32 %v3707, %v5837
    %v5842 = vadd.f32 %v3709, %v5838
    %v5843 = vpack.c.bf16 %v5783, %v5783
    %v5845 = vsel %vm564, %v5843, 0
    %5847 = vmatprep.subr.bf16.mxu0 %v3869
    %5848 = vmatpush1.bf16.msra.mxu0 %v3868
    %5849 = vmatprep.subr.bf16.mxu0 %v3871
    %5850 = vmatpush1.bf16.msra.mxu0 %v3870
    %5851 = vmatprep.subr.bf16.mxu0 0
    %5852 = vmatpush1.bf16.msra.mxu0 0
    %5853 = vmatprep.subr.bf16.mxu0 0
    %5854 = vmatpush1.bf16.msra.mxu0 0
    %5855 = vmatprep.subr.bf16.mxu0 0
    %5856 = vmatpush1.bf16.msra.mxu0 0
    %5857 = vmatprep.subr.bf16.mxu0 0
    %5858 = vmatpush1.bf16.msra.mxu0 0
    %5859 = vmatprep.subr.bf16.mxu0 0
    %5860 = vmatpush1.bf16.msra.mxu0 0
    %5861 = vmatprep.subr.bf16.mxu0 0
    %5862 = vmatpush1.bf16.msra.mxu0 0
    %5863 = vmatprep.subr.bf16.mxu0 0
    %5864 = vmatpush1.bf16.msra.mxu0 0
    %5865 = vmatprep.subr.bf16.mxu0 0
    %5866 = vmatpush1.bf16.msra.mxu0 0
    %5867 = vmatprep.subr.bf16.mxu0 0
    %5868 = vmatpush1.bf16.msra.mxu0 0
    %5869 = vmatprep.subr.bf16.mxu0 0
    %5870 = vmatpush1.bf16.msra.mxu0 0
    %5871 = vmatprep.subr.bf16.mxu0 0
    %5872 = vmatpush1.bf16.msra.mxu0 0
    %5873 = vmatprep.subr.bf16.mxu0 0
    %5874 = vmatpush1.bf16.msra.mxu0 0
    %5875 = vmatprep.subr.bf16.mxu0 0
    %5876 = vmatpush1.bf16.msra.mxu0 0
    %5877 = vmatprep.subr.bf16.mxu0 0
    %5878 = vmatpush1.bf16.msra.mxu0 0
    %5879 = vmatprep.mubr.bf16.mxu0 0
    %5880 = vmatmul.mubr.bf16.gmra.mrb[0].mxu0 %v5845
    %v5881 = vpop.f32.mrb[0].mxu0
    %v5882 = vadd.f32 0.0, %v5881
    %v5883 = vpop.f32.mrb[0].mxu0
    %v5884 = vadd.f32 0.0, %v5883
    %v5885 = vpop.f32.mrb[0].mxu0
    %v5886 = vpop.f32.mrb[0].mxu0
    %5887 = vdwg.mxu0
    %v5888 = vadd.f32 %v3785, %v5882
    %v5889 = vadd.f32 %v3787, %v5884
    %v5890 = vxor.u32 %v5841, 2147483648
    %v5891 = vxor.u32 %v5842, 2147483648
    %v5892 = vmul.f32 %v5890, 1.442695
    %v5893 = vpow.pop %v5892
    %v5894 = vmul.f32 %v5891, 1.442695
    %v5895 = vpow.pop %v5894
    %v5896 = vadd.f32 %v5893, 1.0
    %v5897 = vadd.f32 %v5895, 1.0
    %v5898 = vrcp.pop %v5896
    %v5899 = vmul.f32 1.0, %v5898
    %v5900 = vrcp.pop %v5897
    %v5901 = vmul.f32 1.0, %v5900
    %v5902 = vxor.u32 %v5888, 2147483648
    %v5903 = vxor.u32 %v5889, 2147483648
    %v5904 = vmul.f32 %v5902, 1.442695
    %v5905 = vpow.pop %v5904
    %v5906 = vmul.f32 %v5903, 1.442695
    %v5907 = vpow.pop %v5906
    %v5908 = vadd.f32 %v5905, 1.0
    %v5909 = vadd.f32 %v5907, 1.0
    %v5910 = vrcp.pop %v5908
    %v5911 = vmul.f32 1.0, %v5910
    %v5912 = vrcp.pop %v5909
    %v5913 = vmul.f32 1.0, %v5912
    %v5914 = vtanh.pop %v5842
    %v5915 = vtanh.pop %v5889
    %v5917 = vrot.slane %v5659, 6
    %v5919 = vmul.f32 %v5899, %v5917
    %5921 = vrot.lane.b32.xlu0 %v5914, 64
    %v5922 = vpop.permute.xlu0 %5921
    %v5924 = vmul.f32 %v5899, %v5922
    %5926 = vrot.lane.b32.xlu0 %v5924, 64
    %v5927 = vpop.permute.xlu0 %5926
    %v5929 = vadd.f32 %v5919, %v5927
    %v5930 = vmax.f32 %v5929, -3.0
    %v5931 = vmin.f32 %v5930, 3.0
    %v5933 = vrot.slane %v5675, 2
    %v5935 = vmul.f32 %v5911, %v5933
    %5937 = vrot.lane.b32.xlu0 %v5915, 64
    %v5938 = vpop.permute.xlu0 %5937
    %v5940 = vmul.f32 %v5911, %v5938
    %5942 = vrot.lane.b32.xlu0 %v5940, 64
    %v5943 = vpop.permute.xlu0 %5942
    %v5945 = vadd.f32 %v5935, %v5943
    %v5946 = vmax.f32 %v5945, -3.0
    %v5947 = vmin.f32 %v5946, 3.0
    %v5948 = vtanh.pop %v5931
    %5950 = vrot.lane.b32.xlu0 %v5948, 64
    %v5951 = vpop.permute.xlu0 %5950
    %v5953 = vmul.f32 %v5901, %v5951
    %v5954 = vpack.c.bf16 %v5953, %v5953
    %v5956 = vrot.slane %v5954, 3
    %v5958 = vsel %vm193, %v5956, 0
    %5960 = vmatprep.subr.bf16.mxu0 0
    %5961 = vmatpush1.bf16.msra.mxu0 %v4000
    %5962 = vmatprep.subr.bf16.mxu0 0
    %5963 = vmatpush1.bf16.msra.mxu0 %v4001
    %5964 = vmatprep.subr.bf16.mxu0 0
    %5965 = vmatpush1.bf16.msra.mxu0 %v4002
    %5966 = vmatprep.subr.bf16.mxu0 0
    %5967 = vmatpush1.bf16.msra.mxu0 %v4003
    %5968 = vmatprep.subr.bf16.mxu0 0
    %5969 = vmatpush1.bf16.msra.mxu0 0
    %5970 = vmatprep.subr.bf16.mxu0 0
    %5971 = vmatpush1.bf16.msra.mxu0 0
    %5972 = vmatprep.subr.bf16.mxu0 0
    %5973 = vmatpush1.bf16.msra.mxu0 0
    %5974 = vmatprep.subr.bf16.mxu0 0
    %5975 = vmatpush1.bf16.msra.mxu0 0
    %5976 = vmatprep.subr.bf16.mxu0 0
    %5977 = vmatpush1.bf16.msra.mxu0 0
    %5978 = vmatprep.subr.bf16.mxu0 0
    %5979 = vmatpush1.bf16.msra.mxu0 0
    %5980 = vmatprep.subr.bf16.mxu0 0
    %5981 = vmatpush1.bf16.msra.mxu0 0
    %5982 = vmatprep.subr.bf16.mxu0 0
    %5983 = vmatpush1.bf16.msra.mxu0 0
    %5984 = vmatprep.subr.bf16.mxu0 0
    %5985 = vmatpush1.bf16.msra.mxu0 0
    %5986 = vmatprep.subr.bf16.mxu0 0
    %5987 = vmatpush1.bf16.msra.mxu0 0
    %5988 = vmatprep.subr.bf16.mxu0 0
    %5989 = vmatpush1.bf16.msra.mxu0 0
    %5990 = vmatprep.subr.bf16.mxu0 0
    %5991 = vmatpush1.bf16.msra.mxu0 0
    %5992 = vmatprep.mubr.bf16.mxu0 0
    %5993 = vmatmul.mubr.bf16.gmra.mrb[0].mxu0 %v5958
    %v5994 = vpop.f32.mrb[0].mxu0
    %v5995 = vadd.f32 0.0, %v5994
    %v5996 = vpop.f32.mrb[0].mxu0
    %v5997 = vpop.f32.mrb[0].mxu0
    %v5998 = vpop.f32.mrb[0].mxu0
    %5999 = vdwg.mxu0
    %v6000 = vmax.f32 %v5995, -3.0
    %v6001 = vmin.f32 %v6000, 3.0
    %v6002 = vtanh.pop %v5947
    %6004 = vrot.lane.b32.xlu0 %v6002, 64
    %v6005 = vpop.permute.xlu0 %6004
    %v6007 = vmul.f32 %v5913, %v6005
    %v6008 = vpack.c.bf16 %v6007, %v6007
    %v6010 = vsel %vm193, %v6008, 0
    %6012 = vmatprep.subr.bf16.mxu0 0
    %6013 = vmatpush1.bf16.msra.mxu0 %v4078
    %6014 = vmatprep.subr.bf16.mxu0 0
    %6015 = vmatpush1.bf16.msra.mxu0 %v4079
    %6016 = vmatprep.subr.bf16.mxu0 0
    %6017 = vmatpush1.bf16.msra.mxu0 %v4080
    %6018 = vmatprep.subr.bf16.mxu0 0
    %6019 = vmatpush1.bf16.msra.mxu0 %v4081
    %6020 = vmatprep.subr.bf16.mxu0 0
    %6021 = vmatpush1.bf16.msra.mxu0 0
    %6022 = vmatprep.subr.bf16.mxu0 0
    %6023 = vmatpush1.bf16.msra.mxu0 0
    %6024 = vmatprep.subr.bf16.mxu0 0
    %6025 = vmatpush1.bf16.msra.mxu0 0
    %6026 = vmatprep.subr.bf16.mxu0 0
    %6027 = vmatpush1.bf16.msra.mxu0 0
    %6028 = vmatprep.subr.bf16.mxu0 0
    %6029 = vmatpush1.bf16.msra.mxu0 0
    %6030 = vmatprep.subr.bf16.mxu0 0
    %6031 = vmatpush1.bf16.msra.mxu0 0
    %6032 = vmatprep.subr.bf16.mxu0 0
    %6033 = vmatpush1.bf16.msra.mxu0 0
    %6034 = vmatprep.subr.bf16.mxu0 0
    %6035 = vmatpush1.bf16.msra.mxu0 0
    %6036 = vmatprep.subr.bf16.mxu0 0
    %6037 = vmatpush1.bf16.msra.mxu0 0
    %6038 = vmatprep.subr.bf16.mxu0 0
    %6039 = vmatpush1.bf16.msra.mxu0 0
    %6040 = vmatprep.subr.bf16.mxu0 0
    %6041 = vmatpush1.bf16.msra.mxu0 0
    %6042 = vmatprep.subr.bf16.mxu0 0
    %6043 = vmatpush1.bf16.msra.mxu0 0
    %6044 = vmatprep.mubr.bf16.mxu0 0
    %6045 = vmatmul.mubr.bf16.gmra.mrb[0].mxu0 %v6010
    %v6046 = vpop.f32.mrb[0].mxu0
    %v6047 = vadd.f32 0.0, %v6046
    %v6048 = vpop.f32.mrb[0].mxu0
    %v6049 = vpop.f32.mrb[0].mxu0
    %v6050 = vpop.f32.mrb[0].mxu0
    %6051 = vdwg.mxu0
    %v6052 = vmax.f32 %v6047, -3.0
    %v6053 = vmin.f32 %v6052, 3.0
    %6054 = vst.msk [vmem:[%s4131 + $0xe] sm:$0x3] %vm1663, %v6001
    %6056 = vrot.lane.b32.xlu0 %v6053, 32
    %v6057 = vpop.permute.xlu0 %6056
    %6059 = vst.msk [vmem:[%s4131] sm:$0x3] %vm1669, %v6057
    %s6060 = sld [smem:[#allocation3]]
    %s6061 = sld [smem:[#allocation3 + $0x1]]
    %s6062 = sld [smem:[#allocation3 + $0x2]]
    %s6063 = sld [smem:[#allocation3 + $0x3]]
    %v6064 = vld [vmem:[#allocation2] sm:$0xff]
    %v6065 = vld [vmem:[#allocation2 + $0x8] sm:$0xff]
    %v6066 = vld [vmem:[%s1662] sm:$0xff]
    %v6067 = vld [vmem:[%s1662 + $0x8] sm:$0xff]
    %v6068 = vld [vmem:[%s4131] sm:$0xff]
    %v6069 = vld [vmem:[%s4131 + $0x8] sm:$0xff]
    %v6070 = vstv %s6060
    %v6071 = vmul.f32 %v6070, %v6064
    %v6072 = vmul.f32 %v6070, %v6065
    %v6073 = vstv %s6061
    %v6074 = vmul.f32 %v6073, %v6066
    %v6075 = vmul.f32 %v6073, %v6067
    %v6076 = vadd.f32 %v6071, %v6074
    %v6077 = vadd.f32 %v6072, %v6075
    %v6078 = vadd.f32 %v6068, %v6066
    %v6079 = vadd.f32 %v6069, %v6067
    %v6080 = vstv %s6062
    %v6081 = vmul.f32 %v6080, %v6078
    %v6082 = vmul.f32 %v6080, %v6079
    %v6083 = vadd.f32 %v6076, %v6081
    %v6084 = vadd.f32 %v6077, %v6082
    %v6085 = vstv %s6063
    %v6086 = vmul.f32 %v6085, %v6083
    %v6087 = vmul.f32 %v6085, %v6084
    %6088 = vst.msk [vmem:[%s12] sm:$0xff] %vm193, %v6086
    %6089 = vst.msk [vmem:[%s12 + $0x8] sm:$0xff] %vm193, %v6087
    // Predicated region
    $region54: #{elmo_embedding_forward.1} parent=1 // pred_check
      _
    $region55: #{elmo_embedding_forward.1} parent=1 // pred_check_branch
      %6091 = sbr.rel (0) target = $region57
    $region56: #{elmo_embedding_forward.1} parent=1 // pred_region
      _
    $region57: #{elmo_embedding_forward.1} parent=1 // pred_fallthru
      _
    // Predicated region
    $region58: #{elmo_embedding_forward.1} parent=1 // pred_check
      _
    $region59: #{elmo_embedding_forward.1} parent=1 // pred_check_branch
      %6093 = sbr.rel (0) target = $region61
    $region60: #{elmo_embedding_forward.1} parent=1 // pred_region
      _
    $region61: #{elmo_embedding_forward.1} parent=1 // pred_fallthru
      _
    %6094 = vsyncpa [#allocation4], 1

</llo_original>
